<compile_context>
chip_gen: v5e
topology: v5e:2x2
jax: 0.10.0
libtpu: 0.0.40
codegen_flags: <defaults>
</compile_context>

<pallas_src>
import re
import numpy as np

import jax
import jax.numpy as jnp
from jax import lax
from jax.experimental import pallas as pl
from jax.experimental.pallas import tpu as pltpu

TAG_PAD = 128          # tag dim padded to one full lane tile
NEG = -1.0e30          # finite "-inf" so that NEG * 0.0 == 0.0 (no NaNs)

# ----------------------------------------------------------------------------
# BIO constants / host-side span utilities (data-dependent, stays in Python)
# ----------------------------------------------------------------------------
C_BEGIN, C_INSIDE, C_OUTSIDE = "B-", "I-", "O"


def strip_BIO_tok(x):
    return re.sub(r"(^B-)|(^I-)", "", x)


def is_begin(x):
    return bool(re.match(r"^B-", x))


def is_inside(x):
    return bool(re.match(r"^I-", x))


def is_outside(x):
    return x == C_OUTSIDE


def BIO_to_span_seq(seq):
    """BIO sequence -> (types, [start, end]) with INCLUSIVE end indices
    (matches the `end_exclusive=False` call site of the reference)."""
    # TODO(synk): reference BIO_to_span_seq signature is inconsistent with its
    # call site (end_exclusive kwarg); inclusive-end semantics are used here.
    types_, indices = [], []
    active, start, end = None, -1, -1
    for i, x in enumerate(seq):
        tag = strip_BIO_tok(x)
        if is_outside(x):
            if active is not None:
                types_.append(active)
                indices.append([start, end])
            active = None
        elif is_begin(x):
            if active is not None:
                types_.append(active)
                indices.append([start, end])
            active, start, end = tag, i, i
        elif is_inside(x) and tag == active:
            end = i
        else:
            if active is not None:
                types_.append(active)
                indices.append([start, end])
            active, start, end = tag, i, i
    if active is not None:
        types_.append(active)
        indices.append([start, end])
    return types_, indices


def seq_tags_to_spans(y, map_fn):
    count_, labels, indices_tmp = [], [], []
    for seq in y:
        if any(seq):
            labs_str = [map_fn(s) for s in seq]
            labs, idx = BIO_to_span_seq(labs_str)
            cnt = len(labs)
        else:
            labs, idx, cnt = [], [], 0
        labels.append(labs)
        indices_tmp.append(idx)
        count_.append(cnt)
    batch_size = len(y)
    max_span_count = max(max(count_), 1)
    indices = np.zeros((batch_size, max_span_count, 2), dtype=np.int32)
    mask = np.zeros((batch_size, max_span_count), dtype=np.int32)
    assert batch_size > 0
    for i in range(batch_size):
        c = count_[i]
        if c > 0:
            indices[i, :c, :] = np.array(indices_tmp[i])
            mask[i, :c] = 1
    return labels, indices, mask


# ----------------------------------------------------------------------------
# Kernel 1 (fused): projection + CRF (forward algorithm + Viterbi), batched
# over the full batch, grid over events.
# ----------------------------------------------------------------------------
def _proj_crf_kernel(x_ref, w_ref, b_ref, trans_ref, start_ref, end_ref,
                     tags_ref, mask_ref, ll_ref, vtag_ref, vscore_ref):
    x = x_ref[...]                         # (B, S, E) f32
    w = w_ref[0]                           # (E, Tp)   f32 (padded cols = 0)
    bvec = b_ref[0]                        # (1, Tp)   f32 (padded = 0)
    trans = trans_ref[0]                   # (Tp, Tp)  f32 (padded = NEG)
    start_row = start_ref[0]               # (1, Tp)   f32 (padded = NEG)
    end_row = end_ref[0]                   # (1, Tp)   f32 (padded = NEG)
    tags = tags_ref[0]                     # (B, S)    i32 (gold tags)
    msk = mask_ref[...]                    # (B, S)    i32
    B, S, E = x.shape
    Tp = w.shape[1]

    maskf = msk.astype(jnp.float32)
    L = jnp.sum(msk, axis=1, keepdims=True)          # (B, 1) valid lengths
    # TODO(synk): masks are assumed left-aligned with L >= 1 (as in allennlp).

    # -------- hoisted iotas (never re-materialized inside loops) ----------
    iota_prev = lax.broadcasted_iota(jnp.int32, (B, Tp, Tp), 1)
    lane_T = lax.broadcasted_iota(jnp.int32, (B, Tp), 1)
    lane_S = lax.broadcasted_iota(jnp.int32, (B, S), 1)
    tag_iota = lax.broadcasted_iota(jnp.int32, (B, S, Tp), 2)

    # -------- projection: logits = X @ W + b (MXU, bf16 in / f32 acc) ------
    x2 = x.reshape(B * S, E).astype(jnp.bfloat16)
    wb = w.astype(jnp.bfloat16)
    logits = (jnp.dot(x2, wb, preferred_element_type=jnp.float32) + bvec
              ).reshape(B, S, Tp)                    # padded lanes are exactly 0

    # -------- numerator: score of the gold tag path -----------------------
    onehot = (tag_iota == tags[:, :, None]).astype(jnp.float32)      # (B,S,Tp)
    emit = jnp.sum(jnp.sum(logits * onehot, axis=2) * maskf,
                   axis=1, keepdims=True)                            # (B,1)
    start_term = jnp.sum(start_row * onehot[:, 0, :],
                         axis=1, keepdims=True)                      # (B,1)
    # one reshaped matmul gathers the trans row of every gold tag at once
    trans_rows = jnp.dot(onehot.reshape(B * S, Tp), trans,
                         preferred_element_type=jnp.float32
                         ).reshape(B, S, Tp)                         # (B,S,Tp)
    trans_term = jnp.sum(
        jnp.sum(trans_rows[:, :-1, :] * onehot[:, 1:, :], axis=2) * maskf[:, 1:],
        axis=1, keepdims=True)                                       # (B,1)
    last_tag = jnp.sum(jnp.where(lane_S == (L - 1), tags, 0),
                       axis=1, keepdims=True)                        # (B,1)
    end_term = jnp.sum(jnp.where(lane_T == last_tag, end_row, 0.0),
                       axis=1, keepdims=True)                        # (B,1)
    numerator = start_term + emit + trans_term + end_term            # (B,1)

    # -------- fused forward-algorithm + Viterbi DP (static unroll over S) --
    lgt0 = logits[:, 0, :]                    # (B, Tp) static sublane slice
    alpha = start_row + lgt0                  # (B, Tp) log-partition carry
    v = alpha                                 # (B, Tp) Viterbi carry
    bp_rows = [None] * S                      # back-pointer rows (B, Tp)

    for t in range(1, S):                     # S is static -> fully unrolled
        logit_t = logits[:, t, :]             # (B, Tp)
        # forward algorithm (exp/log go to the EUP; reductions to the XLU)
        a_inner = alpha[:, :, None] + trans                           # (B,Tp,Tp)
        mx = jnp.max(a_inner, axis=1)                                 # (B,Tp)
        lse = mx + jnp.log(jnp.sum(jnp.exp(a_inner - mx[:, None, :]), axis=1))
        alpha_new = lse + logit_t
        # Viterbi (max/argmax overlap in the same bundles as exp/log above)
        s_inner = v[:, :, None] + trans
        best = jnp.max(s_inner, axis=1)                               # (B,Tp)
        bp_rows[t] = jnp.min(
            jnp.where(s_inner == best[:, None, :], iota_prev, Tp),
            axis=1).astype(jnp.int32)                                 # (B,Tp)
        v_new = best + logit_t
        # per-batch masking (update only while t < L_b)
        active = t < L                                                # (B,1)
        alpha = jnp.where(active, alpha_new, alpha)
        v = jnp.where(active, v_new, v)

    # -------- log partition and log-likelihood -----------------------------
    stops = alpha + end_row
    zmax = jnp.max(stops, axis=1, keepdims=True)
    logZ = zmax + jnp.log(jnp.sum(jnp.exp(stops - zmax),
                                  axis=1, keepdims=True))             # (B,1)
    ll_ref[...] = (numerator - logZ).reshape(1, B, 1)

    # -------- Viterbi finalize + backtrack ---------------------------------
    final = v + end_row
    best_score = jnp.max(final, axis=1, keepdims=True)                # (B,1)
    best_last = jnp.min(jnp.where(final == best_score, lane_T, Tp),
                        axis=1, keepdims=True).astype(jnp.int32)      # (B,1)
    trow = jnp.where(lane_S == (L - 1), best_last, 0).astype(jnp.int32)
    cur = best_last
    for t in range(S - 2, -1, -1):            # static unroll
        row = bp_rows[t + 1]                                          # (B,Tp)
        prev = jnp.sum(jnp.where(lane_T == cur, row, 0),
                       axis=1, keepdims=True).astype(jnp.int32)       # (B,1)
        active = t <= (L - 2)                                         # (B,1)
        cur = jnp.where(active, prev, cur)
        trow = jnp.where(jnp.logical_and(active, lane_S == t), prev, trow)

    vtag_ref[...] = trow.reshape(1, B, S)
    vscore_ref[...] = best_score.reshape(1, B, 1)


def proj_crf_pallas(X, W_all, b_all, trans_all, start_all, end_all,
                    tags_all, mask):
    B, S, E = X.shape
    NE, _, Tp = W_all.shape
    out_shape = (
        jax.ShapeDtypeStruct((NE, B, 1), jnp.float32),   # log-likelihood
        jax.ShapeDtypeStruct((NE, B, S), jnp.int32),     # viterbi tags (padded)
        jax.ShapeDtypeStruct((NE, B, 1), jnp.float32),   # viterbi score
    )
    return pl.pallas_call(
        _proj_crf_kernel,
        out_shape=out_shape,
        grid=(NE,),
        in_specs=[
            pl.BlockSpec((B, S, E), lambda i: (0, 0, 0)),     # X (shared)
            pl.BlockSpec((1, E, Tp), lambda i: (i, 0, 0)),    # W per event
            pl.BlockSpec((1, 1, Tp), lambda i: (i, 0, 0)),    # b
            pl.BlockSpec((1, Tp, Tp), lambda i: (i, 0, 0)),   # trans
            pl.BlockSpec((1, 1, Tp), lambda i: (i, 0, 0)),    # start
            pl.BlockSpec((1, 1, Tp), lambda i: (i, 0, 0)),    # end
            pl.BlockSpec((1, B, S), lambda i: (i, 0, 0)),     # gold tags
            pl.BlockSpec((B, S), lambda i: (0, 0)),           # mask (shared)
        ],
        out_specs=(
            pl.BlockSpec((1, B, 1), lambda i: (i, 0, 0)),
            pl.BlockSpec((1, B, S), lambda i: (i, 0, 0)),
            pl.BlockSpec((1, B, 1), lambda i: (i, 0, 0)),
        ),
        compiler_params=pltpu.CompilerParams(
            dimension_semantics=("parallel",)),
    )(X, W_all, b_all, trans_all, start_all, end_all, tags_all, mask)


# ----------------------------------------------------------------------------
# Kernel 2: EndpointSpanExtractor, combination 'x,y,x*y', all events at once
# ----------------------------------------------------------------------------
def _span_kernel(x_ref, se_ref, m_ref, o_ref):
    x = x_ref[0]                              # (S, E) f32
    st_en = se_ref[0, 0]                      # (2M, 1) i32: [starts; ends]
    sm = m_ref[0, 0].astype(jnp.float32)      # (M, 1)
    S, E = x.shape
    M2 = st_en.shape[0]
    M = M2 // 2
    iota_s = lax.broadcasted_iota(jnp.int32, (M2, S), 1)
    oh = (iota_s == st_en).astype(jnp.float32)                  # (2M, S)
    g = jnp.dot(oh, x, preferred_element_type=jnp.float32)      # ONE MXU gather
    se = g[:M]                                                  # (M, E) start
    ee = g[M:]                                                  # (M, E) end
    comb = jnp.concatenate([se, ee, se * ee], axis=0)           # (3M, E) sublane
    maskc = jnp.concatenate([sm, sm, sm], axis=0)               # (3M, 1)
    o_ref[...] = (comb * maskc).reshape(1, 1, 3 * M, E).astype(jnp.float32)


def endpoint_pallas(X, st_en_all, smask_all):
    B, S, E = X.shape
    NE, _, M2, _ = st_en_all.shape
    M = M2 // 2
    # grid = (B, NE): NE is the fast axis, so the shared X block keeps the
    # same block index across consecutive steps -> no redundant X DMAs.
    return pl.pallas_call(
        _span_kernel,
        out_shape=jax.ShapeDtypeStruct((NE, B, 3 * M, E), jnp.float32),
        grid=(B, NE),
        in_specs=[
            pl.BlockSpec((1, S, E), lambda b, e: (b, 0, 0)),
            pl.BlockSpec((1, 1, M2, 1), lambda b, e: (e, b, 0, 0)),
            pl.BlockSpec((1, 1, M, 1), lambda b, e: (e, b, 0, 0)),
        ],
        out_specs=pl.BlockSpec((1, 1, 3 * M, E), lambda b, e: (e, b, 0, 0)),
        compiler_params=pltpu.CompilerParams(
            dimension_semantics=("parallel", "parallel")),
    )(X, st_en_all, smask_all)


# ----------------------------------------------------------------------------
# Multitask span extractor (host orchestration, batched Pallas kernels)
# ----------------------------------------------------------------------------
class PallasMultitaskSpanExtractor:
    def __init__(self, events, entity, num_tags, embed_size, id_to_label, key):
        self.events = events
        self.entity = entity
        self.num_tags = num_tags
        self.embed_size = embed_size
        self.id_to_label = id_to_label
        NE = len(events)
        Tp = TAG_PAD
        # Stack all events' parameters once, padded to a lane-dense tag dim.
        # Padded tag lanes: W/b = 0 (-> logits 0), trans/start/end = NEG so
        # they never contribute to logZ or the Viterbi decode.
        W_all = np.zeros((NE, embed_size, Tp), np.float32)
        b_all = np.zeros((NE, 1, Tp), np.float32)
        trans_all = np.full((NE, Tp, Tp), NEG, np.float32)
        start_all = np.full((NE, 1, Tp), NEG, np.float32)
        end_all = np.full((NE, 1, Tp), NEG, np.float32)
        for e, event in enumerate(events):
            T = num_tags[event][entity]
            key, k1, k2, k3, k4, k5 = jax.random.split(key, 6)
            W_all[e, :, :T] = 0.1 * np.asarray(
                jax.random.normal(k1, (embed_size, T), jnp.float32))
            b_all[e, 0, :T] = 0.1 * np.asarray(
                jax.random.normal(k2, (T,), jnp.float32))
            trans_all[e, :T, :T] = 0.1 * np.asarray(
                jax.random.normal(k3, (T, T), jnp.float32))
            start_all[e, 0, :T] = 0.1 * np.asarray(
                jax.random.normal(k4, (T,), jnp.float32))
            end_all[e, 0, :T] = 0.1 * np.asarray(
                jax.random.normal(k5, (T,), jnp.float32))
        self.W_all = jnp.asarray(W_all)
        self.b_all = jnp.asarray(b_all)
        self.trans_all = jnp.asarray(trans_all)
        self.start_all = jnp.asarray(start_all)
        self.end_all = jnp.asarray(end_all)

    def forward(self, X, y=None, mask=None):
        B, S, E = X.shape
        NE = len(self.events)
        mask_i = jnp.asarray(mask, jnp.int32).reshape(B, S)
        mask_np = np.asarray(jax.device_get(mask_i))
        lengths = mask_np.sum(axis=1).astype(int)

        if y is None:
            tags_all = jnp.zeros((NE, B, S), jnp.int32)
        else:
            tags_all = jnp.stack(
                [jnp.asarray(y[ev][self.entity], jnp.int32).reshape(B, S)
                 for ev in self.events], axis=0)

        # 1) ONE fused projection + CRF call for all events.
        ll_all, vtags_all, _vscore_all = proj_crf_pallas(
            X, self.W_all, self.b_all, self.trans_all, self.start_all,
            self.end_all, tags_all, mask_i)

        # 2) Single host sync for every event's Viterbi tags.
        vtags_np = np.asarray(jax.device_get(vtags_all))   # (NE, B, S)

        loss, y_pred, span_labels = {}, {}, {}
        ev_spans, Mmax_e = [], []
        for e, event in enumerate(self.events):
            loss[event] = None if y is None else -jnp.sum(ll_all[e])
            yp = [vtags_np[e, i, : lengths[i]].astype(int).tolist()
                  for i in range(B)]
            y_pred[event] = yp
            labs, span_idx, span_msk = seq_tags_to_spans(
                yp, self.id_to_label[event][self.entity])
            span_labels[event] = labs
            ev_spans.append((span_idx, span_msk))
            Mmax_e.append(span_idx.shape[1])

        # 3) ONE endpoint-extractor call for all events (padded to common M).
        Mmax = max(Mmax_e)
        st_en_all = np.zeros((NE, B, 2 * Mmax, 1), np.int32)
        smask_all = np.zeros((NE, B, Mmax, 1), np.int32)
        for e, (span_idx, span_msk) in enumerate(ev_spans):
            m = span_idx.shape[1]
            st_en_all[e, :, :m, 0] = span_idx[:, :, 0]          # starts
            st_en_all[e, :, Mmax:Mmax + m, 0] = span_idx[:, :, 1]  # ends (incl)
            smask_all[e, :, :m, 0] = span_msk

        out_all = endpoint_pallas(
            X, jnp.asarray(st_en_all), jnp.asarray(smask_all))  # (NE,B,3M,E)
        # layout plumbing outside the kernel: (3, M, E) groups -> (M, 3E)
        out_all = out_all.reshape(NE, B, 3, Mmax, E)
        out_all = jnp.transpose(out_all, (0, 1, 3, 2, 4)).reshape(
            NE, B, Mmax, 3 * E)

        span_embed = {}
        for e, event in enumerate(self.events):
            span_embed[event] = out_all[e, :, : Mmax_e[e], :]

        return loss, y_pred, span_labels, span_embed


# ----------------------------------------------------------------------------
# main
# ----------------------------------------------------------------------------
if __name__ == "__main__":
    B, S, E = 2, 8, 32
    events = ["event_a", "event_b"]
    entity = "Trigger"
    labels_a = ["O", "B-Alpha", "I-Alpha", "B-Beta", "I-Beta"]
    labels_b = ["O", "B-Gamma", "I-Gamma"]
    num_tags = {"event_a": {entity: len(labels_a)},
                "event_b": {entity: len(labels_b)}}
    id_to_label = {"event_a": {entity: labels_a.__getitem__},
                   "event_b": {entity: labels_b.__getitem__}}

    key = jax.random.PRNGKey(0)
    key, kx, ky1, ky2, kp = jax.random.split(key, 5)
    X = jax.random.normal(kx, (B, S, E), jnp.float32)
    mask = jnp.array([[1] * S, [1] * 5 + [0] * (S - 5)], dtype=jnp.int32)
    y = {"event_a": {entity: jax.random.randint(ky1, (B, S), 0, len(labels_a))},
         "event_b": {entity: jax.random.randint(ky2, (B, S), 0, len(labels_b))}}

    model = PallasMultitaskSpanExtractor(
        events, entity, num_tags, E, id_to_label, kp)
    loss, y_pred, span_labels, span_embed = model.forward(X, y=y, mask=mask)

    for ev in events:
        if loss[ev] is not None:
            jax.block_until_ready(loss[ev])
        jax.block_until_ready(span_embed[ev])

    print("KERNEL_OK")
</pallas_src>

<mosaic_0001>
module attributes {stable_mosaic.version = 11 : i64} {
  func.func @_proj_crf_kernel(%arg0: i32, %arg1: memref<2x8x32xf32, #tpu.memory_space<vmem>>, %arg2: memref<1x32x128xf32, #tpu.memory_space<vmem>>, %arg3: memref<1x1x128xf32, #tpu.memory_space<vmem>>, %arg4: memref<1x128x128xf32, #tpu.memory_space<vmem>>, %arg5: memref<1x1x128xf32, #tpu.memory_space<vmem>>, %arg6: memref<1x1x128xf32, #tpu.memory_space<vmem>>, %arg7: memref<1x2x8xi32, #tpu.memory_space<vmem>>, %arg8: memref<2x8xi32, #tpu.memory_space<vmem>>, %arg9: memref<1x2x1xf32, #tpu.memory_space<vmem>>, %arg10: memref<1x2x8xi32, #tpu.memory_space<vmem>>, %arg11: memref<1x2x1xf32, #tpu.memory_space<vmem>>) attributes {dimension_semantics = [#tpu.dimension_semantics<parallel>], iteration_bounds = array<i64: 2>, scalar_prefetch = 0 : i64, scratch_operands = 0 : i64, tpu.core_type = #tpu.core_type<tc>, window_params = [{pipeline_mode = #tpu.pipeline_mode<synchronous>, transform_indices = @transform_0, window_bounds = array<i64: 2, 8, 32>}, {transform_indices = @transform_1, window_bounds = array<i64: 1, 32, 128>}, {transform_indices = @transform_2, window_bounds = array<i64: 1, 1, 128>}, {transform_indices = @transform_3, window_bounds = array<i64: 1, 128, 128>}, {transform_indices = @transform_4, window_bounds = array<i64: 1, 1, 128>}, {transform_indices = @transform_5, window_bounds = array<i64: 1, 1, 128>}, {transform_indices = @transform_6, window_bounds = array<i64: 1, 2, 8>}, {pipeline_mode = #tpu.pipeline_mode<synchronous>, transform_indices = @transform_7, window_bounds = array<i64: 2, 8>}, {transform_indices = @transform_8, window_bounds = array<i64: 1, 2, 1>}, {transform_indices = @transform_9, window_bounds = array<i64: 1, 2, 8>}, {transform_indices = @transform_10, window_bounds = array<i64: 1, 2, 1>}]} {
    %c0 = arith.constant 0 : index
    %c0_0 = arith.constant 0 : index
    %c0_1 = arith.constant 0 : index
    %0 = vector.load %arg1[%c0, %c0_0, %c0_1] : memref<2x8x32xf32, #tpu.memory_space<vmem>>, vector<2x8x32xf32>
    %c0_2 = arith.constant 0 : index
    %c0_3 = arith.constant 0 : index
    %c0_4 = arith.constant 0 : index
    %1 = vector.load %arg2[%c0_2, %c0_3, %c0_4] : memref<1x32x128xf32, #tpu.memory_space<vmem>>, vector<1x32x128xf32>
    %2 = vector.shape_cast %1 : vector<1x32x128xf32> to vector<32x128xf32>
    %c0_5 = arith.constant 0 : index
    %c0_6 = arith.constant 0 : index
    %c0_7 = arith.constant 0 : index
    %3 = vector.load %arg3[%c0_5, %c0_6, %c0_7] : memref<1x1x128xf32, #tpu.memory_space<vmem>>, vector<1x1x128xf32>
    %4 = vector.shape_cast %3 : vector<1x1x128xf32> to vector<1x128xf32>
    %c0_8 = arith.constant 0 : index
    %c0_9 = arith.constant 0 : index
    %c0_10 = arith.constant 0 : index
    %5 = vector.load %arg4[%c0_8, %c0_9, %c0_10] : memref<1x128x128xf32, #tpu.memory_space<vmem>>, vector<1x128x128xf32>
    %6 = vector.shape_cast %5 : vector<1x128x128xf32> to vector<128x128xf32>
    %c0_11 = arith.constant 0 : index
    %c0_12 = arith.constant 0 : index
    %c0_13 = arith.constant 0 : index
    %7 = vector.load %arg5[%c0_11, %c0_12, %c0_13] : memref<1x1x128xf32, #tpu.memory_space<vmem>>, vector<1x1x128xf32>
    %8 = vector.shape_cast %7 : vector<1x1x128xf32> to vector<1x128xf32>
    %c0_14 = arith.constant 0 : index
    %c0_15 = arith.constant 0 : index
    %c0_16 = arith.constant 0 : index
    %9 = vector.load %arg6[%c0_14, %c0_15, %c0_16] : memref<1x1x128xf32, #tpu.memory_space<vmem>>, vector<1x1x128xf32>
    %10 = vector.shape_cast %9 : vector<1x1x128xf32> to vector<1x128xf32>
    %c0_17 = arith.constant 0 : index
    %c0_18 = arith.constant 0 : index
    %c0_19 = arith.constant 0 : index
    %11 = vector.load %arg7[%c0_17, %c0_18, %c0_19] : memref<1x2x8xi32, #tpu.memory_space<vmem>>, vector<1x2x8xi32>
    %12 = vector.shape_cast %11 : vector<1x2x8xi32> to vector<2x8xi32>
    %c0_20 = arith.constant 0 : index
    %c0_21 = arith.constant 0 : index
    %13 = vector.load %arg8[%c0_20, %c0_21] : memref<2x8xi32, #tpu.memory_space<vmem>>, vector<2x8xi32>
    %14 = arith.sitofp %13 : vector<2x8xi32> to vector<2x8xf32>
    %cst = arith.constant dense<0> : vector<2xi32>
    %15 = vector.multi_reduction <add>, %13, %cst [1] : vector<2x8xi32> to vector<2xi32>
    %16 = vector.shape_cast %15 : vector<2xi32> to vector<2x1xi32>
    %17 = tpu.iota {dimensions = array<i32: 1>} : vector<2x128x128xi32>
    %18 = tpu.iota {dimensions = array<i32: 1>} : vector<2x128xi32>
    %19 = tpu.iota {dimensions = array<i32: 1>} : vector<2x8xi32>
    %20 = tpu.iota {dimensions = array<i32: 2>} : vector<2x8x128xi32>
    %21 = vector.shape_cast %0 : vector<2x8x32xf32> to vector<16x32xf32>
    %22 = arith.truncf %21 : vector<16x32xf32> to vector<16x32xbf16>
    %23 = arith.truncf %2 : vector<32x128xf32> to vector<32x128xbf16>
    %cst_22 = arith.constant dense<0.000000e+00> : vector<16x128xf32>
    %24 = tpu.matmul %22, %23, %cst_22 {dimension_numbers = #tpu.dot_dimension_numbers<[1], [0], [0], [1], [0, 0, 1, 1], [], []>} : vector<16x32xbf16>, vector<32x128xbf16>, vector<16x128xf32> -> vector<16x128xf32>
    %25 = vector.broadcast %4 : vector<1x128xf32> to vector<16x128xf32>
    %26 = arith.addf %24, %25 : vector<16x128xf32>
    %27 = vector.shape_cast %26 : vector<16x128xf32> to vector<2x8x128xf32>
    %28 = vector.shape_cast %12 : vector<2x8xi32> to vector<2x8x1xi32>
    %29 = vector.broadcast %28 : vector<2x8x1xi32> to vector<2x8x128xi32>
    %30 = arith.cmpi eq, %20, %29 : vector<2x8x128xi32>
    %31 = arith.extui %30 : vector<2x8x128xi1> to vector<2x8x128xi32>
    %32 = arith.sitofp %31 : vector<2x8x128xi32> to vector<2x8x128xf32>
    %33 = arith.mulf %27, %32 : vector<2x8x128xf32>
    %cst_23 = arith.constant dense<0.000000e+00> : vector<2x8xf32>
    %34 = vector.multi_reduction <add>, %33, %cst_23 [2] : vector<2x8x128xf32> to vector<2x8xf32>
    %35 = arith.mulf %34, %14 : vector<2x8xf32>
    %cst_24 = arith.constant dense<0.000000e+00> : vector<2xf32>
    %36 = vector.multi_reduction <add>, %35, %cst_24 [1] : vector<2x8xf32> to vector<2xf32>
    %37 = vector.shape_cast %36 : vector<2xf32> to vector<2x1xf32>
    %38 = vector.extract_strided_slice %32 {offsets = [0, 0, 0], sizes = [2, 1, 128], strides = [1, 1, 1]} : vector<2x8x128xf32> to vector<2x1x128xf32>
    %39 = vector.shape_cast %38 : vector<2x1x128xf32> to vector<2x128xf32>
    %40 = vector.broadcast %8 : vector<1x128xf32> to vector<2x128xf32>
    %41 = arith.mulf %40, %39 : vector<2x128xf32>
    %cst_25 = arith.constant dense<0.000000e+00> : vector<2xf32>
    %42 = vector.multi_reduction <add>, %41, %cst_25 [1] : vector<2x128xf32> to vector<2xf32>
    %43 = vector.shape_cast %42 : vector<2xf32> to vector<2x1xf32>
    %44 = vector.shape_cast %32 : vector<2x8x128xf32> to vector<16x128xf32>
    %cst_26 = arith.constant dense<0.000000e+00> : vector<16x128xf32>
    %45 = tpu.matmul %44, %6, %cst_26 {dimension_numbers = #tpu.dot_dimension_numbers<[1], [0], [0], [1], [0, 0, 1, 1], [], []>} : vector<16x128xf32>, vector<128x128xf32>, vector<16x128xf32> -> vector<16x128xf32>
    %46 = vector.shape_cast %45 : vector<16x128xf32> to vector<2x8x128xf32>
    %47 = vector.extract_strided_slice %46 {offsets = [0, 0, 0], sizes = [2, 7, 128], strides = [1, 1, 1]} : vector<2x8x128xf32> to vector<2x7x128xf32>
    %48 = vector.extract_strided_slice %32 {offsets = [0, 1, 0], sizes = [2, 7, 128], strides = [1, 1, 1]} : vector<2x8x128xf32> to vector<2x7x128xf32>
    %49 = arith.mulf %47, %48 : vector<2x7x128xf32>
    %cst_27 = arith.constant dense<0.000000e+00> : vector<2x7xf32>
    %50 = vector.multi_reduction <add>, %49, %cst_27 [2] : vector<2x7x128xf32> to vector<2x7xf32>
    %51 = vector.extract_strided_slice %14 {offsets = [0, 1], sizes = [2, 7], strides = [1, 1]} : vector<2x8xf32> to vector<2x7xf32>
    %52 = arith.mulf %50, %51 : vector<2x7xf32>
    %cst_28 = arith.constant dense<0.000000e+00> : vector<2xf32>
    %53 = vector.multi_reduction <add>, %52, %cst_28 [1] : vector<2x7xf32> to vector<2xf32>
    %54 = vector.shape_cast %53 : vector<2xf32> to vector<2x1xf32>
    %c1_i32 = arith.constant 1 : i32
    %55 = vector.broadcast %c1_i32 : i32 to vector<2x1xi32>
    %56 = arith.subi %16, %55 : vector<2x1xi32>
    %57 = vector.broadcast %56 : vector<2x1xi32> to vector<2x8xi32>
    %58 = arith.cmpi eq, %19, %57 : vector<2x8xi32>
    %c0_i32 = arith.constant 0 : i32
    %59 = vector.broadcast %c0_i32 : i32 to vector<2x8xi32>
    %60 = arith.select %58, %12, %59 : vector<2x8xi1>, vector<2x8xi32>
    %cst_29 = arith.constant dense<0> : vector<2xi32>
    %61 = vector.multi_reduction <add>, %60, %cst_29 [1] : vector<2x8xi32> to vector<2xi32>
    %62 = vector.shape_cast %61 : vector<2xi32> to vector<2x1xi32>
    %63 = vector.broadcast %62 : vector<2x1xi32> to vector<2x128xi32>
    %64 = arith.cmpi eq, %18, %63 : vector<2x128xi32>
    %cst_30 = arith.constant 0.000000e+00 : f32
    %65 = vector.shape_cast %10 : vector<1x128xf32> to vector<1x128xf32>
    %66 = vector.broadcast %65 : vector<1x128xf32> to vector<2x128xf32>
    %67 = vector.broadcast %cst_30 : f32 to vector<2x128xf32>
    %68 = arith.select %64, %66, %67 : vector<2x128xi1>, vector<2x128xf32>
    %cst_31 = arith.constant dense<0.000000e+00> : vector<2xf32>
    %69 = vector.multi_reduction <add>, %68, %cst_31 [1] : vector<2x128xf32> to vector<2xf32>
    %70 = vector.shape_cast %69 : vector<2xf32> to vector<2x1xf32>
    %71 = arith.addf %43, %37 : vector<2x1xf32>
    %72 = arith.addf %71, %54 : vector<2x1xf32>
    %73 = arith.addf %72, %70 : vector<2x1xf32>
    %74 = vector.extract_strided_slice %27 {offsets = [0, 0, 0], sizes = [2, 1, 128], strides = [1, 1, 1]} : vector<2x8x128xf32> to vector<2x1x128xf32>
    %75 = vector.shape_cast %74 : vector<2x1x128xf32> to vector<2x128xf32>
    %76 = vector.broadcast %8 : vector<1x128xf32> to vector<2x128xf32>
    %77 = arith.addf %76, %75 : vector<2x128xf32>
    %78 = vector.extract_strided_slice %27 {offsets = [0, 1, 0], sizes = [2, 1, 128], strides = [1, 1, 1]} : vector<2x8x128xf32> to vector<2x1x128xf32>
    %79 = vector.shape_cast %78 : vector<2x1x128xf32> to vector<2x128xf32>
    %80 = vector.shape_cast %77 : vector<2x128xf32> to vector<2x128x1xf32>
    %81 = vector.shape_cast %6 : vector<128x128xf32> to vector<1x128x128xf32>
    %82 = vector.broadcast %80 : vector<2x128x1xf32> to vector<2x128x128xf32>
    %83 = vector.broadcast %81 : vector<1x128x128xf32> to vector<2x128x128xf32>
    %84 = arith.addf %82, %83 : vector<2x128x128xf32>
    %cst_32 = arith.constant dense<0xFF800000> : vector<2x128xf32>
    %85 = vector.multi_reduction <maximumf>, %84, %cst_32 [1] : vector<2x128x128xf32> to vector<2x128xf32>
    %86 = vector.shape_cast %85 : vector<2x128xf32> to vector<2x1x128xf32>
    %87 = vector.broadcast %86 : vector<2x1x128xf32> to vector<2x128x128xf32>
    %88 = arith.subf %84, %87 : vector<2x128x128xf32>
    %89 = math.exp %88 : vector<2x128x128xf32>
    %cst_33 = arith.constant dense<0.000000e+00> : vector<2x128xf32>
    %90 = vector.multi_reduction <add>, %89, %cst_33 [1] : vector<2x128x128xf32> to vector<2x128xf32>
    %91 = math.log %90 : vector<2x128xf32>
    %92 = arith.addf %85, %91 : vector<2x128xf32>
    %93 = arith.addf %92, %79 : vector<2x128xf32>
    %94 = vector.shape_cast %77 : vector<2x128xf32> to vector<2x128x1xf32>
    %95 = vector.shape_cast %6 : vector<128x128xf32> to vector<1x128x128xf32>
    %96 = vector.broadcast %94 : vector<2x128x1xf32> to vector<2x128x128xf32>
    %97 = vector.broadcast %95 : vector<1x128x128xf32> to vector<2x128x128xf32>
    %98 = arith.addf %96, %97 : vector<2x128x128xf32>
    %cst_34 = arith.constant dense<0xFF800000> : vector<2x128xf32>
    %99 = vector.multi_reduction <maximumf>, %98, %cst_34 [1] : vector<2x128x128xf32> to vector<2x128xf32>
    %100 = vector.shape_cast %99 : vector<2x128xf32> to vector<2x1x128xf32>
    %101 = vector.broadcast %100 : vector<2x1x128xf32> to vector<2x128x128xf32>
    %102 = arith.cmpf oeq, %98, %101 : vector<2x128x128xf32>
    %c128_i32 = arith.constant 128 : i32
    %103 = vector.broadcast %c128_i32 : i32 to vector<2x128x128xi32>
    %104 = arith.select %102, %17, %103 : vector<2x128x128xi1>, vector<2x128x128xi32>
    %cst_35 = arith.constant dense<2147483647> : vector<2x128xi32>
    %105 = vector.multi_reduction <minsi>, %104, %cst_35 [1] : vector<2x128x128xi32> to vector<2x128xi32>
    %106 = arith.addf %99, %79 : vector<2x128xf32>
    %c1_i32_36 = arith.constant 1 : i32
    %107 = vector.broadcast %c1_i32_36 : i32 to vector<2x1xi32>
    %108 = arith.cmpi sgt, %16, %107 : vector<2x1xi32>
    %109 = vector.shape_cast %108 : vector<2x1xi1> to vector<2x1xi1>
    %110 = vector.broadcast %109 : vector<2x1xi1> to vector<2x128xi1>
    %111 = arith.select %110, %93, %77 : vector<2x128xi1>, vector<2x128xf32>
    %112 = vector.shape_cast %108 : vector<2x1xi1> to vector<2x1xi1>
    %113 = vector.broadcast %112 : vector<2x1xi1> to vector<2x128xi1>
    %114 = arith.select %113, %106, %77 : vector<2x128xi1>, vector<2x128xf32>
    %115 = vector.extract_strided_slice %27 {offsets = [0, 2, 0], sizes = [2, 1, 128], strides = [1, 1, 1]} : vector<2x8x128xf32> to vector<2x1x128xf32>
    %116 = vector.shape_cast %115 : vector<2x1x128xf32> to vector<2x128xf32>
    %117 = vector.shape_cast %111 : vector<2x128xf32> to vector<2x128x1xf32>
    %118 = vector.shape_cast %6 : vector<128x128xf32> to vector<1x128x128xf32>
    %119 = vector.broadcast %117 : vector<2x128x1xf32> to vector<2x128x128xf32>
    %120 = vector.broadcast %118 : vector<1x128x128xf32> to vector<2x128x128xf32>
    %121 = arith.addf %119, %120 : vector<2x128x128xf32>
    %cst_37 = arith.constant dense<0xFF800000> : vector<2x128xf32>
    %122 = vector.multi_reduction <maximumf>, %121, %cst_37 [1] : vector<2x128x128xf32> to vector<2x128xf32>
    %123 = vector.shape_cast %122 : vector<2x128xf32> to vector<2x1x128xf32>
    %124 = vector.broadcast %123 : vector<2x1x128xf32> to vector<2x128x128xf32>
    %125 = arith.subf %121, %124 : vector<2x128x128xf32>
    %126 = math.exp %125 : vector<2x128x128xf32>
    %cst_38 = arith.constant dense<0.000000e+00> : vector<2x128xf32>
    %127 = vector.multi_reduction <add>, %126, %cst_38 [1] : vector<2x128x128xf32> to vector<2x128xf32>
    %128 = math.log %127 : vector<2x128xf32>
    %129 = arith.addf %122, %128 : vector<2x128xf32>
    %130 = arith.addf %129, %116 : vector<2x128xf32>
    %131 = vector.shape_cast %114 : vector<2x128xf32> to vector<2x128x1xf32>
    %132 = vector.shape_cast %6 : vector<128x128xf32> to vector<1x128x128xf32>
    %133 = vector.broadcast %131 : vector<2x128x1xf32> to vector<2x128x128xf32>
    %134 = vector.broadcast %132 : vector<1x128x128xf32> to vector<2x128x128xf32>
    %135 = arith.addf %133, %134 : vector<2x128x128xf32>
    %cst_39 = arith.constant dense<0xFF800000> : vector<2x128xf32>
    %136 = vector.multi_reduction <maximumf>, %135, %cst_39 [1] : vector<2x128x128xf32> to vector<2x128xf32>
    %137 = vector.shape_cast %136 : vector<2x128xf32> to vector<2x1x128xf32>
    %138 = vector.broadcast %137 : vector<2x1x128xf32> to vector<2x128x128xf32>
    %139 = arith.cmpf oeq, %135, %138 : vector<2x128x128xf32>
    %c128_i32_40 = arith.constant 128 : i32
    %140 = vector.broadcast %c128_i32_40 : i32 to vector<2x128x128xi32>
    %141 = arith.select %139, %17, %140 : vector<2x128x128xi1>, vector<2x128x128xi32>
    %cst_41 = arith.constant dense<2147483647> : vector<2x128xi32>
    %142 = vector.multi_reduction <minsi>, %141, %cst_41 [1] : vector<2x128x128xi32> to vector<2x128xi32>
    %143 = arith.addf %136, %116 : vector<2x128xf32>
    %c2_i32 = arith.constant 2 : i32
    %144 = vector.broadcast %c2_i32 : i32 to vector<2x1xi32>
    %145 = arith.cmpi sgt, %16, %144 : vector<2x1xi32>
    %146 = vector.shape_cast %145 : vector<2x1xi1> to vector<2x1xi1>
    %147 = vector.broadcast %146 : vector<2x1xi1> to vector<2x128xi1>
    %148 = arith.select %147, %130, %111 : vector<2x128xi1>, vector<2x128xf32>
    %149 = vector.shape_cast %145 : vector<2x1xi1> to vector<2x1xi1>
    %150 = vector.broadcast %149 : vector<2x1xi1> to vector<2x128xi1>
    %151 = arith.select %150, %143, %114 : vector<2x128xi1>, vector<2x128xf32>
    %152 = vector.extract_strided_slice %27 {offsets = [0, 3, 0], sizes = [2, 1, 128], strides = [1, 1, 1]} : vector<2x8x128xf32> to vector<2x1x128xf32>
    %153 = vector.shape_cast %152 : vector<2x1x128xf32> to vector<2x128xf32>
    %154 = vector.shape_cast %148 : vector<2x128xf32> to vector<2x128x1xf32>
    %155 = vector.shape_cast %6 : vector<128x128xf32> to vector<1x128x128xf32>
    %156 = vector.broadcast %154 : vector<2x128x1xf32> to vector<2x128x128xf32>
    %157 = vector.broadcast %155 : vector<1x128x128xf32> to vector<2x128x128xf32>
    %158 = arith.addf %156, %157 : vector<2x128x128xf32>
    %cst_42 = arith.constant dense<0xFF800000> : vector<2x128xf32>
    %159 = vector.multi_reduction <maximumf>, %158, %cst_42 [1] : vector<2x128x128xf32> to vector<2x128xf32>
    %160 = vector.shape_cast %159 : vector<2x128xf32> to vector<2x1x128xf32>
    %161 = vector.broadcast %160 : vector<2x1x128xf32> to vector<2x128x128xf32>
    %162 = arith.subf %158, %161 : vector<2x128x128xf32>
    %163 = math.exp %162 : vector<2x128x128xf32>
    %cst_43 = arith.constant dense<0.000000e+00> : vector<2x128xf32>
    %164 = vector.multi_reduction <add>, %163, %cst_43 [1] : vector<2x128x128xf32> to vector<2x128xf32>
    %165 = math.log %164 : vector<2x128xf32>
    %166 = arith.addf %159, %165 : vector<2x128xf32>
    %167 = arith.addf %166, %153 : vector<2x128xf32>
    %168 = vector.shape_cast %151 : vector<2x128xf32> to vector<2x128x1xf32>
    %169 = vector.shape_cast %6 : vector<128x128xf32> to vector<1x128x128xf32>
    %170 = vector.broadcast %168 : vector<2x128x1xf32> to vector<2x128x128xf32>
    %171 = vector.broadcast %169 : vector<1x128x128xf32> to vector<2x128x128xf32>
    %172 = arith.addf %170, %171 : vector<2x128x128xf32>
    %cst_44 = arith.constant dense<0xFF800000> : vector<2x128xf32>
    %173 = vector.multi_reduction <maximumf>, %172, %cst_44 [1] : vector<2x128x128xf32> to vector<2x128xf32>
    %174 = vector.shape_cast %173 : vector<2x128xf32> to vector<2x1x128xf32>
    %175 = vector.broadcast %174 : vector<2x1x128xf32> to vector<2x128x128xf32>
    %176 = arith.cmpf oeq, %172, %175 : vector<2x128x128xf32>
    %c128_i32_45 = arith.constant 128 : i32
    %177 = vector.broadcast %c128_i32_45 : i32 to vector<2x128x128xi32>
    %178 = arith.select %176, %17, %177 : vector<2x128x128xi1>, vector<2x128x128xi32>
    %cst_46 = arith.constant dense<2147483647> : vector<2x128xi32>
    %179 = vector.multi_reduction <minsi>, %178, %cst_46 [1] : vector<2x128x128xi32> to vector<2x128xi32>
    %180 = arith.addf %173, %153 : vector<2x128xf32>
    %c3_i32 = arith.constant 3 : i32
    %181 = vector.broadcast %c3_i32 : i32 to vector<2x1xi32>
    %182 = arith.cmpi sgt, %16, %181 : vector<2x1xi32>
    %183 = vector.shape_cast %182 : vector<2x1xi1> to vector<2x1xi1>
    %184 = vector.broadcast %183 : vector<2x1xi1> to vector<2x128xi1>
    %185 = arith.select %184, %167, %148 : vector<2x128xi1>, vector<2x128xf32>
    %186 = vector.shape_cast %182 : vector<2x1xi1> to vector<2x1xi1>
    %187 = vector.broadcast %186 : vector<2x1xi1> to vector<2x128xi1>
    %188 = arith.select %187, %180, %151 : vector<2x128xi1>, vector<2x128xf32>
    %189 = vector.extract_strided_slice %27 {offsets = [0, 4, 0], sizes = [2, 1, 128], strides = [1, 1, 1]} : vector<2x8x128xf32> to vector<2x1x128xf32>
    %190 = vector.shape_cast %189 : vector<2x1x128xf32> to vector<2x128xf32>
    %191 = vector.shape_cast %185 : vector<2x128xf32> to vector<2x128x1xf32>
    %192 = vector.shape_cast %6 : vector<128x128xf32> to vector<1x128x128xf32>
    %193 = vector.broadcast %191 : vector<2x128x1xf32> to vector<2x128x128xf32>
    %194 = vector.broadcast %192 : vector<1x128x128xf32> to vector<2x128x128xf32>
    %195 = arith.addf %193, %194 : vector<2x128x128xf32>
    %cst_47 = arith.constant dense<0xFF800000> : vector<2x128xf32>
    %196 = vector.multi_reduction <maximumf>, %195, %cst_47 [1] : vector<2x128x128xf32> to vector<2x128xf32>
    %197 = vector.shape_cast %196 : vector<2x128xf32> to vector<2x1x128xf32>
    %198 = vector.broadcast %197 : vector<2x1x128xf32> to vector<2x128x128xf32>
    %199 = arith.subf %195, %198 : vector<2x128x128xf32>
    %200 = math.exp %199 : vector<2x128x128xf32>
    %cst_48 = arith.constant dense<0.000000e+00> : vector<2x128xf32>
    %201 = vector.multi_reduction <add>, %200, %cst_48 [1] : vector<2x128x128xf32> to vector<2x128xf32>
    %202 = math.log %201 : vector<2x128xf32>
    %203 = arith.addf %196, %202 : vector<2x128xf32>
    %204 = arith.addf %203, %190 : vector<2x128xf32>
    %205 = vector.shape_cast %188 : vector<2x128xf32> to vector<2x128x1xf32>
    %206 = vector.shape_cast %6 : vector<128x128xf32> to vector<1x128x128xf32>
    %207 = vector.broadcast %205 : vector<2x128x1xf32> to vector<2x128x128xf32>
    %208 = vector.broadcast %206 : vector<1x128x128xf32> to vector<2x128x128xf32>
    %209 = arith.addf %207, %208 : vector<2x128x128xf32>
    %cst_49 = arith.constant dense<0xFF800000> : vector<2x128xf32>
    %210 = vector.multi_reduction <maximumf>, %209, %cst_49 [1] : vector<2x128x128xf32> to vector<2x128xf32>
    %211 = vector.shape_cast %210 : vector<2x128xf32> to vector<2x1x128xf32>
    %212 = vector.broadcast %211 : vector<2x1x128xf32> to vector<2x128x128xf32>
    %213 = arith.cmpf oeq, %209, %212 : vector<2x128x128xf32>
    %c128_i32_50 = arith.constant 128 : i32
    %214 = vector.broadcast %c128_i32_50 : i32 to vector<2x128x128xi32>
    %215 = arith.select %213, %17, %214 : vector<2x128x128xi1>, vector<2x128x128xi32>
    %cst_51 = arith.constant dense<2147483647> : vector<2x128xi32>
    %216 = vector.multi_reduction <minsi>, %215, %cst_51 [1] : vector<2x128x128xi32> to vector<2x128xi32>
    %217 = arith.addf %210, %190 : vector<2x128xf32>
    %c4_i32 = arith.constant 4 : i32
    %218 = vector.broadcast %c4_i32 : i32 to vector<2x1xi32>
    %219 = arith.cmpi sgt, %16, %218 : vector<2x1xi32>
    %220 = vector.shape_cast %219 : vector<2x1xi1> to vector<2x1xi1>
    %221 = vector.broadcast %220 : vector<2x1xi1> to vector<2x128xi1>
    %222 = arith.select %221, %204, %185 : vector<2x128xi1>, vector<2x128xf32>
    %223 = vector.shape_cast %219 : vector<2x1xi1> to vector<2x1xi1>
    %224 = vector.broadcast %223 : vector<2x1xi1> to vector<2x128xi1>
    %225 = arith.select %224, %217, %188 : vector<2x128xi1>, vector<2x128xf32>
    %226 = vector.extract_strided_slice %27 {offsets = [0, 5, 0], sizes = [2, 1, 128], strides = [1, 1, 1]} : vector<2x8x128xf32> to vector<2x1x128xf32>
    %227 = vector.shape_cast %226 : vector<2x1x128xf32> to vector<2x128xf32>
    %228 = vector.shape_cast %222 : vector<2x128xf32> to vector<2x128x1xf32>
    %229 = vector.shape_cast %6 : vector<128x128xf32> to vector<1x128x128xf32>
    %230 = vector.broadcast %228 : vector<2x128x1xf32> to vector<2x128x128xf32>
    %231 = vector.broadcast %229 : vector<1x128x128xf32> to vector<2x128x128xf32>
    %232 = arith.addf %230, %231 : vector<2x128x128xf32>
    %cst_52 = arith.constant dense<0xFF800000> : vector<2x128xf32>
    %233 = vector.multi_reduction <maximumf>, %232, %cst_52 [1] : vector<2x128x128xf32> to vector<2x128xf32>
    %234 = vector.shape_cast %233 : vector<2x128xf32> to vector<2x1x128xf32>
    %235 = vector.broadcast %234 : vector<2x1x128xf32> to vector<2x128x128xf32>
    %236 = arith.subf %232, %235 : vector<2x128x128xf32>
    %237 = math.exp %236 : vector<2x128x128xf32>
    %cst_53 = arith.constant dense<0.000000e+00> : vector<2x128xf32>
    %238 = vector.multi_reduction <add>, %237, %cst_53 [1] : vector<2x128x128xf32> to vector<2x128xf32>
    %239 = math.log %238 : vector<2x128xf32>
    %240 = arith.addf %233, %239 : vector<2x128xf32>
    %241 = arith.addf %240, %227 : vector<2x128xf32>
    %242 = vector.shape_cast %225 : vector<2x128xf32> to vector<2x128x1xf32>
    %243 = vector.shape_cast %6 : vector<128x128xf32> to vector<1x128x128xf32>
    %244 = vector.broadcast %242 : vector<2x128x1xf32> to vector<2x128x128xf32>
    %245 = vector.broadcast %243 : vector<1x128x128xf32> to vector<2x128x128xf32>
    %246 = arith.addf %244, %245 : vector<2x128x128xf32>
    %cst_54 = arith.constant dense<0xFF800000> : vector<2x128xf32>
    %247 = vector.multi_reduction <maximumf>, %246, %cst_54 [1] : vector<2x128x128xf32> to vector<2x128xf32>
    %248 = vector.shape_cast %247 : vector<2x128xf32> to vector<2x1x128xf32>
    %249 = vector.broadcast %248 : vector<2x1x128xf32> to vector<2x128x128xf32>
    %250 = arith.cmpf oeq, %246, %249 : vector<2x128x128xf32>
    %c128_i32_55 = arith.constant 128 : i32
    %251 = vector.broadcast %c128_i32_55 : i32 to vector<2x128x128xi32>
    %252 = arith.select %250, %17, %251 : vector<2x128x128xi1>, vector<2x128x128xi32>
    %cst_56 = arith.constant dense<2147483647> : vector<2x128xi32>
    %253 = vector.multi_reduction <minsi>, %252, %cst_56 [1] : vector<2x128x128xi32> to vector<2x128xi32>
    %254 = arith.addf %247, %227 : vector<2x128xf32>
    %c5_i32 = arith.constant 5 : i32
    %255 = vector.broadcast %c5_i32 : i32 to vector<2x1xi32>
    %256 = arith.cmpi sgt, %16, %255 : vector<2x1xi32>
    %257 = vector.shape_cast %256 : vector<2x1xi1> to vector<2x1xi1>
    %258 = vector.broadcast %257 : vector<2x1xi1> to vector<2x128xi1>
    %259 = arith.select %258, %241, %222 : vector<2x128xi1>, vector<2x128xf32>
    %260 = vector.shape_cast %256 : vector<2x1xi1> to vector<2x1xi1>
    %261 = vector.broadcast %260 : vector<2x1xi1> to vector<2x128xi1>
    %262 = arith.select %261, %254, %225 : vector<2x128xi1>, vector<2x128xf32>
    %263 = vector.extract_strided_slice %27 {offsets = [0, 6, 0], sizes = [2, 1, 128], strides = [1, 1, 1]} : vector<2x8x128xf32> to vector<2x1x128xf32>
    %264 = vector.shape_cast %263 : vector<2x1x128xf32> to vector<2x128xf32>
    %265 = vector.shape_cast %259 : vector<2x128xf32> to vector<2x128x1xf32>
    %266 = vector.shape_cast %6 : vector<128x128xf32> to vector<1x128x128xf32>
    %267 = vector.broadcast %265 : vector<2x128x1xf32> to vector<2x128x128xf32>
    %268 = vector.broadcast %266 : vector<1x128x128xf32> to vector<2x128x128xf32>
    %269 = arith.addf %267, %268 : vector<2x128x128xf32>
    %cst_57 = arith.constant dense<0xFF800000> : vector<2x128xf32>
    %270 = vector.multi_reduction <maximumf>, %269, %cst_57 [1] : vector<2x128x128xf32> to vector<2x128xf32>
    %271 = vector.shape_cast %270 : vector<2x128xf32> to vector<2x1x128xf32>
    %272 = vector.broadcast %271 : vector<2x1x128xf32> to vector<2x128x128xf32>
    %273 = arith.subf %269, %272 : vector<2x128x128xf32>
    %274 = math.exp %273 : vector<2x128x128xf32>
    %cst_58 = arith.constant dense<0.000000e+00> : vector<2x128xf32>
    %275 = vector.multi_reduction <add>, %274, %cst_58 [1] : vector<2x128x128xf32> to vector<2x128xf32>
    %276 = math.log %275 : vector<2x128xf32>
    %277 = arith.addf %270, %276 : vector<2x128xf32>
    %278 = arith.addf %277, %264 : vector<2x128xf32>
    %279 = vector.shape_cast %262 : vector<2x128xf32> to vector<2x128x1xf32>
    %280 = vector.shape_cast %6 : vector<128x128xf32> to vector<1x128x128xf32>
    %281 = vector.broadcast %279 : vector<2x128x1xf32> to vector<2x128x128xf32>
    %282 = vector.broadcast %280 : vector<1x128x128xf32> to vector<2x128x128xf32>
    %283 = arith.addf %281, %282 : vector<2x128x128xf32>
    %cst_59 = arith.constant dense<0xFF800000> : vector<2x128xf32>
    %284 = vector.multi_reduction <maximumf>, %283, %cst_59 [1] : vector<2x128x128xf32> to vector<2x128xf32>
    %285 = vector.shape_cast %284 : vector<2x128xf32> to vector<2x1x128xf32>
    %286 = vector.broadcast %285 : vector<2x1x128xf32> to vector<2x128x128xf32>
    %287 = arith.cmpf oeq, %283, %286 : vector<2x128x128xf32>
    %c128_i32_60 = arith.constant 128 : i32
    %288 = vector.broadcast %c128_i32_60 : i32 to vector<2x128x128xi32>
    %289 = arith.select %287, %17, %288 : vector<2x128x128xi1>, vector<2x128x128xi32>
    %cst_61 = arith.constant dense<2147483647> : vector<2x128xi32>
    %290 = vector.multi_reduction <minsi>, %289, %cst_61 [1] : vector<2x128x128xi32> to vector<2x128xi32>
    %291 = arith.addf %284, %264 : vector<2x128xf32>
    %c6_i32 = arith.constant 6 : i32
    %292 = vector.broadcast %c6_i32 : i32 to vector<2x1xi32>
    %293 = arith.cmpi sgt, %16, %292 : vector<2x1xi32>
    %294 = vector.shape_cast %293 : vector<2x1xi1> to vector<2x1xi1>
    %295 = vector.broadcast %294 : vector<2x1xi1> to vector<2x128xi1>
    %296 = arith.select %295, %278, %259 : vector<2x128xi1>, vector<2x128xf32>
    %297 = vector.shape_cast %293 : vector<2x1xi1> to vector<2x1xi1>
    %298 = vector.broadcast %297 : vector<2x1xi1> to vector<2x128xi1>
    %299 = arith.select %298, %291, %262 : vector<2x128xi1>, vector<2x128xf32>
    %300 = vector.extract_strided_slice %27 {offsets = [0, 7, 0], sizes = [2, 1, 128], strides = [1, 1, 1]} : vector<2x8x128xf32> to vector<2x1x128xf32>
    %301 = vector.shape_cast %300 : vector<2x1x128xf32> to vector<2x128xf32>
    %302 = vector.shape_cast %296 : vector<2x128xf32> to vector<2x128x1xf32>
    %303 = vector.shape_cast %6 : vector<128x128xf32> to vector<1x128x128xf32>
    %304 = vector.broadcast %302 : vector<2x128x1xf32> to vector<2x128x128xf32>
    %305 = vector.broadcast %303 : vector<1x128x128xf32> to vector<2x128x128xf32>
    %306 = arith.addf %304, %305 : vector<2x128x128xf32>
    %cst_62 = arith.constant dense<0xFF800000> : vector<2x128xf32>
    %307 = vector.multi_reduction <maximumf>, %306, %cst_62 [1] : vector<2x128x128xf32> to vector<2x128xf32>
    %308 = vector.shape_cast %307 : vector<2x128xf32> to vector<2x1x128xf32>
    %309 = vector.broadcast %308 : vector<2x1x128xf32> to vector<2x128x128xf32>
    %310 = arith.subf %306, %309 : vector<2x128x128xf32>
    %311 = math.exp %310 : vector<2x128x128xf32>
    %cst_63 = arith.constant dense<0.000000e+00> : vector<2x128xf32>
    %312 = vector.multi_reduction <add>, %311, %cst_63 [1] : vector<2x128x128xf32> to vector<2x128xf32>
    %313 = math.log %312 : vector<2x128xf32>
    %314 = arith.addf %307, %313 : vector<2x128xf32>
    %315 = arith.addf %314, %301 : vector<2x128xf32>
    %316 = vector.shape_cast %299 : vector<2x128xf32> to vector<2x128x1xf32>
    %317 = vector.shape_cast %6 : vector<128x128xf32> to vector<1x128x128xf32>
    %318 = vector.broadcast %316 : vector<2x128x1xf32> to vector<2x128x128xf32>
    %319 = vector.broadcast %317 : vector<1x128x128xf32> to vector<2x128x128xf32>
    %320 = arith.addf %318, %319 : vector<2x128x128xf32>
    %cst_64 = arith.constant dense<0xFF800000> : vector<2x128xf32>
    %321 = vector.multi_reduction <maximumf>, %320, %cst_64 [1] : vector<2x128x128xf32> to vector<2x128xf32>
    %322 = vector.shape_cast %321 : vector<2x128xf32> to vector<2x1x128xf32>
    %323 = vector.broadcast %322 : vector<2x1x128xf32> to vector<2x128x128xf32>
    %324 = arith.cmpf oeq, %320, %323 : vector<2x128x128xf32>
    %c128_i32_65 = arith.constant 128 : i32
    %325 = vector.broadcast %c128_i32_65 : i32 to vector<2x128x128xi32>
    %326 = arith.select %324, %17, %325 : vector<2x128x128xi1>, vector<2x128x128xi32>
    %cst_66 = arith.constant dense<2147483647> : vector<2x128xi32>
    %327 = vector.multi_reduction <minsi>, %326, %cst_66 [1] : vector<2x128x128xi32> to vector<2x128xi32>
    %328 = arith.addf %321, %301 : vector<2x128xf32>
    %c7_i32 = arith.constant 7 : i32
    %329 = vector.broadcast %c7_i32 : i32 to vector<2x1xi32>
    %330 = arith.cmpi sgt, %16, %329 : vector<2x1xi32>
    %331 = vector.shape_cast %330 : vector<2x1xi1> to vector<2x1xi1>
    %332 = vector.broadcast %331 : vector<2x1xi1> to vector<2x128xi1>
    %333 = arith.select %332, %315, %296 : vector<2x128xi1>, vector<2x128xf32>
    %334 = vector.shape_cast %330 : vector<2x1xi1> to vector<2x1xi1>
    %335 = vector.broadcast %334 : vector<2x1xi1> to vector<2x128xi1>
    %336 = arith.select %335, %328, %299 : vector<2x128xi1>, vector<2x128xf32>
    %337 = vector.broadcast %10 : vector<1x128xf32> to vector<2x128xf32>
    %338 = arith.addf %333, %337 : vector<2x128xf32>
    %cst_67 = arith.constant dense<0xFF800000> : vector<2xf32>
    %339 = vector.multi_reduction <maximumf>, %338, %cst_67 [1] : vector<2x128xf32> to vector<2xf32>
    %340 = vector.shape_cast %339 : vector<2xf32> to vector<2x1xf32>
    %341 = vector.broadcast %340 : vector<2x1xf32> to vector<2x128xf32>
    %342 = arith.subf %338, %341 : vector<2x128xf32>
    %343 = math.exp %342 : vector<2x128xf32>
    %cst_68 = arith.constant dense<0.000000e+00> : vector<2xf32>
    %344 = vector.multi_reduction <add>, %343, %cst_68 [1] : vector<2x128xf32> to vector<2xf32>
    %345 = vector.shape_cast %344 : vector<2xf32> to vector<2x1xf32>
    %346 = math.log %345 : vector<2x1xf32>
    %347 = arith.addf %340, %346 : vector<2x1xf32>
    %348 = arith.subf %73, %347 : vector<2x1xf32>
    %349 = vector.shape_cast %348 : vector<2x1xf32> to vector<1x2x1xf32>
    %c0_69 = arith.constant 0 : index
    %c0_70 = arith.constant 0 : index
    %c0_71 = arith.constant 0 : index
    %350 = vector.load %arg9[%c0_69, %c0_70, %c0_71] : memref<1x2x1xf32, #tpu.memory_space<vmem>>, vector<1x2x1xf32>
    tpu.vector_store %arg9[%c0_69, %c0_70, %c0_71], %349 {strides = array<i32>} : memref<1x2x1xf32, #tpu.memory_space<vmem>>, vector<1x2x1xf32>,
    %351 = vector.broadcast %10 : vector<1x128xf32> to vector<2x128xf32>
    %352 = arith.addf %336, %351 : vector<2x128xf32>
    %cst_72 = arith.constant dense<0xFF800000> : vector<2xf32>
    %353 = vector.multi_reduction <maximumf>, %352, %cst_72 [1] : vector<2x128xf32> to vector<2xf32>
    %354 = vector.shape_cast %353 : vector<2xf32> to vector<2x1xf32>
    %355 = vector.broadcast %354 : vector<2x1xf32> to vector<2x128xf32>
    %356 = arith.cmpf oeq, %352, %355 : vector<2x128xf32>
    %c128_i32_73 = arith.constant 128 : i32
    %357 = vector.broadcast %c128_i32_73 : i32 to vector<2x128xi32>
    %358 = arith.select %356, %18, %357 : vector<2x128xi1>, vector<2x128xi32>
    %cst_74 = arith.constant dense<2147483647> : vector<2xi32>
    %359 = vector.multi_reduction <minsi>, %358, %cst_74 [1] : vector<2x128xi32> to vector<2xi32>
    %360 = vector.shape_cast %359 : vector<2xi32> to vector<2x1xi32>
    %c1_i32_75 = arith.constant 1 : i32
    %361 = vector.broadcast %c1_i32_75 : i32 to vector<2x1xi32>
    %362 = arith.subi %16, %361 : vector<2x1xi32>
    %363 = vector.broadcast %362 : vector<2x1xi32> to vector<2x8xi32>
    %364 = arith.cmpi eq, %19, %363 : vector<2x8xi32>
    %c0_i32_76 = arith.constant 0 : i32
    %365 = vector.shape_cast %360 : vector<2x1xi32> to vector<2x1xi32>
    %366 = vector.broadcast %365 : vector<2x1xi32> to vector<2x8xi32>
    %367 = vector.broadcast %c0_i32_76 : i32 to vector<2x8xi32>
    %368 = arith.select %364, %366, %367 : vector<2x8xi1>, vector<2x8xi32>
    %369 = vector.broadcast %360 : vector<2x1xi32> to vector<2x128xi32>
    %370 = arith.cmpi eq, %18, %369 : vector<2x128xi32>
    %c0_i32_77 = arith.constant 0 : i32
    %371 = vector.broadcast %c0_i32_77 : i32 to vector<2x128xi32>
    %372 = arith.select %370, %327, %371 : vector<2x128xi1>, vector<2x128xi32>
    %cst_78 = arith.constant dense<0> : vector<2xi32>
    %373 = vector.multi_reduction <add>, %372, %cst_78 [1] : vector<2x128xi32> to vector<2xi32>
    %374 = vector.shape_cast %373 : vector<2xi32> to vector<2x1xi32>
    %c2_i32_79 = arith.constant 2 : i32
    %375 = vector.broadcast %c2_i32_79 : i32 to vector<2x1xi32>
    %376 = arith.subi %16, %375 : vector<2x1xi32>
    %c6_i32_80 = arith.constant 6 : i32
    %377 = vector.broadcast %c6_i32_80 : i32 to vector<2x1xi32>
    %378 = arith.cmpi sge, %376, %377 : vector<2x1xi32>
    %379 = arith.select %378, %374, %360 : vector<2x1xi1>, vector<2x1xi32>
    %c6_i32_81 = arith.constant 6 : i32
    %380 = vector.broadcast %c6_i32_81 : i32 to vector<2x8xi32>
    %381 = arith.cmpi eq, %19, %380 : vector<2x8xi32>
    %382 = vector.broadcast %378 : vector<2x1xi1> to vector<2x8xi1>
    %383 = arith.andi %382, %381 : vector<2x8xi1>
    %384 = vector.shape_cast %374 : vector<2x1xi32> to vector<2x1xi32>
    %385 = vector.broadcast %384 : vector<2x1xi32> to vector<2x8xi32>
    %386 = arith.select %383, %385, %368 : vector<2x8xi1>, vector<2x8xi32>
    %387 = vector.broadcast %379 : vector<2x1xi32> to vector<2x128xi32>
    %388 = arith.cmpi eq, %18, %387 : vector<2x128xi32>
    %c0_i32_82 = arith.constant 0 : i32
    %389 = vector.broadcast %c0_i32_82 : i32 to vector<2x128xi32>
    %390 = arith.select %388, %290, %389 : vector<2x128xi1>, vector<2x128xi32>
    %cst_83 = arith.constant dense<0> : vector<2xi32>
    %391 = vector.multi_reduction <add>, %390, %cst_83 [1] : vector<2x128xi32> to vector<2xi32>
    %392 = vector.shape_cast %391 : vector<2xi32> to vector<2x1xi32>
    %c2_i32_84 = arith.constant 2 : i32
    %393 = vector.broadcast %c2_i32_84 : i32 to vector<2x1xi32>
    %394 = arith.subi %16, %393 : vector<2x1xi32>
    %c5_i32_85 = arith.constant 5 : i32
    %395 = vector.broadcast %c5_i32_85 : i32 to vector<2x1xi32>
    %396 = arith.cmpi sge, %394, %395 : vector<2x1xi32>
    %397 = arith.select %396, %392, %379 : vector<2x1xi1>, vector<2x1xi32>
    %c5_i32_86 = arith.constant 5 : i32
    %398 = vector.broadcast %c5_i32_86 : i32 to vector<2x8xi32>
    %399 = arith.cmpi eq, %19, %398 : vector<2x8xi32>
    %400 = vector.broadcast %396 : vector<2x1xi1> to vector<2x8xi1>
    %401 = arith.andi %400, %399 : vector<2x8xi1>
    %402 = vector.shape_cast %392 : vector<2x1xi32> to vector<2x1xi32>
    %403 = vector.broadcast %402 : vector<2x1xi32> to vector<2x8xi32>
    %404 = arith.select %401, %403, %386 : vector<2x8xi1>, vector<2x8xi32>
    %405 = vector.broadcast %397 : vector<2x1xi32> to vector<2x128xi32>
    %406 = arith.cmpi eq, %18, %405 : vector<2x128xi32>
    %c0_i32_87 = arith.constant 0 : i32
    %407 = vector.broadcast %c0_i32_87 : i32 to vector<2x128xi32>
    %408 = arith.select %406, %253, %407 : vector<2x128xi1>, vector<2x128xi32>
    %cst_88 = arith.constant dense<0> : vector<2xi32>
    %409 = vector.multi_reduction <add>, %408, %cst_88 [1] : vector<2x128xi32> to vector<2xi32>
    %410 = vector.shape_cast %409 : vector<2xi32> to vector<2x1xi32>
    %c2_i32_89 = arith.constant 2 : i32
    %411 = vector.broadcast %c2_i32_89 : i32 to vector<2x1xi32>
    %412 = arith.subi %16, %411 : vector<2x1xi32>
    %c4_i32_90 = arith.constant 4 : i32
    %413 = vector.broadcast %c4_i32_90 : i32 to vector<2x1xi32>
    %414 = arith.cmpi sge, %412, %413 : vector<2x1xi32>
    %415 = arith.select %414, %410, %397 : vector<2x1xi1>, vector<2x1xi32>
    %c4_i32_91 = arith.constant 4 : i32
    %416 = vector.broadcast %c4_i32_91 : i32 to vector<2x8xi32>
    %417 = arith.cmpi eq, %19, %416 : vector<2x8xi32>
    %418 = vector.broadcast %414 : vector<2x1xi1> to vector<2x8xi1>
    %419 = arith.andi %418, %417 : vector<2x8xi1>
    %420 = vector.shape_cast %410 : vector<2x1xi32> to vector<2x1xi32>
    %421 = vector.broadcast %420 : vector<2x1xi32> to vector<2x8xi32>
    %422 = arith.select %419, %421, %404 : vector<2x8xi1>, vector<2x8xi32>
    %423 = vector.broadcast %415 : vector<2x1xi32> to vector<2x128xi32>
    %424 = arith.cmpi eq, %18, %423 : vector<2x128xi32>
    %c0_i32_92 = arith.constant 0 : i32
    %425 = vector.broadcast %c0_i32_92 : i32 to vector<2x128xi32>
    %426 = arith.select %424, %216, %425 : vector<2x128xi1>, vector<2x128xi32>
    %cst_93 = arith.constant dense<0> : vector<2xi32>
    %427 = vector.multi_reduction <add>, %426, %cst_93 [1] : vector<2x128xi32> to vector<2xi32>
    %428 = vector.shape_cast %427 : vector<2xi32> to vector<2x1xi32>
    %c2_i32_94 = arith.constant 2 : i32
    %429 = vector.broadcast %c2_i32_94 : i32 to vector<2x1xi32>
    %430 = arith.subi %16, %429 : vector<2x1xi32>
    %c3_i32_95 = arith.constant 3 : i32
    %431 = vector.broadcast %c3_i32_95 : i32 to vector<2x1xi32>
    %432 = arith.cmpi sge, %430, %431 : vector<2x1xi32>
    %433 = arith.select %432, %428, %415 : vector<2x1xi1>, vector<2x1xi32>
    %c3_i32_96 = arith.constant 3 : i32
    %434 = vector.broadcast %c3_i32_96 : i32 to vector<2x8xi32>
    %435 = arith.cmpi eq, %19, %434 : vector<2x8xi32>
    %436 = vector.broadcast %432 : vector<2x1xi1> to vector<2x8xi1>
    %437 = arith.andi %436, %435 : vector<2x8xi1>
    %438 = vector.shape_cast %428 : vector<2x1xi32> to vector<2x1xi32>
    %439 = vector.broadcast %438 : vector<2x1xi32> to vector<2x8xi32>
    %440 = arith.select %437, %439, %422 : vector<2x8xi1>, vector<2x8xi32>
    %441 = vector.broadcast %433 : vector<2x1xi32> to vector<2x128xi32>
    %442 = arith.cmpi eq, %18, %441 : vector<2x128xi32>
    %c0_i32_97 = arith.constant 0 : i32
    %443 = vector.broadcast %c0_i32_97 : i32 to vector<2x128xi32>
    %444 = arith.select %442, %179, %443 : vector<2x128xi1>, vector<2x128xi32>
    %cst_98 = arith.constant dense<0> : vector<2xi32>
    %445 = vector.multi_reduction <add>, %444, %cst_98 [1] : vector<2x128xi32> to vector<2xi32>
    %446 = vector.shape_cast %445 : vector<2xi32> to vector<2x1xi32>
    %c2_i32_99 = arith.constant 2 : i32
    %447 = vector.broadcast %c2_i32_99 : i32 to vector<2x1xi32>
    %448 = arith.subi %16, %447 : vector<2x1xi32>
    %c2_i32_100 = arith.constant 2 : i32
    %449 = vector.broadcast %c2_i32_100 : i32 to vector<2x1xi32>
    %450 = arith.cmpi sge, %448, %449 : vector<2x1xi32>
    %451 = arith.select %450, %446, %433 : vector<2x1xi1>, vector<2x1xi32>
    %c2_i32_101 = arith.constant 2 : i32
    %452 = vector.broadcast %c2_i32_101 : i32 to vector<2x8xi32>
    %453 = arith.cmpi eq, %19, %452 : vector<2x8xi32>
    %454 = vector.broadcast %450 : vector<2x1xi1> to vector<2x8xi1>
    %455 = arith.andi %454, %453 : vector<2x8xi1>
    %456 = vector.shape_cast %446 : vector<2x1xi32> to vector<2x1xi32>
    %457 = vector.broadcast %456 : vector<2x1xi32> to vector<2x8xi32>
    %458 = arith.select %455, %457, %440 : vector<2x8xi1>, vector<2x8xi32>
    %459 = vector.broadcast %451 : vector<2x1xi32> to vector<2x128xi32>
    %460 = arith.cmpi eq, %18, %459 : vector<2x128xi32>
    %c0_i32_102 = arith.constant 0 : i32
    %461 = vector.broadcast %c0_i32_102 : i32 to vector<2x128xi32>
    %462 = arith.select %460, %142, %461 : vector<2x128xi1>, vector<2x128xi32>
    %cst_103 = arith.constant dense<0> : vector<2xi32>
    %463 = vector.multi_reduction <add>, %462, %cst_103 [1] : vector<2x128xi32> to vector<2xi32>
    %464 = vector.shape_cast %463 : vector<2xi32> to vector<2x1xi32>
    %c2_i32_104 = arith.constant 2 : i32
    %465 = vector.broadcast %c2_i32_104 : i32 to vector<2x1xi32>
    %466 = arith.subi %16, %465 : vector<2x1xi32>
    %c1_i32_105 = arith.constant 1 : i32
    %467 = vector.broadcast %c1_i32_105 : i32 to vector<2x1xi32>
    %468 = arith.cmpi sge, %466, %467 : vector<2x1xi32>
    %469 = arith.select %468, %464, %451 : vector<2x1xi1>, vector<2x1xi32>
    %c1_i32_106 = arith.constant 1 : i32
    %470 = vector.broadcast %c1_i32_106 : i32 to vector<2x8xi32>
    %471 = arith.cmpi eq, %19, %470 : vector<2x8xi32>
    %472 = vector.broadcast %468 : vector<2x1xi1> to vector<2x8xi1>
    %473 = arith.andi %472, %471 : vector<2x8xi1>
    %474 = vector.shape_cast %464 : vector<2x1xi32> to vector<2x1xi32>
    %475 = vector.broadcast %474 : vector<2x1xi32> to vector<2x8xi32>
    %476 = arith.select %473, %475, %458 : vector<2x8xi1>, vector<2x8xi32>
    %477 = vector.broadcast %469 : vector<2x1xi32> to vector<2x128xi32>
    %478 = arith.cmpi eq, %18, %477 : vector<2x128xi32>
    %c0_i32_107 = arith.constant 0 : i32
    %479 = vector.broadcast %c0_i32_107 : i32 to vector<2x128xi32>
    %480 = arith.select %478, %105, %479 : vector<2x128xi1>, vector<2x128xi32>
    %cst_108 = arith.constant dense<0> : vector<2xi32>
    %481 = vector.multi_reduction <add>, %480, %cst_108 [1] : vector<2x128xi32> to vector<2xi32>
    %482 = vector.shape_cast %481 : vector<2xi32> to vector<2x1xi32>
    %c2_i32_109 = arith.constant 2 : i32
    %483 = vector.broadcast %c2_i32_109 : i32 to vector<2x1xi32>
    %484 = arith.subi %16, %483 : vector<2x1xi32>
    %c0_i32_110 = arith.constant 0 : i32
    %485 = vector.broadcast %c0_i32_110 : i32 to vector<2x1xi32>
    %486 = arith.cmpi sge, %484, %485 : vector<2x1xi32>
    %c0_i32_111 = arith.constant 0 : i32
    %487 = vector.broadcast %c0_i32_111 : i32 to vector<2x8xi32>
    %488 = arith.cmpi eq, %19, %487 : vector<2x8xi32>
    %489 = vector.broadcast %486 : vector<2x1xi1> to vector<2x8xi1>
    %490 = arith.andi %489, %488 : vector<2x8xi1>
    %491 = vector.shape_cast %482 : vector<2x1xi32> to vector<2x1xi32>
    %492 = vector.broadcast %491 : vector<2x1xi32> to vector<2x8xi32>
    %493 = arith.select %490, %492, %476 : vector<2x8xi1>, vector<2x8xi32>
    %494 = vector.shape_cast %493 : vector<2x8xi32> to vector<1x2x8xi32>
    %c0_112 = arith.constant 0 : index
    %c0_113 = arith.constant 0 : index
    %c0_114 = arith.constant 0 : index
    %495 = vector.load %arg10[%c0_112, %c0_113, %c0_114] : memref<1x2x8xi32, #tpu.memory_space<vmem>>, vector<1x2x8xi32>
    tpu.vector_store %arg10[%c0_112, %c0_113, %c0_114], %494 {strides = array<i32>} : memref<1x2x8xi32, #tpu.memory_space<vmem>>, vector<1x2x8xi32>,
    %496 = vector.shape_cast %354 : vector<2x1xf32> to vector<1x2x1xf32>
    %c0_115 = arith.constant 0 : index
    %c0_116 = arith.constant 0 : index
    %c0_117 = arith.constant 0 : index
    %497 = vector.load %arg11[%c0_115, %c0_116, %c0_117] : memref<1x2x1xf32, #tpu.memory_space<vmem>>, vector<1x2x1xf32>
    tpu.vector_store %arg11[%c0_115, %c0_116, %c0_117], %496 {strides = array<i32>} : memref<1x2x1xf32, #tpu.memory_space<vmem>>, vector<1x2x1xf32>,
    return
  }
  func.func @transform_0(%arg0: i32) -> (i32, i32, i32) {
    %c0_i32 = arith.constant 0 : i32
    %c0_i32_0 = arith.constant 0 : i32
    %c0_i32_1 = arith.constant 0 : i32
    %c0_i32_2 = arith.constant 0 : i32
    return %c0_i32, %c0_i32_0, %c0_i32_1 : i32, i32, i32
  }
  func.func @transform_1(%arg0: i32) -> (i32, i32, i32) {
    %c0_i32 = arith.constant 0 : i32
    %c0_i32_0 = arith.constant 0 : i32
    %c0_i32_1 = arith.constant 0 : i32
    return %arg0, %c0_i32, %c0_i32_0 : i32, i32, i32
  }
  func.func @transform_2(%arg0: i32) -> (i32, i32, i32) {
    %c0_i32 = arith.constant 0 : i32
    %c0_i32_0 = arith.constant 0 : i32
    %c0_i32_1 = arith.constant 0 : i32
    return %arg0, %c0_i32, %c0_i32_0 : i32, i32, i32
  }
  func.func @transform_3(%arg0: i32) -> (i32, i32, i32) {
    %c0_i32 = arith.constant 0 : i32
    %c0_i32_0 = arith.constant 0 : i32
    %c0_i32_1 = arith.constant 0 : i32
    return %arg0, %c0_i32, %c0_i32_0 : i32, i32, i32
  }
  func.func @transform_4(%arg0: i32) -> (i32, i32, i32) {
    %c0_i32 = arith.constant 0 : i32
    %c0_i32_0 = arith.constant 0 : i32
    %c0_i32_1 = arith.constant 0 : i32
    return %arg0, %c0_i32, %c0_i32_0 : i32, i32, i32
  }
  func.func @transform_5(%arg0: i32) -> (i32, i32, i32) {
    %c0_i32 = arith.constant 0 : i32
    %c0_i32_0 = arith.constant 0 : i32
    %c0_i32_1 = arith.constant 0 : i32
    return %arg0, %c0_i32, %c0_i32_0 : i32, i32, i32
  }
  func.func @transform_6(%arg0: i32) -> (i32, i32, i32) {
    %c0_i32 = arith.constant 0 : i32
    %c0_i32_0 = arith.constant 0 : i32
    %c0_i32_1 = arith.constant 0 : i32
    return %arg0, %c0_i32, %c0_i32_0 : i32, i32, i32
  }
  func.func @transform_7(%arg0: i32) -> (i32, i32) {
    %c0_i32 = arith.constant 0 : i32
    %c0_i32_0 = arith.constant 0 : i32
    %c0_i32_1 = arith.constant 0 : i32
    return %c0_i32, %c0_i32_0 : i32, i32
  }
  func.func @transform_8(%arg0: i32) -> (i32, i32, i32) {
    %c0_i32 = arith.constant 0 : i32
    %c0_i32_0 = arith.constant 0 : i32
    %c0_i32_1 = arith.constant 0 : i32
    return %arg0, %c0_i32, %c0_i32_0 : i32, i32, i32
  }
  func.func @transform_9(%arg0: i32) -> (i32, i32, i32) {
    %c0_i32 = arith.constant 0 : i32
    %c0_i32_0 = arith.constant 0 : i32
    %c0_i32_1 = arith.constant 0 : i32
    return %arg0, %c0_i32, %c0_i32_0 : i32, i32, i32
  }
  func.func @transform_10(%arg0: i32) -> (i32, i32, i32) {
    %c0_i32 = arith.constant 0 : i32
    %c0_i32_0 = arith.constant 0 : i32
    %c0_i32_1 = arith.constant 0 : i32
    return %arg0, %c0_i32, %c0_i32_0 : i32, i32, i32
  }
}

</mosaic_0001>

<llo_original>
// kernel: tpu_custom_call.1
$region0: #{tpu_custom_call.1}
  #allocation0 [shape = 'u32[]', space=smem, size = 0x4, offset = 0x4, fixed_abs, tag = 'smem constant byte address 0x4 - core index']
  #allocation1 [shape = 'u32[72,128]{1,0:T(1,128)}', space=vmem, size = 0x9000, scoped, tag = 'internal scratch']
  %s0 = inlined_call_operand.hbm [shape: f32[2,8,32], index: 0, kind: input, shape index: {}]
  %s1 = inlined_call_operand.hbm [shape: f32[2,32,128], index: 1, kind: input, shape index: {}]
  %s2 = inlined_call_operand.hbm [shape: f32[2,1,128], index: 2, kind: input, shape index: {}]
  %s3 = inlined_call_operand.hbm [shape: f32[2,128,128], index: 3, kind: input, shape index: {}]
  %s4 = inlined_call_operand.hbm [shape: f32[2,1,128], index: 4, kind: input, shape index: {}]
  %s5 = inlined_call_operand.hbm [shape: f32[2,1,128], index: 5, kind: input, shape index: {}]
  %s6 = inlined_call_operand.vmem [shape: s32[2,2,8], index: 6, kind: input, shape index: {}]
  %s7 = inlined_call_operand.vmem [shape: s32[2,8], index: 7, kind: input, shape index: {}]
  %s8 = inlined_call_operand.vmem [shape: f32[2,2,1], index: 8, kind: output, shape index: {0}]
  %s9 = inlined_call_operand.hbm [shape: s32[2,2,8], index: 9, kind: output, shape index: {1}]
  %s10 = inlined_call_operand.vmem [shape: f32[2,2,1], index: 10, kind: output, shape index: {2}]
  %11 = xla_tuple %s8, %s9, %s10
  %s12 = sld [smem:[#allocation0]]
  $region105: #{tpu_custom_call.1} parent=0
    _
  %s14 = ssub.s32 1, %s12
  %s15 = scalar_select 0, %s14, %s12
  $region1: #{tpu_custom_call.1} parent=0
    #allocation2 [shape = 'u8[8192]{0}', space=vmem, size = 0x2000, scoped, tag = 'input window, operand 0, single buffered']
    #allocation3 [shape = 's32[2]{0}', space=sflag, size = 0x8, scoped, tag = 'scoped memory for tpu_custom_call.1']
    #allocation4 [shape = 's32[2]{0}', space=sflag, size = 0x8, scoped, tag = 'scoped memory for tpu_custom_call.1']
    #allocation5 [shape = 'u8[32768]{0}', space=vmem, size = 0x8000, scoped, tag = 'input window, operand 1']
    #allocation6 [shape = 's32[2]{0}', space=sflag, size = 0x8, scoped, tag = 'scoped memory for tpu_custom_call.1']
    #allocation7 [shape = 'u8[1024]{0}', space=vmem, size = 0x400, scoped, tag = 'input window, operand 2']
    #allocation8 [shape = 'u8[131072]{0}', space=vmem, size = 0x20000, scoped, tag = 'input window, operand 3']
    #allocation9 [shape = 's32[2]{0}', space=sflag, size = 0x8, scoped, tag = 'scoped memory for tpu_custom_call.1']
    #allocation10 [shape = 'u8[1024]{0}', space=vmem, size = 0x400, scoped, tag = 'input window, operand 4']
    #allocation11 [shape = 'u8[1024]{0}', space=vmem, size = 0x400, scoped, tag = 'input window, operand 5']
    #allocation12 [shape = 's32[2]{0}', space=sflag, size = 0x8, scoped, tag = 'scoped memory for tpu_custom_call.1']
    #allocation13 [shape = 'u8[2048]{0}', space=vmem, size = 0x800, scoped, tag = 'output window, operand 1']
    %16 = vsyncpa [#allocation3], 0
    %17 = vsyncpa [#allocation6], 0
    %s18 = scalar_lea.sflag [#allocation6], 1
    %19 = vsyncpa %s18, 0
    %20 = vsyncpa [#allocation9], 0
    %s21 = scalar_lea.sflag [#allocation9], 1
    %22 = vsyncpa %s21, 0
    %23 = vsyncpa [#allocation12], 0
    %s24 = scalar_lea.sflag [#allocation12], 1
    %25 = vsyncpa %s24, 0
    %26 = vsyncpa [#allocation4], 0
    %s27 = scalar_lea.sflag [#allocation4], 1
    %28 = vsyncpa %s27, 0
    loop: start=0, step=1, limit=4
    $region2: #{tpu_custom_call.1} parent=1 // loop_pre_header
      _
    $region3: #{tpu_custom_call.1} parent=1 // loop_header
      %s30 = sphi 0, %s34
      %p31 = scmp.ge.s32.totalorder %s30, 4
      %s38 = sphi 0, %s38
      %s40 = sphi 0, %s38
      %s41 = sphi 0, %s40
      %s55 = sphi 0, %s41
      %s61 = sphi 0, %s63
      %s64 = sphi 0, %s61
      %s65 = sphi 0, %s64
      %s81 = sphi 0, %s65
      %s87 = sphi 0, %s89
      %s90 = sphi 0, %s87
      %s91 = sphi 0, %s90
      %s107 = sphi 0, %s91
      %s113 = sphi 0, %s115
      %s116 = sphi 0, %s113
      %s117 = sphi 0, %s116
      %s133 = sphi 0, %s117
      %s139 = sphi 0, %s141
      %s142 = sphi 0, %s139
      %s143 = sphi 0, %s142
      %s159 = sphi 0, %s143
      %s165 = sphi 0, %s167
      %s168 = sphi 0, %s165
      %s169 = sphi 0, %s168
      %s185 = sphi 0, %s169
      %s191 = sphi 0, %s193
      %s194 = sphi 0, %s191
      %s195 = sphi 0, %s194
      %s211 = sphi 0, %s195
      %s215 = sphi 0, %s215
      %s217 = sphi 0, %s215
      %s218 = sphi 0, %s217
      %s232 = sphi 0, %s218
      %s238 = sphi 0, %s240
      %s241 = sphi 0, %s238
      %s242 = sphi 0, %s241
      %s258 = sphi 0, %s242
      %s264 = sphi 0, %s266
      %s267 = sphi 0, %s264
      %s268 = sphi 0, %s267
      %s284 = sphi 0, %s268
      %s290 = sphi 0, %s292
      %s293 = sphi 0, %s290
      %s294 = sphi 0, %s293
      %s310 = sphi 0, %s294
    $region4: #{tpu_custom_call.1} parent=1 // loop_header_branch
      %33 = sbr.rel (%p31) target = $region8
    $region5: #{tpu_custom_call.1} parent=1 // loop_body
      %s35 = ssub.s32 %s30, 1
      %s36 = ssub.s32 %s30, 2
      %s37 = sadd.s32 %s30, 1
      %s39 = sadd.s32 %s38, 1
      %p42 = scmp.eq.s32.totalorder %s30, 1
      %p43 = scmp.ne.s32.totalorder %s38, %s40
      %p44 = scmp.eq.s32.totalorder %s30, 0
      %p45 = por %p43, %p44
      %p46 = scmp.ne.s32.totalorder %s38, %s40
      %p47 = scmp.eq.s32.totalorder %s35, 1
      %p48 = por %p46, %p47
      %p49 = scmp.ne.s32.totalorder %s40, %s41
      %p50 = scmp.eq.s32.totalorder %s35, 0
      %p51 = por %p49, %p50
      %p52 = scmp.ne.s32.totalorder %s40, %s41
      %p53 = scmp.eq.s32.totalorder %s36, 1
      %p54 = por %p52, %p53
      %p56 = scmp.ne.s32.totalorder %s41, %s55
      %p57 = scmp.eq.s32.totalorder %s36, 0
      %p58 = por %p56, %p57
      %s59 = ssub.s32 %s30, %s37
      %p60 = scmp.eq.s32.totalorder %s59, 0
      %s62 = sadd.s32 %s61, 1
      %s63 = scalar_select %p60, %s61, %s62
      %p66 = pneg %p60
      %p67 = scmp.eq.s32.totalorder %s30, 1
      %p68 = por %p66, %p67
      %p69 = scmp.ne.s32.totalorder %s61, %s64
      %p70 = scmp.eq.s32.totalorder %s30, 0
      %p71 = por %p69, %p70
      %p72 = scmp.ne.s32.totalorder %s61, %s64
      %p73 = scmp.eq.s32.totalorder %s35, 1
      %p74 = por %p72, %p73
      %p75 = scmp.ne.s32.totalorder %s64, %s65
      %p76 = scmp.eq.s32.totalorder %s35, 0
      %p77 = por %p75, %p76
      %p78 = scmp.ne.s32.totalorder %s64, %s65
      %p79 = scmp.eq.s32.totalorder %s36, 1
      %p80 = por %p78, %p79
      %p82 = scmp.ne.s32.totalorder %s65, %s81
      %p83 = scmp.eq.s32.totalorder %s36, 0
      %p84 = por %p82, %p83
      %s85 = ssub.s32 %s30, %s37
      %p86 = scmp.eq.s32.totalorder %s85, 0
      %s88 = sadd.s32 %s87, 1
      %s89 = scalar_select %p86, %s87, %s88
      %p92 = pneg %p86
      %p93 = scmp.eq.s32.totalorder %s30, 1
      %p94 = por %p92, %p93
      %p95 = scmp.ne.s32.totalorder %s87, %s90
      %p96 = scmp.eq.s32.totalorder %s30, 0
      %p97 = por %p95, %p96
      %p98 = scmp.ne.s32.totalorder %s87, %s90
      %p99 = scmp.eq.s32.totalorder %s35, 1
      %p100 = por %p98, %p99
      %p101 = scmp.ne.s32.totalorder %s90, %s91
      %p102 = scmp.eq.s32.totalorder %s35, 0
      %p103 = por %p101, %p102
      %p104 = scmp.ne.s32.totalorder %s90, %s91
      %p105 = scmp.eq.s32.totalorder %s36, 1
      %p106 = por %p104, %p105
      %p108 = scmp.ne.s32.totalorder %s91, %s107
      %p109 = scmp.eq.s32.totalorder %s36, 0
      %p110 = por %p108, %p109
      %s111 = ssub.s32 %s30, %s37
      %p112 = scmp.eq.s32.totalorder %s111, 0
      %s114 = sadd.s32 %s113, 1
      %s115 = scalar_select %p112, %s113, %s114
      %p118 = pneg %p112
      %p119 = scmp.eq.s32.totalorder %s30, 1
      %p120 = por %p118, %p119
      %p121 = scmp.ne.s32.totalorder %s113, %s116
      %p122 = scmp.eq.s32.totalorder %s30, 0
      %p123 = por %p121, %p122
      %p124 = scmp.ne.s32.totalorder %s113, %s116
      %p125 = scmp.eq.s32.totalorder %s35, 1
      %p126 = por %p124, %p125
      %p127 = scmp.ne.s32.totalorder %s116, %s117
      %p128 = scmp.eq.s32.totalorder %s35, 0
      %p129 = por %p127, %p128
      %p130 = scmp.ne.s32.totalorder %s116, %s117
      %p131 = scmp.eq.s32.totalorder %s36, 1
      %p132 = por %p130, %p131
      %p134 = scmp.ne.s32.totalorder %s117, %s133
      %p135 = scmp.eq.s32.totalorder %s36, 0
      %p136 = por %p134, %p135
      %s137 = ssub.s32 %s30, %s37
      %p138 = scmp.eq.s32.totalorder %s137, 0
      %s140 = sadd.s32 %s139, 1
      %s141 = scalar_select %p138, %s139, %s140
      %p144 = pneg %p138
      %p145 = scmp.eq.s32.totalorder %s30, 1
      %p146 = por %p144, %p145
      %p147 = scmp.ne.s32.totalorder %s139, %s142
      %p148 = scmp.eq.s32.totalorder %s30, 0
      %p149 = por %p147, %p148
      %p150 = scmp.ne.s32.totalorder %s139, %s142
      %p151 = scmp.eq.s32.totalorder %s35, 1
      %p152 = por %p150, %p151
      %p153 = scmp.ne.s32.totalorder %s142, %s143
      %p154 = scmp.eq.s32.totalorder %s35, 0
      %p155 = por %p153, %p154
      %p156 = scmp.ne.s32.totalorder %s142, %s143
      %p157 = scmp.eq.s32.totalorder %s36, 1
      %p158 = por %p156, %p157
      %p160 = scmp.ne.s32.totalorder %s143, %s159
      %p161 = scmp.eq.s32.totalorder %s36, 0
      %p162 = por %p160, %p161
      %s163 = ssub.s32 %s30, %s37
      %p164 = scmp.eq.s32.totalorder %s163, 0
      %s166 = sadd.s32 %s165, 1
      %s167 = scalar_select %p164, %s165, %s166
      %p170 = pneg %p164
      %p171 = scmp.eq.s32.totalorder %s30, 1
      %p172 = por %p170, %p171
      %p173 = scmp.ne.s32.totalorder %s165, %s168
      %p174 = scmp.eq.s32.totalorder %s30, 0
      %p175 = por %p173, %p174
      %p176 = scmp.ne.s32.totalorder %s165, %s168
      %p177 = scmp.eq.s32.totalorder %s35, 1
      %p178 = por %p176, %p177
      %p179 = scmp.ne.s32.totalorder %s168, %s169
      %p180 = scmp.eq.s32.totalorder %s35, 0
      %p181 = por %p179, %p180
      %p182 = scmp.ne.s32.totalorder %s168, %s169
      %p183 = scmp.eq.s32.totalorder %s36, 1
      %p184 = por %p182, %p183
      %p186 = scmp.ne.s32.totalorder %s169, %s185
      %p187 = scmp.eq.s32.totalorder %s36, 0
      %p188 = por %p186, %p187
      %s189 = ssub.s32 %s30, %s37
      %p190 = scmp.eq.s32.totalorder %s189, 0
      %s192 = sadd.s32 %s191, 1
      %s193 = scalar_select %p190, %s191, %s192
      %p196 = pneg %p190
      %p197 = scmp.eq.s32.totalorder %s30, 1
      %p198 = por %p196, %p197
      %p199 = scmp.ne.s32.totalorder %s191, %s194
      %p200 = scmp.eq.s32.totalorder %s30, 0
      %p201 = por %p199, %p200
      %p202 = scmp.ne.s32.totalorder %s191, %s194
      %p203 = scmp.eq.s32.totalorder %s35, 1
      %p204 = por %p202, %p203
      %p205 = scmp.ne.s32.totalorder %s194, %s195
      %p206 = scmp.eq.s32.totalorder %s35, 0
      %p207 = por %p205, %p206
      %p208 = scmp.ne.s32.totalorder %s194, %s195
      %p209 = scmp.eq.s32.totalorder %s36, 1
      %p210 = por %p208, %p209
      %p212 = scmp.ne.s32.totalorder %s195, %s211
      %p213 = scmp.eq.s32.totalorder %s36, 0
      %p214 = por %p212, %p213
      %s216 = sadd.s32 %s215, 1
      %p219 = scmp.eq.s32.totalorder %s30, 1
      %p220 = scmp.ne.s32.totalorder %s215, %s217
      %p221 = scmp.eq.s32.totalorder %s30, 0
      %p222 = por %p220, %p221
      %p223 = scmp.ne.s32.totalorder %s215, %s217
      %p224 = scmp.eq.s32.totalorder %s35, 1
      %p225 = por %p223, %p224
      %p226 = scmp.ne.s32.totalorder %s217, %s218
      %p227 = scmp.eq.s32.totalorder %s35, 0
      %p228 = por %p226, %p227
      %p229 = scmp.ne.s32.totalorder %s217, %s218
      %p230 = scmp.eq.s32.totalorder %s36, 1
      %p231 = por %p229, %p230
      %p233 = scmp.ne.s32.totalorder %s218, %s232
      %p234 = scmp.eq.s32.totalorder %s36, 0
      %p235 = por %p233, %p234
      %s236 = ssub.s32 %s30, %s37
      %p237 = scmp.eq.s32.totalorder %s236, 0
      %s239 = sadd.s32 %s238, 1
      %s240 = scalar_select %p237, %s238, %s239
      %p243 = pneg %p237
      %p244 = scmp.eq.s32.totalorder %s30, 1
      %p245 = por %p243, %p244
      %p246 = scmp.ne.s32.totalorder %s238, %s241
      %p247 = scmp.eq.s32.totalorder %s30, 0
      %p248 = por %p246, %p247
      %p249 = scmp.ne.s32.totalorder %s238, %s241
      %p250 = scmp.eq.s32.totalorder %s35, 1
      %p251 = por %p249, %p250
      %p252 = scmp.ne.s32.totalorder %s241, %s242
      %p253 = scmp.eq.s32.totalorder %s35, 0
      %p254 = por %p252, %p253
      %p255 = scmp.ne.s32.totalorder %s241, %s242
      %p256 = scmp.eq.s32.totalorder %s36, 1
      %p257 = por %p255, %p256
      %p259 = scmp.ne.s32.totalorder %s242, %s258
      %p260 = scmp.eq.s32.totalorder %s36, 0
      %p261 = por %p259, %p260
      %s262 = ssub.s32 %s30, %s37
      %p263 = scmp.eq.s32.totalorder %s262, 0
      %s265 = sadd.s32 %s264, 1
      %s266 = scalar_select %p263, %s264, %s265
      %p269 = pneg %p263
      %p270 = scmp.eq.s32.totalorder %s30, 1
      %p271 = por %p269, %p270
      %p272 = scmp.ne.s32.totalorder %s264, %s267
      %p273 = scmp.eq.s32.totalorder %s30, 0
      %p274 = por %p272, %p273
      %p275 = scmp.ne.s32.totalorder %s264, %s267
      %p276 = scmp.eq.s32.totalorder %s35, 1
      %p277 = por %p275, %p276
      %p278 = scmp.ne.s32.totalorder %s267, %s268
      %p279 = scmp.eq.s32.totalorder %s35, 0
      %p280 = por %p278, %p279
      %p281 = scmp.ne.s32.totalorder %s267, %s268
      %p282 = scmp.eq.s32.totalorder %s36, 1
      %p283 = por %p281, %p282
      %p285 = scmp.ne.s32.totalorder %s268, %s284
      %p286 = scmp.eq.s32.totalorder %s36, 0
      %p287 = por %p285, %p286
      %s288 = ssub.s32 %s30, %s37
      %p289 = scmp.eq.s32.totalorder %s288, 0
      %s291 = sadd.s32 %s290, 1
      %s292 = scalar_select %p289, %s290, %s291
      %p295 = pneg %p289
      %p296 = scmp.eq.s32.totalorder %s30, 1
      %p297 = por %p295, %p296
      %p298 = scmp.ne.s32.totalorder %s290, %s293
      %p299 = scmp.eq.s32.totalorder %s30, 0
      %p300 = por %p298, %p299
      %p301 = scmp.ne.s32.totalorder %s290, %s293
      %p302 = scmp.eq.s32.totalorder %s35, 1
      %p303 = por %p301, %p302
      %p304 = scmp.ne.s32.totalorder %s293, %s294
      %p305 = scmp.eq.s32.totalorder %s35, 0
      %p306 = por %p304, %p305
      %p307 = scmp.ne.s32.totalorder %s293, %s294
      %p308 = scmp.eq.s32.totalorder %s36, 1
      %p309 = por %p307, %p308
      %p311 = scmp.ne.s32.totalorder %s294, %s310
      %p312 = scmp.eq.s32.totalorder %s36, 0
      %p313 = por %p311, %p312
      %p314 = scmp.le.s32.totalorder 1, %s30
      %p315 = scmp.lt.s32.totalorder %s30, 3
      %p316 = pnand %p314, %p315
      %p317 = pneg %p316
      // Predicated region
      $region9: #{tpu_custom_call.1} parent=5 // pred_check
        _
      $region10: #{tpu_custom_call.1} parent=5 // pred_check_branch
        %319 = sbr.rel (%p316) target = $region12
      $region11: #{tpu_custom_call.1} parent=5 // pred_region
        %s320 = ssub.s32 %s30, 1
        // Predicated region
        $region13: #{tpu_custom_call.1} parent=11 // pred_check
          %p321 = pneg %p51
        $region14: #{tpu_custom_call.1} parent=11 // pred_check_branch
          %323 = sbr.rel (%p321) target = $region16
        $region15: #{tpu_custom_call.1} parent=11 // pred_region
          %325 = vsyncadd [#allocation3], 0
          %s326 = sshll.u32 %s0, 4
          %s327 = int_to_ptr.hbm [resolvable:$true] %s326
          %s328 = sshll.u32 [#allocation2], 4
          %s329 = int_to_ptr.vmem [resolvable:$true] %s328
          %334 = dma.hbm_to_vmem [thread:$0]  %s327, 256, %s329, [#allocation3], 128, 128, 8
        $region16: #{tpu_custom_call.1} parent=11 // pred_fallthru
          _
        // Predicated region
        $region17: #{tpu_custom_call.1} parent=11 // pred_check
          %p335 = pneg %p228
        $region18: #{tpu_custom_call.1} parent=11 // pred_check_branch
          %337 = sbr.rel (%p335) target = $region20
        $region19: #{tpu_custom_call.1} parent=11 // pred_region
          _
        $region20: #{tpu_custom_call.1} parent=11 // pred_fallthru
          _
      $region12: #{tpu_custom_call.1} parent=5 // pred_fallthru
        _
      %p338 = scmp.lt.s32.totalorder %s30, 2
      // Predicated region
      $region21: #{tpu_custom_call.1} parent=5 // pred_check
        %p339 = pneg %p338
      $region22: #{tpu_custom_call.1} parent=5 // pred_check_branch
        %341 = sbr.rel (%p339) target = $region24
      $region23: #{tpu_custom_call.1} parent=5 // pred_region
        // Predicated region
        $region25: #{tpu_custom_call.1} parent=23 // pred_check
          %p342 = pneg %p71
        $region26: #{tpu_custom_call.1} parent=23 // pred_check_branch
          %344 = sbr.rel (%p342) target = $region28
        $region27: #{tpu_custom_call.1} parent=23 // pred_region
          %s345 = sand.u32 %s30, 1
          %s346 = scalar_lea.sflag [#allocation6], %s345
          %s347 = sand.u32 %s61, 1
          %s348 = smul.addr %s347, 32
          %s349 = scalar_lea.vmem [#allocation5], %s348
          %351 = vsyncadd %s346, 0
          %s352 = smul.addr %s30, 4
          %s353 = smul.addr %s352, 8
          %s354 = scalar_lea.hbm %s1, %s353
          %s355 = sshll.u32 %s354, 4
          %s356 = int_to_ptr.hbm [resolvable:$true] %s355
          %s357 = sshll.u32 %s349, 4
          %s358 = int_to_ptr.vmem [resolvable:$true] %s357
          %363 = dma.hbm_to_vmem [thread:$0]  %s356, 512, %s358, %s346, 128, 128, 8
        $region28: #{tpu_custom_call.1} parent=23 // pred_fallthru
          _
        // Predicated region
        $region29: #{tpu_custom_call.1} parent=23 // pred_check
          %p364 = pneg %p97
        $region30: #{tpu_custom_call.1} parent=23 // pred_check_branch
          %366 = sbr.rel (%p364) target = $region32
        $region31: #{tpu_custom_call.1} parent=23 // pred_region
          %s367 = sand.u32 %s30, 1
          %s368 = scalar_lea.sflag [#allocation6], %s367
          %s369 = sand.u32 %s87, 1
          %s370 = scalar_lea.vmem [#allocation7], %s369
          %372 = vsyncadd %s368, 0
          %s373 = scalar_lea.hbm %s2, %s30
          %s375 = sshll.u32 %s373, 4
          %s376 = int_to_ptr.hbm [resolvable:$true] %s375
          %s377 = sshll.u32 %s370, 4
          %s378 = int_to_ptr.vmem [resolvable:$true] %s377
          %380 = dma.hbm_to_vmem [thread:$0]  %s376, 16, %s378, %s368
        $region32: #{tpu_custom_call.1} parent=23 // pred_fallthru
          _
        // Predicated region
        $region33: #{tpu_custom_call.1} parent=23 // pred_check
          %p381 = pneg %p123
        $region34: #{tpu_custom_call.1} parent=23 // pred_check_branch
          %383 = sbr.rel (%p381) target = $region36
        $region35: #{tpu_custom_call.1} parent=23 // pred_region
          %s384 = sand.u32 %s30, 1
          %s385 = scalar_lea.sflag [#allocation9], %s384
          %s386 = sand.u32 %s113, 1
          %s387 = smul.addr %s386, 128
          %s388 = scalar_lea.vmem [#allocation8], %s387
          %390 = vsyncadd %s385, 0
          %s391 = smul.addr %s30, 16
          %s392 = smul.addr %s391, 8
          %s393 = scalar_lea.hbm %s3, %s392
          %s394 = sshll.u32 %s393, 4
          %s395 = int_to_ptr.hbm [resolvable:$true] %s394
          %s396 = sshll.u32 %s388, 4
          %s397 = int_to_ptr.vmem [resolvable:$true] %s396
          %402 = dma.hbm_to_vmem [thread:$0]  %s395, 2048, %s397, %s385, 128, 128, 8
        $region36: #{tpu_custom_call.1} parent=23 // pred_fallthru
          _
        // Predicated region
        $region37: #{tpu_custom_call.1} parent=23 // pred_check
          %p403 = pneg %p149
        $region38: #{tpu_custom_call.1} parent=23 // pred_check_branch
          %405 = sbr.rel (%p403) target = $region40
        $region39: #{tpu_custom_call.1} parent=23 // pred_region
          %s406 = sand.u32 %s30, 1
          %s407 = scalar_lea.sflag [#allocation9], %s406
          %s408 = sand.u32 %s139, 1
          %s409 = scalar_lea.vmem [#allocation10], %s408
          %411 = vsyncadd %s407, 0
          %s412 = scalar_lea.hbm %s4, %s30
          %s414 = sshll.u32 %s412, 4
          %s415 = int_to_ptr.hbm [resolvable:$true] %s414
          %s416 = sshll.u32 %s409, 4
          %s417 = int_to_ptr.vmem [resolvable:$true] %s416
          %419 = dma.hbm_to_vmem [thread:$0]  %s415, 16, %s417, %s407
        $region40: #{tpu_custom_call.1} parent=23 // pred_fallthru
          _
        // Predicated region
        $region41: #{tpu_custom_call.1} parent=23 // pred_check
          %p420 = pneg %p175
        $region42: #{tpu_custom_call.1} parent=23 // pred_check_branch
          %422 = sbr.rel (%p420) target = $region44
        $region43: #{tpu_custom_call.1} parent=23 // pred_region
          %s423 = sand.u32 %s165, 1
          %s424 = scalar_lea.sflag [#allocation12], %s423
          %s425 = sand.u32 %s165, 1
          %s426 = scalar_lea.vmem [#allocation11], %s425
          %428 = vsyncadd %s424, 0
          %s429 = scalar_lea.hbm %s5, %s30
          %s431 = sshll.u32 %s429, 4
          %s432 = int_to_ptr.hbm [resolvable:$true] %s431
          %s433 = sshll.u32 %s426, 4
          %s434 = int_to_ptr.vmem [resolvable:$true] %s433
          %436 = dma.hbm_to_vmem [thread:$0]  %s432, 16, %s434, %s424
        $region44: #{tpu_custom_call.1} parent=23 // pred_fallthru
          _
        // Predicated region
        $region45: #{tpu_custom_call.1} parent=23 // pred_check
          %p437 = pneg %p201
        $region46: #{tpu_custom_call.1} parent=23 // pred_check_branch
          %439 = sbr.rel (%p437) target = $region48
        $region47: #{tpu_custom_call.1} parent=23 // pred_region
          %p440 = scmp.lt.s32.totalorder %s30, 1
          %s441 = scalar_select %p440, %s30, 1
          %s442 = smul.addr %s441, 2
          %s443 = scalar_lea.vmem %s6, %s442
        $region48: #{tpu_custom_call.1} parent=23 // pred_fallthru
          _
      $region24: #{tpu_custom_call.1} parent=5 // pred_fallthru
        _
      %p444 = scmp.le.s32.totalorder 1, %s30
      %p445 = scmp.lt.s32.totalorder %s30, 3
      %p446 = pnand %p444, %p445
      %p447 = pneg %p446
      // Predicated region
      $region49: #{tpu_custom_call.1} parent=5 // pred_check
        _
      $region50: #{tpu_custom_call.1} parent=5 // pred_check_branch
        %449 = sbr.rel (%p446) target = $region52
      $region51: #{tpu_custom_call.1} parent=5 // pred_region
        %s450 = ssub.s32 %s30, 1
        // Predicated region
        $region53: #{tpu_custom_call.1} parent=51 // pred_check
          %p451 = pneg %p51
        $region54: #{tpu_custom_call.1} parent=51 // pred_check_branch
          %453 = sbr.rel (%p451) target = $region56
        $region55: #{tpu_custom_call.1} parent=51 // pred_region
          %455 = dma.done [#allocation3], 256
        $region56: #{tpu_custom_call.1} parent=51 // pred_fallthru
          _
        %s456 = sand.u32 %s35, 1
        %s457 = scalar_lea.sflag [#allocation6], %s456
        %s458 = sand.u32 %s64, 1
        %s459 = smul.addr %s458, 32
        %s460 = scalar_lea.vmem [#allocation5], %s459
        // Predicated region
        $region57: #{tpu_custom_call.1} parent=51 // pred_check
          %p461 = pneg %p77
        $region58: #{tpu_custom_call.1} parent=51 // pred_check_branch
          %463 = sbr.rel (%p461) target = $region60
        $region59: #{tpu_custom_call.1} parent=51 // pred_region
          %465 = dma.done %s457, 512
        $region60: #{tpu_custom_call.1} parent=51 // pred_fallthru
          _
        %s466 = sand.u32 %s35, 1
        %s467 = scalar_lea.sflag [#allocation6], %s466
        %s468 = sand.u32 %s90, 1
        %s469 = scalar_lea.vmem [#allocation7], %s468
        // Predicated region
        $region61: #{tpu_custom_call.1} parent=51 // pred_check
          %p470 = pneg %p103
        $region62: #{tpu_custom_call.1} parent=51 // pred_check_branch
          %472 = sbr.rel (%p470) target = $region64
        $region63: #{tpu_custom_call.1} parent=51 // pred_region
          %474 = dma.done %s467, 16
        $region64: #{tpu_custom_call.1} parent=51 // pred_fallthru
          _
        %s475 = sand.u32 %s35, 1
        %s476 = scalar_lea.sflag [#allocation9], %s475
        %s477 = sand.u32 %s116, 1
        %s478 = smul.addr %s477, 128
        %s479 = scalar_lea.vmem [#allocation8], %s478
        // Predicated region
        $region65: #{tpu_custom_call.1} parent=51 // pred_check
          %p480 = pneg %p129
        $region66: #{tpu_custom_call.1} parent=51 // pred_check_branch
          %482 = sbr.rel (%p480) target = $region68
        $region67: #{tpu_custom_call.1} parent=51 // pred_region
          %484 = dma.done %s476, 2048
        $region68: #{tpu_custom_call.1} parent=51 // pred_fallthru
          _
        %s485 = sand.u32 %s35, 1
        %s486 = scalar_lea.sflag [#allocation9], %s485
        %s487 = sand.u32 %s142, 1
        %s488 = scalar_lea.vmem [#allocation10], %s487
        // Predicated region
        $region69: #{tpu_custom_call.1} parent=51 // pred_check
          %p489 = pneg %p155
        $region70: #{tpu_custom_call.1} parent=51 // pred_check_branch
          %491 = sbr.rel (%p489) target = $region72
        $region71: #{tpu_custom_call.1} parent=51 // pred_region
          %493 = dma.done %s486, 16
        $region72: #{tpu_custom_call.1} parent=51 // pred_fallthru
          _
        %s494 = sand.u32 %s168, 1
        %s495 = scalar_lea.sflag [#allocation12], %s494
        %s496 = sand.u32 %s168, 1
        %s497 = scalar_lea.vmem [#allocation11], %s496
        // Predicated region
        $region73: #{tpu_custom_call.1} parent=51 // pred_check
          %p498 = pneg %p181
        $region74: #{tpu_custom_call.1} parent=51 // pred_check_branch
          %500 = sbr.rel (%p498) target = $region76
        $region75: #{tpu_custom_call.1} parent=51 // pred_region
          %502 = dma.done %s495, 16
        $region76: #{tpu_custom_call.1} parent=51 // pred_fallthru
          _
        %p503 = pneg %p51
        %p504 = pneg %p48
        %s505 = sand.u32 %s35, 1
        %s506 = scalar_lea.sflag [#allocation6], %s505
        %s507 = sand.u32 %s64, 1
        %s508 = smul.addr %s507, 32
        %s509 = scalar_lea.vmem [#allocation5], %s508
        %p510 = pneg %p77
        %p511 = pneg %p74
        %s512 = sand.u32 %s35, 1
        %s513 = scalar_lea.sflag [#allocation6], %s512
        %s514 = sand.u32 %s90, 1
        %s515 = scalar_lea.vmem [#allocation7], %s514
        %p516 = pneg %p103
        %p517 = pneg %p100
        %s518 = sand.u32 %s35, 1
        %s519 = scalar_lea.sflag [#allocation9], %s518
        %s520 = sand.u32 %s116, 1
        %s521 = smul.addr %s520, 128
        %s522 = scalar_lea.vmem [#allocation8], %s521
        %p523 = pneg %p129
        %p524 = pneg %p126
        %s525 = sand.u32 %s35, 1
        %s526 = scalar_lea.sflag [#allocation9], %s525
        %s527 = sand.u32 %s142, 1
        %s528 = scalar_lea.vmem [#allocation10], %s527
        %p529 = pneg %p155
        %p530 = pneg %p152
        %s531 = sand.u32 %s168, 1
        %s532 = scalar_lea.sflag [#allocation12], %s531
        %s533 = sand.u32 %s168, 1
        %s534 = scalar_lea.vmem [#allocation11], %s533
        %p535 = pneg %p181
        %p536 = pneg %p178
        %p537 = scmp.lt.s32.totalorder %s35, 1
        %s538 = scalar_select %p537, %s35, 1
        %s539 = smul.addr %s538, 2
        %s540 = scalar_lea.vmem %s6, %s539
        %p541 = pneg %p207
        %p542 = pneg %p204
        %p543 = pneg %p228
        %p544 = pneg %p225
        %p545 = pneg %p254
        %p546 = pneg %p251
        %p547 = scmp.lt.s32.totalorder %s35, 1
        %s548 = scalar_select %p547, %s35, 1
        %s549 = smul.addr %s548, 2
        %s550 = scalar_lea.vmem %s8, %s549
        %p551 = pneg %p280
        %p552 = pneg %p277
        %s553 = sand.u32 %s267, 1
        %s554 = scalar_lea.sflag [#allocation4], %s553
        %s555 = sand.u32 %s267, 1
        %s556 = smul.addr %s555, 2
        %s557 = scalar_lea.vmem [#allocation13], %s556
        %p558 = pneg %p306
        %p559 = pneg %p303
        %p560 = scmp.lt.s32.totalorder %s35, 1
        %s561 = scalar_select %p560, %s35, 1
        %s562 = smul.addr %s561, 2
        %s563 = scalar_lea.vmem %s10, %s562
        %p564 = scmp.lt.s32.totalorder %s35, 1
        %s565 = scalar_select %p564, %s35, 1
        %s566 = smul.addr %s565, 2
        %s567 = scalar_lea.vmem %s6, %s566
        %p568 = scmp.lt.s32.totalorder %s35, 1
        %s569 = scalar_select %p568, %s35, 1
        %s570 = smul.addr %s569, 2
        %s571 = scalar_lea.vmem %s8, %s570
        %p572 = scmp.lt.s32.totalorder %s35, 1
        %s573 = scalar_select %p572, %s35, 1
        %s574 = smul.addr %s573, 2
        %s575 = scalar_lea.vmem %s10, %s574
        %v577 = vld [vmem:[#allocation2] sm:$0xff]
        %v578 = vld [vmem:[#allocation2 + $0x8] sm:$0xff]
        %v579 = vld [vmem:[%s460] sm:$0xff]
        %v580 = vld [vmem:[%s460 + $0x8] sm:$0xff]
        %v581 = vld [vmem:[%s460 + $0x10] sm:$0xff]
        %v582 = vld [vmem:[%s460 + $0x18] sm:$0xff]
        %v583 = vld [vmem:[%s469] sm:$0x1]
        %v584 = vld [vmem:[%s479] sm:$0xff]
        %v585 = vld [vmem:[%s479 + $0x8] sm:$0xff]
        %v586 = vld [vmem:[%s479 + $0x10] sm:$0xff]
        %v587 = vld [vmem:[%s479 + $0x18] sm:$0xff]
        %v588 = vld [vmem:[%s479 + $0x20] sm:$0xff]
        %v589 = vld [vmem:[%s479 + $0x28] sm:$0xff]
        %v590 = vld [vmem:[%s479 + $0x30] sm:$0xff]
        %v591 = vld [vmem:[%s479 + $0x38] sm:$0xff]
        %v592 = vld [vmem:[%s479 + $0x40] sm:$0xff]
        %v593 = vld [vmem:[%s479 + $0x48] sm:$0xff]
        %v594 = vld [vmem:[%s479 + $0x50] sm:$0xff]
        %v595 = vld [vmem:[%s479 + $0x58] sm:$0xff]
        %v596 = vld [vmem:[%s479 + $0x60] sm:$0xff]
        %v597 = vld [vmem:[%s479 + $0x68] sm:$0xff]
        %v598 = vld [vmem:[%s479 + $0x70] sm:$0xff]
        %v599 = vld [vmem:[%s479 + $0x78] sm:$0xff]
        %v600 = vld [vmem:[%s488] sm:$0x1]
        %v601 = vld [vmem:[%s497] sm:$0x1]
        %v602 = vld [vmem:[%s567] sm:$0x3]
        %v603 = vld [vmem:[%s7] sm:$0x3]
        %v604 = vcvt.s32.f32 %v603
        %vm605 = vcmask 58368
        %v606 = vsel %vm605, %v603, 0
        %v607 = vand.u32 %v606, 65535
        %v608 = vshrl.u32 %v606, 16
        %v609 = vcvt.s32.f32 %v607
        %v610 = vcvt.s32.f32 %v608
        %611 = vadd.xlane.f32.xlu0 %v609
        %v612 = vpop.xlane.xlu0 %611
        %613 = vadd.xlane.f32.xlu0 %v610
        %v614 = vpop.xlane.xlu0 %613
        %v615 = vcvt.f32.s32 %v612
        %v616 = vcvt.f32.s32 %v614
        %v617 = vshll.u32 %v616, 16
        %v618 = vadd.s32 %v617, %v615
        %v619 = vlaneseq
        %v620 = vshrl.u32 %v619, 7
        %v621 = vadd.s32 %v620, 8
        %v622 = vadd.s32 %v620, 16
        %v623 = vadd.s32 %v620, 24
        %v624 = vadd.s32 %v620, 32
        %v625 = vadd.s32 %v620, 40
        %v626 = vadd.s32 %v620, 48
        %v627 = vadd.s32 %v620, 56
        %v628 = vadd.s32 %v620, 64
        %v629 = vadd.s32 %v620, 72
        %v630 = vadd.s32 %v620, 80
        %v631 = vadd.s32 %v620, 88
        %v632 = vadd.s32 %v620, 96
        %v633 = vadd.s32 %v620, 104
        %v634 = vadd.s32 %v620, 112
        %v635 = vadd.s32 %v620, 120
        %v636 = vlaneseq
        %v637 = vand.u32 %v636, 127
        %v638 = vpack.c.bf16 %v578, %v577
        %v639 = vpack.c.bf16 %v580, %v579
        %v640 = vpack.c.bf16 %v582, %v581
        %v642 = vperm.slane %v583, 0
        %vm644 = vcmask 261120
        %v646 = vsel %vm644, %v638, 0
        %648 = vmatpush.bf16.msra.mxu0 0
        %649 = vmatpush.bf16.msra.mxu0 0
        %650 = vmatpush.bf16.msra.mxu0 0
        %651 = vmatpush.bf16.msra.mxu0 0
        %652 = vmatpush.bf16.msra.mxu0 0
        %653 = vmatpush.bf16.msra.mxu0 0
        %654 = vmatpush.bf16.msra.mxu0 %v640
        %655 = vmatpush.bf16.msra.mxu0 %v639
        %656 = vmatmul.bf16.gmra.mxu0 %v646
        %v657 = vpop.f32.mrf.mxu0
        %v658 = vadd.f32 %v642, %v657
        %v659 = vpop.f32.mrf.mxu0
        %v660 = vadd.f32 %v642, %v659
        %661 = vdwg.mxu0
        %v662 = vperm.slane %v602, 0
        %v663 = vlaneseq
        %v664 = vshrl.u32 %v663, 7
        %666 = vset.pattern.permute.xlu0 %v664
        %667 = vperm.xlu0 %666, %v662
        %v668 = vpop.permute.xlu0 %667
        %v669 = vperm.slane %v602, 1
        %v670 = vlaneseq
        %v671 = vshrl.u32 %v670, 7
        %673 = vset.pattern.permute.xlu0 %v671
        %674 = vperm.xlu0 %673, %v669
        %v675 = vpop.permute.xlu0 %674
        %vm676 = vcmp.eq.s32.totalorder %v637, %v668
        %vm677 = vcmp.eq.s32.totalorder %v637, %v675
        %v678 = vsel %vm676, 1, 0
        %v679 = vsel %vm677, 1, 0
        %v680 = vcvt.s32.f32 %v678
        %v681 = vcvt.s32.f32 %v679
        %v682 = vmul.f32 %v658, %v680
        %v683 = vmul.f32 %v660, %v681
        %684 = vadd.xlane.f32.xlu0 %v682
        %v685 = vpop.xlane.xlu0 %684
        %686 = vadd.xlane.f32.xlu0 %v683
        %v687 = vpop.xlane.xlu0 %686
        %v689 = vperm.slane %v604, 0
        %v690 = vlaneseq
        %v691 = vshrl.u32 %v690, 7
        %693 = vset.pattern.permute.xlu0 %v691
        %694 = vperm.xlu0 %693, %v689
        %v695 = vpop.permute.xlu0 %694
        %v696 = vperm.slane %v604, 1
        %v697 = vlaneseq
        %v698 = vshrl.u32 %v697, 7
        %700 = vset.pattern.permute.xlu0 %v698
        %701 = vperm.xlu0 %700, %v696
        %v702 = vpop.permute.xlu0 %701
        %v705 = vmul.f32 %v685, %v695
        %v706 = vmul.f32 %v687, %v702
        %709 = vset.pattern.permute.xlu0 0
        %710 = vperm.xlu0 %709, %v705
        %v711 = vpop.permute.xlu0 %710
        %712 = vset.pattern.permute.xlu0 0
        %713 = vperm.xlu0 %712, %v706
        %v714 = vpop.permute.xlu0 %713
        %v715 = vperm.slane %v711, %v637
        %v716 = vperm.slane %v714, %v637
        %vm717 = vcmask 1041409
        %v718 = vsel %vm717, %v716, %v715
        %v720 = vsel %vm605, %v718, 0.0
        %721 = vadd.xlane.f32.xlu0 %v720
        %v722 = vpop.xlane.xlu0 %721
        %v724 = vperm.slane %v600, 0
        %v728 = vrot.slane %v681, 7
        %v729 = vsel %vm717, %v728, %v680
        %v731 = vmul.f32 %v724, %v729
        %vm732 = vcmask 1041408
        %v733 = vsel %vm732, %v731, 0.0
        %734 = vadd.xlane.f32.xlu0 %v733
        %v735 = vpop.xlane.xlu0 %734
        %736 = vmatpush.msra.mxu0 %v599
        %737 = vmatpush.msra.mxu0 %v598
        %738 = vmatpush.msra.mxu0 %v597
        %739 = vmatpush.msra.mxu0 %v596
        %740 = vmatpush.msra.mxu0 %v595
        %741 = vmatpush.msra.mxu0 %v594
        %742 = vmatpush.msra.mxu0 %v593
        %743 = vmatpush.msra.mxu0 %v592
        %744 = vmatpush.msra.mxu0 %v591
        %745 = vmatpush.msra.mxu0 %v590
        %746 = vmatpush.msra.mxu0 %v589
        %747 = vmatpush.msra.mxu0 %v588
        %748 = vmatpush.msra.mxu0 %v587
        %749 = vmatpush.msra.mxu0 %v586
        %750 = vmatpush.msra.mxu0 %v585
        %751 = vmatpush.msra.mxu0 %v584
        %752 = vmatmul.f32.gmra.mxu0 %v680
        %v753 = vpop.f32.mrf.mxu0
        %v754 = vadd.f32 0.0, %v753
        %755 = vmatmul.f32.gmra.mxu0 %v681
        %v756 = vpop.f32.mrf.mxu0
        %v757 = vadd.f32 0.0, %v756
        %758 = vdwg.mxu0
        %v759 = vrot.slane %v680, 1
        %v760 = vrot.slane %v681, 1
        %v763 = vmul.f32 %v754, %v759
        %v764 = vmul.f32 %v757, %v760
        %vm765 = vcmask 1046528
        %v766 = vsel %vm765, %v763, 0.0
        %767 = vadd.xlane.f32.xlu0 %v766
        %v768 = vpop.xlane.xlu0 %767
        %v769 = vsel %vm765, %v764, 0.0
        %770 = vadd.xlane.f32.xlu0 %v769
        %v771 = vpop.xlane.xlu0 %770
        %v772 = vlaneseq
        %v773 = vshrl.u32 %v772, 7
        %v774 = vadd.s32 %v773, 1
        %775 = vset.pattern.permute.xlu0 %v774
        %776 = vperm.xlu0 %775, %v689
        %v777 = vpop.permute.xlu0 %776
        %v778 = vlaneseq
        %v779 = vshrl.u32 %v778, 7
        %v780 = vadd.s32 %v779, 1
        %781 = vset.pattern.permute.xlu0 %v780
        %782 = vperm.xlu0 %781, %v696
        %v783 = vpop.permute.xlu0 %782
        %v786 = vmul.f32 %v768, %v777
        %v787 = vmul.f32 %v771, %v783
        %790 = vset.pattern.permute.xlu0 0
        %791 = vperm.xlu0 %790, %v786
        %v792 = vpop.permute.xlu0 %791
        %793 = vset.pattern.permute.xlu0 0
        %794 = vperm.xlu0 %793, %v787
        %v795 = vpop.permute.xlu0 %794
        %v796 = vperm.slane %v792, %v637
        %v797 = vperm.slane %v795, %v637
        %v798 = vsel %vm717, %v797, %v796
        %vm800 = vcmask 50176
        %v801 = vsel %vm800, %v798, 0.0
        %802 = vadd.xlane.f32.xlu0 %v801
        %v803 = vpop.xlane.xlu0 %802
        %v804 = vsub.s32 %v618, 1
        %vm805 = vcmp.eq.s32.totalorder %v637, %v804
        %v806 = vsel %vm805, %v602, 0
        %v807 = vsel %vm605, %v806, 0
        %v808 = vand.u32 %v807, 65535
        %v809 = vshrl.u32 %v807, 16
        %v810 = vcvt.s32.f32 %v808
        %v811 = vcvt.s32.f32 %v809
        %812 = vadd.xlane.f32.xlu0 %v810
        %v813 = vpop.xlane.xlu0 %812
        %814 = vadd.xlane.f32.xlu0 %v811
        %v815 = vpop.xlane.xlu0 %814
        %v816 = vcvt.f32.s32 %v813
        %v817 = vcvt.f32.s32 %v815
        %v818 = vshll.u32 %v817, 16
        %v819 = vadd.s32 %v818, %v816
        %vm820 = vcmp.eq.s32.totalorder %v637, %v819
        %v822 = vperm.slane %v601, 0
        %v824 = vsel %vm820, %v822, 0.0
        %v825 = vsel %vm732, %v824, 0.0
        %826 = vadd.xlane.f32.xlu0 %v825
        %v827 = vpop.xlane.xlu0 %826
        %v828 = vadd.f32 %v735, %v722
        %v829 = vadd.f32 %v828, %v803
        %v830 = vadd.f32 %v829, %v827
        %v833 = vrot.slane %v660, 7
        %v834 = vsel %vm717, %v833, %v658
        %v836 = vadd.f32 %v724, %v834
        %v837 = vperm.slane %v836, 0
        %v838 = vlaneseq
        %v839 = vshrl.u32 %v838, 7
        %841 = vset.pattern.permute.xlu0 %v839
        %842 = vperm.xlu0 %841, %v837
        %v843 = vpop.permute.xlu0 %842
        %v844 = vlaneseq
        %v845 = vshrl.u32 %v844, 7
        %v846 = vadd.s32 %v845, 8
        %847 = vset.pattern.permute.xlu0 %v846
        %848 = vperm.xlu0 %847, %v837
        %v849 = vpop.permute.xlu0 %848
        %v850 = vlaneseq
        %v851 = vshrl.u32 %v850, 7
        %v852 = vadd.s32 %v851, 16
        %853 = vset.pattern.permute.xlu0 %v852
        %854 = vperm.xlu0 %853, %v837
        %v855 = vpop.permute.xlu0 %854
        %v856 = vlaneseq
        %v857 = vshrl.u32 %v856, 7
        %v858 = vadd.s32 %v857, 24
        %859 = vset.pattern.permute.xlu0 %v858
        %860 = vperm.xlu0 %859, %v837
        %v861 = vpop.permute.xlu0 %860
        %v862 = vlaneseq
        %v863 = vshrl.u32 %v862, 7
        %v864 = vadd.s32 %v863, 32
        %865 = vset.pattern.permute.xlu0 %v864
        %866 = vperm.xlu0 %865, %v837
        %v867 = vpop.permute.xlu0 %866
        %v868 = vlaneseq
        %v869 = vshrl.u32 %v868, 7
        %v870 = vadd.s32 %v869, 40
        %871 = vset.pattern.permute.xlu0 %v870
        %872 = vperm.xlu0 %871, %v837
        %v873 = vpop.permute.xlu0 %872
        %v874 = vlaneseq
        %v875 = vshrl.u32 %v874, 7
        %v876 = vadd.s32 %v875, 48
        %877 = vset.pattern.permute.xlu0 %v876
        %878 = vperm.xlu0 %877, %v837
        %v879 = vpop.permute.xlu0 %878
        %v880 = vlaneseq
        %v881 = vshrl.u32 %v880, 7
        %v882 = vadd.s32 %v881, 56
        %883 = vset.pattern.permute.xlu0 %v882
        %884 = vperm.xlu0 %883, %v837
        %v885 = vpop.permute.xlu0 %884
        %v886 = vlaneseq
        %v887 = vshrl.u32 %v886, 7
        %v888 = vadd.s32 %v887, 64
        %889 = vset.pattern.permute.xlu0 %v888
        %890 = vperm.xlu0 %889, %v837
        %v891 = vpop.permute.xlu0 %890
        %v892 = vlaneseq
        %v893 = vshrl.u32 %v892, 7
        %v894 = vadd.s32 %v893, 72
        %895 = vset.pattern.permute.xlu0 %v894
        %896 = vperm.xlu0 %895, %v837
        %v897 = vpop.permute.xlu0 %896
        %v898 = vlaneseq
        %v899 = vshrl.u32 %v898, 7
        %v900 = vadd.s32 %v899, 80
        %901 = vset.pattern.permute.xlu0 %v900
        %902 = vperm.xlu0 %901, %v837
        %v903 = vpop.permute.xlu0 %902
        %v904 = vlaneseq
        %v905 = vshrl.u32 %v904, 7
        %v906 = vadd.s32 %v905, 88
        %907 = vset.pattern.permute.xlu0 %v906
        %908 = vperm.xlu0 %907, %v837
        %v909 = vpop.permute.xlu0 %908
        %v910 = vlaneseq
        %v911 = vshrl.u32 %v910, 7
        %v912 = vadd.s32 %v911, 96
        %913 = vset.pattern.permute.xlu0 %v912
        %914 = vperm.xlu0 %913, %v837
        %v915 = vpop.permute.xlu0 %914
        %v916 = vlaneseq
        %v917 = vshrl.u32 %v916, 7
        %v918 = vadd.s32 %v917, 104
        %919 = vset.pattern.permute.xlu0 %v918
        %920 = vperm.xlu0 %919, %v837
        %v921 = vpop.permute.xlu0 %920
        %v922 = vlaneseq
        %v923 = vshrl.u32 %v922, 7
        %v924 = vadd.s32 %v923, 112
        %925 = vset.pattern.permute.xlu0 %v924
        %926 = vperm.xlu0 %925, %v837
        %v927 = vpop.permute.xlu0 %926
        %v928 = vlaneseq
        %v929 = vshrl.u32 %v928, 7
        %v930 = vadd.s32 %v929, 120
        %931 = vset.pattern.permute.xlu0 %v930
        %932 = vperm.xlu0 %931, %v837
        %v933 = vpop.permute.xlu0 %932
        %v934 = vperm.slane %v836, 1
        %v935 = vlaneseq
        %v936 = vshrl.u32 %v935, 7
        %938 = vset.pattern.permute.xlu0 %v936
        %939 = vperm.xlu0 %938, %v934
        %v940 = vpop.permute.xlu0 %939
        %v941 = vlaneseq
        %v942 = vshrl.u32 %v941, 7
        %v943 = vadd.s32 %v942, 8
        %944 = vset.pattern.permute.xlu0 %v943
        %945 = vperm.xlu0 %944, %v934
        %v946 = vpop.permute.xlu0 %945
        %v947 = vlaneseq
        %v948 = vshrl.u32 %v947, 7
        %v949 = vadd.s32 %v948, 16
        %950 = vset.pattern.permute.xlu0 %v949
        %951 = vperm.xlu0 %950, %v934
        %v952 = vpop.permute.xlu0 %951
        %v953 = vlaneseq
        %v954 = vshrl.u32 %v953, 7
        %v955 = vadd.s32 %v954, 24
        %956 = vset.pattern.permute.xlu0 %v955
        %957 = vperm.xlu0 %956, %v934
        %v958 = vpop.permute.xlu0 %957
        %v959 = vlaneseq
        %v960 = vshrl.u32 %v959, 7
        %v961 = vadd.s32 %v960, 32
        %962 = vset.pattern.permute.xlu0 %v961
        %963 = vperm.xlu0 %962, %v934
        %v964 = vpop.permute.xlu0 %963
        %v965 = vlaneseq
        %v966 = vshrl.u32 %v965, 7
        %v967 = vadd.s32 %v966, 40
        %968 = vset.pattern.permute.xlu0 %v967
        %969 = vperm.xlu0 %968, %v934
        %v970 = vpop.permute.xlu0 %969
        %v971 = vlaneseq
        %v972 = vshrl.u32 %v971, 7
        %v973 = vadd.s32 %v972, 48
        %974 = vset.pattern.permute.xlu0 %v973
        %975 = vperm.xlu0 %974, %v934
        %v976 = vpop.permute.xlu0 %975
        %v977 = vlaneseq
        %v978 = vshrl.u32 %v977, 7
        %v979 = vadd.s32 %v978, 56
        %980 = vset.pattern.permute.xlu0 %v979
        %981 = vperm.xlu0 %980, %v934
        %v982 = vpop.permute.xlu0 %981
        %v983 = vlaneseq
        %v984 = vshrl.u32 %v983, 7
        %v985 = vadd.s32 %v984, 64
        %986 = vset.pattern.permute.xlu0 %v985
        %987 = vperm.xlu0 %986, %v934
        %v988 = vpop.permute.xlu0 %987
        %v989 = vlaneseq
        %v990 = vshrl.u32 %v989, 7
        %v991 = vadd.s32 %v990, 72
        %992 = vset.pattern.permute.xlu0 %v991
        %993 = vperm.xlu0 %992, %v934
        %v994 = vpop.permute.xlu0 %993
        %v995 = vlaneseq
        %v996 = vshrl.u32 %v995, 7
        %v997 = vadd.s32 %v996, 80
        %998 = vset.pattern.permute.xlu0 %v997
        %999 = vperm.xlu0 %998, %v934
        %v1000 = vpop.permute.xlu0 %999
        %v1001 = vlaneseq
        %v1002 = vshrl.u32 %v1001, 7
        %v1003 = vadd.s32 %v1002, 88
        %1004 = vset.pattern.permute.xlu0 %v1003
        %1005 = vperm.xlu0 %1004, %v934
        %v1006 = vpop.permute.xlu0 %1005
        %v1007 = vlaneseq
        %v1008 = vshrl.u32 %v1007, 7
        %v1009 = vadd.s32 %v1008, 96
        %1010 = vset.pattern.permute.xlu0 %v1009
        %1011 = vperm.xlu0 %1010, %v934
        %v1012 = vpop.permute.xlu0 %1011
        %v1013 = vlaneseq
        %v1014 = vshrl.u32 %v1013, 7
        %v1015 = vadd.s32 %v1014, 104
        %1016 = vset.pattern.permute.xlu0 %v1015
        %1017 = vperm.xlu0 %1016, %v934
        %v1018 = vpop.permute.xlu0 %1017
        %v1019 = vlaneseq
        %v1020 = vshrl.u32 %v1019, 7
        %v1021 = vadd.s32 %v1020, 112
        %1022 = vset.pattern.permute.xlu0 %v1021
        %1023 = vperm.xlu0 %1022, %v934
        %v1024 = vpop.permute.xlu0 %1023
        %v1025 = vlaneseq
        %v1026 = vshrl.u32 %v1025, 7
        %v1027 = vadd.s32 %v1026, 120
        %1028 = vset.pattern.permute.xlu0 %v1027
        %1029 = vperm.xlu0 %1028, %v934
        %v1030 = vpop.permute.xlu0 %1029
        %v1031 = vadd.f32 %v843, %v584
        %v1032 = vadd.f32 %v849, %v585
        %v1033 = vadd.f32 %v855, %v586
        %v1034 = vadd.f32 %v861, %v587
        %v1035 = vadd.f32 %v867, %v588
        %v1036 = vadd.f32 %v873, %v589
        %v1037 = vadd.f32 %v879, %v590
        %v1038 = vadd.f32 %v885, %v591
        %v1039 = vadd.f32 %v891, %v592
        %v1040 = vadd.f32 %v897, %v593
        %v1041 = vadd.f32 %v903, %v594
        %v1042 = vadd.f32 %v909, %v595
        %v1043 = vadd.f32 %v915, %v596
        %v1044 = vadd.f32 %v921, %v597
        %v1045 = vadd.f32 %v927, %v598
        %v1046 = vadd.f32 %v933, %v599
        %v1047 = vadd.f32 %v940, %v584
        %v1048 = vadd.f32 %v946, %v585
        %v1049 = vadd.f32 %v952, %v586
        %v1050 = vadd.f32 %v958, %v587
        %v1051 = vadd.f32 %v964, %v588
        %v1052 = vadd.f32 %v970, %v589
        %v1053 = vadd.f32 %v976, %v590
        %v1054 = vadd.f32 %v982, %v591
        %v1055 = vadd.f32 %v988, %v592
        %v1056 = vadd.f32 %v994, %v593
        %v1057 = vadd.f32 %v1000, %v594
        %v1058 = vadd.f32 %v1006, %v595
        %v1059 = vadd.f32 %v1012, %v596
        %v1060 = vadd.f32 %v1018, %v597
        %v1061 = vadd.f32 %v1024, %v598
        %v1062 = vadd.f32 %v1030, %v599
        %v1063 = vmax.f32 %v1031, %v1033
        %v1064 = vmax.f32 %v1032, %v1034
        %v1065 = vmax.f32 %v1063, %v1035
        %v1066 = vmax.f32 %v1064, %v1036
        %v1067 = vmax.f32 %v1065, %v1037
        %v1068 = vmax.f32 %v1066, %v1038
        %v1069 = vmax.f32 %v1067, %v1039
        %v1070 = vmax.f32 %v1068, %v1040
        %v1071 = vmax.f32 %v1069, %v1041
        %v1072 = vmax.f32 %v1070, %v1042
        %v1073 = vmax.f32 %v1071, %v1043
        %v1074 = vmax.f32 %v1072, %v1044
        %v1075 = vmax.f32 %v1073, %v1045
        %v1076 = vmax.f32 %v1074, %v1046
        %v1077 = vmax.f32 %v1075, %v1076
        %v1078 = vrot.slane %v1077, 4
        %v1079 = vmax.f32 %v1077, %v1078
        %v1080 = vrot.slane %v1079, 2
        %v1081 = vmax.f32 %v1079, %v1080
        %v1082 = vrot.slane %v1081, 1
        %v1083 = vmax.f32 %v1081, %v1082
        %v1084 = vmax.f32 %v1047, %v1049
        %v1085 = vmax.f32 %v1048, %v1050
        %v1086 = vmax.f32 %v1084, %v1051
        %v1087 = vmax.f32 %v1085, %v1052
        %v1088 = vmax.f32 %v1086, %v1053
        %v1089 = vmax.f32 %v1087, %v1054
        %v1090 = vmax.f32 %v1088, %v1055
        %v1091 = vmax.f32 %v1089, %v1056
        %v1092 = vmax.f32 %v1090, %v1057
        %v1093 = vmax.f32 %v1091, %v1058
        %v1094 = vmax.f32 %v1092, %v1059
        %v1095 = vmax.f32 %v1093, %v1060
        %v1096 = vmax.f32 %v1094, %v1061
        %v1097 = vmax.f32 %v1095, %v1062
        %v1098 = vmax.f32 %v1096, %v1097
        %v1099 = vrot.slane %v1098, 4
        %v1100 = vmax.f32 %v1098, %v1099
        %v1101 = vrot.slane %v1100, 2
        %v1102 = vmax.f32 %v1100, %v1101
        %v1103 = vrot.slane %v1102, 1
        %v1104 = vmax.f32 %v1102, %v1103
        %v1105 = vsub.f32 %v1031, %v1083
        %v1106 = vsub.f32 %v1032, %v1083
        %v1107 = vsub.f32 %v1033, %v1083
        %v1108 = vsub.f32 %v1034, %v1083
        %v1109 = vsub.f32 %v1035, %v1083
        %v1110 = vsub.f32 %v1036, %v1083
        %v1111 = vsub.f32 %v1037, %v1083
        %v1112 = vsub.f32 %v1038, %v1083
        %v1113 = vsub.f32 %v1039, %v1083
        %v1114 = vsub.f32 %v1040, %v1083
        %v1115 = vsub.f32 %v1041, %v1083
        %v1116 = vsub.f32 %v1042, %v1083
        %v1117 = vsub.f32 %v1043, %v1083
        %v1118 = vsub.f32 %v1044, %v1083
        %v1119 = vsub.f32 %v1045, %v1083
        %v1120 = vsub.f32 %v1046, %v1083
        %v1121 = vsub.f32 %v1047, %v1104
        %v1122 = vsub.f32 %v1048, %v1104
        %v1123 = vsub.f32 %v1049, %v1104
        %v1124 = vsub.f32 %v1050, %v1104
        %v1125 = vsub.f32 %v1051, %v1104
        %v1126 = vsub.f32 %v1052, %v1104
        %v1127 = vsub.f32 %v1053, %v1104
        %v1128 = vsub.f32 %v1054, %v1104
        %v1129 = vsub.f32 %v1055, %v1104
        %v1130 = vsub.f32 %v1056, %v1104
        %v1131 = vsub.f32 %v1057, %v1104
        %v1132 = vsub.f32 %v1058, %v1104
        %v1133 = vsub.f32 %v1059, %v1104
        %v1134 = vsub.f32 %v1060, %v1104
        %v1135 = vsub.f32 %v1061, %v1104
        %v1136 = vsub.f32 %v1062, %v1104
        %v1137 = vmul.f32 %v1105, 1.442695
        %v1138 = vpow.pop %v1137
        %v1139 = vmul.f32 %v1106, 1.442695
        %v1140 = vpow.pop %v1139
        %v1141 = vmul.f32 %v1107, 1.442695
        %v1142 = vpow.pop %v1141
        %v1143 = vmul.f32 %v1108, 1.442695
        %v1144 = vpow.pop %v1143
        %v1145 = vmul.f32 %v1109, 1.442695
        %v1146 = vpow.pop %v1145
        %v1147 = vmul.f32 %v1110, 1.442695
        %v1148 = vpow.pop %v1147
        %v1149 = vmul.f32 %v1111, 1.442695
        %v1150 = vpow.pop %v1149
        %v1151 = vmul.f32 %v1112, 1.442695
        %v1152 = vpow.pop %v1151
        %v1153 = vmul.f32 %v1113, 1.442695
        %v1154 = vpow.pop %v1153
        %v1155 = vmul.f32 %v1114, 1.442695
        %v1156 = vpow.pop %v1155
        %v1157 = vmul.f32 %v1115, 1.442695
        %v1158 = vpow.pop %v1157
        %v1159 = vmul.f32 %v1116, 1.442695
        %v1160 = vpow.pop %v1159
        %v1161 = vmul.f32 %v1117, 1.442695
        %v1162 = vpow.pop %v1161
        %v1163 = vmul.f32 %v1118, 1.442695
        %v1164 = vpow.pop %v1163
        %v1165 = vmul.f32 %v1119, 1.442695
        %v1166 = vpow.pop %v1165
        %v1167 = vmul.f32 %v1120, 1.442695
        %v1168 = vpow.pop %v1167
        %v1169 = vmul.f32 %v1121, 1.442695
        %v1170 = vpow.pop %v1169
        %v1171 = vmul.f32 %v1122, 1.442695
        %v1172 = vpow.pop %v1171
        %v1173 = vmul.f32 %v1123, 1.442695
        %v1174 = vpow.pop %v1173
        %v1175 = vmul.f32 %v1124, 1.442695
        %v1176 = vpow.pop %v1175
        %v1177 = vmul.f32 %v1125, 1.442695
        %v1178 = vpow.pop %v1177
        %v1179 = vmul.f32 %v1126, 1.442695
        %v1180 = vpow.pop %v1179
        %v1181 = vmul.f32 %v1127, 1.442695
        %v1182 = vpow.pop %v1181
        %v1183 = vmul.f32 %v1128, 1.442695
        %v1184 = vpow.pop %v1183
        %v1185 = vmul.f32 %v1129, 1.442695
        %v1186 = vpow.pop %v1185
        %v1187 = vmul.f32 %v1130, 1.442695
        %v1188 = vpow.pop %v1187
        %v1189 = vmul.f32 %v1131, 1.442695
        %v1190 = vpow.pop %v1189
        %v1191 = vmul.f32 %v1132, 1.442695
        %v1192 = vpow.pop %v1191
        %v1193 = vmul.f32 %v1133, 1.442695
        %v1194 = vpow.pop %v1193
        %v1195 = vmul.f32 %v1134, 1.442695
        %v1196 = vpow.pop %v1195
        %v1197 = vmul.f32 %v1135, 1.442695
        %v1198 = vpow.pop %v1197
        %v1199 = vmul.f32 %v1136, 1.442695
        %v1200 = vpow.pop %v1199
        %v1201 = vadd.f32 %v1138, %v1140
        %v1202 = vadd.f32 %v1201, %v1142
        %v1203 = vadd.f32 %v1202, %v1144
        %v1204 = vadd.f32 %v1203, %v1146
        %v1205 = vadd.f32 %v1204, %v1148
        %v1206 = vadd.f32 %v1205, %v1150
        %v1207 = vadd.f32 %v1206, %v1152
        %v1208 = vadd.f32 %v1207, %v1154
        %v1209 = vadd.f32 %v1208, %v1156
        %v1210 = vadd.f32 %v1209, %v1158
        %v1211 = vadd.f32 %v1210, %v1160
        %v1212 = vadd.f32 %v1211, %v1162
        %v1213 = vadd.f32 %v1212, %v1164
        %v1214 = vadd.f32 %v1213, %v1166
        %v1215 = vadd.f32 %v1214, %v1168
        %v1216 = vrot.slane %v1215, 4
        %v1217 = vadd.f32 %v1215, %v1216
        %v1218 = vrot.slane %v1217, 2
        %v1219 = vadd.f32 %v1217, %v1218
        %v1220 = vrot.slane %v1219, 1
        %v1221 = vadd.f32 %v1219, %v1220
        %v1222 = vadd.f32 %v1170, %v1172
        %v1223 = vadd.f32 %v1222, %v1174
        %v1224 = vadd.f32 %v1223, %v1176
        %v1225 = vadd.f32 %v1224, %v1178
        %v1226 = vadd.f32 %v1225, %v1180
        %v1227 = vadd.f32 %v1226, %v1182
        %v1228 = vadd.f32 %v1227, %v1184
        %v1229 = vadd.f32 %v1228, %v1186
        %v1230 = vadd.f32 %v1229, %v1188
        %v1231 = vadd.f32 %v1230, %v1190
        %v1232 = vadd.f32 %v1231, %v1192
        %v1233 = vadd.f32 %v1232, %v1194
        %v1234 = vadd.f32 %v1233, %v1196
        %v1235 = vadd.f32 %v1234, %v1198
        %v1236 = vadd.f32 %v1235, %v1200
        %v1237 = vrot.slane %v1236, 4
        %v1238 = vadd.f32 %v1236, %v1237
        %v1239 = vrot.slane %v1238, 2
        %v1240 = vadd.f32 %v1238, %v1239
        %v1241 = vrot.slane %v1240, 1
        %v1242 = vadd.f32 %v1240, %v1241
        %v1243 = vlog2.pop %v1221
        %v1244 = vmul.f32 %v1243, 0.6931472
        %v1245 = vlog2.pop %v1242
        %v1246 = vmul.f32 %v1245, 0.6931472
        %v1247 = vadd.f32 %v1083, %v1244
        %v1248 = vadd.f32 %v1104, %v1246
        %v1249 = vadd.f32 %v1247, %v658
        %v1250 = vadd.f32 %v1248, %v660
        %vm1251 = vcmp.eq.f32.partialorder %v1031, %v1083
        %vm1252 = vcmp.eq.f32.partialorder %v1032, %v1083
        %vm1253 = vcmp.eq.f32.partialorder %v1033, %v1083
        %vm1254 = vcmp.eq.f32.partialorder %v1034, %v1083
        %vm1255 = vcmp.eq.f32.partialorder %v1035, %v1083
        %vm1256 = vcmp.eq.f32.partialorder %v1036, %v1083
        %vm1257 = vcmp.eq.f32.partialorder %v1037, %v1083
        %vm1258 = vcmp.eq.f32.partialorder %v1038, %v1083
        %vm1259 = vcmp.eq.f32.partialorder %v1039, %v1083
        %vm1260 = vcmp.eq.f32.partialorder %v1040, %v1083
        %vm1261 = vcmp.eq.f32.partialorder %v1041, %v1083
        %vm1262 = vcmp.eq.f32.partialorder %v1042, %v1083
        %vm1263 = vcmp.eq.f32.partialorder %v1043, %v1083
        %vm1264 = vcmp.eq.f32.partialorder %v1044, %v1083
        %vm1265 = vcmp.eq.f32.partialorder %v1045, %v1083
        %vm1266 = vcmp.eq.f32.partialorder %v1046, %v1083
        %vm1267 = vcmp.eq.f32.partialorder %v1047, %v1104
        %vm1268 = vcmp.eq.f32.partialorder %v1048, %v1104
        %vm1269 = vcmp.eq.f32.partialorder %v1049, %v1104
        %vm1270 = vcmp.eq.f32.partialorder %v1050, %v1104
        %vm1271 = vcmp.eq.f32.partialorder %v1051, %v1104
        %vm1272 = vcmp.eq.f32.partialorder %v1052, %v1104
        %vm1273 = vcmp.eq.f32.partialorder %v1053, %v1104
        %vm1274 = vcmp.eq.f32.partialorder %v1054, %v1104
        %vm1275 = vcmp.eq.f32.partialorder %v1055, %v1104
        %vm1276 = vcmp.eq.f32.partialorder %v1056, %v1104
        %vm1277 = vcmp.eq.f32.partialorder %v1057, %v1104
        %vm1278 = vcmp.eq.f32.partialorder %v1058, %v1104
        %vm1279 = vcmp.eq.f32.partialorder %v1059, %v1104
        %vm1280 = vcmp.eq.f32.partialorder %v1060, %v1104
        %vm1281 = vcmp.eq.f32.partialorder %v1061, %v1104
        %vm1282 = vcmp.eq.f32.partialorder %v1062, %v1104
        %v1283 = vsel %vm1251, %v620, 128
        %v1284 = vsel %vm1252, %v621, 128
        %v1285 = vsel %vm1253, %v622, 128
        %v1286 = vsel %vm1254, %v623, 128
        %v1287 = vsel %vm1255, %v624, 128
        %v1288 = vsel %vm1256, %v625, 128
        %v1289 = vsel %vm1257, %v626, 128
        %v1290 = vsel %vm1258, %v627, 128
        %v1291 = vsel %vm1259, %v628, 128
        %v1292 = vsel %vm1260, %v629, 128
        %v1293 = vsel %vm1261, %v630, 128
        %v1294 = vsel %vm1262, %v631, 128
        %v1295 = vsel %vm1263, %v632, 128
        %v1296 = vsel %vm1264, %v633, 128
        %v1297 = vsel %vm1265, %v634, 128
        %v1298 = vsel %vm1266, %v635, 128
        %v1299 = vsel %vm1267, %v620, 128
        %v1300 = vsel %vm1268, %v621, 128
        %v1301 = vsel %vm1269, %v622, 128
        %v1302 = vsel %vm1270, %v623, 128
        %v1303 = vsel %vm1271, %v624, 128
        %v1304 = vsel %vm1272, %v625, 128
        %v1305 = vsel %vm1273, %v626, 128
        %v1306 = vsel %vm1274, %v627, 128
        %v1307 = vsel %vm1275, %v628, 128
        %v1308 = vsel %vm1276, %v629, 128
        %v1309 = vsel %vm1277, %v630, 128
        %v1310 = vsel %vm1278, %v631, 128
        %v1311 = vsel %vm1279, %v632, 128
        %v1312 = vsel %vm1280, %v633, 128
        %v1313 = vsel %vm1281, %v634, 128
        %v1314 = vsel %vm1282, %v635, 128
        %vm1315 = vcmp.lt.s32.totalorder %v1283, %v1285
        %v1316 = vsel %vm1315, %v1283, %v1285
        %vm1317 = vcmp.lt.s32.totalorder %v1284, %v1286
        %v1318 = vsel %vm1317, %v1284, %v1286
        %vm1319 = vcmp.lt.s32.totalorder %v1316, %v1287
        %v1320 = vsel %vm1319, %v1316, %v1287
        %vm1321 = vcmp.lt.s32.totalorder %v1318, %v1288
        %v1322 = vsel %vm1321, %v1318, %v1288
        %vm1323 = vcmp.lt.s32.totalorder %v1320, %v1289
        %v1324 = vsel %vm1323, %v1320, %v1289
        %vm1325 = vcmp.lt.s32.totalorder %v1322, %v1290
        %v1326 = vsel %vm1325, %v1322, %v1290
        %vm1327 = vcmp.lt.s32.totalorder %v1324, %v1291
        %v1328 = vsel %vm1327, %v1324, %v1291
        %vm1329 = vcmp.lt.s32.totalorder %v1326, %v1292
        %v1330 = vsel %vm1329, %v1326, %v1292
        %vm1331 = vcmp.lt.s32.totalorder %v1328, %v1293
        %v1332 = vsel %vm1331, %v1328, %v1293
        %vm1333 = vcmp.lt.s32.totalorder %v1330, %v1294
        %v1334 = vsel %vm1333, %v1330, %v1294
        %vm1335 = vcmp.lt.s32.totalorder %v1332, %v1295
        %v1336 = vsel %vm1335, %v1332, %v1295
        %vm1337 = vcmp.lt.s32.totalorder %v1334, %v1296
        %v1338 = vsel %vm1337, %v1334, %v1296
        %vm1339 = vcmp.lt.s32.totalorder %v1336, %v1297
        %v1340 = vsel %vm1339, %v1336, %v1297
        %vm1341 = vcmp.lt.s32.totalorder %v1338, %v1298
        %v1342 = vsel %vm1341, %v1338, %v1298
        %vm1343 = vcmp.lt.s32.totalorder %v1340, %v1342
        %v1344 = vsel %vm1343, %v1340, %v1342
        %v1345 = vrot.slane %v1344, 4
        %vm1346 = vcmp.lt.s32.totalorder %v1344, %v1345
        %v1347 = vsel %vm1346, %v1344, %v1345
        %v1348 = vrot.slane %v1347, 2
        %vm1349 = vcmp.lt.s32.totalorder %v1347, %v1348
        %v1350 = vsel %vm1349, %v1347, %v1348
        %v1351 = vrot.slane %v1350, 1
        %vm1352 = vcmp.lt.s32.totalorder %v1350, %v1351
        %v1353 = vsel %vm1352, %v1350, %v1351
        %vm1354 = vcmp.lt.s32.totalorder %v1299, %v1301
        %v1355 = vsel %vm1354, %v1299, %v1301
        %vm1356 = vcmp.lt.s32.totalorder %v1300, %v1302
        %v1357 = vsel %vm1356, %v1300, %v1302
        %vm1358 = vcmp.lt.s32.totalorder %v1355, %v1303
        %v1359 = vsel %vm1358, %v1355, %v1303
        %vm1360 = vcmp.lt.s32.totalorder %v1357, %v1304
        %v1361 = vsel %vm1360, %v1357, %v1304
        %vm1362 = vcmp.lt.s32.totalorder %v1359, %v1305
        %v1363 = vsel %vm1362, %v1359, %v1305
        %vm1364 = vcmp.lt.s32.totalorder %v1361, %v1306
        %v1365 = vsel %vm1364, %v1361, %v1306
        %vm1366 = vcmp.lt.s32.totalorder %v1363, %v1307
        %v1367 = vsel %vm1366, %v1363, %v1307
        %vm1368 = vcmp.lt.s32.totalorder %v1365, %v1308
        %v1369 = vsel %vm1368, %v1365, %v1308
        %vm1370 = vcmp.lt.s32.totalorder %v1367, %v1309
        %v1371 = vsel %vm1370, %v1367, %v1309
        %vm1372 = vcmp.lt.s32.totalorder %v1369, %v1310
        %v1373 = vsel %vm1372, %v1369, %v1310
        %vm1374 = vcmp.lt.s32.totalorder %v1371, %v1311
        %v1375 = vsel %vm1374, %v1371, %v1311
        %vm1376 = vcmp.lt.s32.totalorder %v1373, %v1312
        %v1377 = vsel %vm1376, %v1373, %v1312
        %vm1378 = vcmp.lt.s32.totalorder %v1375, %v1313
        %v1379 = vsel %vm1378, %v1375, %v1313
        %vm1380 = vcmp.lt.s32.totalorder %v1377, %v1314
        %v1381 = vsel %vm1380, %v1377, %v1314
        %vm1382 = vcmp.lt.s32.totalorder %v1379, %v1381
        %v1383 = vsel %vm1382, %v1379, %v1381
        %v1384 = vrot.slane %v1383, 4
        %vm1385 = vcmp.lt.s32.totalorder %v1383, %v1384
        %v1386 = vsel %vm1385, %v1383, %v1384
        %v1387 = vrot.slane %v1386, 2
        %vm1388 = vcmp.lt.s32.totalorder %v1386, %v1387
        %v1389 = vsel %vm1388, %v1386, %v1387
        %v1390 = vrot.slane %v1389, 1
        %vm1391 = vcmp.lt.s32.totalorder %v1389, %v1390
        %v1392 = vsel %vm1391, %v1389, %v1390
        %v1393 = vadd.f32 %v1083, %v658
        %v1394 = vadd.f32 %v1104, %v660
        %vm1395 = vcmp.gt.s32.totalorder %v618, 1
        %v1396 = vsel %vm1395, 1, 0
        %vm1397 = vcmp.eq.s32.totalorder %v1396, 1
        %v1400 = vrot.slane %v1249, 1
        %v1401 = vsel %vm717, %v1250, %v1400
        %v1403 = vsel %vm1397, %v1401, %v836
        %v1406 = vrot.slane %v1393, 1
        %v1407 = vsel %vm717, %v1394, %v1406
        %v1409 = vsel %vm1397, %v1407, %v836
        %v1410 = vperm.slane %v1403, 0
        %v1411 = vlaneseq
        %v1412 = vshrl.u32 %v1411, 7
        %1414 = vset.pattern.permute.xlu0 %v1412
        %1415 = vperm.xlu0 %1414, %v1410
        %v1416 = vpop.permute.xlu0 %1415
        %v1417 = vlaneseq
        %v1418 = vshrl.u32 %v1417, 7
        %v1419 = vadd.s32 %v1418, 8
        %1420 = vset.pattern.permute.xlu0 %v1419
        %1421 = vperm.xlu0 %1420, %v1410
        %v1422 = vpop.permute.xlu0 %1421
        %v1423 = vlaneseq
        %v1424 = vshrl.u32 %v1423, 7
        %v1425 = vadd.s32 %v1424, 16
        %1426 = vset.pattern.permute.xlu0 %v1425
        %1427 = vperm.xlu0 %1426, %v1410
        %v1428 = vpop.permute.xlu0 %1427
        %v1429 = vlaneseq
        %v1430 = vshrl.u32 %v1429, 7
        %v1431 = vadd.s32 %v1430, 24
        %1432 = vset.pattern.permute.xlu0 %v1431
        %1433 = vperm.xlu0 %1432, %v1410
        %v1434 = vpop.permute.xlu0 %1433
        %v1435 = vlaneseq
        %v1436 = vshrl.u32 %v1435, 7
        %v1437 = vadd.s32 %v1436, 32
        %1438 = vset.pattern.permute.xlu0 %v1437
        %1439 = vperm.xlu0 %1438, %v1410
        %v1440 = vpop.permute.xlu0 %1439
        %v1441 = vlaneseq
        %v1442 = vshrl.u32 %v1441, 7
        %v1443 = vadd.s32 %v1442, 40
        %1444 = vset.pattern.permute.xlu0 %v1443
        %1445 = vperm.xlu0 %1444, %v1410
        %v1446 = vpop.permute.xlu0 %1445
        %v1447 = vlaneseq
        %v1448 = vshrl.u32 %v1447, 7
        %v1449 = vadd.s32 %v1448, 48
        %1450 = vset.pattern.permute.xlu0 %v1449
        %1451 = vperm.xlu0 %1450, %v1410
        %v1452 = vpop.permute.xlu0 %1451
        %v1453 = vlaneseq
        %v1454 = vshrl.u32 %v1453, 7
        %v1455 = vadd.s32 %v1454, 56
        %1456 = vset.pattern.permute.xlu0 %v1455
        %1457 = vperm.xlu0 %1456, %v1410
        %v1458 = vpop.permute.xlu0 %1457
        %v1459 = vlaneseq
        %v1460 = vshrl.u32 %v1459, 7
        %v1461 = vadd.s32 %v1460, 64
        %1462 = vset.pattern.permute.xlu0 %v1461
        %1463 = vperm.xlu0 %1462, %v1410
        %v1464 = vpop.permute.xlu0 %1463
        %v1465 = vlaneseq
        %v1466 = vshrl.u32 %v1465, 7
        %v1467 = vadd.s32 %v1466, 72
        %1468 = vset.pattern.permute.xlu0 %v1467
        %1469 = vperm.xlu0 %1468, %v1410
        %v1470 = vpop.permute.xlu0 %1469
        %v1471 = vlaneseq
        %v1472 = vshrl.u32 %v1471, 7
        %v1473 = vadd.s32 %v1472, 80
        %1474 = vset.pattern.permute.xlu0 %v1473
        %1475 = vperm.xlu0 %1474, %v1410
        %v1476 = vpop.permute.xlu0 %1475
        %v1477 = vlaneseq
        %v1478 = vshrl.u32 %v1477, 7
        %v1479 = vadd.s32 %v1478, 88
        %1480 = vset.pattern.permute.xlu0 %v1479
        %1481 = vperm.xlu0 %1480, %v1410
        %v1482 = vpop.permute.xlu0 %1481
        %v1483 = vlaneseq
        %v1484 = vshrl.u32 %v1483, 7
        %v1485 = vadd.s32 %v1484, 96
        %1486 = vset.pattern.permute.xlu0 %v1485
        %1487 = vperm.xlu0 %1486, %v1410
        %v1488 = vpop.permute.xlu0 %1487
        %v1489 = vlaneseq
        %v1490 = vshrl.u32 %v1489, 7
        %v1491 = vadd.s32 %v1490, 104
        %1492 = vset.pattern.permute.xlu0 %v1491
        %1493 = vperm.xlu0 %1492, %v1410
        %v1494 = vpop.permute.xlu0 %1493
        %v1495 = vlaneseq
        %v1496 = vshrl.u32 %v1495, 7
        %v1497 = vadd.s32 %v1496, 112
        %1498 = vset.pattern.permute.xlu0 %v1497
        %1499 = vperm.xlu0 %1498, %v1410
        %v1500 = vpop.permute.xlu0 %1499
        %v1501 = vlaneseq
        %v1502 = vshrl.u32 %v1501, 7
        %v1503 = vadd.s32 %v1502, 120
        %1504 = vset.pattern.permute.xlu0 %v1503
        %1505 = vperm.xlu0 %1504, %v1410
        %v1506 = vpop.permute.xlu0 %1505
        %v1507 = vperm.slane %v1403, 1
        %v1508 = vlaneseq
        %v1509 = vshrl.u32 %v1508, 7
        %1511 = vset.pattern.permute.xlu0 %v1509
        %1512 = vperm.xlu0 %1511, %v1507
        %v1513 = vpop.permute.xlu0 %1512
        %v1514 = vlaneseq
        %v1515 = vshrl.u32 %v1514, 7
        %v1516 = vadd.s32 %v1515, 8
        %1517 = vset.pattern.permute.xlu0 %v1516
        %1518 = vperm.xlu0 %1517, %v1507
        %v1519 = vpop.permute.xlu0 %1518
        %v1520 = vlaneseq
        %v1521 = vshrl.u32 %v1520, 7
        %v1522 = vadd.s32 %v1521, 16
        %1523 = vset.pattern.permute.xlu0 %v1522
        %1524 = vperm.xlu0 %1523, %v1507
        %v1525 = vpop.permute.xlu0 %1524
        %v1526 = vlaneseq
        %v1527 = vshrl.u32 %v1526, 7
        %v1528 = vadd.s32 %v1527, 24
        %1529 = vset.pattern.permute.xlu0 %v1528
        %1530 = vperm.xlu0 %1529, %v1507
        %v1531 = vpop.permute.xlu0 %1530
        %v1532 = vlaneseq
        %v1533 = vshrl.u32 %v1532, 7
        %v1534 = vadd.s32 %v1533, 32
        %1535 = vset.pattern.permute.xlu0 %v1534
        %1536 = vperm.xlu0 %1535, %v1507
        %v1537 = vpop.permute.xlu0 %1536
        %v1538 = vlaneseq
        %v1539 = vshrl.u32 %v1538, 7
        %v1540 = vadd.s32 %v1539, 40
        %1541 = vset.pattern.permute.xlu0 %v1540
        %1542 = vperm.xlu0 %1541, %v1507
        %v1543 = vpop.permute.xlu0 %1542
        %v1544 = vlaneseq
        %v1545 = vshrl.u32 %v1544, 7
        %v1546 = vadd.s32 %v1545, 48
        %1547 = vset.pattern.permute.xlu0 %v1546
        %1548 = vperm.xlu0 %1547, %v1507
        %v1549 = vpop.permute.xlu0 %1548
        %v1550 = vlaneseq
        %v1551 = vshrl.u32 %v1550, 7
        %v1552 = vadd.s32 %v1551, 56
        %1553 = vset.pattern.permute.xlu0 %v1552
        %1554 = vperm.xlu0 %1553, %v1507
        %v1555 = vpop.permute.xlu0 %1554
        %v1556 = vlaneseq
        %v1557 = vshrl.u32 %v1556, 7
        %v1558 = vadd.s32 %v1557, 64
        %1559 = vset.pattern.permute.xlu0 %v1558
        %1560 = vperm.xlu0 %1559, %v1507
        %v1561 = vpop.permute.xlu0 %1560
        %v1562 = vlaneseq
        %v1563 = vshrl.u32 %v1562, 7
        %v1564 = vadd.s32 %v1563, 72
        %1565 = vset.pattern.permute.xlu0 %v1564
        %1566 = vperm.xlu0 %1565, %v1507
        %v1567 = vpop.permute.xlu0 %1566
        %v1568 = vlaneseq
        %v1569 = vshrl.u32 %v1568, 7
        %v1570 = vadd.s32 %v1569, 80
        %1571 = vset.pattern.permute.xlu0 %v1570
        %1572 = vperm.xlu0 %1571, %v1507
        %v1573 = vpop.permute.xlu0 %1572
        %v1574 = vlaneseq
        %v1575 = vshrl.u32 %v1574, 7
        %v1576 = vadd.s32 %v1575, 88
        %1577 = vset.pattern.permute.xlu0 %v1576
        %1578 = vperm.xlu0 %1577, %v1507
        %v1579 = vpop.permute.xlu0 %1578
        %v1580 = vlaneseq
        %v1581 = vshrl.u32 %v1580, 7
        %v1582 = vadd.s32 %v1581, 96
        %1583 = vset.pattern.permute.xlu0 %v1582
        %1584 = vperm.xlu0 %1583, %v1507
        %v1585 = vpop.permute.xlu0 %1584
        %v1586 = vlaneseq
        %v1587 = vshrl.u32 %v1586, 7
        %v1588 = vadd.s32 %v1587, 104
        %1589 = vset.pattern.permute.xlu0 %v1588
        %1590 = vperm.xlu0 %1589, %v1507
        %v1591 = vpop.permute.xlu0 %1590
        %v1592 = vlaneseq
        %v1593 = vshrl.u32 %v1592, 7
        %v1594 = vadd.s32 %v1593, 112
        %1595 = vset.pattern.permute.xlu0 %v1594
        %1596 = vperm.xlu0 %1595, %v1507
        %v1597 = vpop.permute.xlu0 %1596
        %v1598 = vlaneseq
        %v1599 = vshrl.u32 %v1598, 7
        %v1600 = vadd.s32 %v1599, 120
        %1601 = vset.pattern.permute.xlu0 %v1600
        %1602 = vperm.xlu0 %1601, %v1507
        %v1603 = vpop.permute.xlu0 %1602
        %v1604 = vadd.f32 %v1416, %v584
        %v1605 = vadd.f32 %v1422, %v585
        %v1606 = vadd.f32 %v1428, %v586
        %v1607 = vadd.f32 %v1434, %v587
        %v1608 = vadd.f32 %v1440, %v588
        %v1609 = vadd.f32 %v1446, %v589
        %v1610 = vadd.f32 %v1452, %v590
        %v1611 = vadd.f32 %v1458, %v591
        %v1612 = vadd.f32 %v1464, %v592
        %v1613 = vadd.f32 %v1470, %v593
        %v1614 = vadd.f32 %v1476, %v594
        %v1615 = vadd.f32 %v1482, %v595
        %v1616 = vadd.f32 %v1488, %v596
        %v1617 = vadd.f32 %v1494, %v597
        %v1618 = vadd.f32 %v1500, %v598
        %v1619 = vadd.f32 %v1506, %v599
        %v1620 = vadd.f32 %v1513, %v584
        %v1621 = vadd.f32 %v1519, %v585
        %v1622 = vadd.f32 %v1525, %v586
        %v1623 = vadd.f32 %v1531, %v587
        %v1624 = vadd.f32 %v1537, %v588
        %v1625 = vadd.f32 %v1543, %v589
        %v1626 = vadd.f32 %v1549, %v590
        %v1627 = vadd.f32 %v1555, %v591
        %v1628 = vadd.f32 %v1561, %v592
        %v1629 = vadd.f32 %v1567, %v593
        %v1630 = vadd.f32 %v1573, %v594
        %v1631 = vadd.f32 %v1579, %v595
        %v1632 = vadd.f32 %v1585, %v596
        %v1633 = vadd.f32 %v1591, %v597
        %v1634 = vadd.f32 %v1597, %v598
        %v1635 = vadd.f32 %v1603, %v599
        %v1636 = vmax.f32 %v1604, %v1606
        %v1637 = vmax.f32 %v1605, %v1607
        %v1638 = vmax.f32 %v1636, %v1608
        %v1639 = vmax.f32 %v1637, %v1609
        %v1640 = vmax.f32 %v1638, %v1610
        %v1641 = vmax.f32 %v1639, %v1611
        %v1642 = vmax.f32 %v1640, %v1612
        %v1643 = vmax.f32 %v1641, %v1613
        %v1644 = vmax.f32 %v1642, %v1614
        %v1645 = vmax.f32 %v1643, %v1615
        %v1646 = vmax.f32 %v1644, %v1616
        %v1647 = vmax.f32 %v1645, %v1617
        %v1648 = vmax.f32 %v1646, %v1618
        %v1649 = vmax.f32 %v1647, %v1619
        %v1650 = vmax.f32 %v1648, %v1649
        %v1651 = vrot.slane %v1650, 4
        %v1652 = vmax.f32 %v1650, %v1651
        %v1653 = vrot.slane %v1652, 2
        %v1654 = vmax.f32 %v1652, %v1653
        %v1655 = vrot.slane %v1654, 1
        %v1656 = vmax.f32 %v1654, %v1655
        %v1657 = vmax.f32 %v1620, %v1622
        %v1658 = vmax.f32 %v1621, %v1623
        %v1659 = vmax.f32 %v1657, %v1624
        %v1660 = vmax.f32 %v1658, %v1625
        %v1661 = vmax.f32 %v1659, %v1626
        %v1662 = vmax.f32 %v1660, %v1627
        %v1663 = vmax.f32 %v1661, %v1628
        %v1664 = vmax.f32 %v1662, %v1629
        %v1665 = vmax.f32 %v1663, %v1630
        %v1666 = vmax.f32 %v1664, %v1631
        %v1667 = vmax.f32 %v1665, %v1632
        %v1668 = vmax.f32 %v1666, %v1633
        %v1669 = vmax.f32 %v1667, %v1634
        %v1670 = vmax.f32 %v1668, %v1635
        %v1671 = vmax.f32 %v1669, %v1670
        %v1672 = vrot.slane %v1671, 4
        %v1673 = vmax.f32 %v1671, %v1672
        %v1674 = vrot.slane %v1673, 2
        %v1675 = vmax.f32 %v1673, %v1674
        %v1676 = vrot.slane %v1675, 1
        %v1677 = vmax.f32 %v1675, %v1676
        %v1678 = vsub.f32 %v1604, %v1656
        %v1679 = vsub.f32 %v1605, %v1656
        %v1680 = vsub.f32 %v1606, %v1656
        %v1681 = vsub.f32 %v1607, %v1656
        %v1682 = vsub.f32 %v1608, %v1656
        %v1683 = vsub.f32 %v1609, %v1656
        %v1684 = vsub.f32 %v1610, %v1656
        %v1685 = vsub.f32 %v1611, %v1656
        %v1686 = vsub.f32 %v1612, %v1656
        %v1687 = vsub.f32 %v1613, %v1656
        %v1688 = vsub.f32 %v1614, %v1656
        %v1689 = vsub.f32 %v1615, %v1656
        %v1690 = vsub.f32 %v1616, %v1656
        %v1691 = vsub.f32 %v1617, %v1656
        %v1692 = vsub.f32 %v1618, %v1656
        %v1693 = vsub.f32 %v1619, %v1656
        %v1694 = vsub.f32 %v1620, %v1677
        %v1695 = vsub.f32 %v1621, %v1677
        %v1696 = vsub.f32 %v1622, %v1677
        %v1697 = vsub.f32 %v1623, %v1677
        %v1698 = vsub.f32 %v1624, %v1677
        %v1699 = vsub.f32 %v1625, %v1677
        %v1700 = vsub.f32 %v1626, %v1677
        %v1701 = vsub.f32 %v1627, %v1677
        %v1702 = vsub.f32 %v1628, %v1677
        %v1703 = vsub.f32 %v1629, %v1677
        %v1704 = vsub.f32 %v1630, %v1677
        %v1705 = vsub.f32 %v1631, %v1677
        %v1706 = vsub.f32 %v1632, %v1677
        %v1707 = vsub.f32 %v1633, %v1677
        %v1708 = vsub.f32 %v1634, %v1677
        %v1709 = vsub.f32 %v1635, %v1677
        %v1710 = vmul.f32 %v1678, 1.442695
        %v1711 = vpow.pop %v1710
        %v1712 = vmul.f32 %v1679, 1.442695
        %v1713 = vpow.pop %v1712
        %v1714 = vmul.f32 %v1680, 1.442695
        %v1715 = vpow.pop %v1714
        %v1716 = vmul.f32 %v1681, 1.442695
        %v1717 = vpow.pop %v1716
        %v1718 = vmul.f32 %v1682, 1.442695
        %v1719 = vpow.pop %v1718
        %v1720 = vmul.f32 %v1683, 1.442695
        %v1721 = vpow.pop %v1720
        %v1722 = vmul.f32 %v1684, 1.442695
        %v1723 = vpow.pop %v1722
        %v1724 = vmul.f32 %v1685, 1.442695
        %v1725 = vpow.pop %v1724
        %v1726 = vmul.f32 %v1686, 1.442695
        %v1727 = vpow.pop %v1726
        %v1728 = vmul.f32 %v1687, 1.442695
        %v1729 = vpow.pop %v1728
        %v1730 = vmul.f32 %v1688, 1.442695
        %v1731 = vpow.pop %v1730
        %v1732 = vmul.f32 %v1689, 1.442695
        %v1733 = vpow.pop %v1732
        %v1734 = vmul.f32 %v1690, 1.442695
        %v1735 = vpow.pop %v1734
        %v1736 = vmul.f32 %v1691, 1.442695
        %v1737 = vpow.pop %v1736
        %v1738 = vmul.f32 %v1692, 1.442695
        %v1739 = vpow.pop %v1738
        %v1740 = vmul.f32 %v1693, 1.442695
        %v1741 = vpow.pop %v1740
        %v1742 = vmul.f32 %v1694, 1.442695
        %v1743 = vpow.pop %v1742
        %v1744 = vmul.f32 %v1695, 1.442695
        %v1745 = vpow.pop %v1744
        %v1746 = vmul.f32 %v1696, 1.442695
        %v1747 = vpow.pop %v1746
        %v1748 = vmul.f32 %v1697, 1.442695
        %v1749 = vpow.pop %v1748
        %v1750 = vmul.f32 %v1698, 1.442695
        %v1751 = vpow.pop %v1750
        %v1752 = vmul.f32 %v1699, 1.442695
        %v1753 = vpow.pop %v1752
        %v1754 = vmul.f32 %v1700, 1.442695
        %v1755 = vpow.pop %v1754
        %v1756 = vmul.f32 %v1701, 1.442695
        %v1757 = vpow.pop %v1756
        %v1758 = vmul.f32 %v1702, 1.442695
        %v1759 = vpow.pop %v1758
        %v1760 = vmul.f32 %v1703, 1.442695
        %v1761 = vpow.pop %v1760
        %v1762 = vmul.f32 %v1704, 1.442695
        %v1763 = vpow.pop %v1762
        %v1764 = vmul.f32 %v1705, 1.442695
        %v1765 = vpow.pop %v1764
        %v1766 = vmul.f32 %v1706, 1.442695
        %v1767 = vpow.pop %v1766
        %v1768 = vmul.f32 %v1707, 1.442695
        %v1769 = vpow.pop %v1768
        %v1770 = vmul.f32 %v1708, 1.442695
        %v1771 = vpow.pop %v1770
        %v1772 = vmul.f32 %v1709, 1.442695
        %v1773 = vpow.pop %v1772
        %v1774 = vadd.f32 %v1711, %v1713
        %v1775 = vadd.f32 %v1774, %v1715
        %v1776 = vadd.f32 %v1775, %v1717
        %v1777 = vadd.f32 %v1776, %v1719
        %v1778 = vadd.f32 %v1777, %v1721
        %v1779 = vadd.f32 %v1778, %v1723
        %v1780 = vadd.f32 %v1779, %v1725
        %v1781 = vadd.f32 %v1780, %v1727
        %v1782 = vadd.f32 %v1781, %v1729
        %v1783 = vadd.f32 %v1782, %v1731
        %v1784 = vadd.f32 %v1783, %v1733
        %v1785 = vadd.f32 %v1784, %v1735
        %v1786 = vadd.f32 %v1785, %v1737
        %v1787 = vadd.f32 %v1786, %v1739
        %v1788 = vadd.f32 %v1787, %v1741
        %v1789 = vrot.slane %v1788, 4
        %v1790 = vadd.f32 %v1788, %v1789
        %v1791 = vrot.slane %v1790, 2
        %v1792 = vadd.f32 %v1790, %v1791
        %v1793 = vrot.slane %v1792, 1
        %v1794 = vadd.f32 %v1792, %v1793
        %v1795 = vadd.f32 %v1743, %v1745
        %v1796 = vadd.f32 %v1795, %v1747
        %v1797 = vadd.f32 %v1796, %v1749
        %v1798 = vadd.f32 %v1797, %v1751
        %v1799 = vadd.f32 %v1798, %v1753
        %v1800 = vadd.f32 %v1799, %v1755
        %v1801 = vadd.f32 %v1800, %v1757
        %v1802 = vadd.f32 %v1801, %v1759
        %v1803 = vadd.f32 %v1802, %v1761
        %v1804 = vadd.f32 %v1803, %v1763
        %v1805 = vadd.f32 %v1804, %v1765
        %v1806 = vadd.f32 %v1805, %v1767
        %v1807 = vadd.f32 %v1806, %v1769
        %v1808 = vadd.f32 %v1807, %v1771
        %v1809 = vadd.f32 %v1808, %v1773
        %v1810 = vrot.slane %v1809, 4
        %v1811 = vadd.f32 %v1809, %v1810
        %v1812 = vrot.slane %v1811, 2
        %v1813 = vadd.f32 %v1811, %v1812
        %v1814 = vrot.slane %v1813, 1
        %v1815 = vadd.f32 %v1813, %v1814
        %v1816 = vlog2.pop %v1794
        %v1817 = vmul.f32 %v1816, 0.6931472
        %v1818 = vlog2.pop %v1815
        %v1819 = vmul.f32 %v1818, 0.6931472
        %v1820 = vadd.f32 %v1656, %v1817
        %v1821 = vadd.f32 %v1677, %v1819
        %v1822 = vadd.f32 %v1820, %v658
        %v1823 = vadd.f32 %v1821, %v660
        %v1824 = vperm.slane %v1409, 0
        %v1825 = vlaneseq
        %v1826 = vshrl.u32 %v1825, 7
        %1828 = vset.pattern.permute.xlu0 %v1826
        %1829 = vperm.xlu0 %1828, %v1824
        %v1830 = vpop.permute.xlu0 %1829
        %v1831 = vlaneseq
        %v1832 = vshrl.u32 %v1831, 7
        %v1833 = vadd.s32 %v1832, 8
        %1834 = vset.pattern.permute.xlu0 %v1833
        %1835 = vperm.xlu0 %1834, %v1824
        %v1836 = vpop.permute.xlu0 %1835
        %v1837 = vlaneseq
        %v1838 = vshrl.u32 %v1837, 7
        %v1839 = vadd.s32 %v1838, 16
        %1840 = vset.pattern.permute.xlu0 %v1839
        %1841 = vperm.xlu0 %1840, %v1824
        %v1842 = vpop.permute.xlu0 %1841
        %v1843 = vlaneseq
        %v1844 = vshrl.u32 %v1843, 7
        %v1845 = vadd.s32 %v1844, 24
        %1846 = vset.pattern.permute.xlu0 %v1845
        %1847 = vperm.xlu0 %1846, %v1824
        %v1848 = vpop.permute.xlu0 %1847
        %v1849 = vlaneseq
        %v1850 = vshrl.u32 %v1849, 7
        %v1851 = vadd.s32 %v1850, 32
        %1852 = vset.pattern.permute.xlu0 %v1851
        %1853 = vperm.xlu0 %1852, %v1824
        %v1854 = vpop.permute.xlu0 %1853
        %v1855 = vlaneseq
        %v1856 = vshrl.u32 %v1855, 7
        %v1857 = vadd.s32 %v1856, 40
        %1858 = vset.pattern.permute.xlu0 %v1857
        %1859 = vperm.xlu0 %1858, %v1824
        %v1860 = vpop.permute.xlu0 %1859
        %v1861 = vlaneseq
        %v1862 = vshrl.u32 %v1861, 7
        %v1863 = vadd.s32 %v1862, 48
        %1864 = vset.pattern.permute.xlu0 %v1863
        %1865 = vperm.xlu0 %1864, %v1824
        %v1866 = vpop.permute.xlu0 %1865
        %v1867 = vlaneseq
        %v1868 = vshrl.u32 %v1867, 7
        %v1869 = vadd.s32 %v1868, 56
        %1870 = vset.pattern.permute.xlu0 %v1869
        %1871 = vperm.xlu0 %1870, %v1824
        %v1872 = vpop.permute.xlu0 %1871
        %v1873 = vlaneseq
        %v1874 = vshrl.u32 %v1873, 7
        %v1875 = vadd.s32 %v1874, 64
        %1876 = vset.pattern.permute.xlu0 %v1875
        %1877 = vperm.xlu0 %1876, %v1824
        %v1878 = vpop.permute.xlu0 %1877
        %v1879 = vlaneseq
        %v1880 = vshrl.u32 %v1879, 7
        %v1881 = vadd.s32 %v1880, 72
        %1882 = vset.pattern.permute.xlu0 %v1881
        %1883 = vperm.xlu0 %1882, %v1824
        %v1884 = vpop.permute.xlu0 %1883
        %v1885 = vlaneseq
        %v1886 = vshrl.u32 %v1885, 7
        %v1887 = vadd.s32 %v1886, 80
        %1888 = vset.pattern.permute.xlu0 %v1887
        %1889 = vperm.xlu0 %1888, %v1824
        %v1890 = vpop.permute.xlu0 %1889
        %v1891 = vlaneseq
        %v1892 = vshrl.u32 %v1891, 7
        %v1893 = vadd.s32 %v1892, 88
        %1894 = vset.pattern.permute.xlu0 %v1893
        %1895 = vperm.xlu0 %1894, %v1824
        %v1896 = vpop.permute.xlu0 %1895
        %v1897 = vlaneseq
        %v1898 = vshrl.u32 %v1897, 7
        %v1899 = vadd.s32 %v1898, 96
        %1900 = vset.pattern.permute.xlu0 %v1899
        %1901 = vperm.xlu0 %1900, %v1824
        %v1902 = vpop.permute.xlu0 %1901
        %v1903 = vlaneseq
        %v1904 = vshrl.u32 %v1903, 7
        %v1905 = vadd.s32 %v1904, 104
        %1906 = vset.pattern.permute.xlu0 %v1905
        %1907 = vperm.xlu0 %1906, %v1824
        %v1908 = vpop.permute.xlu0 %1907
        %v1909 = vlaneseq
        %v1910 = vshrl.u32 %v1909, 7
        %v1911 = vadd.s32 %v1910, 112
        %1912 = vset.pattern.permute.xlu0 %v1911
        %1913 = vperm.xlu0 %1912, %v1824
        %v1914 = vpop.permute.xlu0 %1913
        %v1915 = vlaneseq
        %v1916 = vshrl.u32 %v1915, 7
        %v1917 = vadd.s32 %v1916, 120
        %1918 = vset.pattern.permute.xlu0 %v1917
        %1919 = vperm.xlu0 %1918, %v1824
        %v1920 = vpop.permute.xlu0 %1919
        %v1921 = vperm.slane %v1409, 1
        %v1922 = vlaneseq
        %v1923 = vshrl.u32 %v1922, 7
        %1925 = vset.pattern.permute.xlu0 %v1923
        %1926 = vperm.xlu0 %1925, %v1921
        %v1927 = vpop.permute.xlu0 %1926
        %v1928 = vlaneseq
        %v1929 = vshrl.u32 %v1928, 7
        %v1930 = vadd.s32 %v1929, 8
        %1931 = vset.pattern.permute.xlu0 %v1930
        %1932 = vperm.xlu0 %1931, %v1921
        %v1933 = vpop.permute.xlu0 %1932
        %v1934 = vlaneseq
        %v1935 = vshrl.u32 %v1934, 7
        %v1936 = vadd.s32 %v1935, 16
        %1937 = vset.pattern.permute.xlu0 %v1936
        %1938 = vperm.xlu0 %1937, %v1921
        %v1939 = vpop.permute.xlu0 %1938
        %v1940 = vlaneseq
        %v1941 = vshrl.u32 %v1940, 7
        %v1942 = vadd.s32 %v1941, 24
        %1943 = vset.pattern.permute.xlu0 %v1942
        %1944 = vperm.xlu0 %1943, %v1921
        %v1945 = vpop.permute.xlu0 %1944
        %v1946 = vlaneseq
        %v1947 = vshrl.u32 %v1946, 7
        %v1948 = vadd.s32 %v1947, 32
        %1949 = vset.pattern.permute.xlu0 %v1948
        %1950 = vperm.xlu0 %1949, %v1921
        %v1951 = vpop.permute.xlu0 %1950
        %v1952 = vlaneseq
        %v1953 = vshrl.u32 %v1952, 7
        %v1954 = vadd.s32 %v1953, 40
        %1955 = vset.pattern.permute.xlu0 %v1954
        %1956 = vperm.xlu0 %1955, %v1921
        %v1957 = vpop.permute.xlu0 %1956
        %v1958 = vlaneseq
        %v1959 = vshrl.u32 %v1958, 7
        %v1960 = vadd.s32 %v1959, 48
        %1961 = vset.pattern.permute.xlu0 %v1960
        %1962 = vperm.xlu0 %1961, %v1921
        %v1963 = vpop.permute.xlu0 %1962
        %v1964 = vlaneseq
        %v1965 = vshrl.u32 %v1964, 7
        %v1966 = vadd.s32 %v1965, 56
        %1967 = vset.pattern.permute.xlu0 %v1966
        %1968 = vperm.xlu0 %1967, %v1921
        %v1969 = vpop.permute.xlu0 %1968
        %v1970 = vlaneseq
        %v1971 = vshrl.u32 %v1970, 7
        %v1972 = vadd.s32 %v1971, 64
        %1973 = vset.pattern.permute.xlu0 %v1972
        %1974 = vperm.xlu0 %1973, %v1921
        %v1975 = vpop.permute.xlu0 %1974
        %v1976 = vlaneseq
        %v1977 = vshrl.u32 %v1976, 7
        %v1978 = vadd.s32 %v1977, 72
        %1979 = vset.pattern.permute.xlu0 %v1978
        %1980 = vperm.xlu0 %1979, %v1921
        %v1981 = vpop.permute.xlu0 %1980
        %v1982 = vlaneseq
        %v1983 = vshrl.u32 %v1982, 7
        %v1984 = vadd.s32 %v1983, 80
        %1985 = vset.pattern.permute.xlu0 %v1984
        %1986 = vperm.xlu0 %1985, %v1921
        %v1987 = vpop.permute.xlu0 %1986
        %v1988 = vlaneseq
        %v1989 = vshrl.u32 %v1988, 7
        %v1990 = vadd.s32 %v1989, 88
        %1991 = vset.pattern.permute.xlu0 %v1990
        %1992 = vperm.xlu0 %1991, %v1921
        %v1993 = vpop.permute.xlu0 %1992
        %v1994 = vlaneseq
        %v1995 = vshrl.u32 %v1994, 7
        %v1996 = vadd.s32 %v1995, 96
        %1997 = vset.pattern.permute.xlu0 %v1996
        %1998 = vperm.xlu0 %1997, %v1921
        %v1999 = vpop.permute.xlu0 %1998
        %v2000 = vlaneseq
        %v2001 = vshrl.u32 %v2000, 7
        %v2002 = vadd.s32 %v2001, 104
        %2003 = vset.pattern.permute.xlu0 %v2002
        %2004 = vperm.xlu0 %2003, %v1921
        %v2005 = vpop.permute.xlu0 %2004
        %v2006 = vlaneseq
        %v2007 = vshrl.u32 %v2006, 7
        %v2008 = vadd.s32 %v2007, 112
        %2009 = vset.pattern.permute.xlu0 %v2008
        %2010 = vperm.xlu0 %2009, %v1921
        %v2011 = vpop.permute.xlu0 %2010
        %v2012 = vlaneseq
        %v2013 = vshrl.u32 %v2012, 7
        %v2014 = vadd.s32 %v2013, 120
        %2015 = vset.pattern.permute.xlu0 %v2014
        %2016 = vperm.xlu0 %2015, %v1921
        %v2017 = vpop.permute.xlu0 %2016
        %v2018 = vadd.f32 %v1830, %v584
        %v2019 = vadd.f32 %v1836, %v585
        %v2020 = vadd.f32 %v1842, %v586
        %v2021 = vadd.f32 %v1848, %v587
        %v2022 = vadd.f32 %v1854, %v588
        %v2023 = vadd.f32 %v1860, %v589
        %v2024 = vadd.f32 %v1866, %v590
        %v2025 = vadd.f32 %v1872, %v591
        %v2026 = vadd.f32 %v1878, %v592
        %v2027 = vadd.f32 %v1884, %v593
        %v2028 = vadd.f32 %v1890, %v594
        %v2029 = vadd.f32 %v1896, %v595
        %v2030 = vadd.f32 %v1902, %v596
        %v2031 = vadd.f32 %v1908, %v597
        %v2032 = vadd.f32 %v1914, %v598
        %v2033 = vadd.f32 %v1920, %v599
        %v2034 = vadd.f32 %v1927, %v584
        %v2035 = vadd.f32 %v1933, %v585
        %v2036 = vadd.f32 %v1939, %v586
        %v2037 = vadd.f32 %v1945, %v587
        %v2038 = vadd.f32 %v1951, %v588
        %v2039 = vadd.f32 %v1957, %v589
        %v2040 = vadd.f32 %v1963, %v590
        %v2041 = vadd.f32 %v1969, %v591
        %v2042 = vadd.f32 %v1975, %v592
        %v2043 = vadd.f32 %v1981, %v593
        %v2044 = vadd.f32 %v1987, %v594
        %v2045 = vadd.f32 %v1993, %v595
        %v2046 = vadd.f32 %v1999, %v596
        %v2047 = vadd.f32 %v2005, %v597
        %v2048 = vadd.f32 %v2011, %v598
        %v2049 = vadd.f32 %v2017, %v599
        %v2050 = vmax.f32 %v2018, %v2020
        %v2051 = vmax.f32 %v2019, %v2021
        %v2052 = vmax.f32 %v2050, %v2022
        %v2053 = vmax.f32 %v2051, %v2023
        %v2054 = vmax.f32 %v2052, %v2024
        %v2055 = vmax.f32 %v2053, %v2025
        %v2056 = vmax.f32 %v2054, %v2026
        %v2057 = vmax.f32 %v2055, %v2027
        %v2058 = vmax.f32 %v2056, %v2028
        %v2059 = vmax.f32 %v2057, %v2029
        %v2060 = vmax.f32 %v2058, %v2030
        %v2061 = vmax.f32 %v2059, %v2031
        %v2062 = vmax.f32 %v2060, %v2032
        %v2063 = vmax.f32 %v2061, %v2033
        %v2064 = vmax.f32 %v2062, %v2063
        %v2065 = vrot.slane %v2064, 4
        %v2066 = vmax.f32 %v2064, %v2065
        %v2067 = vrot.slane %v2066, 2
        %v2068 = vmax.f32 %v2066, %v2067
        %v2069 = vrot.slane %v2068, 1
        %v2070 = vmax.f32 %v2068, %v2069
        %v2071 = vmax.f32 %v2034, %v2036
        %v2072 = vmax.f32 %v2035, %v2037
        %v2073 = vmax.f32 %v2071, %v2038
        %v2074 = vmax.f32 %v2072, %v2039
        %v2075 = vmax.f32 %v2073, %v2040
        %v2076 = vmax.f32 %v2074, %v2041
        %v2077 = vmax.f32 %v2075, %v2042
        %v2078 = vmax.f32 %v2076, %v2043
        %v2079 = vmax.f32 %v2077, %v2044
        %v2080 = vmax.f32 %v2078, %v2045
        %v2081 = vmax.f32 %v2079, %v2046
        %v2082 = vmax.f32 %v2080, %v2047
        %v2083 = vmax.f32 %v2081, %v2048
        %v2084 = vmax.f32 %v2082, %v2049
        %v2085 = vmax.f32 %v2083, %v2084
        %v2086 = vrot.slane %v2085, 4
        %v2087 = vmax.f32 %v2085, %v2086
        %v2088 = vrot.slane %v2087, 2
        %v2089 = vmax.f32 %v2087, %v2088
        %v2090 = vrot.slane %v2089, 1
        %v2091 = vmax.f32 %v2089, %v2090
        %vm2092 = vcmp.eq.f32.partialorder %v2018, %v2070
        %vm2093 = vcmp.eq.f32.partialorder %v2019, %v2070
        %vm2094 = vcmp.eq.f32.partialorder %v2020, %v2070
        %vm2095 = vcmp.eq.f32.partialorder %v2021, %v2070
        %vm2096 = vcmp.eq.f32.partialorder %v2022, %v2070
        %vm2097 = vcmp.eq.f32.partialorder %v2023, %v2070
        %vm2098 = vcmp.eq.f32.partialorder %v2024, %v2070
        %vm2099 = vcmp.eq.f32.partialorder %v2025, %v2070
        %vm2100 = vcmp.eq.f32.partialorder %v2026, %v2070
        %vm2101 = vcmp.eq.f32.partialorder %v2027, %v2070
        %vm2102 = vcmp.eq.f32.partialorder %v2028, %v2070
        %vm2103 = vcmp.eq.f32.partialorder %v2029, %v2070
        %vm2104 = vcmp.eq.f32.partialorder %v2030, %v2070
        %vm2105 = vcmp.eq.f32.partialorder %v2031, %v2070
        %vm2106 = vcmp.eq.f32.partialorder %v2032, %v2070
        %vm2107 = vcmp.eq.f32.partialorder %v2033, %v2070
        %vm2108 = vcmp.eq.f32.partialorder %v2034, %v2091
        %vm2109 = vcmp.eq.f32.partialorder %v2035, %v2091
        %vm2110 = vcmp.eq.f32.partialorder %v2036, %v2091
        %vm2111 = vcmp.eq.f32.partialorder %v2037, %v2091
        %vm2112 = vcmp.eq.f32.partialorder %v2038, %v2091
        %vm2113 = vcmp.eq.f32.partialorder %v2039, %v2091
        %vm2114 = vcmp.eq.f32.partialorder %v2040, %v2091
        %vm2115 = vcmp.eq.f32.partialorder %v2041, %v2091
        %vm2116 = vcmp.eq.f32.partialorder %v2042, %v2091
        %vm2117 = vcmp.eq.f32.partialorder %v2043, %v2091
        %vm2118 = vcmp.eq.f32.partialorder %v2044, %v2091
        %vm2119 = vcmp.eq.f32.partialorder %v2045, %v2091
        %vm2120 = vcmp.eq.f32.partialorder %v2046, %v2091
        %vm2121 = vcmp.eq.f32.partialorder %v2047, %v2091
        %vm2122 = vcmp.eq.f32.partialorder %v2048, %v2091
        %vm2123 = vcmp.eq.f32.partialorder %v2049, %v2091
        %v2124 = vsel %vm2092, %v620, 128
        %v2125 = vsel %vm2093, %v621, 128
        %v2126 = vsel %vm2094, %v622, 128
        %v2127 = vsel %vm2095, %v623, 128
        %v2128 = vsel %vm2096, %v624, 128
        %v2129 = vsel %vm2097, %v625, 128
        %v2130 = vsel %vm2098, %v626, 128
        %v2131 = vsel %vm2099, %v627, 128
        %v2132 = vsel %vm2100, %v628, 128
        %v2133 = vsel %vm2101, %v629, 128
        %v2134 = vsel %vm2102, %v630, 128
        %v2135 = vsel %vm2103, %v631, 128
        %v2136 = vsel %vm2104, %v632, 128
        %v2137 = vsel %vm2105, %v633, 128
        %v2138 = vsel %vm2106, %v634, 128
        %v2139 = vsel %vm2107, %v635, 128
        %v2140 = vsel %vm2108, %v620, 128
        %v2141 = vsel %vm2109, %v621, 128
        %v2142 = vsel %vm2110, %v622, 128
        %v2143 = vsel %vm2111, %v623, 128
        %v2144 = vsel %vm2112, %v624, 128
        %v2145 = vsel %vm2113, %v625, 128
        %v2146 = vsel %vm2114, %v626, 128
        %v2147 = vsel %vm2115, %v627, 128
        %v2148 = vsel %vm2116, %v628, 128
        %v2149 = vsel %vm2117, %v629, 128
        %v2150 = vsel %vm2118, %v630, 128
        %v2151 = vsel %vm2119, %v631, 128
        %v2152 = vsel %vm2120, %v632, 128
        %v2153 = vsel %vm2121, %v633, 128
        %v2154 = vsel %vm2122, %v634, 128
        %v2155 = vsel %vm2123, %v635, 128
        %vm2156 = vcmp.lt.s32.totalorder %v2124, %v2126
        %v2157 = vsel %vm2156, %v2124, %v2126
        %vm2158 = vcmp.lt.s32.totalorder %v2125, %v2127
        %v2159 = vsel %vm2158, %v2125, %v2127
        %vm2160 = vcmp.lt.s32.totalorder %v2157, %v2128
        %v2161 = vsel %vm2160, %v2157, %v2128
        %vm2162 = vcmp.lt.s32.totalorder %v2159, %v2129
        %v2163 = vsel %vm2162, %v2159, %v2129
        %vm2164 = vcmp.lt.s32.totalorder %v2161, %v2130
        %v2165 = vsel %vm2164, %v2161, %v2130
        %vm2166 = vcmp.lt.s32.totalorder %v2163, %v2131
        %v2167 = vsel %vm2166, %v2163, %v2131
        %vm2168 = vcmp.lt.s32.totalorder %v2165, %v2132
        %v2169 = vsel %vm2168, %v2165, %v2132
        %vm2170 = vcmp.lt.s32.totalorder %v2167, %v2133
        %v2171 = vsel %vm2170, %v2167, %v2133
        %vm2172 = vcmp.lt.s32.totalorder %v2169, %v2134
        %v2173 = vsel %vm2172, %v2169, %v2134
        %vm2174 = vcmp.lt.s32.totalorder %v2171, %v2135
        %v2175 = vsel %vm2174, %v2171, %v2135
        %vm2176 = vcmp.lt.s32.totalorder %v2173, %v2136
        %v2177 = vsel %vm2176, %v2173, %v2136
        %vm2178 = vcmp.lt.s32.totalorder %v2175, %v2137
        %v2179 = vsel %vm2178, %v2175, %v2137
        %vm2180 = vcmp.lt.s32.totalorder %v2177, %v2138
        %v2181 = vsel %vm2180, %v2177, %v2138
        %vm2182 = vcmp.lt.s32.totalorder %v2179, %v2139
        %v2183 = vsel %vm2182, %v2179, %v2139
        %vm2184 = vcmp.lt.s32.totalorder %v2181, %v2183
        %v2185 = vsel %vm2184, %v2181, %v2183
        %v2186 = vrot.slane %v2185, 4
        %vm2187 = vcmp.lt.s32.totalorder %v2185, %v2186
        %v2188 = vsel %vm2187, %v2185, %v2186
        %v2189 = vrot.slane %v2188, 2
        %vm2190 = vcmp.lt.s32.totalorder %v2188, %v2189
        %v2191 = vsel %vm2190, %v2188, %v2189
        %v2192 = vrot.slane %v2191, 1
        %vm2193 = vcmp.lt.s32.totalorder %v2191, %v2192
        %v2194 = vsel %vm2193, %v2191, %v2192
        %vm2195 = vcmp.lt.s32.totalorder %v2140, %v2142
        %v2196 = vsel %vm2195, %v2140, %v2142
        %vm2197 = vcmp.lt.s32.totalorder %v2141, %v2143
        %v2198 = vsel %vm2197, %v2141, %v2143
        %vm2199 = vcmp.lt.s32.totalorder %v2196, %v2144
        %v2200 = vsel %vm2199, %v2196, %v2144
        %vm2201 = vcmp.lt.s32.totalorder %v2198, %v2145
        %v2202 = vsel %vm2201, %v2198, %v2145
        %vm2203 = vcmp.lt.s32.totalorder %v2200, %v2146
        %v2204 = vsel %vm2203, %v2200, %v2146
        %vm2205 = vcmp.lt.s32.totalorder %v2202, %v2147
        %v2206 = vsel %vm2205, %v2202, %v2147
        %vm2207 = vcmp.lt.s32.totalorder %v2204, %v2148
        %v2208 = vsel %vm2207, %v2204, %v2148
        %vm2209 = vcmp.lt.s32.totalorder %v2206, %v2149
        %v2210 = vsel %vm2209, %v2206, %v2149
        %vm2211 = vcmp.lt.s32.totalorder %v2208, %v2150
        %v2212 = vsel %vm2211, %v2208, %v2150
        %vm2213 = vcmp.lt.s32.totalorder %v2210, %v2151
        %v2214 = vsel %vm2213, %v2210, %v2151
        %vm2215 = vcmp.lt.s32.totalorder %v2212, %v2152
        %v2216 = vsel %vm2215, %v2212, %v2152
        %vm2217 = vcmp.lt.s32.totalorder %v2214, %v2153
        %v2218 = vsel %vm2217, %v2214, %v2153
        %vm2219 = vcmp.lt.s32.totalorder %v2216, %v2154
        %v2220 = vsel %vm2219, %v2216, %v2154
        %vm2221 = vcmp.lt.s32.totalorder %v2218, %v2155
        %v2222 = vsel %vm2221, %v2218, %v2155
        %vm2223 = vcmp.lt.s32.totalorder %v2220, %v2222
        %v2224 = vsel %vm2223, %v2220, %v2222
        %v2225 = vrot.slane %v2224, 4
        %vm2226 = vcmp.lt.s32.totalorder %v2224, %v2225
        %v2227 = vsel %vm2226, %v2224, %v2225
        %v2228 = vrot.slane %v2227, 2
        %vm2229 = vcmp.lt.s32.totalorder %v2227, %v2228
        %v2230 = vsel %vm2229, %v2227, %v2228
        %v2231 = vrot.slane %v2230, 1
        %vm2232 = vcmp.lt.s32.totalorder %v2230, %v2231
        %v2233 = vsel %vm2232, %v2230, %v2231
        %v2234 = vadd.f32 %v2070, %v658
        %v2235 = vadd.f32 %v2091, %v660
        %vm2236 = vcmp.gt.s32.totalorder %v618, 2
        %v2237 = vsel %vm2236, 1, 0
        %vm2238 = vcmp.eq.s32.totalorder %v2237, 1
        %v2241 = vrot.slane %v1822, 2
        %v2242 = vrot.slane %v1823, 1
        %v2243 = vsel %vm717, %v2242, %v2241
        %v2245 = vsel %vm2238, %v2243, %v1403
        %v2248 = vrot.slane %v2234, 2
        %v2249 = vrot.slane %v2235, 1
        %v2250 = vsel %vm717, %v2249, %v2248
        %v2252 = vsel %vm2238, %v2250, %v1409
        %v2253 = vperm.slane %v2245, 0
        %v2254 = vlaneseq
        %v2255 = vshrl.u32 %v2254, 7
        %2257 = vset.pattern.permute.xlu0 %v2255
        %2258 = vperm.xlu0 %2257, %v2253
        %v2259 = vpop.permute.xlu0 %2258
        %v2260 = vlaneseq
        %v2261 = vshrl.u32 %v2260, 7
        %v2262 = vadd.s32 %v2261, 8
        %2263 = vset.pattern.permute.xlu0 %v2262
        %2264 = vperm.xlu0 %2263, %v2253
        %v2265 = vpop.permute.xlu0 %2264
        %v2266 = vlaneseq
        %v2267 = vshrl.u32 %v2266, 7
        %v2268 = vadd.s32 %v2267, 16
        %2269 = vset.pattern.permute.xlu0 %v2268
        %2270 = vperm.xlu0 %2269, %v2253
        %v2271 = vpop.permute.xlu0 %2270
        %v2272 = vlaneseq
        %v2273 = vshrl.u32 %v2272, 7
        %v2274 = vadd.s32 %v2273, 24
        %2275 = vset.pattern.permute.xlu0 %v2274
        %2276 = vperm.xlu0 %2275, %v2253
        %v2277 = vpop.permute.xlu0 %2276
        %v2278 = vlaneseq
        %v2279 = vshrl.u32 %v2278, 7
        %v2280 = vadd.s32 %v2279, 32
        %2281 = vset.pattern.permute.xlu0 %v2280
        %2282 = vperm.xlu0 %2281, %v2253
        %v2283 = vpop.permute.xlu0 %2282
        %v2284 = vlaneseq
        %v2285 = vshrl.u32 %v2284, 7
        %v2286 = vadd.s32 %v2285, 40
        %2287 = vset.pattern.permute.xlu0 %v2286
        %2288 = vperm.xlu0 %2287, %v2253
        %v2289 = vpop.permute.xlu0 %2288
        %v2290 = vlaneseq
        %v2291 = vshrl.u32 %v2290, 7
        %v2292 = vadd.s32 %v2291, 48
        %2293 = vset.pattern.permute.xlu0 %v2292
        %2294 = vperm.xlu0 %2293, %v2253
        %v2295 = vpop.permute.xlu0 %2294
        %v2296 = vlaneseq
        %v2297 = vshrl.u32 %v2296, 7
        %v2298 = vadd.s32 %v2297, 56
        %2299 = vset.pattern.permute.xlu0 %v2298
        %2300 = vperm.xlu0 %2299, %v2253
        %v2301 = vpop.permute.xlu0 %2300
        %v2302 = vlaneseq
        %v2303 = vshrl.u32 %v2302, 7
        %v2304 = vadd.s32 %v2303, 64
        %2305 = vset.pattern.permute.xlu0 %v2304
        %2306 = vperm.xlu0 %2305, %v2253
        %v2307 = vpop.permute.xlu0 %2306
        %v2308 = vlaneseq
        %v2309 = vshrl.u32 %v2308, 7
        %v2310 = vadd.s32 %v2309, 72
        %2311 = vset.pattern.permute.xlu0 %v2310
        %2312 = vperm.xlu0 %2311, %v2253
        %v2313 = vpop.permute.xlu0 %2312
        %v2314 = vlaneseq
        %v2315 = vshrl.u32 %v2314, 7
        %v2316 = vadd.s32 %v2315, 80
        %2317 = vset.pattern.permute.xlu0 %v2316
        %2318 = vperm.xlu0 %2317, %v2253
        %v2319 = vpop.permute.xlu0 %2318
        %v2320 = vlaneseq
        %v2321 = vshrl.u32 %v2320, 7
        %v2322 = vadd.s32 %v2321, 88
        %2323 = vset.pattern.permute.xlu0 %v2322
        %2324 = vperm.xlu0 %2323, %v2253
        %v2325 = vpop.permute.xlu0 %2324
        %v2326 = vlaneseq
        %v2327 = vshrl.u32 %v2326, 7
        %v2328 = vadd.s32 %v2327, 96
        %2329 = vset.pattern.permute.xlu0 %v2328
        %2330 = vperm.xlu0 %2329, %v2253
        %v2331 = vpop.permute.xlu0 %2330
        %v2332 = vlaneseq
        %v2333 = vshrl.u32 %v2332, 7
        %v2334 = vadd.s32 %v2333, 104
        %2335 = vset.pattern.permute.xlu0 %v2334
        %2336 = vperm.xlu0 %2335, %v2253
        %v2337 = vpop.permute.xlu0 %2336
        %v2338 = vlaneseq
        %v2339 = vshrl.u32 %v2338, 7
        %v2340 = vadd.s32 %v2339, 112
        %2341 = vset.pattern.permute.xlu0 %v2340
        %2342 = vperm.xlu0 %2341, %v2253
        %v2343 = vpop.permute.xlu0 %2342
        %v2344 = vlaneseq
        %v2345 = vshrl.u32 %v2344, 7
        %v2346 = vadd.s32 %v2345, 120
        %2347 = vset.pattern.permute.xlu0 %v2346
        %2348 = vperm.xlu0 %2347, %v2253
        %v2349 = vpop.permute.xlu0 %2348
        %v2350 = vperm.slane %v2245, 1
        %v2351 = vlaneseq
        %v2352 = vshrl.u32 %v2351, 7
        %2354 = vset.pattern.permute.xlu0 %v2352
        %2355 = vperm.xlu0 %2354, %v2350
        %v2356 = vpop.permute.xlu0 %2355
        %v2357 = vlaneseq
        %v2358 = vshrl.u32 %v2357, 7
        %v2359 = vadd.s32 %v2358, 8
        %2360 = vset.pattern.permute.xlu0 %v2359
        %2361 = vperm.xlu0 %2360, %v2350
        %v2362 = vpop.permute.xlu0 %2361
        %v2363 = vlaneseq
        %v2364 = vshrl.u32 %v2363, 7
        %v2365 = vadd.s32 %v2364, 16
        %2366 = vset.pattern.permute.xlu0 %v2365
        %2367 = vperm.xlu0 %2366, %v2350
        %v2368 = vpop.permute.xlu0 %2367
        %v2369 = vlaneseq
        %v2370 = vshrl.u32 %v2369, 7
        %v2371 = vadd.s32 %v2370, 24
        %2372 = vset.pattern.permute.xlu0 %v2371
        %2373 = vperm.xlu0 %2372, %v2350
        %v2374 = vpop.permute.xlu0 %2373
        %v2375 = vlaneseq
        %v2376 = vshrl.u32 %v2375, 7
        %v2377 = vadd.s32 %v2376, 32
        %2378 = vset.pattern.permute.xlu0 %v2377
        %2379 = vperm.xlu0 %2378, %v2350
        %v2380 = vpop.permute.xlu0 %2379
        %v2381 = vlaneseq
        %v2382 = vshrl.u32 %v2381, 7
        %v2383 = vadd.s32 %v2382, 40
        %2384 = vset.pattern.permute.xlu0 %v2383
        %2385 = vperm.xlu0 %2384, %v2350
        %v2386 = vpop.permute.xlu0 %2385
        %v2387 = vlaneseq
        %v2388 = vshrl.u32 %v2387, 7
        %v2389 = vadd.s32 %v2388, 48
        %2390 = vset.pattern.permute.xlu0 %v2389
        %2391 = vperm.xlu0 %2390, %v2350
        %v2392 = vpop.permute.xlu0 %2391
        %v2393 = vlaneseq
        %v2394 = vshrl.u32 %v2393, 7
        %v2395 = vadd.s32 %v2394, 56
        %2396 = vset.pattern.permute.xlu0 %v2395
        %2397 = vperm.xlu0 %2396, %v2350
        %v2398 = vpop.permute.xlu0 %2397
        %v2399 = vlaneseq
        %v2400 = vshrl.u32 %v2399, 7
        %v2401 = vadd.s32 %v2400, 64
        %2402 = vset.pattern.permute.xlu0 %v2401
        %2403 = vperm.xlu0 %2402, %v2350
        %v2404 = vpop.permute.xlu0 %2403
        %v2405 = vlaneseq
        %v2406 = vshrl.u32 %v2405, 7
        %v2407 = vadd.s32 %v2406, 72
        %2408 = vset.pattern.permute.xlu0 %v2407
        %2409 = vperm.xlu0 %2408, %v2350
        %v2410 = vpop.permute.xlu0 %2409
        %v2411 = vlaneseq
        %v2412 = vshrl.u32 %v2411, 7
        %v2413 = vadd.s32 %v2412, 80
        %2414 = vset.pattern.permute.xlu0 %v2413
        %2415 = vperm.xlu0 %2414, %v2350
        %v2416 = vpop.permute.xlu0 %2415
        %v2417 = vlaneseq
        %v2418 = vshrl.u32 %v2417, 7
        %v2419 = vadd.s32 %v2418, 88
        %2420 = vset.pattern.permute.xlu0 %v2419
        %2421 = vperm.xlu0 %2420, %v2350
        %v2422 = vpop.permute.xlu0 %2421
        %v2423 = vlaneseq
        %v2424 = vshrl.u32 %v2423, 7
        %v2425 = vadd.s32 %v2424, 96
        %2426 = vset.pattern.permute.xlu0 %v2425
        %2427 = vperm.xlu0 %2426, %v2350
        %v2428 = vpop.permute.xlu0 %2427
        %v2429 = vlaneseq
        %v2430 = vshrl.u32 %v2429, 7
        %v2431 = vadd.s32 %v2430, 104
        %2432 = vset.pattern.permute.xlu0 %v2431
        %2433 = vperm.xlu0 %2432, %v2350
        %v2434 = vpop.permute.xlu0 %2433
        %v2435 = vlaneseq
        %v2436 = vshrl.u32 %v2435, 7
        %v2437 = vadd.s32 %v2436, 112
        %2438 = vset.pattern.permute.xlu0 %v2437
        %2439 = vperm.xlu0 %2438, %v2350
        %v2440 = vpop.permute.xlu0 %2439
        %v2441 = vlaneseq
        %v2442 = vshrl.u32 %v2441, 7
        %v2443 = vadd.s32 %v2442, 120
        %2444 = vset.pattern.permute.xlu0 %v2443
        %2445 = vperm.xlu0 %2444, %v2350
        %v2446 = vpop.permute.xlu0 %2445
        %v2447 = vadd.f32 %v2259, %v584
        %v2448 = vadd.f32 %v2265, %v585
        %v2449 = vadd.f32 %v2271, %v586
        %v2450 = vadd.f32 %v2277, %v587
        %v2451 = vadd.f32 %v2283, %v588
        %v2452 = vadd.f32 %v2289, %v589
        %v2453 = vadd.f32 %v2295, %v590
        %v2454 = vadd.f32 %v2301, %v591
        %v2455 = vadd.f32 %v2307, %v592
        %v2456 = vadd.f32 %v2313, %v593
        %v2457 = vadd.f32 %v2319, %v594
        %v2458 = vadd.f32 %v2325, %v595
        %v2459 = vadd.f32 %v2331, %v596
        %v2460 = vadd.f32 %v2337, %v597
        %v2461 = vadd.f32 %v2343, %v598
        %v2462 = vadd.f32 %v2349, %v599
        %v2463 = vadd.f32 %v2356, %v584
        %v2464 = vadd.f32 %v2362, %v585
        %v2465 = vadd.f32 %v2368, %v586
        %v2466 = vadd.f32 %v2374, %v587
        %v2467 = vadd.f32 %v2380, %v588
        %v2468 = vadd.f32 %v2386, %v589
        %v2469 = vadd.f32 %v2392, %v590
        %v2470 = vadd.f32 %v2398, %v591
        %v2471 = vadd.f32 %v2404, %v592
        %v2472 = vadd.f32 %v2410, %v593
        %v2473 = vadd.f32 %v2416, %v594
        %v2474 = vadd.f32 %v2422, %v595
        %v2475 = vadd.f32 %v2428, %v596
        %v2476 = vadd.f32 %v2434, %v597
        %v2477 = vadd.f32 %v2440, %v598
        %v2478 = vadd.f32 %v2446, %v599
        %v2479 = vmax.f32 %v2447, %v2449
        %v2480 = vmax.f32 %v2448, %v2450
        %v2481 = vmax.f32 %v2479, %v2451
        %v2482 = vmax.f32 %v2480, %v2452
        %v2483 = vmax.f32 %v2481, %v2453
        %v2484 = vmax.f32 %v2482, %v2454
        %v2485 = vmax.f32 %v2483, %v2455
        %v2486 = vmax.f32 %v2484, %v2456
        %v2487 = vmax.f32 %v2485, %v2457
        %v2488 = vmax.f32 %v2486, %v2458
        %v2489 = vmax.f32 %v2487, %v2459
        %v2490 = vmax.f32 %v2488, %v2460
        %v2491 = vmax.f32 %v2489, %v2461
        %v2492 = vmax.f32 %v2490, %v2462
        %v2493 = vmax.f32 %v2491, %v2492
        %v2494 = vrot.slane %v2493, 4
        %v2495 = vmax.f32 %v2493, %v2494
        %v2496 = vrot.slane %v2495, 2
        %v2497 = vmax.f32 %v2495, %v2496
        %v2498 = vrot.slane %v2497, 1
        %v2499 = vmax.f32 %v2497, %v2498
        %v2500 = vmax.f32 %v2463, %v2465
        %v2501 = vmax.f32 %v2464, %v2466
        %v2502 = vmax.f32 %v2500, %v2467
        %v2503 = vmax.f32 %v2501, %v2468
        %v2504 = vmax.f32 %v2502, %v2469
        %v2505 = vmax.f32 %v2503, %v2470
        %v2506 = vmax.f32 %v2504, %v2471
        %v2507 = vmax.f32 %v2505, %v2472
        %v2508 = vmax.f32 %v2506, %v2473
        %v2509 = vmax.f32 %v2507, %v2474
        %v2510 = vmax.f32 %v2508, %v2475
        %v2511 = vmax.f32 %v2509, %v2476
        %v2512 = vmax.f32 %v2510, %v2477
        %v2513 = vmax.f32 %v2511, %v2478
        %v2514 = vmax.f32 %v2512, %v2513
        %v2515 = vrot.slane %v2514, 4
        %v2516 = vmax.f32 %v2514, %v2515
        %v2517 = vrot.slane %v2516, 2
        %v2518 = vmax.f32 %v2516, %v2517
        %v2519 = vrot.slane %v2518, 1
        %v2520 = vmax.f32 %v2518, %v2519
        %v2521 = vsub.f32 %v2447, %v2499
        %v2522 = vsub.f32 %v2448, %v2499
        %v2523 = vsub.f32 %v2449, %v2499
        %v2524 = vsub.f32 %v2450, %v2499
        %v2525 = vsub.f32 %v2451, %v2499
        %v2526 = vsub.f32 %v2452, %v2499
        %v2527 = vsub.f32 %v2453, %v2499
        %v2528 = vsub.f32 %v2454, %v2499
        %v2529 = vsub.f32 %v2455, %v2499
        %v2530 = vsub.f32 %v2456, %v2499
        %v2531 = vsub.f32 %v2457, %v2499
        %v2532 = vsub.f32 %v2458, %v2499
        %v2533 = vsub.f32 %v2459, %v2499
        %v2534 = vsub.f32 %v2460, %v2499
        %v2535 = vsub.f32 %v2461, %v2499
        %v2536 = vsub.f32 %v2462, %v2499
        %v2537 = vsub.f32 %v2463, %v2520
        %v2538 = vsub.f32 %v2464, %v2520
        %v2539 = vsub.f32 %v2465, %v2520
        %v2540 = vsub.f32 %v2466, %v2520
        %v2541 = vsub.f32 %v2467, %v2520
        %v2542 = vsub.f32 %v2468, %v2520
        %v2543 = vsub.f32 %v2469, %v2520
        %v2544 = vsub.f32 %v2470, %v2520
        %v2545 = vsub.f32 %v2471, %v2520
        %v2546 = vsub.f32 %v2472, %v2520
        %v2547 = vsub.f32 %v2473, %v2520
        %v2548 = vsub.f32 %v2474, %v2520
        %v2549 = vsub.f32 %v2475, %v2520
        %v2550 = vsub.f32 %v2476, %v2520
        %v2551 = vsub.f32 %v2477, %v2520
        %v2552 = vsub.f32 %v2478, %v2520
        %v2553 = vmul.f32 %v2521, 1.442695
        %v2554 = vpow.pop %v2553
        %v2555 = vmul.f32 %v2522, 1.442695
        %v2556 = vpow.pop %v2555
        %v2557 = vmul.f32 %v2523, 1.442695
        %v2558 = vpow.pop %v2557
        %v2559 = vmul.f32 %v2524, 1.442695
        %v2560 = vpow.pop %v2559
        %v2561 = vmul.f32 %v2525, 1.442695
        %v2562 = vpow.pop %v2561
        %v2563 = vmul.f32 %v2526, 1.442695
        %v2564 = vpow.pop %v2563
        %v2565 = vmul.f32 %v2527, 1.442695
        %v2566 = vpow.pop %v2565
        %v2567 = vmul.f32 %v2528, 1.442695
        %v2568 = vpow.pop %v2567
        %v2569 = vmul.f32 %v2529, 1.442695
        %v2570 = vpow.pop %v2569
        %v2571 = vmul.f32 %v2530, 1.442695
        %v2572 = vpow.pop %v2571
        %v2573 = vmul.f32 %v2531, 1.442695
        %v2574 = vpow.pop %v2573
        %v2575 = vmul.f32 %v2532, 1.442695
        %v2576 = vpow.pop %v2575
        %v2577 = vmul.f32 %v2533, 1.442695
        %v2578 = vpow.pop %v2577
        %v2579 = vmul.f32 %v2534, 1.442695
        %v2580 = vpow.pop %v2579
        %v2581 = vmul.f32 %v2535, 1.442695
        %v2582 = vpow.pop %v2581
        %v2583 = vmul.f32 %v2536, 1.442695
        %v2584 = vpow.pop %v2583
        %v2585 = vmul.f32 %v2537, 1.442695
        %v2586 = vpow.pop %v2585
        %v2587 = vmul.f32 %v2538, 1.442695
        %v2588 = vpow.pop %v2587
        %v2589 = vmul.f32 %v2539, 1.442695
        %v2590 = vpow.pop %v2589
        %v2591 = vmul.f32 %v2540, 1.442695
        %v2592 = vpow.pop %v2591
        %v2593 = vmul.f32 %v2541, 1.442695
        %v2594 = vpow.pop %v2593
        %v2595 = vmul.f32 %v2542, 1.442695
        %v2596 = vpow.pop %v2595
        %v2597 = vmul.f32 %v2543, 1.442695
        %v2598 = vpow.pop %v2597
        %v2599 = vmul.f32 %v2544, 1.442695
        %v2600 = vpow.pop %v2599
        %v2601 = vmul.f32 %v2545, 1.442695
        %v2602 = vpow.pop %v2601
        %v2603 = vmul.f32 %v2546, 1.442695
        %v2604 = vpow.pop %v2603
        %v2605 = vmul.f32 %v2547, 1.442695
        %v2606 = vpow.pop %v2605
        %v2607 = vmul.f32 %v2548, 1.442695
        %v2608 = vpow.pop %v2607
        %v2609 = vmul.f32 %v2549, 1.442695
        %v2610 = vpow.pop %v2609
        %v2611 = vmul.f32 %v2550, 1.442695
        %v2612 = vpow.pop %v2611
        %v2613 = vmul.f32 %v2551, 1.442695
        %v2614 = vpow.pop %v2613
        %v2615 = vmul.f32 %v2552, 1.442695
        %v2616 = vpow.pop %v2615
        %v2617 = vadd.f32 %v2554, %v2556
        %v2618 = vadd.f32 %v2617, %v2558
        %v2619 = vadd.f32 %v2618, %v2560
        %v2620 = vadd.f32 %v2619, %v2562
        %v2621 = vadd.f32 %v2620, %v2564
        %v2622 = vadd.f32 %v2621, %v2566
        %v2623 = vadd.f32 %v2622, %v2568
        %v2624 = vadd.f32 %v2623, %v2570
        %v2625 = vadd.f32 %v2624, %v2572
        %v2626 = vadd.f32 %v2625, %v2574
        %v2627 = vadd.f32 %v2626, %v2576
        %v2628 = vadd.f32 %v2627, %v2578
        %v2629 = vadd.f32 %v2628, %v2580
        %v2630 = vadd.f32 %v2629, %v2582
        %v2631 = vadd.f32 %v2630, %v2584
        %v2632 = vrot.slane %v2631, 4
        %v2633 = vadd.f32 %v2631, %v2632
        %v2634 = vrot.slane %v2633, 2
        %v2635 = vadd.f32 %v2633, %v2634
        %v2636 = vrot.slane %v2635, 1
        %v2637 = vadd.f32 %v2635, %v2636
        %v2638 = vadd.f32 %v2586, %v2588
        %v2639 = vadd.f32 %v2638, %v2590
        %v2640 = vadd.f32 %v2639, %v2592
        %v2641 = vadd.f32 %v2640, %v2594
        %v2642 = vadd.f32 %v2641, %v2596
        %v2643 = vadd.f32 %v2642, %v2598
        %v2644 = vadd.f32 %v2643, %v2600
        %v2645 = vadd.f32 %v2644, %v2602
        %v2646 = vadd.f32 %v2645, %v2604
        %v2647 = vadd.f32 %v2646, %v2606
        %v2648 = vadd.f32 %v2647, %v2608
        %v2649 = vadd.f32 %v2648, %v2610
        %v2650 = vadd.f32 %v2649, %v2612
        %v2651 = vadd.f32 %v2650, %v2614
        %v2652 = vadd.f32 %v2651, %v2616
        %v2653 = vrot.slane %v2652, 4
        %v2654 = vadd.f32 %v2652, %v2653
        %v2655 = vrot.slane %v2654, 2
        %v2656 = vadd.f32 %v2654, %v2655
        %v2657 = vrot.slane %v2656, 1
        %v2658 = vadd.f32 %v2656, %v2657
        %v2659 = vlog2.pop %v2637
        %v2660 = vmul.f32 %v2659, 0.6931472
        %v2661 = vlog2.pop %v2658
        %v2662 = vmul.f32 %v2661, 0.6931472
        %v2663 = vadd.f32 %v2499, %v2660
        %v2664 = vadd.f32 %v2520, %v2662
        %v2665 = vadd.f32 %v2663, %v658
        %v2666 = vadd.f32 %v2664, %v660
        %v2667 = vperm.slane %v2252, 0
        %v2668 = vlaneseq
        %v2669 = vshrl.u32 %v2668, 7
        %2671 = vset.pattern.permute.xlu0 %v2669
        %2672 = vperm.xlu0 %2671, %v2667
        %v2673 = vpop.permute.xlu0 %2672
        %v2674 = vlaneseq
        %v2675 = vshrl.u32 %v2674, 7
        %v2676 = vadd.s32 %v2675, 8
        %2677 = vset.pattern.permute.xlu0 %v2676
        %2678 = vperm.xlu0 %2677, %v2667
        %v2679 = vpop.permute.xlu0 %2678
        %v2680 = vlaneseq
        %v2681 = vshrl.u32 %v2680, 7
        %v2682 = vadd.s32 %v2681, 16
        %2683 = vset.pattern.permute.xlu0 %v2682
        %2684 = vperm.xlu0 %2683, %v2667
        %v2685 = vpop.permute.xlu0 %2684
        %v2686 = vlaneseq
        %v2687 = vshrl.u32 %v2686, 7
        %v2688 = vadd.s32 %v2687, 24
        %2689 = vset.pattern.permute.xlu0 %v2688
        %2690 = vperm.xlu0 %2689, %v2667
        %v2691 = vpop.permute.xlu0 %2690
        %v2692 = vlaneseq
        %v2693 = vshrl.u32 %v2692, 7
        %v2694 = vadd.s32 %v2693, 32
        %2695 = vset.pattern.permute.xlu0 %v2694
        %2696 = vperm.xlu0 %2695, %v2667
        %v2697 = vpop.permute.xlu0 %2696
        %v2698 = vlaneseq
        %v2699 = vshrl.u32 %v2698, 7
        %v2700 = vadd.s32 %v2699, 40
        %2701 = vset.pattern.permute.xlu0 %v2700
        %2702 = vperm.xlu0 %2701, %v2667
        %v2703 = vpop.permute.xlu0 %2702
        %v2704 = vlaneseq
        %v2705 = vshrl.u32 %v2704, 7
        %v2706 = vadd.s32 %v2705, 48
        %2707 = vset.pattern.permute.xlu0 %v2706
        %2708 = vperm.xlu0 %2707, %v2667
        %v2709 = vpop.permute.xlu0 %2708
        %v2710 = vlaneseq
        %v2711 = vshrl.u32 %v2710, 7
        %v2712 = vadd.s32 %v2711, 56
        %2713 = vset.pattern.permute.xlu0 %v2712
        %2714 = vperm.xlu0 %2713, %v2667
        %v2715 = vpop.permute.xlu0 %2714
        %v2716 = vlaneseq
        %v2717 = vshrl.u32 %v2716, 7
        %v2718 = vadd.s32 %v2717, 64
        %2719 = vset.pattern.permute.xlu0 %v2718
        %2720 = vperm.xlu0 %2719, %v2667
        %v2721 = vpop.permute.xlu0 %2720
        %v2722 = vlaneseq
        %v2723 = vshrl.u32 %v2722, 7
        %v2724 = vadd.s32 %v2723, 72
        %2725 = vset.pattern.permute.xlu0 %v2724
        %2726 = vperm.xlu0 %2725, %v2667
        %v2727 = vpop.permute.xlu0 %2726
        %v2728 = vlaneseq
        %v2729 = vshrl.u32 %v2728, 7
        %v2730 = vadd.s32 %v2729, 80
        %2731 = vset.pattern.permute.xlu0 %v2730
        %2732 = vperm.xlu0 %2731, %v2667
        %v2733 = vpop.permute.xlu0 %2732
        %v2734 = vlaneseq
        %v2735 = vshrl.u32 %v2734, 7
        %v2736 = vadd.s32 %v2735, 88
        %2737 = vset.pattern.permute.xlu0 %v2736
        %2738 = vperm.xlu0 %2737, %v2667
        %v2739 = vpop.permute.xlu0 %2738
        %v2740 = vlaneseq
        %v2741 = vshrl.u32 %v2740, 7
        %v2742 = vadd.s32 %v2741, 96
        %2743 = vset.pattern.permute.xlu0 %v2742
        %2744 = vperm.xlu0 %2743, %v2667
        %v2745 = vpop.permute.xlu0 %2744
        %v2746 = vlaneseq
        %v2747 = vshrl.u32 %v2746, 7
        %v2748 = vadd.s32 %v2747, 104
        %2749 = vset.pattern.permute.xlu0 %v2748
        %2750 = vperm.xlu0 %2749, %v2667
        %v2751 = vpop.permute.xlu0 %2750
        %v2752 = vlaneseq
        %v2753 = vshrl.u32 %v2752, 7
        %v2754 = vadd.s32 %v2753, 112
        %2755 = vset.pattern.permute.xlu0 %v2754
        %2756 = vperm.xlu0 %2755, %v2667
        %v2757 = vpop.permute.xlu0 %2756
        %v2758 = vlaneseq
        %v2759 = vshrl.u32 %v2758, 7
        %v2760 = vadd.s32 %v2759, 120
        %2761 = vset.pattern.permute.xlu0 %v2760
        %2762 = vperm.xlu0 %2761, %v2667
        %v2763 = vpop.permute.xlu0 %2762
        %v2764 = vperm.slane %v2252, 1
        %v2765 = vlaneseq
        %v2766 = vshrl.u32 %v2765, 7
        %2768 = vset.pattern.permute.xlu0 %v2766
        %2769 = vperm.xlu0 %2768, %v2764
        %v2770 = vpop.permute.xlu0 %2769
        %v2771 = vlaneseq
        %v2772 = vshrl.u32 %v2771, 7
        %v2773 = vadd.s32 %v2772, 8
        %2774 = vset.pattern.permute.xlu0 %v2773
        %2775 = vperm.xlu0 %2774, %v2764
        %v2776 = vpop.permute.xlu0 %2775
        %v2777 = vlaneseq
        %v2778 = vshrl.u32 %v2777, 7
        %v2779 = vadd.s32 %v2778, 16
        %2780 = vset.pattern.permute.xlu0 %v2779
        %2781 = vperm.xlu0 %2780, %v2764
        %v2782 = vpop.permute.xlu0 %2781
        %v2783 = vlaneseq
        %v2784 = vshrl.u32 %v2783, 7
        %v2785 = vadd.s32 %v2784, 24
        %2786 = vset.pattern.permute.xlu0 %v2785
        %2787 = vperm.xlu0 %2786, %v2764
        %v2788 = vpop.permute.xlu0 %2787
        %v2789 = vlaneseq
        %v2790 = vshrl.u32 %v2789, 7
        %v2791 = vadd.s32 %v2790, 32
        %2792 = vset.pattern.permute.xlu0 %v2791
        %2793 = vperm.xlu0 %2792, %v2764
        %v2794 = vpop.permute.xlu0 %2793
        %v2795 = vlaneseq
        %v2796 = vshrl.u32 %v2795, 7
        %v2797 = vadd.s32 %v2796, 40
        %2798 = vset.pattern.permute.xlu0 %v2797
        %2799 = vperm.xlu0 %2798, %v2764
        %v2800 = vpop.permute.xlu0 %2799
        %v2801 = vlaneseq
        %v2802 = vshrl.u32 %v2801, 7
        %v2803 = vadd.s32 %v2802, 48
        %2804 = vset.pattern.permute.xlu0 %v2803
        %2805 = vperm.xlu0 %2804, %v2764
        %v2806 = vpop.permute.xlu0 %2805
        %v2807 = vlaneseq
        %v2808 = vshrl.u32 %v2807, 7
        %v2809 = vadd.s32 %v2808, 56
        %2810 = vset.pattern.permute.xlu0 %v2809
        %2811 = vperm.xlu0 %2810, %v2764
        %v2812 = vpop.permute.xlu0 %2811
        %v2813 = vlaneseq
        %v2814 = vshrl.u32 %v2813, 7
        %v2815 = vadd.s32 %v2814, 64
        %2816 = vset.pattern.permute.xlu0 %v2815
        %2817 = vperm.xlu0 %2816, %v2764
        %v2818 = vpop.permute.xlu0 %2817
        %v2819 = vlaneseq
        %v2820 = vshrl.u32 %v2819, 7
        %v2821 = vadd.s32 %v2820, 72
        %2822 = vset.pattern.permute.xlu0 %v2821
        %2823 = vperm.xlu0 %2822, %v2764
        %v2824 = vpop.permute.xlu0 %2823
        %v2825 = vlaneseq
        %v2826 = vshrl.u32 %v2825, 7
        %v2827 = vadd.s32 %v2826, 80
        %2828 = vset.pattern.permute.xlu0 %v2827
        %2829 = vperm.xlu0 %2828, %v2764
        %v2830 = vpop.permute.xlu0 %2829
        %v2831 = vlaneseq
        %v2832 = vshrl.u32 %v2831, 7
        %v2833 = vadd.s32 %v2832, 88
        %2834 = vset.pattern.permute.xlu0 %v2833
        %2835 = vperm.xlu0 %2834, %v2764
        %v2836 = vpop.permute.xlu0 %2835
        %v2837 = vlaneseq
        %v2838 = vshrl.u32 %v2837, 7
        %v2839 = vadd.s32 %v2838, 96
        %2840 = vset.pattern.permute.xlu0 %v2839
        %2841 = vperm.xlu0 %2840, %v2764
        %v2842 = vpop.permute.xlu0 %2841
        %v2843 = vlaneseq
        %v2844 = vshrl.u32 %v2843, 7
        %v2845 = vadd.s32 %v2844, 104
        %2846 = vset.pattern.permute.xlu0 %v2845
        %2847 = vperm.xlu0 %2846, %v2764
        %v2848 = vpop.permute.xlu0 %2847
        %v2849 = vlaneseq
        %v2850 = vshrl.u32 %v2849, 7
        %v2851 = vadd.s32 %v2850, 112
        %2852 = vset.pattern.permute.xlu0 %v2851
        %2853 = vperm.xlu0 %2852, %v2764
        %v2854 = vpop.permute.xlu0 %2853
        %v2855 = vlaneseq
        %v2856 = vshrl.u32 %v2855, 7
        %v2857 = vadd.s32 %v2856, 120
        %2858 = vset.pattern.permute.xlu0 %v2857
        %2859 = vperm.xlu0 %2858, %v2764
        %v2860 = vpop.permute.xlu0 %2859
        %v2861 = vadd.f32 %v2673, %v584
        %v2862 = vadd.f32 %v2679, %v585
        %v2863 = vadd.f32 %v2685, %v586
        %v2864 = vadd.f32 %v2691, %v587
        %v2865 = vadd.f32 %v2697, %v588
        %v2866 = vadd.f32 %v2703, %v589
        %v2867 = vadd.f32 %v2709, %v590
        %v2868 = vadd.f32 %v2715, %v591
        %v2869 = vadd.f32 %v2721, %v592
        %v2870 = vadd.f32 %v2727, %v593
        %v2871 = vadd.f32 %v2733, %v594
        %v2872 = vadd.f32 %v2739, %v595
        %v2873 = vadd.f32 %v2745, %v596
        %v2874 = vadd.f32 %v2751, %v597
        %v2875 = vadd.f32 %v2757, %v598
        %v2876 = vadd.f32 %v2763, %v599
        %v2877 = vadd.f32 %v2770, %v584
        %v2878 = vadd.f32 %v2776, %v585
        %v2879 = vadd.f32 %v2782, %v586
        %v2880 = vadd.f32 %v2788, %v587
        %v2881 = vadd.f32 %v2794, %v588
        %v2882 = vadd.f32 %v2800, %v589
        %v2883 = vadd.f32 %v2806, %v590
        %v2884 = vadd.f32 %v2812, %v591
        %v2885 = vadd.f32 %v2818, %v592
        %v2886 = vadd.f32 %v2824, %v593
        %v2887 = vadd.f32 %v2830, %v594
        %v2888 = vadd.f32 %v2836, %v595
        %v2889 = vadd.f32 %v2842, %v596
        %v2890 = vadd.f32 %v2848, %v597
        %v2891 = vadd.f32 %v2854, %v598
        %v2892 = vadd.f32 %v2860, %v599
        %v2893 = vmax.f32 %v2861, %v2863
        %v2894 = vmax.f32 %v2862, %v2864
        %v2895 = vmax.f32 %v2893, %v2865
        %v2896 = vmax.f32 %v2894, %v2866
        %v2897 = vmax.f32 %v2895, %v2867
        %v2898 = vmax.f32 %v2896, %v2868
        %v2899 = vmax.f32 %v2897, %v2869
        %v2900 = vmax.f32 %v2898, %v2870
        %v2901 = vmax.f32 %v2899, %v2871
        %v2902 = vmax.f32 %v2900, %v2872
        %v2903 = vmax.f32 %v2901, %v2873
        %v2904 = vmax.f32 %v2902, %v2874
        %v2905 = vmax.f32 %v2903, %v2875
        %v2906 = vmax.f32 %v2904, %v2876
        %v2907 = vmax.f32 %v2905, %v2906
        %v2908 = vrot.slane %v2907, 4
        %v2909 = vmax.f32 %v2907, %v2908
        %v2910 = vrot.slane %v2909, 2
        %v2911 = vmax.f32 %v2909, %v2910
        %v2912 = vrot.slane %v2911, 1
        %v2913 = vmax.f32 %v2911, %v2912
        %v2914 = vmax.f32 %v2877, %v2879
        %v2915 = vmax.f32 %v2878, %v2880
        %v2916 = vmax.f32 %v2914, %v2881
        %v2917 = vmax.f32 %v2915, %v2882
        %v2918 = vmax.f32 %v2916, %v2883
        %v2919 = vmax.f32 %v2917, %v2884
        %v2920 = vmax.f32 %v2918, %v2885
        %v2921 = vmax.f32 %v2919, %v2886
        %v2922 = vmax.f32 %v2920, %v2887
        %v2923 = vmax.f32 %v2921, %v2888
        %v2924 = vmax.f32 %v2922, %v2889
        %v2925 = vmax.f32 %v2923, %v2890
        %v2926 = vmax.f32 %v2924, %v2891
        %v2927 = vmax.f32 %v2925, %v2892
        %v2928 = vmax.f32 %v2926, %v2927
        %v2929 = vrot.slane %v2928, 4
        %v2930 = vmax.f32 %v2928, %v2929
        %v2931 = vrot.slane %v2930, 2
        %v2932 = vmax.f32 %v2930, %v2931
        %v2933 = vrot.slane %v2932, 1
        %v2934 = vmax.f32 %v2932, %v2933
        %vm2935 = vcmp.eq.f32.partialorder %v2861, %v2913
        %vm2936 = vcmp.eq.f32.partialorder %v2862, %v2913
        %vm2937 = vcmp.eq.f32.partialorder %v2863, %v2913
        %vm2938 = vcmp.eq.f32.partialorder %v2864, %v2913
        %vm2939 = vcmp.eq.f32.partialorder %v2865, %v2913
        %vm2940 = vcmp.eq.f32.partialorder %v2866, %v2913
        %vm2941 = vcmp.eq.f32.partialorder %v2867, %v2913
        %vm2942 = vcmp.eq.f32.partialorder %v2868, %v2913
        %vm2943 = vcmp.eq.f32.partialorder %v2869, %v2913
        %vm2944 = vcmp.eq.f32.partialorder %v2870, %v2913
        %vm2945 = vcmp.eq.f32.partialorder %v2871, %v2913
        %vm2946 = vcmp.eq.f32.partialorder %v2872, %v2913
        %vm2947 = vcmp.eq.f32.partialorder %v2873, %v2913
        %vm2948 = vcmp.eq.f32.partialorder %v2874, %v2913
        %vm2949 = vcmp.eq.f32.partialorder %v2875, %v2913
        %vm2950 = vcmp.eq.f32.partialorder %v2876, %v2913
        %vm2951 = vcmp.eq.f32.partialorder %v2877, %v2934
        %vm2952 = vcmp.eq.f32.partialorder %v2878, %v2934
        %vm2953 = vcmp.eq.f32.partialorder %v2879, %v2934
        %vm2954 = vcmp.eq.f32.partialorder %v2880, %v2934
        %vm2955 = vcmp.eq.f32.partialorder %v2881, %v2934
        %vm2956 = vcmp.eq.f32.partialorder %v2882, %v2934
        %vm2957 = vcmp.eq.f32.partialorder %v2883, %v2934
        %vm2958 = vcmp.eq.f32.partialorder %v2884, %v2934
        %vm2959 = vcmp.eq.f32.partialorder %v2885, %v2934
        %vm2960 = vcmp.eq.f32.partialorder %v2886, %v2934
        %vm2961 = vcmp.eq.f32.partialorder %v2887, %v2934
        %vm2962 = vcmp.eq.f32.partialorder %v2888, %v2934
        %vm2963 = vcmp.eq.f32.partialorder %v2889, %v2934
        %vm2964 = vcmp.eq.f32.partialorder %v2890, %v2934
        %vm2965 = vcmp.eq.f32.partialorder %v2891, %v2934
        %vm2966 = vcmp.eq.f32.partialorder %v2892, %v2934
        %v2967 = vsel %vm2935, %v620, 128
        %v2968 = vsel %vm2936, %v621, 128
        %v2969 = vsel %vm2937, %v622, 128
        %v2970 = vsel %vm2938, %v623, 128
        %v2971 = vsel %vm2939, %v624, 128
        %v2972 = vsel %vm2940, %v625, 128
        %v2973 = vsel %vm2941, %v626, 128
        %v2974 = vsel %vm2942, %v627, 128
        %v2975 = vsel %vm2943, %v628, 128
        %v2976 = vsel %vm2944, %v629, 128
        %v2977 = vsel %vm2945, %v630, 128
        %v2978 = vsel %vm2946, %v631, 128
        %v2979 = vsel %vm2947, %v632, 128
        %v2980 = vsel %vm2948, %v633, 128
        %v2981 = vsel %vm2949, %v634, 128
        %v2982 = vsel %vm2950, %v635, 128
        %v2983 = vsel %vm2951, %v620, 128
        %v2984 = vsel %vm2952, %v621, 128
        %v2985 = vsel %vm2953, %v622, 128
        %v2986 = vsel %vm2954, %v623, 128
        %v2987 = vsel %vm2955, %v624, 128
        %v2988 = vsel %vm2956, %v625, 128
        %v2989 = vsel %vm2957, %v626, 128
        %v2990 = vsel %vm2958, %v627, 128
        %v2991 = vsel %vm2959, %v628, 128
        %v2992 = vsel %vm2960, %v629, 128
        %v2993 = vsel %vm2961, %v630, 128
        %v2994 = vsel %vm2962, %v631, 128
        %v2995 = vsel %vm2963, %v632, 128
        %v2996 = vsel %vm2964, %v633, 128
        %v2997 = vsel %vm2965, %v634, 128
        %v2998 = vsel %vm2966, %v635, 128
        %vm2999 = vcmp.lt.s32.totalorder %v2967, %v2969
        %v3000 = vsel %vm2999, %v2967, %v2969
        %vm3001 = vcmp.lt.s32.totalorder %v2968, %v2970
        %v3002 = vsel %vm3001, %v2968, %v2970
        %vm3003 = vcmp.lt.s32.totalorder %v3000, %v2971
        %v3004 = vsel %vm3003, %v3000, %v2971
        %vm3005 = vcmp.lt.s32.totalorder %v3002, %v2972
        %v3006 = vsel %vm3005, %v3002, %v2972
        %vm3007 = vcmp.lt.s32.totalorder %v3004, %v2973
        %v3008 = vsel %vm3007, %v3004, %v2973
        %vm3009 = vcmp.lt.s32.totalorder %v3006, %v2974
        %v3010 = vsel %vm3009, %v3006, %v2974
        %vm3011 = vcmp.lt.s32.totalorder %v3008, %v2975
        %v3012 = vsel %vm3011, %v3008, %v2975
        %vm3013 = vcmp.lt.s32.totalorder %v3010, %v2976
        %v3014 = vsel %vm3013, %v3010, %v2976
        %vm3015 = vcmp.lt.s32.totalorder %v3012, %v2977
        %v3016 = vsel %vm3015, %v3012, %v2977
        %vm3017 = vcmp.lt.s32.totalorder %v3014, %v2978
        %v3018 = vsel %vm3017, %v3014, %v2978
        %vm3019 = vcmp.lt.s32.totalorder %v3016, %v2979
        %v3020 = vsel %vm3019, %v3016, %v2979
        %vm3021 = vcmp.lt.s32.totalorder %v3018, %v2980
        %v3022 = vsel %vm3021, %v3018, %v2980
        %vm3023 = vcmp.lt.s32.totalorder %v3020, %v2981
        %v3024 = vsel %vm3023, %v3020, %v2981
        %vm3025 = vcmp.lt.s32.totalorder %v3022, %v2982
        %v3026 = vsel %vm3025, %v3022, %v2982
        %vm3027 = vcmp.lt.s32.totalorder %v3024, %v3026
        %v3028 = vsel %vm3027, %v3024, %v3026
        %v3029 = vrot.slane %v3028, 4
        %vm3030 = vcmp.lt.s32.totalorder %v3028, %v3029
        %v3031 = vsel %vm3030, %v3028, %v3029
        %v3032 = vrot.slane %v3031, 2
        %vm3033 = vcmp.lt.s32.totalorder %v3031, %v3032
        %v3034 = vsel %vm3033, %v3031, %v3032
        %v3035 = vrot.slane %v3034, 1
        %vm3036 = vcmp.lt.s32.totalorder %v3034, %v3035
        %v3037 = vsel %vm3036, %v3034, %v3035
        %vm3038 = vcmp.lt.s32.totalorder %v2983, %v2985
        %v3039 = vsel %vm3038, %v2983, %v2985
        %vm3040 = vcmp.lt.s32.totalorder %v2984, %v2986
        %v3041 = vsel %vm3040, %v2984, %v2986
        %vm3042 = vcmp.lt.s32.totalorder %v3039, %v2987
        %v3043 = vsel %vm3042, %v3039, %v2987
        %vm3044 = vcmp.lt.s32.totalorder %v3041, %v2988
        %v3045 = vsel %vm3044, %v3041, %v2988
        %vm3046 = vcmp.lt.s32.totalorder %v3043, %v2989
        %v3047 = vsel %vm3046, %v3043, %v2989
        %vm3048 = vcmp.lt.s32.totalorder %v3045, %v2990
        %v3049 = vsel %vm3048, %v3045, %v2990
        %vm3050 = vcmp.lt.s32.totalorder %v3047, %v2991
        %v3051 = vsel %vm3050, %v3047, %v2991
        %vm3052 = vcmp.lt.s32.totalorder %v3049, %v2992
        %v3053 = vsel %vm3052, %v3049, %v2992
        %vm3054 = vcmp.lt.s32.totalorder %v3051, %v2993
        %v3055 = vsel %vm3054, %v3051, %v2993
        %vm3056 = vcmp.lt.s32.totalorder %v3053, %v2994
        %v3057 = vsel %vm3056, %v3053, %v2994
        %vm3058 = vcmp.lt.s32.totalorder %v3055, %v2995
        %v3059 = vsel %vm3058, %v3055, %v2995
        %vm3060 = vcmp.lt.s32.totalorder %v3057, %v2996
        %v3061 = vsel %vm3060, %v3057, %v2996
        %vm3062 = vcmp.lt.s32.totalorder %v3059, %v2997
        %v3063 = vsel %vm3062, %v3059, %v2997
        %vm3064 = vcmp.lt.s32.totalorder %v3061, %v2998
        %v3065 = vsel %vm3064, %v3061, %v2998
        %vm3066 = vcmp.lt.s32.totalorder %v3063, %v3065
        %v3067 = vsel %vm3066, %v3063, %v3065
        %v3068 = vrot.slane %v3067, 4
        %vm3069 = vcmp.lt.s32.totalorder %v3067, %v3068
        %v3070 = vsel %vm3069, %v3067, %v3068
        %v3071 = vrot.slane %v3070, 2
        %vm3072 = vcmp.lt.s32.totalorder %v3070, %v3071
        %v3073 = vsel %vm3072, %v3070, %v3071
        %v3074 = vrot.slane %v3073, 1
        %vm3075 = vcmp.lt.s32.totalorder %v3073, %v3074
        %v3076 = vsel %vm3075, %v3073, %v3074
        %v3077 = vadd.f32 %v2913, %v658
        %v3078 = vadd.f32 %v2934, %v660
        %vm3079 = vcmp.gt.s32.totalorder %v618, 3
        %v3080 = vsel %vm3079, 1, 0
        %vm3081 = vcmp.eq.s32.totalorder %v3080, 1
        %v3084 = vrot.slane %v2665, 3
        %v3085 = vrot.slane %v2666, 2
        %v3086 = vsel %vm717, %v3085, %v3084
        %v3088 = vsel %vm3081, %v3086, %v2245
        %v3091 = vrot.slane %v3077, 3
        %v3092 = vrot.slane %v3078, 2
        %v3093 = vsel %vm717, %v3092, %v3091
        %v3095 = vsel %vm3081, %v3093, %v2252
        %v3096 = vperm.slane %v3088, 0
        %v3097 = vlaneseq
        %v3098 = vshrl.u32 %v3097, 7
        %3100 = vset.pattern.permute.xlu0 %v3098
        %3101 = vperm.xlu0 %3100, %v3096
        %v3102 = vpop.permute.xlu0 %3101
        %v3103 = vlaneseq
        %v3104 = vshrl.u32 %v3103, 7
        %v3105 = vadd.s32 %v3104, 8
        %3106 = vset.pattern.permute.xlu0 %v3105
        %3107 = vperm.xlu0 %3106, %v3096
        %v3108 = vpop.permute.xlu0 %3107
        %v3109 = vlaneseq
        %v3110 = vshrl.u32 %v3109, 7
        %v3111 = vadd.s32 %v3110, 16
        %3112 = vset.pattern.permute.xlu0 %v3111
        %3113 = vperm.xlu0 %3112, %v3096
        %v3114 = vpop.permute.xlu0 %3113
        %v3115 = vlaneseq
        %v3116 = vshrl.u32 %v3115, 7
        %v3117 = vadd.s32 %v3116, 24
        %3118 = vset.pattern.permute.xlu0 %v3117
        %3119 = vperm.xlu0 %3118, %v3096
        %v3120 = vpop.permute.xlu0 %3119
        %v3121 = vlaneseq
        %v3122 = vshrl.u32 %v3121, 7
        %v3123 = vadd.s32 %v3122, 32
        %3124 = vset.pattern.permute.xlu0 %v3123
        %3125 = vperm.xlu0 %3124, %v3096
        %v3126 = vpop.permute.xlu0 %3125
        %v3127 = vlaneseq
        %v3128 = vshrl.u32 %v3127, 7
        %v3129 = vadd.s32 %v3128, 40
        %3130 = vset.pattern.permute.xlu0 %v3129
        %3131 = vperm.xlu0 %3130, %v3096
        %v3132 = vpop.permute.xlu0 %3131
        %v3133 = vlaneseq
        %v3134 = vshrl.u32 %v3133, 7
        %v3135 = vadd.s32 %v3134, 48
        %3136 = vset.pattern.permute.xlu0 %v3135
        %3137 = vperm.xlu0 %3136, %v3096
        %v3138 = vpop.permute.xlu0 %3137
        %v3139 = vlaneseq
        %v3140 = vshrl.u32 %v3139, 7
        %v3141 = vadd.s32 %v3140, 56
        %3142 = vset.pattern.permute.xlu0 %v3141
        %3143 = vperm.xlu0 %3142, %v3096
        %v3144 = vpop.permute.xlu0 %3143
        %v3145 = vlaneseq
        %v3146 = vshrl.u32 %v3145, 7
        %v3147 = vadd.s32 %v3146, 64
        %3148 = vset.pattern.permute.xlu0 %v3147
        %3149 = vperm.xlu0 %3148, %v3096
        %v3150 = vpop.permute.xlu0 %3149
        %v3151 = vlaneseq
        %v3152 = vshrl.u32 %v3151, 7
        %v3153 = vadd.s32 %v3152, 72
        %3154 = vset.pattern.permute.xlu0 %v3153
        %3155 = vperm.xlu0 %3154, %v3096
        %v3156 = vpop.permute.xlu0 %3155
        %v3157 = vlaneseq
        %v3158 = vshrl.u32 %v3157, 7
        %v3159 = vadd.s32 %v3158, 80
        %3160 = vset.pattern.permute.xlu0 %v3159
        %3161 = vperm.xlu0 %3160, %v3096
        %v3162 = vpop.permute.xlu0 %3161
        %v3163 = vlaneseq
        %v3164 = vshrl.u32 %v3163, 7
        %v3165 = vadd.s32 %v3164, 88
        %3166 = vset.pattern.permute.xlu0 %v3165
        %3167 = vperm.xlu0 %3166, %v3096
        %v3168 = vpop.permute.xlu0 %3167
        %v3169 = vlaneseq
        %v3170 = vshrl.u32 %v3169, 7
        %v3171 = vadd.s32 %v3170, 96
        %3172 = vset.pattern.permute.xlu0 %v3171
        %3173 = vperm.xlu0 %3172, %v3096
        %v3174 = vpop.permute.xlu0 %3173
        %v3175 = vlaneseq
        %v3176 = vshrl.u32 %v3175, 7
        %v3177 = vadd.s32 %v3176, 104
        %3178 = vset.pattern.permute.xlu0 %v3177
        %3179 = vperm.xlu0 %3178, %v3096
        %v3180 = vpop.permute.xlu0 %3179
        %v3181 = vlaneseq
        %v3182 = vshrl.u32 %v3181, 7
        %v3183 = vadd.s32 %v3182, 112
        %3184 = vset.pattern.permute.xlu0 %v3183
        %3185 = vperm.xlu0 %3184, %v3096
        %v3186 = vpop.permute.xlu0 %3185
        %v3187 = vlaneseq
        %v3188 = vshrl.u32 %v3187, 7
        %v3189 = vadd.s32 %v3188, 120
        %3190 = vset.pattern.permute.xlu0 %v3189
        %3191 = vperm.xlu0 %3190, %v3096
        %v3192 = vpop.permute.xlu0 %3191
        %v3193 = vperm.slane %v3088, 1
        %v3194 = vlaneseq
        %v3195 = vshrl.u32 %v3194, 7
        %3197 = vset.pattern.permute.xlu0 %v3195
        %3198 = vperm.xlu0 %3197, %v3193
        %v3199 = vpop.permute.xlu0 %3198
        %v3200 = vlaneseq
        %v3201 = vshrl.u32 %v3200, 7
        %v3202 = vadd.s32 %v3201, 8
        %3203 = vset.pattern.permute.xlu0 %v3202
        %3204 = vperm.xlu0 %3203, %v3193
        %v3205 = vpop.permute.xlu0 %3204
        %v3206 = vlaneseq
        %v3207 = vshrl.u32 %v3206, 7
        %v3208 = vadd.s32 %v3207, 16
        %3209 = vset.pattern.permute.xlu0 %v3208
        %3210 = vperm.xlu0 %3209, %v3193
        %v3211 = vpop.permute.xlu0 %3210
        %v3212 = vlaneseq
        %v3213 = vshrl.u32 %v3212, 7
        %v3214 = vadd.s32 %v3213, 24
        %3215 = vset.pattern.permute.xlu0 %v3214
        %3216 = vperm.xlu0 %3215, %v3193
        %v3217 = vpop.permute.xlu0 %3216
        %v3218 = vlaneseq
        %v3219 = vshrl.u32 %v3218, 7
        %v3220 = vadd.s32 %v3219, 32
        %3221 = vset.pattern.permute.xlu0 %v3220
        %3222 = vperm.xlu0 %3221, %v3193
        %v3223 = vpop.permute.xlu0 %3222
        %v3224 = vlaneseq
        %v3225 = vshrl.u32 %v3224, 7
        %v3226 = vadd.s32 %v3225, 40
        %3227 = vset.pattern.permute.xlu0 %v3226
        %3228 = vperm.xlu0 %3227, %v3193
        %v3229 = vpop.permute.xlu0 %3228
        %v3230 = vlaneseq
        %v3231 = vshrl.u32 %v3230, 7
        %v3232 = vadd.s32 %v3231, 48
        %3233 = vset.pattern.permute.xlu0 %v3232
        %3234 = vperm.xlu0 %3233, %v3193
        %v3235 = vpop.permute.xlu0 %3234
        %v3236 = vlaneseq
        %v3237 = vshrl.u32 %v3236, 7
        %v3238 = vadd.s32 %v3237, 56
        %3239 = vset.pattern.permute.xlu0 %v3238
        %3240 = vperm.xlu0 %3239, %v3193
        %v3241 = vpop.permute.xlu0 %3240
        %v3242 = vlaneseq
        %v3243 = vshrl.u32 %v3242, 7
        %v3244 = vadd.s32 %v3243, 64
        %3245 = vset.pattern.permute.xlu0 %v3244
        %3246 = vperm.xlu0 %3245, %v3193
        %v3247 = vpop.permute.xlu0 %3246
        %v3248 = vlaneseq
        %v3249 = vshrl.u32 %v3248, 7
        %v3250 = vadd.s32 %v3249, 72
        %3251 = vset.pattern.permute.xlu0 %v3250
        %3252 = vperm.xlu0 %3251, %v3193
        %v3253 = vpop.permute.xlu0 %3252
        %v3254 = vlaneseq
        %v3255 = vshrl.u32 %v3254, 7
        %v3256 = vadd.s32 %v3255, 80
        %3257 = vset.pattern.permute.xlu0 %v3256
        %3258 = vperm.xlu0 %3257, %v3193
        %v3259 = vpop.permute.xlu0 %3258
        %v3260 = vlaneseq
        %v3261 = vshrl.u32 %v3260, 7
        %v3262 = vadd.s32 %v3261, 88
        %3263 = vset.pattern.permute.xlu0 %v3262
        %3264 = vperm.xlu0 %3263, %v3193
        %v3265 = vpop.permute.xlu0 %3264
        %v3266 = vlaneseq
        %v3267 = vshrl.u32 %v3266, 7
        %v3268 = vadd.s32 %v3267, 96
        %3269 = vset.pattern.permute.xlu0 %v3268
        %3270 = vperm.xlu0 %3269, %v3193
        %v3271 = vpop.permute.xlu0 %3270
        %v3272 = vlaneseq
        %v3273 = vshrl.u32 %v3272, 7
        %v3274 = vadd.s32 %v3273, 104
        %3275 = vset.pattern.permute.xlu0 %v3274
        %3276 = vperm.xlu0 %3275, %v3193
        %v3277 = vpop.permute.xlu0 %3276
        %v3278 = vlaneseq
        %v3279 = vshrl.u32 %v3278, 7
        %v3280 = vadd.s32 %v3279, 112
        %3281 = vset.pattern.permute.xlu0 %v3280
        %3282 = vperm.xlu0 %3281, %v3193
        %v3283 = vpop.permute.xlu0 %3282
        %v3284 = vlaneseq
        %v3285 = vshrl.u32 %v3284, 7
        %v3286 = vadd.s32 %v3285, 120
        %3287 = vset.pattern.permute.xlu0 %v3286
        %3288 = vperm.xlu0 %3287, %v3193
        %v3289 = vpop.permute.xlu0 %3288
        %v3290 = vadd.f32 %v3102, %v584
        %v3291 = vadd.f32 %v3108, %v585
        %v3292 = vadd.f32 %v3114, %v586
        %v3293 = vadd.f32 %v3120, %v587
        %v3294 = vadd.f32 %v3126, %v588
        %v3295 = vadd.f32 %v3132, %v589
        %v3296 = vadd.f32 %v3138, %v590
        %v3297 = vadd.f32 %v3144, %v591
        %v3298 = vadd.f32 %v3150, %v592
        %v3299 = vadd.f32 %v3156, %v593
        %v3300 = vadd.f32 %v3162, %v594
        %v3301 = vadd.f32 %v3168, %v595
        %v3302 = vadd.f32 %v3174, %v596
        %v3303 = vadd.f32 %v3180, %v597
        %v3304 = vadd.f32 %v3186, %v598
        %v3305 = vadd.f32 %v3192, %v599
        %v3306 = vadd.f32 %v3199, %v584
        %v3307 = vadd.f32 %v3205, %v585
        %v3308 = vadd.f32 %v3211, %v586
        %v3309 = vadd.f32 %v3217, %v587
        %v3310 = vadd.f32 %v3223, %v588
        %v3311 = vadd.f32 %v3229, %v589
        %v3312 = vadd.f32 %v3235, %v590
        %v3313 = vadd.f32 %v3241, %v591
        %v3314 = vadd.f32 %v3247, %v592
        %v3315 = vadd.f32 %v3253, %v593
        %v3316 = vadd.f32 %v3259, %v594
        %v3317 = vadd.f32 %v3265, %v595
        %v3318 = vadd.f32 %v3271, %v596
        %v3319 = vadd.f32 %v3277, %v597
        %v3320 = vadd.f32 %v3283, %v598
        %v3321 = vadd.f32 %v3289, %v599
        %v3322 = vmax.f32 %v3290, %v3292
        %v3323 = vmax.f32 %v3291, %v3293
        %v3324 = vmax.f32 %v3322, %v3294
        %v3325 = vmax.f32 %v3323, %v3295
        %v3326 = vmax.f32 %v3324, %v3296
        %v3327 = vmax.f32 %v3325, %v3297
        %v3328 = vmax.f32 %v3326, %v3298
        %v3329 = vmax.f32 %v3327, %v3299
        %v3330 = vmax.f32 %v3328, %v3300
        %v3331 = vmax.f32 %v3329, %v3301
        %v3332 = vmax.f32 %v3330, %v3302
        %v3333 = vmax.f32 %v3331, %v3303
        %v3334 = vmax.f32 %v3332, %v3304
        %v3335 = vmax.f32 %v3333, %v3305
        %v3336 = vmax.f32 %v3334, %v3335
        %v3337 = vrot.slane %v3336, 4
        %v3338 = vmax.f32 %v3336, %v3337
        %v3339 = vrot.slane %v3338, 2
        %v3340 = vmax.f32 %v3338, %v3339
        %v3341 = vrot.slane %v3340, 1
        %v3342 = vmax.f32 %v3340, %v3341
        %v3343 = vmax.f32 %v3306, %v3308
        %v3344 = vmax.f32 %v3307, %v3309
        %v3345 = vmax.f32 %v3343, %v3310
        %v3346 = vmax.f32 %v3344, %v3311
        %v3347 = vmax.f32 %v3345, %v3312
        %v3348 = vmax.f32 %v3346, %v3313
        %v3349 = vmax.f32 %v3347, %v3314
        %v3350 = vmax.f32 %v3348, %v3315
        %v3351 = vmax.f32 %v3349, %v3316
        %v3352 = vmax.f32 %v3350, %v3317
        %v3353 = vmax.f32 %v3351, %v3318
        %v3354 = vmax.f32 %v3352, %v3319
        %v3355 = vmax.f32 %v3353, %v3320
        %v3356 = vmax.f32 %v3354, %v3321
        %v3357 = vmax.f32 %v3355, %v3356
        %v3358 = vrot.slane %v3357, 4
        %v3359 = vmax.f32 %v3357, %v3358
        %v3360 = vrot.slane %v3359, 2
        %v3361 = vmax.f32 %v3359, %v3360
        %v3362 = vrot.slane %v3361, 1
        %v3363 = vmax.f32 %v3361, %v3362
        %v3364 = vsub.f32 %v3290, %v3342
        %v3365 = vsub.f32 %v3291, %v3342
        %v3366 = vsub.f32 %v3292, %v3342
        %v3367 = vsub.f32 %v3293, %v3342
        %v3368 = vsub.f32 %v3294, %v3342
        %v3369 = vsub.f32 %v3295, %v3342
        %v3370 = vsub.f32 %v3296, %v3342
        %v3371 = vsub.f32 %v3297, %v3342
        %v3372 = vsub.f32 %v3298, %v3342
        %v3373 = vsub.f32 %v3299, %v3342
        %v3374 = vsub.f32 %v3300, %v3342
        %v3375 = vsub.f32 %v3301, %v3342
        %v3376 = vsub.f32 %v3302, %v3342
        %v3377 = vsub.f32 %v3303, %v3342
        %v3378 = vsub.f32 %v3304, %v3342
        %v3379 = vsub.f32 %v3305, %v3342
        %v3380 = vsub.f32 %v3306, %v3363
        %v3381 = vsub.f32 %v3307, %v3363
        %v3382 = vsub.f32 %v3308, %v3363
        %v3383 = vsub.f32 %v3309, %v3363
        %v3384 = vsub.f32 %v3310, %v3363
        %v3385 = vsub.f32 %v3311, %v3363
        %v3386 = vsub.f32 %v3312, %v3363
        %v3387 = vsub.f32 %v3313, %v3363
        %v3388 = vsub.f32 %v3314, %v3363
        %v3389 = vsub.f32 %v3315, %v3363
        %v3390 = vsub.f32 %v3316, %v3363
        %v3391 = vsub.f32 %v3317, %v3363
        %v3392 = vsub.f32 %v3318, %v3363
        %v3393 = vsub.f32 %v3319, %v3363
        %v3394 = vsub.f32 %v3320, %v3363
        %v3395 = vsub.f32 %v3321, %v3363
        %v3396 = vmul.f32 %v3364, 1.442695
        %v3397 = vpow.pop %v3396
        %v3398 = vmul.f32 %v3365, 1.442695
        %v3399 = vpow.pop %v3398
        %v3400 = vmul.f32 %v3366, 1.442695
        %v3401 = vpow.pop %v3400
        %v3402 = vmul.f32 %v3367, 1.442695
        %v3403 = vpow.pop %v3402
        %v3404 = vmul.f32 %v3368, 1.442695
        %v3405 = vpow.pop %v3404
        %v3406 = vmul.f32 %v3369, 1.442695
        %v3407 = vpow.pop %v3406
        %v3408 = vmul.f32 %v3370, 1.442695
        %v3409 = vpow.pop %v3408
        %v3410 = vmul.f32 %v3371, 1.442695
        %v3411 = vpow.pop %v3410
        %v3412 = vmul.f32 %v3372, 1.442695
        %v3413 = vpow.pop %v3412
        %v3414 = vmul.f32 %v3373, 1.442695
        %v3415 = vpow.pop %v3414
        %v3416 = vmul.f32 %v3374, 1.442695
        %v3417 = vpow.pop %v3416
        %v3418 = vmul.f32 %v3375, 1.442695
        %v3419 = vpow.pop %v3418
        %v3420 = vmul.f32 %v3376, 1.442695
        %v3421 = vpow.pop %v3420
        %v3422 = vmul.f32 %v3377, 1.442695
        %v3423 = vpow.pop %v3422
        %v3424 = vmul.f32 %v3378, 1.442695
        %v3425 = vpow.pop %v3424
        %v3426 = vmul.f32 %v3379, 1.442695
        %v3427 = vpow.pop %v3426
        %v3428 = vmul.f32 %v3380, 1.442695
        %v3429 = vpow.pop %v3428
        %v3430 = vmul.f32 %v3381, 1.442695
        %v3431 = vpow.pop %v3430
        %v3432 = vmul.f32 %v3382, 1.442695
        %v3433 = vpow.pop %v3432
        %v3434 = vmul.f32 %v3383, 1.442695
        %v3435 = vpow.pop %v3434
        %v3436 = vmul.f32 %v3384, 1.442695
        %v3437 = vpow.pop %v3436
        %v3438 = vmul.f32 %v3385, 1.442695
        %v3439 = vpow.pop %v3438
        %v3440 = vmul.f32 %v3386, 1.442695
        %v3441 = vpow.pop %v3440
        %v3442 = vmul.f32 %v3387, 1.442695
        %v3443 = vpow.pop %v3442
        %v3444 = vmul.f32 %v3388, 1.442695
        %v3445 = vpow.pop %v3444
        %v3446 = vmul.f32 %v3389, 1.442695
        %v3447 = vpow.pop %v3446
        %v3448 = vmul.f32 %v3390, 1.442695
        %v3449 = vpow.pop %v3448
        %v3450 = vmul.f32 %v3391, 1.442695
        %v3451 = vpow.pop %v3450
        %v3452 = vmul.f32 %v3392, 1.442695
        %v3453 = vpow.pop %v3452
        %v3454 = vmul.f32 %v3393, 1.442695
        %v3455 = vpow.pop %v3454
        %v3456 = vmul.f32 %v3394, 1.442695
        %v3457 = vpow.pop %v3456
        %v3458 = vmul.f32 %v3395, 1.442695
        %v3459 = vpow.pop %v3458
        %v3460 = vadd.f32 %v3397, %v3399
        %v3461 = vadd.f32 %v3460, %v3401
        %v3462 = vadd.f32 %v3461, %v3403
        %v3463 = vadd.f32 %v3462, %v3405
        %v3464 = vadd.f32 %v3463, %v3407
        %v3465 = vadd.f32 %v3464, %v3409
        %v3466 = vadd.f32 %v3465, %v3411
        %v3467 = vadd.f32 %v3466, %v3413
        %v3468 = vadd.f32 %v3467, %v3415
        %v3469 = vadd.f32 %v3468, %v3417
        %v3470 = vadd.f32 %v3469, %v3419
        %v3471 = vadd.f32 %v3470, %v3421
        %v3472 = vadd.f32 %v3471, %v3423
        %v3473 = vadd.f32 %v3472, %v3425
        %v3474 = vadd.f32 %v3473, %v3427
        %v3475 = vrot.slane %v3474, 4
        %v3476 = vadd.f32 %v3474, %v3475
        %v3477 = vrot.slane %v3476, 2
        %v3478 = vadd.f32 %v3476, %v3477
        %v3479 = vrot.slane %v3478, 1
        %v3480 = vadd.f32 %v3478, %v3479
        %v3481 = vadd.f32 %v3429, %v3431
        %v3482 = vadd.f32 %v3481, %v3433
        %v3483 = vadd.f32 %v3482, %v3435
        %v3484 = vadd.f32 %v3483, %v3437
        %v3485 = vadd.f32 %v3484, %v3439
        %v3486 = vadd.f32 %v3485, %v3441
        %v3487 = vadd.f32 %v3486, %v3443
        %v3488 = vadd.f32 %v3487, %v3445
        %v3489 = vadd.f32 %v3488, %v3447
        %v3490 = vadd.f32 %v3489, %v3449
        %v3491 = vadd.f32 %v3490, %v3451
        %v3492 = vadd.f32 %v3491, %v3453
        %v3493 = vadd.f32 %v3492, %v3455
        %v3494 = vadd.f32 %v3493, %v3457
        %v3495 = vadd.f32 %v3494, %v3459
        %v3496 = vrot.slane %v3495, 4
        %v3497 = vadd.f32 %v3495, %v3496
        %v3498 = vrot.slane %v3497, 2
        %v3499 = vadd.f32 %v3497, %v3498
        %v3500 = vrot.slane %v3499, 1
        %v3501 = vadd.f32 %v3499, %v3500
        %v3502 = vlog2.pop %v3480
        %v3503 = vmul.f32 %v3502, 0.6931472
        %v3504 = vlog2.pop %v3501
        %v3505 = vmul.f32 %v3504, 0.6931472
        %v3506 = vadd.f32 %v3342, %v3503
        %v3507 = vadd.f32 %v3363, %v3505
        %v3508 = vadd.f32 %v3506, %v658
        %v3509 = vadd.f32 %v3507, %v660
        %v3510 = vperm.slane %v3095, 0
        %v3511 = vlaneseq
        %v3512 = vshrl.u32 %v3511, 7
        %3514 = vset.pattern.permute.xlu0 %v3512
        %3515 = vperm.xlu0 %3514, %v3510
        %v3516 = vpop.permute.xlu0 %3515
        %v3517 = vlaneseq
        %v3518 = vshrl.u32 %v3517, 7
        %v3519 = vadd.s32 %v3518, 8
        %3520 = vset.pattern.permute.xlu0 %v3519
        %3521 = vperm.xlu0 %3520, %v3510
        %v3522 = vpop.permute.xlu0 %3521
        %v3523 = vlaneseq
        %v3524 = vshrl.u32 %v3523, 7
        %v3525 = vadd.s32 %v3524, 16
        %3526 = vset.pattern.permute.xlu0 %v3525
        %3527 = vperm.xlu0 %3526, %v3510
        %v3528 = vpop.permute.xlu0 %3527
        %v3529 = vlaneseq
        %v3530 = vshrl.u32 %v3529, 7
        %v3531 = vadd.s32 %v3530, 24
        %3532 = vset.pattern.permute.xlu0 %v3531
        %3533 = vperm.xlu0 %3532, %v3510
        %v3534 = vpop.permute.xlu0 %3533
        %v3535 = vlaneseq
        %v3536 = vshrl.u32 %v3535, 7
        %v3537 = vadd.s32 %v3536, 32
        %3538 = vset.pattern.permute.xlu0 %v3537
        %3539 = vperm.xlu0 %3538, %v3510
        %v3540 = vpop.permute.xlu0 %3539
        %v3541 = vlaneseq
        %v3542 = vshrl.u32 %v3541, 7
        %v3543 = vadd.s32 %v3542, 40
        %3544 = vset.pattern.permute.xlu0 %v3543
        %3545 = vperm.xlu0 %3544, %v3510
        %v3546 = vpop.permute.xlu0 %3545
        %v3547 = vlaneseq
        %v3548 = vshrl.u32 %v3547, 7
        %v3549 = vadd.s32 %v3548, 48
        %3550 = vset.pattern.permute.xlu0 %v3549
        %3551 = vperm.xlu0 %3550, %v3510
        %v3552 = vpop.permute.xlu0 %3551
        %v3553 = vlaneseq
        %v3554 = vshrl.u32 %v3553, 7
        %v3555 = vadd.s32 %v3554, 56
        %3556 = vset.pattern.permute.xlu0 %v3555
        %3557 = vperm.xlu0 %3556, %v3510
        %v3558 = vpop.permute.xlu0 %3557
        %v3559 = vlaneseq
        %v3560 = vshrl.u32 %v3559, 7
        %v3561 = vadd.s32 %v3560, 64
        %3562 = vset.pattern.permute.xlu0 %v3561
        %3563 = vperm.xlu0 %3562, %v3510
        %v3564 = vpop.permute.xlu0 %3563
        %v3565 = vlaneseq
        %v3566 = vshrl.u32 %v3565, 7
        %v3567 = vadd.s32 %v3566, 72
        %3568 = vset.pattern.permute.xlu0 %v3567
        %3569 = vperm.xlu0 %3568, %v3510
        %v3570 = vpop.permute.xlu0 %3569
        %v3571 = vlaneseq
        %v3572 = vshrl.u32 %v3571, 7
        %v3573 = vadd.s32 %v3572, 80
        %3574 = vset.pattern.permute.xlu0 %v3573
        %3575 = vperm.xlu0 %3574, %v3510
        %v3576 = vpop.permute.xlu0 %3575
        %v3577 = vlaneseq
        %v3578 = vshrl.u32 %v3577, 7
        %v3579 = vadd.s32 %v3578, 88
        %3580 = vset.pattern.permute.xlu0 %v3579
        %3581 = vperm.xlu0 %3580, %v3510
        %v3582 = vpop.permute.xlu0 %3581
        %v3583 = vlaneseq
        %v3584 = vshrl.u32 %v3583, 7
        %v3585 = vadd.s32 %v3584, 96
        %3586 = vset.pattern.permute.xlu0 %v3585
        %3587 = vperm.xlu0 %3586, %v3510
        %v3588 = vpop.permute.xlu0 %3587
        %v3589 = vlaneseq
        %v3590 = vshrl.u32 %v3589, 7
        %v3591 = vadd.s32 %v3590, 104
        %3592 = vset.pattern.permute.xlu0 %v3591
        %3593 = vperm.xlu0 %3592, %v3510
        %v3594 = vpop.permute.xlu0 %3593
        %v3595 = vlaneseq
        %v3596 = vshrl.u32 %v3595, 7
        %v3597 = vadd.s32 %v3596, 112
        %3598 = vset.pattern.permute.xlu0 %v3597
        %3599 = vperm.xlu0 %3598, %v3510
        %v3600 = vpop.permute.xlu0 %3599
        %v3601 = vlaneseq
        %v3602 = vshrl.u32 %v3601, 7
        %v3603 = vadd.s32 %v3602, 120
        %3604 = vset.pattern.permute.xlu0 %v3603
        %3605 = vperm.xlu0 %3604, %v3510
        %v3606 = vpop.permute.xlu0 %3605
        %v3607 = vperm.slane %v3095, 1
        %v3608 = vlaneseq
        %v3609 = vshrl.u32 %v3608, 7
        %3611 = vset.pattern.permute.xlu0 %v3609
        %3612 = vperm.xlu0 %3611, %v3607
        %v3613 = vpop.permute.xlu0 %3612
        %v3614 = vlaneseq
        %v3615 = vshrl.u32 %v3614, 7
        %v3616 = vadd.s32 %v3615, 8
        %3617 = vset.pattern.permute.xlu0 %v3616
        %3618 = vperm.xlu0 %3617, %v3607
        %v3619 = vpop.permute.xlu0 %3618
        %v3620 = vlaneseq
        %v3621 = vshrl.u32 %v3620, 7
        %v3622 = vadd.s32 %v3621, 16
        %3623 = vset.pattern.permute.xlu0 %v3622
        %3624 = vperm.xlu0 %3623, %v3607
        %v3625 = vpop.permute.xlu0 %3624
        %v3626 = vlaneseq
        %v3627 = vshrl.u32 %v3626, 7
        %v3628 = vadd.s32 %v3627, 24
        %3629 = vset.pattern.permute.xlu0 %v3628
        %3630 = vperm.xlu0 %3629, %v3607
        %v3631 = vpop.permute.xlu0 %3630
        %v3632 = vlaneseq
        %v3633 = vshrl.u32 %v3632, 7
        %v3634 = vadd.s32 %v3633, 32
        %3635 = vset.pattern.permute.xlu0 %v3634
        %3636 = vperm.xlu0 %3635, %v3607
        %v3637 = vpop.permute.xlu0 %3636
        %v3638 = vlaneseq
        %v3639 = vshrl.u32 %v3638, 7
        %v3640 = vadd.s32 %v3639, 40
        %3641 = vset.pattern.permute.xlu0 %v3640
        %3642 = vperm.xlu0 %3641, %v3607
        %v3643 = vpop.permute.xlu0 %3642
        %v3644 = vlaneseq
        %v3645 = vshrl.u32 %v3644, 7
        %v3646 = vadd.s32 %v3645, 48
        %3647 = vset.pattern.permute.xlu0 %v3646
        %3648 = vperm.xlu0 %3647, %v3607
        %v3649 = vpop.permute.xlu0 %3648
        %v3650 = vlaneseq
        %v3651 = vshrl.u32 %v3650, 7
        %v3652 = vadd.s32 %v3651, 56
        %3653 = vset.pattern.permute.xlu0 %v3652
        %3654 = vperm.xlu0 %3653, %v3607
        %v3655 = vpop.permute.xlu0 %3654
        %v3656 = vlaneseq
        %v3657 = vshrl.u32 %v3656, 7
        %v3658 = vadd.s32 %v3657, 64
        %3659 = vset.pattern.permute.xlu0 %v3658
        %3660 = vperm.xlu0 %3659, %v3607
        %v3661 = vpop.permute.xlu0 %3660
        %v3662 = vlaneseq
        %v3663 = vshrl.u32 %v3662, 7
        %v3664 = vadd.s32 %v3663, 72
        %3665 = vset.pattern.permute.xlu0 %v3664
        %3666 = vperm.xlu0 %3665, %v3607
        %v3667 = vpop.permute.xlu0 %3666
        %v3668 = vlaneseq
        %v3669 = vshrl.u32 %v3668, 7
        %v3670 = vadd.s32 %v3669, 80
        %3671 = vset.pattern.permute.xlu0 %v3670
        %3672 = vperm.xlu0 %3671, %v3607
        %v3673 = vpop.permute.xlu0 %3672
        %v3674 = vlaneseq
        %v3675 = vshrl.u32 %v3674, 7
        %v3676 = vadd.s32 %v3675, 88
        %3677 = vset.pattern.permute.xlu0 %v3676
        %3678 = vperm.xlu0 %3677, %v3607
        %v3679 = vpop.permute.xlu0 %3678
        %v3680 = vlaneseq
        %v3681 = vshrl.u32 %v3680, 7
        %v3682 = vadd.s32 %v3681, 96
        %3683 = vset.pattern.permute.xlu0 %v3682
        %3684 = vperm.xlu0 %3683, %v3607
        %v3685 = vpop.permute.xlu0 %3684
        %v3686 = vlaneseq
        %v3687 = vshrl.u32 %v3686, 7
        %v3688 = vadd.s32 %v3687, 104
        %3689 = vset.pattern.permute.xlu0 %v3688
        %3690 = vperm.xlu0 %3689, %v3607
        %v3691 = vpop.permute.xlu0 %3690
        %v3692 = vlaneseq
        %v3693 = vshrl.u32 %v3692, 7
        %v3694 = vadd.s32 %v3693, 112
        %3695 = vset.pattern.permute.xlu0 %v3694
        %3696 = vperm.xlu0 %3695, %v3607
        %v3697 = vpop.permute.xlu0 %3696
        %v3698 = vlaneseq
        %v3699 = vshrl.u32 %v3698, 7
        %v3700 = vadd.s32 %v3699, 120
        %3701 = vset.pattern.permute.xlu0 %v3700
        %3702 = vperm.xlu0 %3701, %v3607
        %v3703 = vpop.permute.xlu0 %3702
        %v3704 = vadd.f32 %v3516, %v584
        %v3705 = vadd.f32 %v3522, %v585
        %v3706 = vadd.f32 %v3528, %v586
        %v3707 = vadd.f32 %v3534, %v587
        %v3708 = vadd.f32 %v3540, %v588
        %v3709 = vadd.f32 %v3546, %v589
        %v3710 = vadd.f32 %v3552, %v590
        %v3711 = vadd.f32 %v3558, %v591
        %v3712 = vadd.f32 %v3564, %v592
        %v3713 = vadd.f32 %v3570, %v593
        %v3714 = vadd.f32 %v3576, %v594
        %v3715 = vadd.f32 %v3582, %v595
        %v3716 = vadd.f32 %v3588, %v596
        %v3717 = vadd.f32 %v3594, %v597
        %v3718 = vadd.f32 %v3600, %v598
        %v3719 = vadd.f32 %v3606, %v599
        %v3720 = vadd.f32 %v3613, %v584
        %v3721 = vadd.f32 %v3619, %v585
        %v3722 = vadd.f32 %v3625, %v586
        %v3723 = vadd.f32 %v3631, %v587
        %v3724 = vadd.f32 %v3637, %v588
        %v3725 = vadd.f32 %v3643, %v589
        %v3726 = vadd.f32 %v3649, %v590
        %v3727 = vadd.f32 %v3655, %v591
        %v3728 = vadd.f32 %v3661, %v592
        %v3729 = vadd.f32 %v3667, %v593
        %v3730 = vadd.f32 %v3673, %v594
        %v3731 = vadd.f32 %v3679, %v595
        %v3732 = vadd.f32 %v3685, %v596
        %v3733 = vadd.f32 %v3691, %v597
        %v3734 = vadd.f32 %v3697, %v598
        %v3735 = vadd.f32 %v3703, %v599
        %v3736 = vmax.f32 %v3704, %v3706
        %v3737 = vmax.f32 %v3705, %v3707
        %v3738 = vmax.f32 %v3736, %v3708
        %v3739 = vmax.f32 %v3737, %v3709
        %v3740 = vmax.f32 %v3738, %v3710
        %v3741 = vmax.f32 %v3739, %v3711
        %v3742 = vmax.f32 %v3740, %v3712
        %v3743 = vmax.f32 %v3741, %v3713
        %v3744 = vmax.f32 %v3742, %v3714
        %v3745 = vmax.f32 %v3743, %v3715
        %v3746 = vmax.f32 %v3744, %v3716
        %v3747 = vmax.f32 %v3745, %v3717
        %v3748 = vmax.f32 %v3746, %v3718
        %v3749 = vmax.f32 %v3747, %v3719
        %v3750 = vmax.f32 %v3748, %v3749
        %v3751 = vrot.slane %v3750, 4
        %v3752 = vmax.f32 %v3750, %v3751
        %v3753 = vrot.slane %v3752, 2
        %v3754 = vmax.f32 %v3752, %v3753
        %v3755 = vrot.slane %v3754, 1
        %v3756 = vmax.f32 %v3754, %v3755
        %v3757 = vmax.f32 %v3720, %v3722
        %v3758 = vmax.f32 %v3721, %v3723
        %v3759 = vmax.f32 %v3757, %v3724
        %v3760 = vmax.f32 %v3758, %v3725
        %v3761 = vmax.f32 %v3759, %v3726
        %v3762 = vmax.f32 %v3760, %v3727
        %v3763 = vmax.f32 %v3761, %v3728
        %v3764 = vmax.f32 %v3762, %v3729
        %v3765 = vmax.f32 %v3763, %v3730
        %v3766 = vmax.f32 %v3764, %v3731
        %v3767 = vmax.f32 %v3765, %v3732
        %v3768 = vmax.f32 %v3766, %v3733
        %v3769 = vmax.f32 %v3767, %v3734
        %v3770 = vmax.f32 %v3768, %v3735
        %v3771 = vmax.f32 %v3769, %v3770
        %v3772 = vrot.slane %v3771, 4
        %v3773 = vmax.f32 %v3771, %v3772
        %v3774 = vrot.slane %v3773, 2
        %v3775 = vmax.f32 %v3773, %v3774
        %v3776 = vrot.slane %v3775, 1
        %v3777 = vmax.f32 %v3775, %v3776
        %vm3778 = vcmp.eq.f32.partialorder %v3704, %v3756
        %vm3779 = vcmp.eq.f32.partialorder %v3705, %v3756
        %vm3780 = vcmp.eq.f32.partialorder %v3706, %v3756
        %vm3781 = vcmp.eq.f32.partialorder %v3707, %v3756
        %vm3782 = vcmp.eq.f32.partialorder %v3708, %v3756
        %vm3783 = vcmp.eq.f32.partialorder %v3709, %v3756
        %vm3784 = vcmp.eq.f32.partialorder %v3710, %v3756
        %vm3785 = vcmp.eq.f32.partialorder %v3711, %v3756
        %vm3786 = vcmp.eq.f32.partialorder %v3712, %v3756
        %vm3787 = vcmp.eq.f32.partialorder %v3713, %v3756
        %vm3788 = vcmp.eq.f32.partialorder %v3714, %v3756
        %vm3789 = vcmp.eq.f32.partialorder %v3715, %v3756
        %vm3790 = vcmp.eq.f32.partialorder %v3716, %v3756
        %vm3791 = vcmp.eq.f32.partialorder %v3717, %v3756
        %vm3792 = vcmp.eq.f32.partialorder %v3718, %v3756
        %vm3793 = vcmp.eq.f32.partialorder %v3719, %v3756
        %vm3794 = vcmp.eq.f32.partialorder %v3720, %v3777
        %vm3795 = vcmp.eq.f32.partialorder %v3721, %v3777
        %vm3796 = vcmp.eq.f32.partialorder %v3722, %v3777
        %vm3797 = vcmp.eq.f32.partialorder %v3723, %v3777
        %vm3798 = vcmp.eq.f32.partialorder %v3724, %v3777
        %vm3799 = vcmp.eq.f32.partialorder %v3725, %v3777
        %vm3800 = vcmp.eq.f32.partialorder %v3726, %v3777
        %vm3801 = vcmp.eq.f32.partialorder %v3727, %v3777
        %vm3802 = vcmp.eq.f32.partialorder %v3728, %v3777
        %vm3803 = vcmp.eq.f32.partialorder %v3729, %v3777
        %vm3804 = vcmp.eq.f32.partialorder %v3730, %v3777
        %vm3805 = vcmp.eq.f32.partialorder %v3731, %v3777
        %vm3806 = vcmp.eq.f32.partialorder %v3732, %v3777
        %vm3807 = vcmp.eq.f32.partialorder %v3733, %v3777
        %vm3808 = vcmp.eq.f32.partialorder %v3734, %v3777
        %vm3809 = vcmp.eq.f32.partialorder %v3735, %v3777
        %v3810 = vsel %vm3778, %v620, 128
        %v3811 = vsel %vm3779, %v621, 128
        %v3812 = vsel %vm3780, %v622, 128
        %v3813 = vsel %vm3781, %v623, 128
        %v3814 = vsel %vm3782, %v624, 128
        %v3815 = vsel %vm3783, %v625, 128
        %v3816 = vsel %vm3784, %v626, 128
        %v3817 = vsel %vm3785, %v627, 128
        %v3818 = vsel %vm3786, %v628, 128
        %v3819 = vsel %vm3787, %v629, 128
        %v3820 = vsel %vm3788, %v630, 128
        %v3821 = vsel %vm3789, %v631, 128
        %v3822 = vsel %vm3790, %v632, 128
        %v3823 = vsel %vm3791, %v633, 128
        %v3824 = vsel %vm3792, %v634, 128
        %v3825 = vsel %vm3793, %v635, 128
        %v3826 = vsel %vm3794, %v620, 128
        %v3827 = vsel %vm3795, %v621, 128
        %v3828 = vsel %vm3796, %v622, 128
        %v3829 = vsel %vm3797, %v623, 128
        %v3830 = vsel %vm3798, %v624, 128
        %v3831 = vsel %vm3799, %v625, 128
        %v3832 = vsel %vm3800, %v626, 128
        %v3833 = vsel %vm3801, %v627, 128
        %v3834 = vsel %vm3802, %v628, 128
        %v3835 = vsel %vm3803, %v629, 128
        %v3836 = vsel %vm3804, %v630, 128
        %v3837 = vsel %vm3805, %v631, 128
        %v3838 = vsel %vm3806, %v632, 128
        %v3839 = vsel %vm3807, %v633, 128
        %v3840 = vsel %vm3808, %v634, 128
        %v3841 = vsel %vm3809, %v635, 128
        %vm3842 = vcmp.lt.s32.totalorder %v3810, %v3812
        %v3843 = vsel %vm3842, %v3810, %v3812
        %vm3844 = vcmp.lt.s32.totalorder %v3811, %v3813
        %v3845 = vsel %vm3844, %v3811, %v3813
        %vm3846 = vcmp.lt.s32.totalorder %v3843, %v3814
        %v3847 = vsel %vm3846, %v3843, %v3814
        %vm3848 = vcmp.lt.s32.totalorder %v3845, %v3815
        %v3849 = vsel %vm3848, %v3845, %v3815
        %vm3850 = vcmp.lt.s32.totalorder %v3847, %v3816
        %v3851 = vsel %vm3850, %v3847, %v3816
        %vm3852 = vcmp.lt.s32.totalorder %v3849, %v3817
        %v3853 = vsel %vm3852, %v3849, %v3817
        %vm3854 = vcmp.lt.s32.totalorder %v3851, %v3818
        %v3855 = vsel %vm3854, %v3851, %v3818
        %vm3856 = vcmp.lt.s32.totalorder %v3853, %v3819
        %v3857 = vsel %vm3856, %v3853, %v3819
        %vm3858 = vcmp.lt.s32.totalorder %v3855, %v3820
        %v3859 = vsel %vm3858, %v3855, %v3820
        %vm3860 = vcmp.lt.s32.totalorder %v3857, %v3821
        %v3861 = vsel %vm3860, %v3857, %v3821
        %vm3862 = vcmp.lt.s32.totalorder %v3859, %v3822
        %v3863 = vsel %vm3862, %v3859, %v3822
        %vm3864 = vcmp.lt.s32.totalorder %v3861, %v3823
        %v3865 = vsel %vm3864, %v3861, %v3823
        %vm3866 = vcmp.lt.s32.totalorder %v3863, %v3824
        %v3867 = vsel %vm3866, %v3863, %v3824
        %vm3868 = vcmp.lt.s32.totalorder %v3865, %v3825
        %v3869 = vsel %vm3868, %v3865, %v3825
        %vm3870 = vcmp.lt.s32.totalorder %v3867, %v3869
        %v3871 = vsel %vm3870, %v3867, %v3869
        %v3872 = vrot.slane %v3871, 4
        %vm3873 = vcmp.lt.s32.totalorder %v3871, %v3872
        %v3874 = vsel %vm3873, %v3871, %v3872
        %v3875 = vrot.slane %v3874, 2
        %vm3876 = vcmp.lt.s32.totalorder %v3874, %v3875
        %v3877 = vsel %vm3876, %v3874, %v3875
        %v3878 = vrot.slane %v3877, 1
        %vm3879 = vcmp.lt.s32.totalorder %v3877, %v3878
        %v3880 = vsel %vm3879, %v3877, %v3878
        %vm3881 = vcmp.lt.s32.totalorder %v3826, %v3828
        %v3882 = vsel %vm3881, %v3826, %v3828
        %vm3883 = vcmp.lt.s32.totalorder %v3827, %v3829
        %v3884 = vsel %vm3883, %v3827, %v3829
        %vm3885 = vcmp.lt.s32.totalorder %v3882, %v3830
        %v3886 = vsel %vm3885, %v3882, %v3830
        %vm3887 = vcmp.lt.s32.totalorder %v3884, %v3831
        %v3888 = vsel %vm3887, %v3884, %v3831
        %vm3889 = vcmp.lt.s32.totalorder %v3886, %v3832
        %v3890 = vsel %vm3889, %v3886, %v3832
        %vm3891 = vcmp.lt.s32.totalorder %v3888, %v3833
        %v3892 = vsel %vm3891, %v3888, %v3833
        %vm3893 = vcmp.lt.s32.totalorder %v3890, %v3834
        %v3894 = vsel %vm3893, %v3890, %v3834
        %vm3895 = vcmp.lt.s32.totalorder %v3892, %v3835
        %v3896 = vsel %vm3895, %v3892, %v3835
        %vm3897 = vcmp.lt.s32.totalorder %v3894, %v3836
        %v3898 = vsel %vm3897, %v3894, %v3836
        %vm3899 = vcmp.lt.s32.totalorder %v3896, %v3837
        %v3900 = vsel %vm3899, %v3896, %v3837
        %vm3901 = vcmp.lt.s32.totalorder %v3898, %v3838
        %v3902 = vsel %vm3901, %v3898, %v3838
        %vm3903 = vcmp.lt.s32.totalorder %v3900, %v3839
        %v3904 = vsel %vm3903, %v3900, %v3839
        %vm3905 = vcmp.lt.s32.totalorder %v3902, %v3840
        %v3906 = vsel %vm3905, %v3902, %v3840
        %vm3907 = vcmp.lt.s32.totalorder %v3904, %v3841
        %v3908 = vsel %vm3907, %v3904, %v3841
        %vm3909 = vcmp.lt.s32.totalorder %v3906, %v3908
        %v3910 = vsel %vm3909, %v3906, %v3908
        %v3911 = vrot.slane %v3910, 4
        %vm3912 = vcmp.lt.s32.totalorder %v3910, %v3911
        %v3913 = vsel %vm3912, %v3910, %v3911
        %v3914 = vrot.slane %v3913, 2
        %vm3915 = vcmp.lt.s32.totalorder %v3913, %v3914
        %v3916 = vsel %vm3915, %v3913, %v3914
        %v3917 = vrot.slane %v3916, 1
        %vm3918 = vcmp.lt.s32.totalorder %v3916, %v3917
        %v3919 = vsel %vm3918, %v3916, %v3917
        %v3920 = vadd.f32 %v3756, %v658
        %v3921 = vadd.f32 %v3777, %v660
        %vm3922 = vcmp.gt.s32.totalorder %v618, 4
        %v3923 = vsel %vm3922, 1, 0
        %vm3924 = vcmp.eq.s32.totalorder %v3923, 1
        %v3927 = vrot.slane %v3508, 4
        %v3928 = vrot.slane %v3509, 3
        %v3929 = vsel %vm717, %v3928, %v3927
        %v3931 = vsel %vm3924, %v3929, %v3088
        %v3934 = vrot.slane %v3920, 4
        %v3935 = vrot.slane %v3921, 3
        %v3936 = vsel %vm717, %v3935, %v3934
        %v3938 = vsel %vm3924, %v3936, %v3095
        %v3939 = vperm.slane %v3931, 0
        %v3940 = vlaneseq
        %v3941 = vshrl.u32 %v3940, 7
        %3943 = vset.pattern.permute.xlu0 %v3941
        %3944 = vperm.xlu0 %3943, %v3939
        %v3945 = vpop.permute.xlu0 %3944
        %v3946 = vlaneseq
        %v3947 = vshrl.u32 %v3946, 7
        %v3948 = vadd.s32 %v3947, 8
        %3949 = vset.pattern.permute.xlu0 %v3948
        %3950 = vperm.xlu0 %3949, %v3939
        %v3951 = vpop.permute.xlu0 %3950
        %v3952 = vlaneseq
        %v3953 = vshrl.u32 %v3952, 7
        %v3954 = vadd.s32 %v3953, 16
        %3955 = vset.pattern.permute.xlu0 %v3954
        %3956 = vperm.xlu0 %3955, %v3939
        %v3957 = vpop.permute.xlu0 %3956
        %v3958 = vlaneseq
        %v3959 = vshrl.u32 %v3958, 7
        %v3960 = vadd.s32 %v3959, 24
        %3961 = vset.pattern.permute.xlu0 %v3960
        %3962 = vperm.xlu0 %3961, %v3939
        %v3963 = vpop.permute.xlu0 %3962
        %v3964 = vlaneseq
        %v3965 = vshrl.u32 %v3964, 7
        %v3966 = vadd.s32 %v3965, 32
        %3967 = vset.pattern.permute.xlu0 %v3966
        %3968 = vperm.xlu0 %3967, %v3939
        %v3969 = vpop.permute.xlu0 %3968
        %v3970 = vlaneseq
        %v3971 = vshrl.u32 %v3970, 7
        %v3972 = vadd.s32 %v3971, 40
        %3973 = vset.pattern.permute.xlu0 %v3972
        %3974 = vperm.xlu0 %3973, %v3939
        %v3975 = vpop.permute.xlu0 %3974
        %v3976 = vlaneseq
        %v3977 = vshrl.u32 %v3976, 7
        %v3978 = vadd.s32 %v3977, 48
        %3979 = vset.pattern.permute.xlu0 %v3978
        %3980 = vperm.xlu0 %3979, %v3939
        %v3981 = vpop.permute.xlu0 %3980
        %v3982 = vlaneseq
        %v3983 = vshrl.u32 %v3982, 7
        %v3984 = vadd.s32 %v3983, 56
        %3985 = vset.pattern.permute.xlu0 %v3984
        %3986 = vperm.xlu0 %3985, %v3939
        %v3987 = vpop.permute.xlu0 %3986
        %v3988 = vlaneseq
        %v3989 = vshrl.u32 %v3988, 7
        %v3990 = vadd.s32 %v3989, 64
        %3991 = vset.pattern.permute.xlu0 %v3990
        %3992 = vperm.xlu0 %3991, %v3939
        %v3993 = vpop.permute.xlu0 %3992
        %v3994 = vlaneseq
        %v3995 = vshrl.u32 %v3994, 7
        %v3996 = vadd.s32 %v3995, 72
        %3997 = vset.pattern.permute.xlu0 %v3996
        %3998 = vperm.xlu0 %3997, %v3939
        %v3999 = vpop.permute.xlu0 %3998
        %v4000 = vlaneseq
        %v4001 = vshrl.u32 %v4000, 7
        %v4002 = vadd.s32 %v4001, 80
        %4003 = vset.pattern.permute.xlu0 %v4002
        %4004 = vperm.xlu0 %4003, %v3939
        %v4005 = vpop.permute.xlu0 %4004
        %v4006 = vlaneseq
        %v4007 = vshrl.u32 %v4006, 7
        %v4008 = vadd.s32 %v4007, 88
        %4009 = vset.pattern.permute.xlu0 %v4008
        %4010 = vperm.xlu0 %4009, %v3939
        %v4011 = vpop.permute.xlu0 %4010
        %v4012 = vlaneseq
        %v4013 = vshrl.u32 %v4012, 7
        %v4014 = vadd.s32 %v4013, 96
        %4015 = vset.pattern.permute.xlu0 %v4014
        %4016 = vperm.xlu0 %4015, %v3939
        %v4017 = vpop.permute.xlu0 %4016
        %v4018 = vlaneseq
        %v4019 = vshrl.u32 %v4018, 7
        %v4020 = vadd.s32 %v4019, 104
        %4021 = vset.pattern.permute.xlu0 %v4020
        %4022 = vperm.xlu0 %4021, %v3939
        %v4023 = vpop.permute.xlu0 %4022
        %v4024 = vlaneseq
        %v4025 = vshrl.u32 %v4024, 7
        %v4026 = vadd.s32 %v4025, 112
        %4027 = vset.pattern.permute.xlu0 %v4026
        %4028 = vperm.xlu0 %4027, %v3939
        %v4029 = vpop.permute.xlu0 %4028
        %v4030 = vlaneseq
        %v4031 = vshrl.u32 %v4030, 7
        %v4032 = vadd.s32 %v4031, 120
        %4033 = vset.pattern.permute.xlu0 %v4032
        %4034 = vperm.xlu0 %4033, %v3939
        %v4035 = vpop.permute.xlu0 %4034
        %v4036 = vperm.slane %v3931, 1
        %v4037 = vlaneseq
        %v4038 = vshrl.u32 %v4037, 7
        %4040 = vset.pattern.permute.xlu0 %v4038
        %4041 = vperm.xlu0 %4040, %v4036
        %v4042 = vpop.permute.xlu0 %4041
        %v4043 = vlaneseq
        %v4044 = vshrl.u32 %v4043, 7
        %v4045 = vadd.s32 %v4044, 8
        %4046 = vset.pattern.permute.xlu0 %v4045
        %4047 = vperm.xlu0 %4046, %v4036
        %v4048 = vpop.permute.xlu0 %4047
        %v4049 = vlaneseq
        %v4050 = vshrl.u32 %v4049, 7
        %v4051 = vadd.s32 %v4050, 16
        %4052 = vset.pattern.permute.xlu0 %v4051
        %4053 = vperm.xlu0 %4052, %v4036
        %v4054 = vpop.permute.xlu0 %4053
        %v4055 = vlaneseq
        %v4056 = vshrl.u32 %v4055, 7
        %v4057 = vadd.s32 %v4056, 24
        %4058 = vset.pattern.permute.xlu0 %v4057
        %4059 = vperm.xlu0 %4058, %v4036
        %v4060 = vpop.permute.xlu0 %4059
        %v4061 = vlaneseq
        %v4062 = vshrl.u32 %v4061, 7
        %v4063 = vadd.s32 %v4062, 32
        %4064 = vset.pattern.permute.xlu0 %v4063
        %4065 = vperm.xlu0 %4064, %v4036
        %v4066 = vpop.permute.xlu0 %4065
        %v4067 = vlaneseq
        %v4068 = vshrl.u32 %v4067, 7
        %v4069 = vadd.s32 %v4068, 40
        %4070 = vset.pattern.permute.xlu0 %v4069
        %4071 = vperm.xlu0 %4070, %v4036
        %v4072 = vpop.permute.xlu0 %4071
        %v4073 = vlaneseq
        %v4074 = vshrl.u32 %v4073, 7
        %v4075 = vadd.s32 %v4074, 48
        %4076 = vset.pattern.permute.xlu0 %v4075
        %4077 = vperm.xlu0 %4076, %v4036
        %v4078 = vpop.permute.xlu0 %4077
        %v4079 = vlaneseq
        %v4080 = vshrl.u32 %v4079, 7
        %v4081 = vadd.s32 %v4080, 56
        %4082 = vset.pattern.permute.xlu0 %v4081
        %4083 = vperm.xlu0 %4082, %v4036
        %v4084 = vpop.permute.xlu0 %4083
        %v4085 = vlaneseq
        %v4086 = vshrl.u32 %v4085, 7
        %v4087 = vadd.s32 %v4086, 64
        %4088 = vset.pattern.permute.xlu0 %v4087
        %4089 = vperm.xlu0 %4088, %v4036
        %v4090 = vpop.permute.xlu0 %4089
        %v4091 = vlaneseq
        %v4092 = vshrl.u32 %v4091, 7
        %v4093 = vadd.s32 %v4092, 72
        %4094 = vset.pattern.permute.xlu0 %v4093
        %4095 = vperm.xlu0 %4094, %v4036
        %v4096 = vpop.permute.xlu0 %4095
        %v4097 = vlaneseq
        %v4098 = vshrl.u32 %v4097, 7
        %v4099 = vadd.s32 %v4098, 80
        %4100 = vset.pattern.permute.xlu0 %v4099
        %4101 = vperm.xlu0 %4100, %v4036
        %v4102 = vpop.permute.xlu0 %4101
        %v4103 = vlaneseq
        %v4104 = vshrl.u32 %v4103, 7
        %v4105 = vadd.s32 %v4104, 88
        %4106 = vset.pattern.permute.xlu0 %v4105
        %4107 = vperm.xlu0 %4106, %v4036
        %v4108 = vpop.permute.xlu0 %4107
        %v4109 = vlaneseq
        %v4110 = vshrl.u32 %v4109, 7
        %v4111 = vadd.s32 %v4110, 96
        %4112 = vset.pattern.permute.xlu0 %v4111
        %4113 = vperm.xlu0 %4112, %v4036
        %v4114 = vpop.permute.xlu0 %4113
        %v4115 = vlaneseq
        %v4116 = vshrl.u32 %v4115, 7
        %v4117 = vadd.s32 %v4116, 104
        %4118 = vset.pattern.permute.xlu0 %v4117
        %4119 = vperm.xlu0 %4118, %v4036
        %v4120 = vpop.permute.xlu0 %4119
        %v4121 = vlaneseq
        %v4122 = vshrl.u32 %v4121, 7
        %v4123 = vadd.s32 %v4122, 112
        %4124 = vset.pattern.permute.xlu0 %v4123
        %4125 = vperm.xlu0 %4124, %v4036
        %v4126 = vpop.permute.xlu0 %4125
        %v4127 = vlaneseq
        %v4128 = vshrl.u32 %v4127, 7
        %v4129 = vadd.s32 %v4128, 120
        %4130 = vset.pattern.permute.xlu0 %v4129
        %4131 = vperm.xlu0 %4130, %v4036
        %v4132 = vpop.permute.xlu0 %4131
        %v4133 = vadd.f32 %v3945, %v584
        %v4134 = vadd.f32 %v3951, %v585
        %v4135 = vadd.f32 %v3957, %v586
        %v4136 = vadd.f32 %v3963, %v587
        %v4137 = vadd.f32 %v3969, %v588
        %v4138 = vadd.f32 %v3975, %v589
        %v4139 = vadd.f32 %v3981, %v590
        %v4140 = vadd.f32 %v3987, %v591
        %v4141 = vadd.f32 %v3993, %v592
        %v4142 = vadd.f32 %v3999, %v593
        %v4143 = vadd.f32 %v4005, %v594
        %v4144 = vadd.f32 %v4011, %v595
        %v4145 = vadd.f32 %v4017, %v596
        %v4146 = vadd.f32 %v4023, %v597
        %v4147 = vadd.f32 %v4029, %v598
        %v4148 = vadd.f32 %v4035, %v599
        %v4149 = vadd.f32 %v4042, %v584
        %v4150 = vadd.f32 %v4048, %v585
        %v4151 = vadd.f32 %v4054, %v586
        %v4152 = vadd.f32 %v4060, %v587
        %v4153 = vadd.f32 %v4066, %v588
        %v4154 = vadd.f32 %v4072, %v589
        %v4155 = vadd.f32 %v4078, %v590
        %v4156 = vadd.f32 %v4084, %v591
        %v4157 = vadd.f32 %v4090, %v592
        %v4158 = vadd.f32 %v4096, %v593
        %v4159 = vadd.f32 %v4102, %v594
        %v4160 = vadd.f32 %v4108, %v595
        %v4161 = vadd.f32 %v4114, %v596
        %v4162 = vadd.f32 %v4120, %v597
        %v4163 = vadd.f32 %v4126, %v598
        %v4164 = vadd.f32 %v4132, %v599
        %v4165 = vmax.f32 %v4133, %v4135
        %v4166 = vmax.f32 %v4134, %v4136
        %v4167 = vmax.f32 %v4165, %v4137
        %v4168 = vmax.f32 %v4166, %v4138
        %v4169 = vmax.f32 %v4167, %v4139
        %v4170 = vmax.f32 %v4168, %v4140
        %v4171 = vmax.f32 %v4169, %v4141
        %v4172 = vmax.f32 %v4170, %v4142
        %v4173 = vmax.f32 %v4171, %v4143
        %v4174 = vmax.f32 %v4172, %v4144
        %v4175 = vmax.f32 %v4173, %v4145
        %v4176 = vmax.f32 %v4174, %v4146
        %v4177 = vmax.f32 %v4175, %v4147
        %v4178 = vmax.f32 %v4176, %v4148
        %v4179 = vmax.f32 %v4177, %v4178
        %v4180 = vrot.slane %v4179, 4
        %v4181 = vmax.f32 %v4179, %v4180
        %v4182 = vrot.slane %v4181, 2
        %v4183 = vmax.f32 %v4181, %v4182
        %v4184 = vrot.slane %v4183, 1
        %v4185 = vmax.f32 %v4183, %v4184
        %v4186 = vmax.f32 %v4149, %v4151
        %v4187 = vmax.f32 %v4150, %v4152
        %v4188 = vmax.f32 %v4186, %v4153
        %v4189 = vmax.f32 %v4187, %v4154
        %v4190 = vmax.f32 %v4188, %v4155
        %v4191 = vmax.f32 %v4189, %v4156
        %v4192 = vmax.f32 %v4190, %v4157
        %v4193 = vmax.f32 %v4191, %v4158
        %v4194 = vmax.f32 %v4192, %v4159
        %v4195 = vmax.f32 %v4193, %v4160
        %v4196 = vmax.f32 %v4194, %v4161
        %v4197 = vmax.f32 %v4195, %v4162
        %v4198 = vmax.f32 %v4196, %v4163
        %v4199 = vmax.f32 %v4197, %v4164
        %v4200 = vmax.f32 %v4198, %v4199
        %v4201 = vrot.slane %v4200, 4
        %v4202 = vmax.f32 %v4200, %v4201
        %v4203 = vrot.slane %v4202, 2
        %v4204 = vmax.f32 %v4202, %v4203
        %v4205 = vrot.slane %v4204, 1
        %v4206 = vmax.f32 %v4204, %v4205
        %v4207 = vsub.f32 %v4133, %v4185
        %v4208 = vsub.f32 %v4134, %v4185
        %v4209 = vsub.f32 %v4135, %v4185
        %v4210 = vsub.f32 %v4136, %v4185
        %v4211 = vsub.f32 %v4137, %v4185
        %v4212 = vsub.f32 %v4138, %v4185
        %v4213 = vsub.f32 %v4139, %v4185
        %v4214 = vsub.f32 %v4140, %v4185
        %v4215 = vsub.f32 %v4141, %v4185
        %v4216 = vsub.f32 %v4142, %v4185
        %v4217 = vsub.f32 %v4143, %v4185
        %v4218 = vsub.f32 %v4144, %v4185
        %v4219 = vsub.f32 %v4145, %v4185
        %v4220 = vsub.f32 %v4146, %v4185
        %v4221 = vsub.f32 %v4147, %v4185
        %v4222 = vsub.f32 %v4148, %v4185
        %v4223 = vsub.f32 %v4149, %v4206
        %v4224 = vsub.f32 %v4150, %v4206
        %v4225 = vsub.f32 %v4151, %v4206
        %v4226 = vsub.f32 %v4152, %v4206
        %v4227 = vsub.f32 %v4153, %v4206
        %v4228 = vsub.f32 %v4154, %v4206
        %v4229 = vsub.f32 %v4155, %v4206
        %v4230 = vsub.f32 %v4156, %v4206
        %v4231 = vsub.f32 %v4157, %v4206
        %v4232 = vsub.f32 %v4158, %v4206
        %v4233 = vsub.f32 %v4159, %v4206
        %v4234 = vsub.f32 %v4160, %v4206
        %v4235 = vsub.f32 %v4161, %v4206
        %v4236 = vsub.f32 %v4162, %v4206
        %v4237 = vsub.f32 %v4163, %v4206
        %v4238 = vsub.f32 %v4164, %v4206
        %v4239 = vmul.f32 %v4207, 1.442695
        %v4240 = vpow.pop %v4239
        %v4241 = vmul.f32 %v4208, 1.442695
        %v4242 = vpow.pop %v4241
        %v4243 = vmul.f32 %v4209, 1.442695
        %v4244 = vpow.pop %v4243
        %v4245 = vmul.f32 %v4210, 1.442695
        %v4246 = vpow.pop %v4245
        %v4247 = vmul.f32 %v4211, 1.442695
        %v4248 = vpow.pop %v4247
        %v4249 = vmul.f32 %v4212, 1.442695
        %v4250 = vpow.pop %v4249
        %v4251 = vmul.f32 %v4213, 1.442695
        %v4252 = vpow.pop %v4251
        %v4253 = vmul.f32 %v4214, 1.442695
        %v4254 = vpow.pop %v4253
        %v4255 = vmul.f32 %v4215, 1.442695
        %v4256 = vpow.pop %v4255
        %v4257 = vmul.f32 %v4216, 1.442695
        %v4258 = vpow.pop %v4257
        %v4259 = vmul.f32 %v4217, 1.442695
        %v4260 = vpow.pop %v4259
        %v4261 = vmul.f32 %v4218, 1.442695
        %v4262 = vpow.pop %v4261
        %v4263 = vmul.f32 %v4219, 1.442695
        %v4264 = vpow.pop %v4263
        %v4265 = vmul.f32 %v4220, 1.442695
        %v4266 = vpow.pop %v4265
        %v4267 = vmul.f32 %v4221, 1.442695
        %v4268 = vpow.pop %v4267
        %v4269 = vmul.f32 %v4222, 1.442695
        %v4270 = vpow.pop %v4269
        %v4271 = vmul.f32 %v4223, 1.442695
        %v4272 = vpow.pop %v4271
        %v4273 = vmul.f32 %v4224, 1.442695
        %v4274 = vpow.pop %v4273
        %v4275 = vmul.f32 %v4225, 1.442695
        %v4276 = vpow.pop %v4275
        %v4277 = vmul.f32 %v4226, 1.442695
        %v4278 = vpow.pop %v4277
        %v4279 = vmul.f32 %v4227, 1.442695
        %v4280 = vpow.pop %v4279
        %v4281 = vmul.f32 %v4228, 1.442695
        %v4282 = vpow.pop %v4281
        %v4283 = vmul.f32 %v4229, 1.442695
        %v4284 = vpow.pop %v4283
        %v4285 = vmul.f32 %v4230, 1.442695
        %v4286 = vpow.pop %v4285
        %v4287 = vmul.f32 %v4231, 1.442695
        %v4288 = vpow.pop %v4287
        %v4289 = vmul.f32 %v4232, 1.442695
        %v4290 = vpow.pop %v4289
        %v4291 = vmul.f32 %v4233, 1.442695
        %v4292 = vpow.pop %v4291
        %v4293 = vmul.f32 %v4234, 1.442695
        %v4294 = vpow.pop %v4293
        %v4295 = vmul.f32 %v4235, 1.442695
        %v4296 = vpow.pop %v4295
        %v4297 = vmul.f32 %v4236, 1.442695
        %v4298 = vpow.pop %v4297
        %v4299 = vmul.f32 %v4237, 1.442695
        %v4300 = vpow.pop %v4299
        %v4301 = vmul.f32 %v4238, 1.442695
        %v4302 = vpow.pop %v4301
        %v4303 = vadd.f32 %v4240, %v4242
        %v4304 = vadd.f32 %v4303, %v4244
        %v4305 = vadd.f32 %v4304, %v4246
        %v4306 = vadd.f32 %v4305, %v4248
        %v4307 = vadd.f32 %v4306, %v4250
        %v4308 = vadd.f32 %v4307, %v4252
        %v4309 = vadd.f32 %v4308, %v4254
        %v4310 = vadd.f32 %v4309, %v4256
        %v4311 = vadd.f32 %v4310, %v4258
        %v4312 = vadd.f32 %v4311, %v4260
        %v4313 = vadd.f32 %v4312, %v4262
        %v4314 = vadd.f32 %v4313, %v4264
        %v4315 = vadd.f32 %v4314, %v4266
        %v4316 = vadd.f32 %v4315, %v4268
        %v4317 = vadd.f32 %v4316, %v4270
        %v4318 = vrot.slane %v4317, 4
        %v4319 = vadd.f32 %v4317, %v4318
        %v4320 = vrot.slane %v4319, 2
        %v4321 = vadd.f32 %v4319, %v4320
        %v4322 = vrot.slane %v4321, 1
        %v4323 = vadd.f32 %v4321, %v4322
        %v4324 = vadd.f32 %v4272, %v4274
        %v4325 = vadd.f32 %v4324, %v4276
        %v4326 = vadd.f32 %v4325, %v4278
        %v4327 = vadd.f32 %v4326, %v4280
        %v4328 = vadd.f32 %v4327, %v4282
        %v4329 = vadd.f32 %v4328, %v4284
        %v4330 = vadd.f32 %v4329, %v4286
        %v4331 = vadd.f32 %v4330, %v4288
        %v4332 = vadd.f32 %v4331, %v4290
        %v4333 = vadd.f32 %v4332, %v4292
        %v4334 = vadd.f32 %v4333, %v4294
        %v4335 = vadd.f32 %v4334, %v4296
        %v4336 = vadd.f32 %v4335, %v4298
        %v4337 = vadd.f32 %v4336, %v4300
        %v4338 = vadd.f32 %v4337, %v4302
        %v4339 = vrot.slane %v4338, 4
        %v4340 = vadd.f32 %v4338, %v4339
        %v4341 = vrot.slane %v4340, 2
        %v4342 = vadd.f32 %v4340, %v4341
        %v4343 = vrot.slane %v4342, 1
        %v4344 = vadd.f32 %v4342, %v4343
        %v4345 = vlog2.pop %v4323
        %v4346 = vmul.f32 %v4345, 0.6931472
        %v4347 = vlog2.pop %v4344
        %v4348 = vmul.f32 %v4347, 0.6931472
        %v4349 = vadd.f32 %v4185, %v4346
        %v4350 = vadd.f32 %v4206, %v4348
        %v4351 = vadd.f32 %v4349, %v658
        %v4352 = vadd.f32 %v4350, %v660
        %v4353 = vperm.slane %v3938, 0
        %v4354 = vlaneseq
        %v4355 = vshrl.u32 %v4354, 7
        %4357 = vset.pattern.permute.xlu0 %v4355
        %4358 = vperm.xlu0 %4357, %v4353
        %v4359 = vpop.permute.xlu0 %4358
        %v4360 = vlaneseq
        %v4361 = vshrl.u32 %v4360, 7
        %v4362 = vadd.s32 %v4361, 8
        %4363 = vset.pattern.permute.xlu0 %v4362
        %4364 = vperm.xlu0 %4363, %v4353
        %v4365 = vpop.permute.xlu0 %4364
        %v4366 = vlaneseq
        %v4367 = vshrl.u32 %v4366, 7
        %v4368 = vadd.s32 %v4367, 16
        %4369 = vset.pattern.permute.xlu0 %v4368
        %4370 = vperm.xlu0 %4369, %v4353
        %v4371 = vpop.permute.xlu0 %4370
        %v4372 = vlaneseq
        %v4373 = vshrl.u32 %v4372, 7
        %v4374 = vadd.s32 %v4373, 24
        %4375 = vset.pattern.permute.xlu0 %v4374
        %4376 = vperm.xlu0 %4375, %v4353
        %v4377 = vpop.permute.xlu0 %4376
        %v4378 = vlaneseq
        %v4379 = vshrl.u32 %v4378, 7
        %v4380 = vadd.s32 %v4379, 32
        %4381 = vset.pattern.permute.xlu0 %v4380
        %4382 = vperm.xlu0 %4381, %v4353
        %v4383 = vpop.permute.xlu0 %4382
        %v4384 = vlaneseq
        %v4385 = vshrl.u32 %v4384, 7
        %v4386 = vadd.s32 %v4385, 40
        %4387 = vset.pattern.permute.xlu0 %v4386
        %4388 = vperm.xlu0 %4387, %v4353
        %v4389 = vpop.permute.xlu0 %4388
        %v4390 = vlaneseq
        %v4391 = vshrl.u32 %v4390, 7
        %v4392 = vadd.s32 %v4391, 48
        %4393 = vset.pattern.permute.xlu0 %v4392
        %4394 = vperm.xlu0 %4393, %v4353
        %v4395 = vpop.permute.xlu0 %4394
        %v4396 = vlaneseq
        %v4397 = vshrl.u32 %v4396, 7
        %v4398 = vadd.s32 %v4397, 56
        %4399 = vset.pattern.permute.xlu0 %v4398
        %4400 = vperm.xlu0 %4399, %v4353
        %v4401 = vpop.permute.xlu0 %4400
        %v4402 = vlaneseq
        %v4403 = vshrl.u32 %v4402, 7
        %v4404 = vadd.s32 %v4403, 64
        %4405 = vset.pattern.permute.xlu0 %v4404
        %4406 = vperm.xlu0 %4405, %v4353
        %v4407 = vpop.permute.xlu0 %4406
        %v4408 = vlaneseq
        %v4409 = vshrl.u32 %v4408, 7
        %v4410 = vadd.s32 %v4409, 72
        %4411 = vset.pattern.permute.xlu0 %v4410
        %4412 = vperm.xlu0 %4411, %v4353
        %v4413 = vpop.permute.xlu0 %4412
        %v4414 = vlaneseq
        %v4415 = vshrl.u32 %v4414, 7
        %v4416 = vadd.s32 %v4415, 80
        %4417 = vset.pattern.permute.xlu0 %v4416
        %4418 = vperm.xlu0 %4417, %v4353
        %v4419 = vpop.permute.xlu0 %4418
        %v4420 = vlaneseq
        %v4421 = vshrl.u32 %v4420, 7
        %v4422 = vadd.s32 %v4421, 88
        %4423 = vset.pattern.permute.xlu0 %v4422
        %4424 = vperm.xlu0 %4423, %v4353
        %v4425 = vpop.permute.xlu0 %4424
        %v4426 = vlaneseq
        %v4427 = vshrl.u32 %v4426, 7
        %v4428 = vadd.s32 %v4427, 96
        %4429 = vset.pattern.permute.xlu0 %v4428
        %4430 = vperm.xlu0 %4429, %v4353
        %v4431 = vpop.permute.xlu0 %4430
        %v4432 = vlaneseq
        %v4433 = vshrl.u32 %v4432, 7
        %v4434 = vadd.s32 %v4433, 104
        %4435 = vset.pattern.permute.xlu0 %v4434
        %4436 = vperm.xlu0 %4435, %v4353
        %v4437 = vpop.permute.xlu0 %4436
        %v4438 = vlaneseq
        %v4439 = vshrl.u32 %v4438, 7
        %v4440 = vadd.s32 %v4439, 112
        %4441 = vset.pattern.permute.xlu0 %v4440
        %4442 = vperm.xlu0 %4441, %v4353
        %v4443 = vpop.permute.xlu0 %4442
        %v4444 = vlaneseq
        %v4445 = vshrl.u32 %v4444, 7
        %v4446 = vadd.s32 %v4445, 120
        %4447 = vset.pattern.permute.xlu0 %v4446
        %4448 = vperm.xlu0 %4447, %v4353
        %v4449 = vpop.permute.xlu0 %4448
        %v4450 = vperm.slane %v3938, 1
        %v4451 = vlaneseq
        %v4452 = vshrl.u32 %v4451, 7
        %4454 = vset.pattern.permute.xlu0 %v4452
        %4455 = vperm.xlu0 %4454, %v4450
        %v4456 = vpop.permute.xlu0 %4455
        %v4457 = vlaneseq
        %v4458 = vshrl.u32 %v4457, 7
        %v4459 = vadd.s32 %v4458, 8
        %4460 = vset.pattern.permute.xlu0 %v4459
        %4461 = vperm.xlu0 %4460, %v4450
        %v4462 = vpop.permute.xlu0 %4461
        %v4463 = vlaneseq
        %v4464 = vshrl.u32 %v4463, 7
        %v4465 = vadd.s32 %v4464, 16
        %4466 = vset.pattern.permute.xlu0 %v4465
        %4467 = vperm.xlu0 %4466, %v4450
        %v4468 = vpop.permute.xlu0 %4467
        %v4469 = vlaneseq
        %v4470 = vshrl.u32 %v4469, 7
        %v4471 = vadd.s32 %v4470, 24
        %4472 = vset.pattern.permute.xlu0 %v4471
        %4473 = vperm.xlu0 %4472, %v4450
        %v4474 = vpop.permute.xlu0 %4473
        %v4475 = vlaneseq
        %v4476 = vshrl.u32 %v4475, 7
        %v4477 = vadd.s32 %v4476, 32
        %4478 = vset.pattern.permute.xlu0 %v4477
        %4479 = vperm.xlu0 %4478, %v4450
        %v4480 = vpop.permute.xlu0 %4479
        %v4481 = vlaneseq
        %v4482 = vshrl.u32 %v4481, 7
        %v4483 = vadd.s32 %v4482, 40
        %4484 = vset.pattern.permute.xlu0 %v4483
        %4485 = vperm.xlu0 %4484, %v4450
        %v4486 = vpop.permute.xlu0 %4485
        %v4487 = vlaneseq
        %v4488 = vshrl.u32 %v4487, 7
        %v4489 = vadd.s32 %v4488, 48
        %4490 = vset.pattern.permute.xlu0 %v4489
        %4491 = vperm.xlu0 %4490, %v4450
        %v4492 = vpop.permute.xlu0 %4491
        %v4493 = vlaneseq
        %v4494 = vshrl.u32 %v4493, 7
        %v4495 = vadd.s32 %v4494, 56
        %4496 = vset.pattern.permute.xlu0 %v4495
        %4497 = vperm.xlu0 %4496, %v4450
        %v4498 = vpop.permute.xlu0 %4497
        %v4499 = vlaneseq
        %v4500 = vshrl.u32 %v4499, 7
        %v4501 = vadd.s32 %v4500, 64
        %4502 = vset.pattern.permute.xlu0 %v4501
        %4503 = vperm.xlu0 %4502, %v4450
        %v4504 = vpop.permute.xlu0 %4503
        %v4505 = vlaneseq
        %v4506 = vshrl.u32 %v4505, 7
        %v4507 = vadd.s32 %v4506, 72
        %4508 = vset.pattern.permute.xlu0 %v4507
        %4509 = vperm.xlu0 %4508, %v4450
        %v4510 = vpop.permute.xlu0 %4509
        %v4511 = vlaneseq
        %v4512 = vshrl.u32 %v4511, 7
        %v4513 = vadd.s32 %v4512, 80
        %4514 = vset.pattern.permute.xlu0 %v4513
        %4515 = vperm.xlu0 %4514, %v4450
        %v4516 = vpop.permute.xlu0 %4515
        %v4517 = vlaneseq
        %v4518 = vshrl.u32 %v4517, 7
        %v4519 = vadd.s32 %v4518, 88
        %4520 = vset.pattern.permute.xlu0 %v4519
        %4521 = vperm.xlu0 %4520, %v4450
        %v4522 = vpop.permute.xlu0 %4521
        %v4523 = vlaneseq
        %v4524 = vshrl.u32 %v4523, 7
        %v4525 = vadd.s32 %v4524, 96
        %4526 = vset.pattern.permute.xlu0 %v4525
        %4527 = vperm.xlu0 %4526, %v4450
        %v4528 = vpop.permute.xlu0 %4527
        %v4529 = vlaneseq
        %v4530 = vshrl.u32 %v4529, 7
        %v4531 = vadd.s32 %v4530, 104
        %4532 = vset.pattern.permute.xlu0 %v4531
        %4533 = vperm.xlu0 %4532, %v4450
        %v4534 = vpop.permute.xlu0 %4533
        %v4535 = vlaneseq
        %v4536 = vshrl.u32 %v4535, 7
        %v4537 = vadd.s32 %v4536, 112
        %4538 = vset.pattern.permute.xlu0 %v4537
        %4539 = vperm.xlu0 %4538, %v4450
        %v4540 = vpop.permute.xlu0 %4539
        %v4541 = vlaneseq
        %v4542 = vshrl.u32 %v4541, 7
        %v4543 = vadd.s32 %v4542, 120
        %4544 = vset.pattern.permute.xlu0 %v4543
        %4545 = vperm.xlu0 %4544, %v4450
        %v4546 = vpop.permute.xlu0 %4545
        %v4547 = vadd.f32 %v4359, %v584
        %v4548 = vadd.f32 %v4365, %v585
        %v4549 = vadd.f32 %v4371, %v586
        %v4550 = vadd.f32 %v4377, %v587
        %v4551 = vadd.f32 %v4383, %v588
        %v4552 = vadd.f32 %v4389, %v589
        %v4553 = vadd.f32 %v4395, %v590
        %v4554 = vadd.f32 %v4401, %v591
        %v4555 = vadd.f32 %v4407, %v592
        %v4556 = vadd.f32 %v4413, %v593
        %v4557 = vadd.f32 %v4419, %v594
        %v4558 = vadd.f32 %v4425, %v595
        %v4559 = vadd.f32 %v4431, %v596
        %v4560 = vadd.f32 %v4437, %v597
        %v4561 = vadd.f32 %v4443, %v598
        %v4562 = vadd.f32 %v4449, %v599
        %v4563 = vadd.f32 %v4456, %v584
        %v4564 = vadd.f32 %v4462, %v585
        %v4565 = vadd.f32 %v4468, %v586
        %v4566 = vadd.f32 %v4474, %v587
        %v4567 = vadd.f32 %v4480, %v588
        %v4568 = vadd.f32 %v4486, %v589
        %v4569 = vadd.f32 %v4492, %v590
        %v4570 = vadd.f32 %v4498, %v591
        %v4571 = vadd.f32 %v4504, %v592
        %v4572 = vadd.f32 %v4510, %v593
        %v4573 = vadd.f32 %v4516, %v594
        %v4574 = vadd.f32 %v4522, %v595
        %v4575 = vadd.f32 %v4528, %v596
        %v4576 = vadd.f32 %v4534, %v597
        %v4577 = vadd.f32 %v4540, %v598
        %v4578 = vadd.f32 %v4546, %v599
        %v4579 = vmax.f32 %v4547, %v4549
        %v4580 = vmax.f32 %v4548, %v4550
        %v4581 = vmax.f32 %v4579, %v4551
        %v4582 = vmax.f32 %v4580, %v4552
        %v4583 = vmax.f32 %v4581, %v4553
        %v4584 = vmax.f32 %v4582, %v4554
        %v4585 = vmax.f32 %v4583, %v4555
        %v4586 = vmax.f32 %v4584, %v4556
        %v4587 = vmax.f32 %v4585, %v4557
        %v4588 = vmax.f32 %v4586, %v4558
        %v4589 = vmax.f32 %v4587, %v4559
        %v4590 = vmax.f32 %v4588, %v4560
        %v4591 = vmax.f32 %v4589, %v4561
        %v4592 = vmax.f32 %v4590, %v4562
        %v4593 = vmax.f32 %v4591, %v4592
        %v4594 = vrot.slane %v4593, 4
        %v4595 = vmax.f32 %v4593, %v4594
        %v4596 = vrot.slane %v4595, 2
        %v4597 = vmax.f32 %v4595, %v4596
        %v4598 = vrot.slane %v4597, 1
        %v4599 = vmax.f32 %v4597, %v4598
        %v4600 = vmax.f32 %v4563, %v4565
        %v4601 = vmax.f32 %v4564, %v4566
        %v4602 = vmax.f32 %v4600, %v4567
        %v4603 = vmax.f32 %v4601, %v4568
        %v4604 = vmax.f32 %v4602, %v4569
        %v4605 = vmax.f32 %v4603, %v4570
        %v4606 = vmax.f32 %v4604, %v4571
        %v4607 = vmax.f32 %v4605, %v4572
        %v4608 = vmax.f32 %v4606, %v4573
        %v4609 = vmax.f32 %v4607, %v4574
        %v4610 = vmax.f32 %v4608, %v4575
        %v4611 = vmax.f32 %v4609, %v4576
        %v4612 = vmax.f32 %v4610, %v4577
        %v4613 = vmax.f32 %v4611, %v4578
        %v4614 = vmax.f32 %v4612, %v4613
        %v4615 = vrot.slane %v4614, 4
        %v4616 = vmax.f32 %v4614, %v4615
        %v4617 = vrot.slane %v4616, 2
        %v4618 = vmax.f32 %v4616, %v4617
        %v4619 = vrot.slane %v4618, 1
        %v4620 = vmax.f32 %v4618, %v4619
        %vm4621 = vcmp.eq.f32.partialorder %v4547, %v4599
        %vm4622 = vcmp.eq.f32.partialorder %v4548, %v4599
        %vm4623 = vcmp.eq.f32.partialorder %v4549, %v4599
        %vm4624 = vcmp.eq.f32.partialorder %v4550, %v4599
        %vm4625 = vcmp.eq.f32.partialorder %v4551, %v4599
        %vm4626 = vcmp.eq.f32.partialorder %v4552, %v4599
        %vm4627 = vcmp.eq.f32.partialorder %v4553, %v4599
        %vm4628 = vcmp.eq.f32.partialorder %v4554, %v4599
        %vm4629 = vcmp.eq.f32.partialorder %v4555, %v4599
        %vm4630 = vcmp.eq.f32.partialorder %v4556, %v4599
        %vm4631 = vcmp.eq.f32.partialorder %v4557, %v4599
        %vm4632 = vcmp.eq.f32.partialorder %v4558, %v4599
        %vm4633 = vcmp.eq.f32.partialorder %v4559, %v4599
        %vm4634 = vcmp.eq.f32.partialorder %v4560, %v4599
        %vm4635 = vcmp.eq.f32.partialorder %v4561, %v4599
        %vm4636 = vcmp.eq.f32.partialorder %v4562, %v4599
        %vm4637 = vcmp.eq.f32.partialorder %v4563, %v4620
        %vm4638 = vcmp.eq.f32.partialorder %v4564, %v4620
        %vm4639 = vcmp.eq.f32.partialorder %v4565, %v4620
        %vm4640 = vcmp.eq.f32.partialorder %v4566, %v4620
        %vm4641 = vcmp.eq.f32.partialorder %v4567, %v4620
        %vm4642 = vcmp.eq.f32.partialorder %v4568, %v4620
        %vm4643 = vcmp.eq.f32.partialorder %v4569, %v4620
        %vm4644 = vcmp.eq.f32.partialorder %v4570, %v4620
        %vm4645 = vcmp.eq.f32.partialorder %v4571, %v4620
        %vm4646 = vcmp.eq.f32.partialorder %v4572, %v4620
        %vm4647 = vcmp.eq.f32.partialorder %v4573, %v4620
        %vm4648 = vcmp.eq.f32.partialorder %v4574, %v4620
        %vm4649 = vcmp.eq.f32.partialorder %v4575, %v4620
        %vm4650 = vcmp.eq.f32.partialorder %v4576, %v4620
        %vm4651 = vcmp.eq.f32.partialorder %v4577, %v4620
        %vm4652 = vcmp.eq.f32.partialorder %v4578, %v4620
        %v4653 = vsel %vm4621, %v620, 128
        %v4654 = vsel %vm4622, %v621, 128
        %v4655 = vsel %vm4623, %v622, 128
        %v4656 = vsel %vm4624, %v623, 128
        %v4657 = vsel %vm4625, %v624, 128
        %v4658 = vsel %vm4626, %v625, 128
        %v4659 = vsel %vm4627, %v626, 128
        %v4660 = vsel %vm4628, %v627, 128
        %v4661 = vsel %vm4629, %v628, 128
        %v4662 = vsel %vm4630, %v629, 128
        %v4663 = vsel %vm4631, %v630, 128
        %v4664 = vsel %vm4632, %v631, 128
        %v4665 = vsel %vm4633, %v632, 128
        %v4666 = vsel %vm4634, %v633, 128
        %v4667 = vsel %vm4635, %v634, 128
        %v4668 = vsel %vm4636, %v635, 128
        %v4669 = vsel %vm4637, %v620, 128
        %v4670 = vsel %vm4638, %v621, 128
        %v4671 = vsel %vm4639, %v622, 128
        %v4672 = vsel %vm4640, %v623, 128
        %v4673 = vsel %vm4641, %v624, 128
        %v4674 = vsel %vm4642, %v625, 128
        %v4675 = vsel %vm4643, %v626, 128
        %v4676 = vsel %vm4644, %v627, 128
        %v4677 = vsel %vm4645, %v628, 128
        %v4678 = vsel %vm4646, %v629, 128
        %v4679 = vsel %vm4647, %v630, 128
        %v4680 = vsel %vm4648, %v631, 128
        %v4681 = vsel %vm4649, %v632, 128
        %v4682 = vsel %vm4650, %v633, 128
        %v4683 = vsel %vm4651, %v634, 128
        %v4684 = vsel %vm4652, %v635, 128
        %vm4685 = vcmp.lt.s32.totalorder %v4653, %v4655
        %v4686 = vsel %vm4685, %v4653, %v4655
        %vm4687 = vcmp.lt.s32.totalorder %v4654, %v4656
        %v4688 = vsel %vm4687, %v4654, %v4656
        %vm4689 = vcmp.lt.s32.totalorder %v4686, %v4657
        %v4690 = vsel %vm4689, %v4686, %v4657
        %vm4691 = vcmp.lt.s32.totalorder %v4688, %v4658
        %v4692 = vsel %vm4691, %v4688, %v4658
        %vm4693 = vcmp.lt.s32.totalorder %v4690, %v4659
        %v4694 = vsel %vm4693, %v4690, %v4659
        %vm4695 = vcmp.lt.s32.totalorder %v4692, %v4660
        %v4696 = vsel %vm4695, %v4692, %v4660
        %vm4697 = vcmp.lt.s32.totalorder %v4694, %v4661
        %v4698 = vsel %vm4697, %v4694, %v4661
        %vm4699 = vcmp.lt.s32.totalorder %v4696, %v4662
        %v4700 = vsel %vm4699, %v4696, %v4662
        %vm4701 = vcmp.lt.s32.totalorder %v4698, %v4663
        %v4702 = vsel %vm4701, %v4698, %v4663
        %vm4703 = vcmp.lt.s32.totalorder %v4700, %v4664
        %v4704 = vsel %vm4703, %v4700, %v4664
        %vm4705 = vcmp.lt.s32.totalorder %v4702, %v4665
        %v4706 = vsel %vm4705, %v4702, %v4665
        %vm4707 = vcmp.lt.s32.totalorder %v4704, %v4666
        %v4708 = vsel %vm4707, %v4704, %v4666
        %vm4709 = vcmp.lt.s32.totalorder %v4706, %v4667
        %v4710 = vsel %vm4709, %v4706, %v4667
        %vm4711 = vcmp.lt.s32.totalorder %v4708, %v4668
        %v4712 = vsel %vm4711, %v4708, %v4668
        %vm4713 = vcmp.lt.s32.totalorder %v4710, %v4712
        %v4714 = vsel %vm4713, %v4710, %v4712
        %v4715 = vrot.slane %v4714, 4
        %vm4716 = vcmp.lt.s32.totalorder %v4714, %v4715
        %v4717 = vsel %vm4716, %v4714, %v4715
        %v4718 = vrot.slane %v4717, 2
        %vm4719 = vcmp.lt.s32.totalorder %v4717, %v4718
        %v4720 = vsel %vm4719, %v4717, %v4718
        %v4721 = vrot.slane %v4720, 1
        %vm4722 = vcmp.lt.s32.totalorder %v4720, %v4721
        %v4723 = vsel %vm4722, %v4720, %v4721
        %vm4724 = vcmp.lt.s32.totalorder %v4669, %v4671
        %v4725 = vsel %vm4724, %v4669, %v4671
        %vm4726 = vcmp.lt.s32.totalorder %v4670, %v4672
        %v4727 = vsel %vm4726, %v4670, %v4672
        %vm4728 = vcmp.lt.s32.totalorder %v4725, %v4673
        %v4729 = vsel %vm4728, %v4725, %v4673
        %vm4730 = vcmp.lt.s32.totalorder %v4727, %v4674
        %v4731 = vsel %vm4730, %v4727, %v4674
        %vm4732 = vcmp.lt.s32.totalorder %v4729, %v4675
        %v4733 = vsel %vm4732, %v4729, %v4675
        %vm4734 = vcmp.lt.s32.totalorder %v4731, %v4676
        %v4735 = vsel %vm4734, %v4731, %v4676
        %vm4736 = vcmp.lt.s32.totalorder %v4733, %v4677
        %v4737 = vsel %vm4736, %v4733, %v4677
        %vm4738 = vcmp.lt.s32.totalorder %v4735, %v4678
        %v4739 = vsel %vm4738, %v4735, %v4678
        %vm4740 = vcmp.lt.s32.totalorder %v4737, %v4679
        %v4741 = vsel %vm4740, %v4737, %v4679
        %vm4742 = vcmp.lt.s32.totalorder %v4739, %v4680
        %v4743 = vsel %vm4742, %v4739, %v4680
        %vm4744 = vcmp.lt.s32.totalorder %v4741, %v4681
        %v4745 = vsel %vm4744, %v4741, %v4681
        %vm4746 = vcmp.lt.s32.totalorder %v4743, %v4682
        %v4747 = vsel %vm4746, %v4743, %v4682
        %vm4748 = vcmp.lt.s32.totalorder %v4745, %v4683
        %v4749 = vsel %vm4748, %v4745, %v4683
        %vm4750 = vcmp.lt.s32.totalorder %v4747, %v4684
        %v4751 = vsel %vm4750, %v4747, %v4684
        %vm4752 = vcmp.lt.s32.totalorder %v4749, %v4751
        %v4753 = vsel %vm4752, %v4749, %v4751
        %v4754 = vrot.slane %v4753, 4
        %vm4755 = vcmp.lt.s32.totalorder %v4753, %v4754
        %v4756 = vsel %vm4755, %v4753, %v4754
        %v4757 = vrot.slane %v4756, 2
        %vm4758 = vcmp.lt.s32.totalorder %v4756, %v4757
        %v4759 = vsel %vm4758, %v4756, %v4757
        %v4760 = vrot.slane %v4759, 1
        %vm4761 = vcmp.lt.s32.totalorder %v4759, %v4760
        %v4762 = vsel %vm4761, %v4759, %v4760
        %v4763 = vadd.f32 %v4599, %v658
        %v4764 = vadd.f32 %v4620, %v660
        %vm4765 = vcmp.gt.s32.totalorder %v618, 5
        %v4766 = vsel %vm4765, 1, 0
        %vm4767 = vcmp.eq.s32.totalorder %v4766, 1
        %v4770 = vrot.slane %v4351, 5
        %v4771 = vrot.slane %v4352, 4
        %v4772 = vsel %vm717, %v4771, %v4770
        %v4774 = vsel %vm4767, %v4772, %v3931
        %v4777 = vrot.slane %v4763, 5
        %v4778 = vrot.slane %v4764, 4
        %v4779 = vsel %vm717, %v4778, %v4777
        %v4781 = vsel %vm4767, %v4779, %v3938
        %v4782 = vperm.slane %v4774, 0
        %v4783 = vlaneseq
        %v4784 = vshrl.u32 %v4783, 7
        %4786 = vset.pattern.permute.xlu0 %v4784
        %4787 = vperm.xlu0 %4786, %v4782
        %v4788 = vpop.permute.xlu0 %4787
        %v4789 = vlaneseq
        %v4790 = vshrl.u32 %v4789, 7
        %v4791 = vadd.s32 %v4790, 8
        %4792 = vset.pattern.permute.xlu0 %v4791
        %4793 = vperm.xlu0 %4792, %v4782
        %v4794 = vpop.permute.xlu0 %4793
        %v4795 = vlaneseq
        %v4796 = vshrl.u32 %v4795, 7
        %v4797 = vadd.s32 %v4796, 16
        %4798 = vset.pattern.permute.xlu0 %v4797
        %4799 = vperm.xlu0 %4798, %v4782
        %v4800 = vpop.permute.xlu0 %4799
        %v4801 = vlaneseq
        %v4802 = vshrl.u32 %v4801, 7
        %v4803 = vadd.s32 %v4802, 24
        %4804 = vset.pattern.permute.xlu0 %v4803
        %4805 = vperm.xlu0 %4804, %v4782
        %v4806 = vpop.permute.xlu0 %4805
        %v4807 = vlaneseq
        %v4808 = vshrl.u32 %v4807, 7
        %v4809 = vadd.s32 %v4808, 32
        %4810 = vset.pattern.permute.xlu0 %v4809
        %4811 = vperm.xlu0 %4810, %v4782
        %v4812 = vpop.permute.xlu0 %4811
        %v4813 = vlaneseq
        %v4814 = vshrl.u32 %v4813, 7
        %v4815 = vadd.s32 %v4814, 40
        %4816 = vset.pattern.permute.xlu0 %v4815
        %4817 = vperm.xlu0 %4816, %v4782
        %v4818 = vpop.permute.xlu0 %4817
        %v4819 = vlaneseq
        %v4820 = vshrl.u32 %v4819, 7
        %v4821 = vadd.s32 %v4820, 48
        %4822 = vset.pattern.permute.xlu0 %v4821
        %4823 = vperm.xlu0 %4822, %v4782
        %v4824 = vpop.permute.xlu0 %4823
        %v4825 = vlaneseq
        %v4826 = vshrl.u32 %v4825, 7
        %v4827 = vadd.s32 %v4826, 56
        %4828 = vset.pattern.permute.xlu0 %v4827
        %4829 = vperm.xlu0 %4828, %v4782
        %v4830 = vpop.permute.xlu0 %4829
        %v4831 = vlaneseq
        %v4832 = vshrl.u32 %v4831, 7
        %v4833 = vadd.s32 %v4832, 64
        %4834 = vset.pattern.permute.xlu0 %v4833
        %4835 = vperm.xlu0 %4834, %v4782
        %v4836 = vpop.permute.xlu0 %4835
        %v4837 = vlaneseq
        %v4838 = vshrl.u32 %v4837, 7
        %v4839 = vadd.s32 %v4838, 72
        %4840 = vset.pattern.permute.xlu0 %v4839
        %4841 = vperm.xlu0 %4840, %v4782
        %v4842 = vpop.permute.xlu0 %4841
        %v4843 = vlaneseq
        %v4844 = vshrl.u32 %v4843, 7
        %v4845 = vadd.s32 %v4844, 80
        %4846 = vset.pattern.permute.xlu0 %v4845
        %4847 = vperm.xlu0 %4846, %v4782
        %v4848 = vpop.permute.xlu0 %4847
        %v4849 = vlaneseq
        %v4850 = vshrl.u32 %v4849, 7
        %v4851 = vadd.s32 %v4850, 88
        %4852 = vset.pattern.permute.xlu0 %v4851
        %4853 = vperm.xlu0 %4852, %v4782
        %v4854 = vpop.permute.xlu0 %4853
        %v4855 = vlaneseq
        %v4856 = vshrl.u32 %v4855, 7
        %v4857 = vadd.s32 %v4856, 96
        %4858 = vset.pattern.permute.xlu0 %v4857
        %4859 = vperm.xlu0 %4858, %v4782
        %v4860 = vpop.permute.xlu0 %4859
        %v4861 = vlaneseq
        %v4862 = vshrl.u32 %v4861, 7
        %v4863 = vadd.s32 %v4862, 104
        %4864 = vset.pattern.permute.xlu0 %v4863
        %4865 = vperm.xlu0 %4864, %v4782
        %v4866 = vpop.permute.xlu0 %4865
        %v4867 = vlaneseq
        %v4868 = vshrl.u32 %v4867, 7
        %v4869 = vadd.s32 %v4868, 112
        %4870 = vset.pattern.permute.xlu0 %v4869
        %4871 = vperm.xlu0 %4870, %v4782
        %v4872 = vpop.permute.xlu0 %4871
        %v4873 = vlaneseq
        %v4874 = vshrl.u32 %v4873, 7
        %v4875 = vadd.s32 %v4874, 120
        %4876 = vset.pattern.permute.xlu0 %v4875
        %4877 = vperm.xlu0 %4876, %v4782
        %v4878 = vpop.permute.xlu0 %4877
        %v4879 = vperm.slane %v4774, 1
        %v4880 = vlaneseq
        %v4881 = vshrl.u32 %v4880, 7
        %4883 = vset.pattern.permute.xlu0 %v4881
        %4884 = vperm.xlu0 %4883, %v4879
        %v4885 = vpop.permute.xlu0 %4884
        %v4886 = vlaneseq
        %v4887 = vshrl.u32 %v4886, 7
        %v4888 = vadd.s32 %v4887, 8
        %4889 = vset.pattern.permute.xlu0 %v4888
        %4890 = vperm.xlu0 %4889, %v4879
        %v4891 = vpop.permute.xlu0 %4890
        %v4892 = vlaneseq
        %v4893 = vshrl.u32 %v4892, 7
        %v4894 = vadd.s32 %v4893, 16
        %4895 = vset.pattern.permute.xlu0 %v4894
        %4896 = vperm.xlu0 %4895, %v4879
        %v4897 = vpop.permute.xlu0 %4896
        %v4898 = vlaneseq
        %v4899 = vshrl.u32 %v4898, 7
        %v4900 = vadd.s32 %v4899, 24
        %4901 = vset.pattern.permute.xlu0 %v4900
        %4902 = vperm.xlu0 %4901, %v4879
        %v4903 = vpop.permute.xlu0 %4902
        %v4904 = vlaneseq
        %v4905 = vshrl.u32 %v4904, 7
        %v4906 = vadd.s32 %v4905, 32
        %4907 = vset.pattern.permute.xlu0 %v4906
        %4908 = vperm.xlu0 %4907, %v4879
        %v4909 = vpop.permute.xlu0 %4908
        %v4910 = vlaneseq
        %v4911 = vshrl.u32 %v4910, 7
        %v4912 = vadd.s32 %v4911, 40
        %4913 = vset.pattern.permute.xlu0 %v4912
        %4914 = vperm.xlu0 %4913, %v4879
        %v4915 = vpop.permute.xlu0 %4914
        %v4916 = vlaneseq
        %v4917 = vshrl.u32 %v4916, 7
        %v4918 = vadd.s32 %v4917, 48
        %4919 = vset.pattern.permute.xlu0 %v4918
        %4920 = vperm.xlu0 %4919, %v4879
        %v4921 = vpop.permute.xlu0 %4920
        %v4922 = vlaneseq
        %v4923 = vshrl.u32 %v4922, 7
        %v4924 = vadd.s32 %v4923, 56
        %4925 = vset.pattern.permute.xlu0 %v4924
        %4926 = vperm.xlu0 %4925, %v4879
        %v4927 = vpop.permute.xlu0 %4926
        %v4928 = vlaneseq
        %v4929 = vshrl.u32 %v4928, 7
        %v4930 = vadd.s32 %v4929, 64
        %4931 = vset.pattern.permute.xlu0 %v4930
        %4932 = vperm.xlu0 %4931, %v4879
        %v4933 = vpop.permute.xlu0 %4932
        %v4934 = vlaneseq
        %v4935 = vshrl.u32 %v4934, 7
        %v4936 = vadd.s32 %v4935, 72
        %4937 = vset.pattern.permute.xlu0 %v4936
        %4938 = vperm.xlu0 %4937, %v4879
        %v4939 = vpop.permute.xlu0 %4938
        %v4940 = vlaneseq
        %v4941 = vshrl.u32 %v4940, 7
        %v4942 = vadd.s32 %v4941, 80
        %4943 = vset.pattern.permute.xlu0 %v4942
        %4944 = vperm.xlu0 %4943, %v4879
        %v4945 = vpop.permute.xlu0 %4944
        %v4946 = vlaneseq
        %v4947 = vshrl.u32 %v4946, 7
        %v4948 = vadd.s32 %v4947, 88
        %4949 = vset.pattern.permute.xlu0 %v4948
        %4950 = vperm.xlu0 %4949, %v4879
        %v4951 = vpop.permute.xlu0 %4950
        %v4952 = vlaneseq
        %v4953 = vshrl.u32 %v4952, 7
        %v4954 = vadd.s32 %v4953, 96
        %4955 = vset.pattern.permute.xlu0 %v4954
        %4956 = vperm.xlu0 %4955, %v4879
        %v4957 = vpop.permute.xlu0 %4956
        %v4958 = vlaneseq
        %v4959 = vshrl.u32 %v4958, 7
        %v4960 = vadd.s32 %v4959, 104
        %4961 = vset.pattern.permute.xlu0 %v4960
        %4962 = vperm.xlu0 %4961, %v4879
        %v4963 = vpop.permute.xlu0 %4962
        %v4964 = vlaneseq
        %v4965 = vshrl.u32 %v4964, 7
        %v4966 = vadd.s32 %v4965, 112
        %4967 = vset.pattern.permute.xlu0 %v4966
        %4968 = vperm.xlu0 %4967, %v4879
        %v4969 = vpop.permute.xlu0 %4968
        %v4970 = vlaneseq
        %v4971 = vshrl.u32 %v4970, 7
        %v4972 = vadd.s32 %v4971, 120
        %4973 = vset.pattern.permute.xlu0 %v4972
        %4974 = vperm.xlu0 %4973, %v4879
        %v4975 = vpop.permute.xlu0 %4974
        %v4976 = vadd.f32 %v4788, %v584
        %v4977 = vadd.f32 %v4794, %v585
        %v4978 = vadd.f32 %v4800, %v586
        %v4979 = vadd.f32 %v4806, %v587
        %v4980 = vadd.f32 %v4812, %v588
        %v4981 = vadd.f32 %v4818, %v589
        %v4982 = vadd.f32 %v4824, %v590
        %v4983 = vadd.f32 %v4830, %v591
        %v4984 = vadd.f32 %v4836, %v592
        %v4985 = vadd.f32 %v4842, %v593
        %v4986 = vadd.f32 %v4848, %v594
        %v4987 = vadd.f32 %v4854, %v595
        %v4988 = vadd.f32 %v4860, %v596
        %v4989 = vadd.f32 %v4866, %v597
        %v4990 = vadd.f32 %v4872, %v598
        %v4991 = vadd.f32 %v4878, %v599
        %v4992 = vadd.f32 %v4885, %v584
        %v4993 = vadd.f32 %v4891, %v585
        %v4994 = vadd.f32 %v4897, %v586
        %v4995 = vadd.f32 %v4903, %v587
        %v4996 = vadd.f32 %v4909, %v588
        %v4997 = vadd.f32 %v4915, %v589
        %v4998 = vadd.f32 %v4921, %v590
        %v4999 = vadd.f32 %v4927, %v591
        %v5000 = vadd.f32 %v4933, %v592
        %v5001 = vadd.f32 %v4939, %v593
        %v5002 = vadd.f32 %v4945, %v594
        %v5003 = vadd.f32 %v4951, %v595
        %v5004 = vadd.f32 %v4957, %v596
        %v5005 = vadd.f32 %v4963, %v597
        %v5006 = vadd.f32 %v4969, %v598
        %v5007 = vadd.f32 %v4975, %v599
        %v5008 = vmax.f32 %v4976, %v4978
        %v5009 = vmax.f32 %v4977, %v4979
        %v5010 = vmax.f32 %v5008, %v4980
        %v5011 = vmax.f32 %v5009, %v4981
        %v5012 = vmax.f32 %v5010, %v4982
        %v5013 = vmax.f32 %v5011, %v4983
        %v5014 = vmax.f32 %v5012, %v4984
        %v5015 = vmax.f32 %v5013, %v4985
        %v5016 = vmax.f32 %v5014, %v4986
        %v5017 = vmax.f32 %v5015, %v4987
        %v5018 = vmax.f32 %v5016, %v4988
        %v5019 = vmax.f32 %v5017, %v4989
        %v5020 = vmax.f32 %v5018, %v4990
        %v5021 = vmax.f32 %v5019, %v4991
        %v5022 = vmax.f32 %v5020, %v5021
        %v5023 = vrot.slane %v5022, 4
        %v5024 = vmax.f32 %v5022, %v5023
        %v5025 = vrot.slane %v5024, 2
        %v5026 = vmax.f32 %v5024, %v5025
        %v5027 = vrot.slane %v5026, 1
        %v5028 = vmax.f32 %v5026, %v5027
        %v5029 = vmax.f32 %v4992, %v4994
        %v5030 = vmax.f32 %v4993, %v4995
        %v5031 = vmax.f32 %v5029, %v4996
        %v5032 = vmax.f32 %v5030, %v4997
        %v5033 = vmax.f32 %v5031, %v4998
        %v5034 = vmax.f32 %v5032, %v4999
        %v5035 = vmax.f32 %v5033, %v5000
        %v5036 = vmax.f32 %v5034, %v5001
        %v5037 = vmax.f32 %v5035, %v5002
        %v5038 = vmax.f32 %v5036, %v5003
        %v5039 = vmax.f32 %v5037, %v5004
        %v5040 = vmax.f32 %v5038, %v5005
        %v5041 = vmax.f32 %v5039, %v5006
        %v5042 = vmax.f32 %v5040, %v5007
        %v5043 = vmax.f32 %v5041, %v5042
        %v5044 = vrot.slane %v5043, 4
        %v5045 = vmax.f32 %v5043, %v5044
        %v5046 = vrot.slane %v5045, 2
        %v5047 = vmax.f32 %v5045, %v5046
        %v5048 = vrot.slane %v5047, 1
        %v5049 = vmax.f32 %v5047, %v5048
        %v5050 = vsub.f32 %v4976, %v5028
        %v5051 = vsub.f32 %v4977, %v5028
        %v5052 = vsub.f32 %v4978, %v5028
        %v5053 = vsub.f32 %v4979, %v5028
        %v5054 = vsub.f32 %v4980, %v5028
        %v5055 = vsub.f32 %v4981, %v5028
        %v5056 = vsub.f32 %v4982, %v5028
        %v5057 = vsub.f32 %v4983, %v5028
        %v5058 = vsub.f32 %v4984, %v5028
        %v5059 = vsub.f32 %v4985, %v5028
        %v5060 = vsub.f32 %v4986, %v5028
        %v5061 = vsub.f32 %v4987, %v5028
        %v5062 = vsub.f32 %v4988, %v5028
        %v5063 = vsub.f32 %v4989, %v5028
        %v5064 = vsub.f32 %v4990, %v5028
        %v5065 = vsub.f32 %v4991, %v5028
        %v5066 = vsub.f32 %v4992, %v5049
        %v5067 = vsub.f32 %v4993, %v5049
        %v5068 = vsub.f32 %v4994, %v5049
        %v5069 = vsub.f32 %v4995, %v5049
        %v5070 = vsub.f32 %v4996, %v5049
        %v5071 = vsub.f32 %v4997, %v5049
        %v5072 = vsub.f32 %v4998, %v5049
        %v5073 = vsub.f32 %v4999, %v5049
        %v5074 = vsub.f32 %v5000, %v5049
        %v5075 = vsub.f32 %v5001, %v5049
        %v5076 = vsub.f32 %v5002, %v5049
        %v5077 = vsub.f32 %v5003, %v5049
        %v5078 = vsub.f32 %v5004, %v5049
        %v5079 = vsub.f32 %v5005, %v5049
        %v5080 = vsub.f32 %v5006, %v5049
        %v5081 = vsub.f32 %v5007, %v5049
        %v5082 = vmul.f32 %v5050, 1.442695
        %v5083 = vpow.pop %v5082
        %v5084 = vmul.f32 %v5051, 1.442695
        %v5085 = vpow.pop %v5084
        %v5086 = vmul.f32 %v5052, 1.442695
        %v5087 = vpow.pop %v5086
        %v5088 = vmul.f32 %v5053, 1.442695
        %v5089 = vpow.pop %v5088
        %v5090 = vmul.f32 %v5054, 1.442695
        %v5091 = vpow.pop %v5090
        %v5092 = vmul.f32 %v5055, 1.442695
        %v5093 = vpow.pop %v5092
        %v5094 = vmul.f32 %v5056, 1.442695
        %v5095 = vpow.pop %v5094
        %v5096 = vmul.f32 %v5057, 1.442695
        %v5097 = vpow.pop %v5096
        %v5098 = vmul.f32 %v5058, 1.442695
        %v5099 = vpow.pop %v5098
        %v5100 = vmul.f32 %v5059, 1.442695
        %v5101 = vpow.pop %v5100
        %v5102 = vmul.f32 %v5060, 1.442695
        %v5103 = vpow.pop %v5102
        %v5104 = vmul.f32 %v5061, 1.442695
        %v5105 = vpow.pop %v5104
        %v5106 = vmul.f32 %v5062, 1.442695
        %v5107 = vpow.pop %v5106
        %v5108 = vmul.f32 %v5063, 1.442695
        %v5109 = vpow.pop %v5108
        %v5110 = vmul.f32 %v5064, 1.442695
        %v5111 = vpow.pop %v5110
        %v5112 = vmul.f32 %v5065, 1.442695
        %v5113 = vpow.pop %v5112
        %v5114 = vmul.f32 %v5066, 1.442695
        %v5115 = vpow.pop %v5114
        %v5116 = vmul.f32 %v5067, 1.442695
        %v5117 = vpow.pop %v5116
        %v5118 = vmul.f32 %v5068, 1.442695
        %v5119 = vpow.pop %v5118
        %v5120 = vmul.f32 %v5069, 1.442695
        %v5121 = vpow.pop %v5120
        %v5122 = vmul.f32 %v5070, 1.442695
        %v5123 = vpow.pop %v5122
        %v5124 = vmul.f32 %v5071, 1.442695
        %v5125 = vpow.pop %v5124
        %v5126 = vmul.f32 %v5072, 1.442695
        %v5127 = vpow.pop %v5126
        %v5128 = vmul.f32 %v5073, 1.442695
        %v5129 = vpow.pop %v5128
        %v5130 = vmul.f32 %v5074, 1.442695
        %v5131 = vpow.pop %v5130
        %v5132 = vmul.f32 %v5075, 1.442695
        %v5133 = vpow.pop %v5132
        %v5134 = vmul.f32 %v5076, 1.442695
        %v5135 = vpow.pop %v5134
        %v5136 = vmul.f32 %v5077, 1.442695
        %v5137 = vpow.pop %v5136
        %v5138 = vmul.f32 %v5078, 1.442695
        %v5139 = vpow.pop %v5138
        %v5140 = vmul.f32 %v5079, 1.442695
        %v5141 = vpow.pop %v5140
        %v5142 = vmul.f32 %v5080, 1.442695
        %v5143 = vpow.pop %v5142
        %v5144 = vmul.f32 %v5081, 1.442695
        %v5145 = vpow.pop %v5144
        %v5146 = vadd.f32 %v5083, %v5085
        %v5147 = vadd.f32 %v5146, %v5087
        %v5148 = vadd.f32 %v5147, %v5089
        %v5149 = vadd.f32 %v5148, %v5091
        %v5150 = vadd.f32 %v5149, %v5093
        %v5151 = vadd.f32 %v5150, %v5095
        %v5152 = vadd.f32 %v5151, %v5097
        %v5153 = vadd.f32 %v5152, %v5099
        %v5154 = vadd.f32 %v5153, %v5101
        %v5155 = vadd.f32 %v5154, %v5103
        %v5156 = vadd.f32 %v5155, %v5105
        %v5157 = vadd.f32 %v5156, %v5107
        %v5158 = vadd.f32 %v5157, %v5109
        %v5159 = vadd.f32 %v5158, %v5111
        %v5160 = vadd.f32 %v5159, %v5113
        %v5161 = vrot.slane %v5160, 4
        %v5162 = vadd.f32 %v5160, %v5161
        %v5163 = vrot.slane %v5162, 2
        %v5164 = vadd.f32 %v5162, %v5163
        %v5165 = vrot.slane %v5164, 1
        %v5166 = vadd.f32 %v5164, %v5165
        %v5167 = vadd.f32 %v5115, %v5117
        %v5168 = vadd.f32 %v5167, %v5119
        %v5169 = vadd.f32 %v5168, %v5121
        %v5170 = vadd.f32 %v5169, %v5123
        %v5171 = vadd.f32 %v5170, %v5125
        %v5172 = vadd.f32 %v5171, %v5127
        %v5173 = vadd.f32 %v5172, %v5129
        %v5174 = vadd.f32 %v5173, %v5131
        %v5175 = vadd.f32 %v5174, %v5133
        %v5176 = vadd.f32 %v5175, %v5135
        %v5177 = vadd.f32 %v5176, %v5137
        %v5178 = vadd.f32 %v5177, %v5139
        %v5179 = vadd.f32 %v5178, %v5141
        %v5180 = vadd.f32 %v5179, %v5143
        %v5181 = vadd.f32 %v5180, %v5145
        %v5182 = vrot.slane %v5181, 4
        %v5183 = vadd.f32 %v5181, %v5182
        %v5184 = vrot.slane %v5183, 2
        %v5185 = vadd.f32 %v5183, %v5184
        %v5186 = vrot.slane %v5185, 1
        %v5187 = vadd.f32 %v5185, %v5186
        %v5188 = vlog2.pop %v5166
        %v5189 = vmul.f32 %v5188, 0.6931472
        %v5190 = vlog2.pop %v5187
        %v5191 = vmul.f32 %v5190, 0.6931472
        %v5192 = vadd.f32 %v5028, %v5189
        %v5193 = vadd.f32 %v5049, %v5191
        %v5194 = vadd.f32 %v5192, %v658
        %v5195 = vadd.f32 %v5193, %v660
        %v5196 = vperm.slane %v4781, 0
        %v5197 = vlaneseq
        %v5198 = vshrl.u32 %v5197, 7
        %5200 = vset.pattern.permute.xlu0 %v5198
        %5201 = vperm.xlu0 %5200, %v5196
        %v5202 = vpop.permute.xlu0 %5201
        %v5203 = vlaneseq
        %v5204 = vshrl.u32 %v5203, 7
        %v5205 = vadd.s32 %v5204, 8
        %5206 = vset.pattern.permute.xlu0 %v5205
        %5207 = vperm.xlu0 %5206, %v5196
        %v5208 = vpop.permute.xlu0 %5207
        %v5209 = vlaneseq
        %v5210 = vshrl.u32 %v5209, 7
        %v5211 = vadd.s32 %v5210, 16
        %5212 = vset.pattern.permute.xlu0 %v5211
        %5213 = vperm.xlu0 %5212, %v5196
        %v5214 = vpop.permute.xlu0 %5213
        %v5215 = vlaneseq
        %v5216 = vshrl.u32 %v5215, 7
        %v5217 = vadd.s32 %v5216, 24
        %5218 = vset.pattern.permute.xlu0 %v5217
        %5219 = vperm.xlu0 %5218, %v5196
        %v5220 = vpop.permute.xlu0 %5219
        %v5221 = vlaneseq
        %v5222 = vshrl.u32 %v5221, 7
        %v5223 = vadd.s32 %v5222, 32
        %5224 = vset.pattern.permute.xlu0 %v5223
        %5225 = vperm.xlu0 %5224, %v5196
        %v5226 = vpop.permute.xlu0 %5225
        %v5227 = vlaneseq
        %v5228 = vshrl.u32 %v5227, 7
        %v5229 = vadd.s32 %v5228, 40
        %5230 = vset.pattern.permute.xlu0 %v5229
        %5231 = vperm.xlu0 %5230, %v5196
        %v5232 = vpop.permute.xlu0 %5231
        %v5233 = vlaneseq
        %v5234 = vshrl.u32 %v5233, 7
        %v5235 = vadd.s32 %v5234, 48
        %5236 = vset.pattern.permute.xlu0 %v5235
        %5237 = vperm.xlu0 %5236, %v5196
        %v5238 = vpop.permute.xlu0 %5237
        %v5239 = vlaneseq
        %v5240 = vshrl.u32 %v5239, 7
        %v5241 = vadd.s32 %v5240, 56
        %5242 = vset.pattern.permute.xlu0 %v5241
        %5243 = vperm.xlu0 %5242, %v5196
        %v5244 = vpop.permute.xlu0 %5243
        %v5245 = vlaneseq
        %v5246 = vshrl.u32 %v5245, 7
        %v5247 = vadd.s32 %v5246, 64
        %5248 = vset.pattern.permute.xlu0 %v5247
        %5249 = vperm.xlu0 %5248, %v5196
        %v5250 = vpop.permute.xlu0 %5249
        %v5251 = vlaneseq
        %v5252 = vshrl.u32 %v5251, 7
        %v5253 = vadd.s32 %v5252, 72
        %5254 = vset.pattern.permute.xlu0 %v5253
        %5255 = vperm.xlu0 %5254, %v5196
        %v5256 = vpop.permute.xlu0 %5255
        %v5257 = vlaneseq
        %v5258 = vshrl.u32 %v5257, 7
        %v5259 = vadd.s32 %v5258, 80
        %5260 = vset.pattern.permute.xlu0 %v5259
        %5261 = vperm.xlu0 %5260, %v5196
        %v5262 = vpop.permute.xlu0 %5261
        %v5263 = vlaneseq
        %v5264 = vshrl.u32 %v5263, 7
        %v5265 = vadd.s32 %v5264, 88
        %5266 = vset.pattern.permute.xlu0 %v5265
        %5267 = vperm.xlu0 %5266, %v5196
        %v5268 = vpop.permute.xlu0 %5267
        %v5269 = vlaneseq
        %v5270 = vshrl.u32 %v5269, 7
        %v5271 = vadd.s32 %v5270, 96
        %5272 = vset.pattern.permute.xlu0 %v5271
        %5273 = vperm.xlu0 %5272, %v5196
        %v5274 = vpop.permute.xlu0 %5273
        %v5275 = vlaneseq
        %v5276 = vshrl.u32 %v5275, 7
        %v5277 = vadd.s32 %v5276, 104
        %5278 = vset.pattern.permute.xlu0 %v5277
        %5279 = vperm.xlu0 %5278, %v5196
        %v5280 = vpop.permute.xlu0 %5279
        %v5281 = vlaneseq
        %v5282 = vshrl.u32 %v5281, 7
        %v5283 = vadd.s32 %v5282, 112
        %5284 = vset.pattern.permute.xlu0 %v5283
        %5285 = vperm.xlu0 %5284, %v5196
        %v5286 = vpop.permute.xlu0 %5285
        %v5287 = vlaneseq
        %v5288 = vshrl.u32 %v5287, 7
        %v5289 = vadd.s32 %v5288, 120
        %5290 = vset.pattern.permute.xlu0 %v5289
        %5291 = vperm.xlu0 %5290, %v5196
        %v5292 = vpop.permute.xlu0 %5291
        %v5293 = vperm.slane %v4781, 1
        %v5294 = vlaneseq
        %v5295 = vshrl.u32 %v5294, 7
        %5297 = vset.pattern.permute.xlu0 %v5295
        %5298 = vperm.xlu0 %5297, %v5293
        %v5299 = vpop.permute.xlu0 %5298
        %v5300 = vlaneseq
        %v5301 = vshrl.u32 %v5300, 7
        %v5302 = vadd.s32 %v5301, 8
        %5303 = vset.pattern.permute.xlu0 %v5302
        %5304 = vperm.xlu0 %5303, %v5293
        %v5305 = vpop.permute.xlu0 %5304
        %v5306 = vlaneseq
        %v5307 = vshrl.u32 %v5306, 7
        %v5308 = vadd.s32 %v5307, 16
        %5309 = vset.pattern.permute.xlu0 %v5308
        %5310 = vperm.xlu0 %5309, %v5293
        %v5311 = vpop.permute.xlu0 %5310
        %v5312 = vlaneseq
        %v5313 = vshrl.u32 %v5312, 7
        %v5314 = vadd.s32 %v5313, 24
        %5315 = vset.pattern.permute.xlu0 %v5314
        %5316 = vperm.xlu0 %5315, %v5293
        %v5317 = vpop.permute.xlu0 %5316
        %v5318 = vlaneseq
        %v5319 = vshrl.u32 %v5318, 7
        %v5320 = vadd.s32 %v5319, 32
        %5321 = vset.pattern.permute.xlu0 %v5320
        %5322 = vperm.xlu0 %5321, %v5293
        %v5323 = vpop.permute.xlu0 %5322
        %v5324 = vlaneseq
        %v5325 = vshrl.u32 %v5324, 7
        %v5326 = vadd.s32 %v5325, 40
        %5327 = vset.pattern.permute.xlu0 %v5326
        %5328 = vperm.xlu0 %5327, %v5293
        %v5329 = vpop.permute.xlu0 %5328
        %v5330 = vlaneseq
        %v5331 = vshrl.u32 %v5330, 7
        %v5332 = vadd.s32 %v5331, 48
        %5333 = vset.pattern.permute.xlu0 %v5332
        %5334 = vperm.xlu0 %5333, %v5293
        %v5335 = vpop.permute.xlu0 %5334
        %v5336 = vlaneseq
        %v5337 = vshrl.u32 %v5336, 7
        %v5338 = vadd.s32 %v5337, 56
        %5339 = vset.pattern.permute.xlu0 %v5338
        %5340 = vperm.xlu0 %5339, %v5293
        %v5341 = vpop.permute.xlu0 %5340
        %v5342 = vlaneseq
        %v5343 = vshrl.u32 %v5342, 7
        %v5344 = vadd.s32 %v5343, 64
        %5345 = vset.pattern.permute.xlu0 %v5344
        %5346 = vperm.xlu0 %5345, %v5293
        %v5347 = vpop.permute.xlu0 %5346
        %v5348 = vlaneseq
        %v5349 = vshrl.u32 %v5348, 7
        %v5350 = vadd.s32 %v5349, 72
        %5351 = vset.pattern.permute.xlu0 %v5350
        %5352 = vperm.xlu0 %5351, %v5293
        %v5353 = vpop.permute.xlu0 %5352
        %v5354 = vlaneseq
        %v5355 = vshrl.u32 %v5354, 7
        %v5356 = vadd.s32 %v5355, 80
        %5357 = vset.pattern.permute.xlu0 %v5356
        %5358 = vperm.xlu0 %5357, %v5293
        %v5359 = vpop.permute.xlu0 %5358
        %v5360 = vlaneseq
        %v5361 = vshrl.u32 %v5360, 7
        %v5362 = vadd.s32 %v5361, 88
        %5363 = vset.pattern.permute.xlu0 %v5362
        %5364 = vperm.xlu0 %5363, %v5293
        %v5365 = vpop.permute.xlu0 %5364
        %v5366 = vlaneseq
        %v5367 = vshrl.u32 %v5366, 7
        %v5368 = vadd.s32 %v5367, 96
        %5369 = vset.pattern.permute.xlu0 %v5368
        %5370 = vperm.xlu0 %5369, %v5293
        %v5371 = vpop.permute.xlu0 %5370
        %v5372 = vlaneseq
        %v5373 = vshrl.u32 %v5372, 7
        %v5374 = vadd.s32 %v5373, 104
        %5375 = vset.pattern.permute.xlu0 %v5374
        %5376 = vperm.xlu0 %5375, %v5293
        %v5377 = vpop.permute.xlu0 %5376
        %v5378 = vlaneseq
        %v5379 = vshrl.u32 %v5378, 7
        %v5380 = vadd.s32 %v5379, 112
        %5381 = vset.pattern.permute.xlu0 %v5380
        %5382 = vperm.xlu0 %5381, %v5293
        %v5383 = vpop.permute.xlu0 %5382
        %v5384 = vlaneseq
        %v5385 = vshrl.u32 %v5384, 7
        %v5386 = vadd.s32 %v5385, 120
        %5387 = vset.pattern.permute.xlu0 %v5386
        %5388 = vperm.xlu0 %5387, %v5293
        %v5389 = vpop.permute.xlu0 %5388
        %v5390 = vadd.f32 %v5202, %v584
        %v5391 = vadd.f32 %v5208, %v585
        %v5392 = vadd.f32 %v5214, %v586
        %v5393 = vadd.f32 %v5220, %v587
        %v5394 = vadd.f32 %v5226, %v588
        %v5395 = vadd.f32 %v5232, %v589
        %v5396 = vadd.f32 %v5238, %v590
        %v5397 = vadd.f32 %v5244, %v591
        %v5398 = vadd.f32 %v5250, %v592
        %v5399 = vadd.f32 %v5256, %v593
        %v5400 = vadd.f32 %v5262, %v594
        %v5401 = vadd.f32 %v5268, %v595
        %v5402 = vadd.f32 %v5274, %v596
        %v5403 = vadd.f32 %v5280, %v597
        %v5404 = vadd.f32 %v5286, %v598
        %v5405 = vadd.f32 %v5292, %v599
        %v5406 = vadd.f32 %v5299, %v584
        %v5407 = vadd.f32 %v5305, %v585
        %v5408 = vadd.f32 %v5311, %v586
        %v5409 = vadd.f32 %v5317, %v587
        %v5410 = vadd.f32 %v5323, %v588
        %v5411 = vadd.f32 %v5329, %v589
        %v5412 = vadd.f32 %v5335, %v590
        %v5413 = vadd.f32 %v5341, %v591
        %v5414 = vadd.f32 %v5347, %v592
        %v5415 = vadd.f32 %v5353, %v593
        %v5416 = vadd.f32 %v5359, %v594
        %v5417 = vadd.f32 %v5365, %v595
        %v5418 = vadd.f32 %v5371, %v596
        %v5419 = vadd.f32 %v5377, %v597
        %v5420 = vadd.f32 %v5383, %v598
        %v5421 = vadd.f32 %v5389, %v599
        %v5422 = vmax.f32 %v5390, %v5392
        %v5423 = vmax.f32 %v5391, %v5393
        %v5424 = vmax.f32 %v5422, %v5394
        %v5425 = vmax.f32 %v5423, %v5395
        %v5426 = vmax.f32 %v5424, %v5396
        %v5427 = vmax.f32 %v5425, %v5397
        %v5428 = vmax.f32 %v5426, %v5398
        %v5429 = vmax.f32 %v5427, %v5399
        %v5430 = vmax.f32 %v5428, %v5400
        %v5431 = vmax.f32 %v5429, %v5401
        %v5432 = vmax.f32 %v5430, %v5402
        %v5433 = vmax.f32 %v5431, %v5403
        %v5434 = vmax.f32 %v5432, %v5404
        %v5435 = vmax.f32 %v5433, %v5405
        %v5436 = vmax.f32 %v5434, %v5435
        %v5437 = vrot.slane %v5436, 4
        %v5438 = vmax.f32 %v5436, %v5437
        %v5439 = vrot.slane %v5438, 2
        %v5440 = vmax.f32 %v5438, %v5439
        %v5441 = vrot.slane %v5440, 1
        %v5442 = vmax.f32 %v5440, %v5441
        %v5443 = vmax.f32 %v5406, %v5408
        %v5444 = vmax.f32 %v5407, %v5409
        %v5445 = vmax.f32 %v5443, %v5410
        %v5446 = vmax.f32 %v5444, %v5411
        %v5447 = vmax.f32 %v5445, %v5412
        %v5448 = vmax.f32 %v5446, %v5413
        %v5449 = vmax.f32 %v5447, %v5414
        %v5450 = vmax.f32 %v5448, %v5415
        %v5451 = vmax.f32 %v5449, %v5416
        %v5452 = vmax.f32 %v5450, %v5417
        %v5453 = vmax.f32 %v5451, %v5418
        %v5454 = vmax.f32 %v5452, %v5419
        %v5455 = vmax.f32 %v5453, %v5420
        %v5456 = vmax.f32 %v5454, %v5421
        %v5457 = vmax.f32 %v5455, %v5456
        %v5458 = vrot.slane %v5457, 4
        %v5459 = vmax.f32 %v5457, %v5458
        %v5460 = vrot.slane %v5459, 2
        %v5461 = vmax.f32 %v5459, %v5460
        %v5462 = vrot.slane %v5461, 1
        %v5463 = vmax.f32 %v5461, %v5462
        %vm5464 = vcmp.eq.f32.partialorder %v5390, %v5442
        %vm5465 = vcmp.eq.f32.partialorder %v5391, %v5442
        %vm5466 = vcmp.eq.f32.partialorder %v5392, %v5442
        %vm5467 = vcmp.eq.f32.partialorder %v5393, %v5442
        %vm5468 = vcmp.eq.f32.partialorder %v5394, %v5442
        %vm5469 = vcmp.eq.f32.partialorder %v5395, %v5442
        %vm5470 = vcmp.eq.f32.partialorder %v5396, %v5442
        %vm5471 = vcmp.eq.f32.partialorder %v5397, %v5442
        %vm5472 = vcmp.eq.f32.partialorder %v5398, %v5442
        %vm5473 = vcmp.eq.f32.partialorder %v5399, %v5442
        %vm5474 = vcmp.eq.f32.partialorder %v5400, %v5442
        %vm5475 = vcmp.eq.f32.partialorder %v5401, %v5442
        %vm5476 = vcmp.eq.f32.partialorder %v5402, %v5442
        %vm5477 = vcmp.eq.f32.partialorder %v5403, %v5442
        %vm5478 = vcmp.eq.f32.partialorder %v5404, %v5442
        %vm5479 = vcmp.eq.f32.partialorder %v5405, %v5442
        %vm5480 = vcmp.eq.f32.partialorder %v5406, %v5463
        %vm5481 = vcmp.eq.f32.partialorder %v5407, %v5463
        %vm5482 = vcmp.eq.f32.partialorder %v5408, %v5463
        %vm5483 = vcmp.eq.f32.partialorder %v5409, %v5463
        %vm5484 = vcmp.eq.f32.partialorder %v5410, %v5463
        %vm5485 = vcmp.eq.f32.partialorder %v5411, %v5463
        %vm5486 = vcmp.eq.f32.partialorder %v5412, %v5463
        %vm5487 = vcmp.eq.f32.partialorder %v5413, %v5463
        %vm5488 = vcmp.eq.f32.partialorder %v5414, %v5463
        %vm5489 = vcmp.eq.f32.partialorder %v5415, %v5463
        %vm5490 = vcmp.eq.f32.partialorder %v5416, %v5463
        %vm5491 = vcmp.eq.f32.partialorder %v5417, %v5463
        %vm5492 = vcmp.eq.f32.partialorder %v5418, %v5463
        %vm5493 = vcmp.eq.f32.partialorder %v5419, %v5463
        %vm5494 = vcmp.eq.f32.partialorder %v5420, %v5463
        %vm5495 = vcmp.eq.f32.partialorder %v5421, %v5463
        %v5496 = vsel %vm5464, %v620, 128
        %v5497 = vsel %vm5465, %v621, 128
        %v5498 = vsel %vm5466, %v622, 128
        %v5499 = vsel %vm5467, %v623, 128
        %v5500 = vsel %vm5468, %v624, 128
        %v5501 = vsel %vm5469, %v625, 128
        %v5502 = vsel %vm5470, %v626, 128
        %v5503 = vsel %vm5471, %v627, 128
        %v5504 = vsel %vm5472, %v628, 128
        %v5505 = vsel %vm5473, %v629, 128
        %v5506 = vsel %vm5474, %v630, 128
        %v5507 = vsel %vm5475, %v631, 128
        %v5508 = vsel %vm5476, %v632, 128
        %v5509 = vsel %vm5477, %v633, 128
        %v5510 = vsel %vm5478, %v634, 128
        %v5511 = vsel %vm5479, %v635, 128
        %v5512 = vsel %vm5480, %v620, 128
        %v5513 = vsel %vm5481, %v621, 128
        %v5514 = vsel %vm5482, %v622, 128
        %v5515 = vsel %vm5483, %v623, 128
        %v5516 = vsel %vm5484, %v624, 128
        %v5517 = vsel %vm5485, %v625, 128
        %v5518 = vsel %vm5486, %v626, 128
        %v5519 = vsel %vm5487, %v627, 128
        %v5520 = vsel %vm5488, %v628, 128
        %v5521 = vsel %vm5489, %v629, 128
        %v5522 = vsel %vm5490, %v630, 128
        %v5523 = vsel %vm5491, %v631, 128
        %v5524 = vsel %vm5492, %v632, 128
        %v5525 = vsel %vm5493, %v633, 128
        %v5526 = vsel %vm5494, %v634, 128
        %v5527 = vsel %vm5495, %v635, 128
        %vm5528 = vcmp.lt.s32.totalorder %v5496, %v5498
        %v5529 = vsel %vm5528, %v5496, %v5498
        %vm5530 = vcmp.lt.s32.totalorder %v5497, %v5499
        %v5531 = vsel %vm5530, %v5497, %v5499
        %vm5532 = vcmp.lt.s32.totalorder %v5529, %v5500
        %v5533 = vsel %vm5532, %v5529, %v5500
        %vm5534 = vcmp.lt.s32.totalorder %v5531, %v5501
        %v5535 = vsel %vm5534, %v5531, %v5501
        %vm5536 = vcmp.lt.s32.totalorder %v5533, %v5502
        %v5537 = vsel %vm5536, %v5533, %v5502
        %vm5538 = vcmp.lt.s32.totalorder %v5535, %v5503
        %v5539 = vsel %vm5538, %v5535, %v5503
        %vm5540 = vcmp.lt.s32.totalorder %v5537, %v5504
        %v5541 = vsel %vm5540, %v5537, %v5504
        %vm5542 = vcmp.lt.s32.totalorder %v5539, %v5505
        %v5543 = vsel %vm5542, %v5539, %v5505
        %vm5544 = vcmp.lt.s32.totalorder %v5541, %v5506
        %v5545 = vsel %vm5544, %v5541, %v5506
        %vm5546 = vcmp.lt.s32.totalorder %v5543, %v5507
        %v5547 = vsel %vm5546, %v5543, %v5507
        %vm5548 = vcmp.lt.s32.totalorder %v5545, %v5508
        %v5549 = vsel %vm5548, %v5545, %v5508
        %vm5550 = vcmp.lt.s32.totalorder %v5547, %v5509
        %v5551 = vsel %vm5550, %v5547, %v5509
        %vm5552 = vcmp.lt.s32.totalorder %v5549, %v5510
        %v5553 = vsel %vm5552, %v5549, %v5510
        %vm5554 = vcmp.lt.s32.totalorder %v5551, %v5511
        %v5555 = vsel %vm5554, %v5551, %v5511
        %vm5556 = vcmp.lt.s32.totalorder %v5553, %v5555
        %v5557 = vsel %vm5556, %v5553, %v5555
        %v5558 = vrot.slane %v5557, 4
        %vm5559 = vcmp.lt.s32.totalorder %v5557, %v5558
        %v5560 = vsel %vm5559, %v5557, %v5558
        %v5561 = vrot.slane %v5560, 2
        %vm5562 = vcmp.lt.s32.totalorder %v5560, %v5561
        %v5563 = vsel %vm5562, %v5560, %v5561
        %v5564 = vrot.slane %v5563, 1
        %vm5565 = vcmp.lt.s32.totalorder %v5563, %v5564
        %v5566 = vsel %vm5565, %v5563, %v5564
        %vm5567 = vcmp.lt.s32.totalorder %v5512, %v5514
        %v5568 = vsel %vm5567, %v5512, %v5514
        %vm5569 = vcmp.lt.s32.totalorder %v5513, %v5515
        %v5570 = vsel %vm5569, %v5513, %v5515
        %vm5571 = vcmp.lt.s32.totalorder %v5568, %v5516
        %v5572 = vsel %vm5571, %v5568, %v5516
        %vm5573 = vcmp.lt.s32.totalorder %v5570, %v5517
        %v5574 = vsel %vm5573, %v5570, %v5517
        %vm5575 = vcmp.lt.s32.totalorder %v5572, %v5518
        %v5576 = vsel %vm5575, %v5572, %v5518
        %vm5577 = vcmp.lt.s32.totalorder %v5574, %v5519
        %v5578 = vsel %vm5577, %v5574, %v5519
        %vm5579 = vcmp.lt.s32.totalorder %v5576, %v5520
        %v5580 = vsel %vm5579, %v5576, %v5520
        %vm5581 = vcmp.lt.s32.totalorder %v5578, %v5521
        %v5582 = vsel %vm5581, %v5578, %v5521
        %vm5583 = vcmp.lt.s32.totalorder %v5580, %v5522
        %v5584 = vsel %vm5583, %v5580, %v5522
        %vm5585 = vcmp.lt.s32.totalorder %v5582, %v5523
        %v5586 = vsel %vm5585, %v5582, %v5523
        %vm5587 = vcmp.lt.s32.totalorder %v5584, %v5524
        %v5588 = vsel %vm5587, %v5584, %v5524
        %vm5589 = vcmp.lt.s32.totalorder %v5586, %v5525
        %v5590 = vsel %vm5589, %v5586, %v5525
        %vm5591 = vcmp.lt.s32.totalorder %v5588, %v5526
        %v5592 = vsel %vm5591, %v5588, %v5526
        %vm5593 = vcmp.lt.s32.totalorder %v5590, %v5527
        %v5594 = vsel %vm5593, %v5590, %v5527
        %vm5595 = vcmp.lt.s32.totalorder %v5592, %v5594
        %v5596 = vsel %vm5595, %v5592, %v5594
        %v5597 = vrot.slane %v5596, 4
        %vm5598 = vcmp.lt.s32.totalorder %v5596, %v5597
        %v5599 = vsel %vm5598, %v5596, %v5597
        %v5600 = vrot.slane %v5599, 2
        %vm5601 = vcmp.lt.s32.totalorder %v5599, %v5600
        %v5602 = vsel %vm5601, %v5599, %v5600
        %v5603 = vrot.slane %v5602, 1
        %vm5604 = vcmp.lt.s32.totalorder %v5602, %v5603
        %v5605 = vsel %vm5604, %v5602, %v5603
        %v5606 = vadd.f32 %v5442, %v658
        %v5607 = vadd.f32 %v5463, %v660
        %vm5608 = vcmp.gt.s32.totalorder %v618, 6
        %v5609 = vsel %vm5608, 1, 0
        %vm5610 = vcmp.eq.s32.totalorder %v5609, 1
        %v5613 = vrot.slane %v5194, 6
        %v5614 = vrot.slane %v5195, 5
        %v5615 = vsel %vm717, %v5614, %v5613
        %v5617 = vsel %vm5610, %v5615, %v4774
        %v5620 = vrot.slane %v5606, 6
        %v5621 = vrot.slane %v5607, 5
        %v5622 = vsel %vm717, %v5621, %v5620
        %v5624 = vsel %vm5610, %v5622, %v4781
        %v5625 = vperm.slane %v5617, 0
        %v5626 = vlaneseq
        %v5627 = vshrl.u32 %v5626, 7
        %5629 = vset.pattern.permute.xlu0 %v5627
        %5630 = vperm.xlu0 %5629, %v5625
        %v5631 = vpop.permute.xlu0 %5630
        %v5632 = vlaneseq
        %v5633 = vshrl.u32 %v5632, 7
        %v5634 = vadd.s32 %v5633, 8
        %5635 = vset.pattern.permute.xlu0 %v5634
        %5636 = vperm.xlu0 %5635, %v5625
        %v5637 = vpop.permute.xlu0 %5636
        %v5638 = vlaneseq
        %v5639 = vshrl.u32 %v5638, 7
        %v5640 = vadd.s32 %v5639, 16
        %5641 = vset.pattern.permute.xlu0 %v5640
        %5642 = vperm.xlu0 %5641, %v5625
        %v5643 = vpop.permute.xlu0 %5642
        %v5644 = vlaneseq
        %v5645 = vshrl.u32 %v5644, 7
        %v5646 = vadd.s32 %v5645, 24
        %5647 = vset.pattern.permute.xlu0 %v5646
        %5648 = vperm.xlu0 %5647, %v5625
        %v5649 = vpop.permute.xlu0 %5648
        %v5650 = vlaneseq
        %v5651 = vshrl.u32 %v5650, 7
        %v5652 = vadd.s32 %v5651, 32
        %5653 = vset.pattern.permute.xlu0 %v5652
        %5654 = vperm.xlu0 %5653, %v5625
        %v5655 = vpop.permute.xlu0 %5654
        %v5656 = vlaneseq
        %v5657 = vshrl.u32 %v5656, 7
        %v5658 = vadd.s32 %v5657, 40
        %5659 = vset.pattern.permute.xlu0 %v5658
        %5660 = vperm.xlu0 %5659, %v5625
        %v5661 = vpop.permute.xlu0 %5660
        %v5662 = vlaneseq
        %v5663 = vshrl.u32 %v5662, 7
        %v5664 = vadd.s32 %v5663, 48
        %5665 = vset.pattern.permute.xlu0 %v5664
        %5666 = vperm.xlu0 %5665, %v5625
        %v5667 = vpop.permute.xlu0 %5666
        %v5668 = vlaneseq
        %v5669 = vshrl.u32 %v5668, 7
        %v5670 = vadd.s32 %v5669, 56
        %5671 = vset.pattern.permute.xlu0 %v5670
        %5672 = vperm.xlu0 %5671, %v5625
        %v5673 = vpop.permute.xlu0 %5672
        %v5674 = vlaneseq
        %v5675 = vshrl.u32 %v5674, 7
        %v5676 = vadd.s32 %v5675, 64
        %5677 = vset.pattern.permute.xlu0 %v5676
        %5678 = vperm.xlu0 %5677, %v5625
        %v5679 = vpop.permute.xlu0 %5678
        %v5680 = vlaneseq
        %v5681 = vshrl.u32 %v5680, 7
        %v5682 = vadd.s32 %v5681, 72
        %5683 = vset.pattern.permute.xlu0 %v5682
        %5684 = vperm.xlu0 %5683, %v5625
        %v5685 = vpop.permute.xlu0 %5684
        %v5686 = vlaneseq
        %v5687 = vshrl.u32 %v5686, 7
        %v5688 = vadd.s32 %v5687, 80
        %5689 = vset.pattern.permute.xlu0 %v5688
        %5690 = vperm.xlu0 %5689, %v5625
        %v5691 = vpop.permute.xlu0 %5690
        %v5692 = vlaneseq
        %v5693 = vshrl.u32 %v5692, 7
        %v5694 = vadd.s32 %v5693, 88
        %5695 = vset.pattern.permute.xlu0 %v5694
        %5696 = vperm.xlu0 %5695, %v5625
        %v5697 = vpop.permute.xlu0 %5696
        %v5698 = vlaneseq
        %v5699 = vshrl.u32 %v5698, 7
        %v5700 = vadd.s32 %v5699, 96
        %5701 = vset.pattern.permute.xlu0 %v5700
        %5702 = vperm.xlu0 %5701, %v5625
        %v5703 = vpop.permute.xlu0 %5702
        %v5704 = vlaneseq
        %v5705 = vshrl.u32 %v5704, 7
        %v5706 = vadd.s32 %v5705, 104
        %5707 = vset.pattern.permute.xlu0 %v5706
        %5708 = vperm.xlu0 %5707, %v5625
        %v5709 = vpop.permute.xlu0 %5708
        %v5710 = vlaneseq
        %v5711 = vshrl.u32 %v5710, 7
        %v5712 = vadd.s32 %v5711, 112
        %5713 = vset.pattern.permute.xlu0 %v5712
        %5714 = vperm.xlu0 %5713, %v5625
        %v5715 = vpop.permute.xlu0 %5714
        %v5716 = vlaneseq
        %v5717 = vshrl.u32 %v5716, 7
        %v5718 = vadd.s32 %v5717, 120
        %5719 = vset.pattern.permute.xlu0 %v5718
        %5720 = vperm.xlu0 %5719, %v5625
        %v5721 = vpop.permute.xlu0 %5720
        %v5722 = vperm.slane %v5617, 1
        %v5723 = vlaneseq
        %v5724 = vshrl.u32 %v5723, 7
        %5726 = vset.pattern.permute.xlu0 %v5724
        %5727 = vperm.xlu0 %5726, %v5722
        %v5728 = vpop.permute.xlu0 %5727
        %v5729 = vlaneseq
        %v5730 = vshrl.u32 %v5729, 7
        %v5731 = vadd.s32 %v5730, 8
        %5732 = vset.pattern.permute.xlu0 %v5731
        %5733 = vperm.xlu0 %5732, %v5722
        %v5734 = vpop.permute.xlu0 %5733
        %v5735 = vlaneseq
        %v5736 = vshrl.u32 %v5735, 7
        %v5737 = vadd.s32 %v5736, 16
        %5738 = vset.pattern.permute.xlu0 %v5737
        %5739 = vperm.xlu0 %5738, %v5722
        %v5740 = vpop.permute.xlu0 %5739
        %v5741 = vlaneseq
        %v5742 = vshrl.u32 %v5741, 7
        %v5743 = vadd.s32 %v5742, 24
        %5744 = vset.pattern.permute.xlu0 %v5743
        %5745 = vperm.xlu0 %5744, %v5722
        %v5746 = vpop.permute.xlu0 %5745
        %v5747 = vlaneseq
        %v5748 = vshrl.u32 %v5747, 7
        %v5749 = vadd.s32 %v5748, 32
        %5750 = vset.pattern.permute.xlu0 %v5749
        %5751 = vperm.xlu0 %5750, %v5722
        %v5752 = vpop.permute.xlu0 %5751
        %v5753 = vlaneseq
        %v5754 = vshrl.u32 %v5753, 7
        %v5755 = vadd.s32 %v5754, 40
        %5756 = vset.pattern.permute.xlu0 %v5755
        %5757 = vperm.xlu0 %5756, %v5722
        %v5758 = vpop.permute.xlu0 %5757
        %v5759 = vlaneseq
        %v5760 = vshrl.u32 %v5759, 7
        %v5761 = vadd.s32 %v5760, 48
        %5762 = vset.pattern.permute.xlu0 %v5761
        %5763 = vperm.xlu0 %5762, %v5722
        %v5764 = vpop.permute.xlu0 %5763
        %v5765 = vlaneseq
        %v5766 = vshrl.u32 %v5765, 7
        %v5767 = vadd.s32 %v5766, 56
        %5768 = vset.pattern.permute.xlu0 %v5767
        %5769 = vperm.xlu0 %5768, %v5722
        %v5770 = vpop.permute.xlu0 %5769
        %v5771 = vlaneseq
        %v5772 = vshrl.u32 %v5771, 7
        %v5773 = vadd.s32 %v5772, 64
        %5774 = vset.pattern.permute.xlu0 %v5773
        %5775 = vperm.xlu0 %5774, %v5722
        %v5776 = vpop.permute.xlu0 %5775
        %v5777 = vlaneseq
        %v5778 = vshrl.u32 %v5777, 7
        %v5779 = vadd.s32 %v5778, 72
        %5780 = vset.pattern.permute.xlu0 %v5779
        %5781 = vperm.xlu0 %5780, %v5722
        %v5782 = vpop.permute.xlu0 %5781
        %v5783 = vlaneseq
        %v5784 = vshrl.u32 %v5783, 7
        %v5785 = vadd.s32 %v5784, 80
        %5786 = vset.pattern.permute.xlu0 %v5785
        %5787 = vperm.xlu0 %5786, %v5722
        %v5788 = vpop.permute.xlu0 %5787
        %v5789 = vlaneseq
        %v5790 = vshrl.u32 %v5789, 7
        %v5791 = vadd.s32 %v5790, 88
        %5792 = vset.pattern.permute.xlu0 %v5791
        %5793 = vperm.xlu0 %5792, %v5722
        %v5794 = vpop.permute.xlu0 %5793
        %v5795 = vlaneseq
        %v5796 = vshrl.u32 %v5795, 7
        %v5797 = vadd.s32 %v5796, 96
        %5798 = vset.pattern.permute.xlu0 %v5797
        %5799 = vperm.xlu0 %5798, %v5722
        %v5800 = vpop.permute.xlu0 %5799
        %v5801 = vlaneseq
        %v5802 = vshrl.u32 %v5801, 7
        %v5803 = vadd.s32 %v5802, 104
        %5804 = vset.pattern.permute.xlu0 %v5803
        %5805 = vperm.xlu0 %5804, %v5722
        %v5806 = vpop.permute.xlu0 %5805
        %v5807 = vlaneseq
        %v5808 = vshrl.u32 %v5807, 7
        %v5809 = vadd.s32 %v5808, 112
        %5810 = vset.pattern.permute.xlu0 %v5809
        %5811 = vperm.xlu0 %5810, %v5722
        %v5812 = vpop.permute.xlu0 %5811
        %v5813 = vlaneseq
        %v5814 = vshrl.u32 %v5813, 7
        %v5815 = vadd.s32 %v5814, 120
        %5816 = vset.pattern.permute.xlu0 %v5815
        %5817 = vperm.xlu0 %5816, %v5722
        %v5818 = vpop.permute.xlu0 %5817
        %v5819 = vadd.f32 %v5631, %v584
        %v5820 = vadd.f32 %v5637, %v585
        %v5821 = vadd.f32 %v5643, %v586
        %v5822 = vadd.f32 %v5649, %v587
        %v5823 = vadd.f32 %v5655, %v588
        %v5824 = vadd.f32 %v5661, %v589
        %v5825 = vadd.f32 %v5667, %v590
        %v5826 = vadd.f32 %v5673, %v591
        %v5827 = vadd.f32 %v5679, %v592
        %v5828 = vadd.f32 %v5685, %v593
        %v5829 = vadd.f32 %v5691, %v594
        %v5830 = vadd.f32 %v5697, %v595
        %v5831 = vadd.f32 %v5703, %v596
        %v5832 = vadd.f32 %v5709, %v597
        %v5833 = vadd.f32 %v5715, %v598
        %v5834 = vadd.f32 %v5721, %v599
        %v5835 = vadd.f32 %v5728, %v584
        %v5836 = vadd.f32 %v5734, %v585
        %v5837 = vadd.f32 %v5740, %v586
        %v5838 = vadd.f32 %v5746, %v587
        %v5839 = vadd.f32 %v5752, %v588
        %v5840 = vadd.f32 %v5758, %v589
        %v5841 = vadd.f32 %v5764, %v590
        %v5842 = vadd.f32 %v5770, %v591
        %v5843 = vadd.f32 %v5776, %v592
        %v5844 = vadd.f32 %v5782, %v593
        %v5845 = vadd.f32 %v5788, %v594
        %v5846 = vadd.f32 %v5794, %v595
        %v5847 = vadd.f32 %v5800, %v596
        %v5848 = vadd.f32 %v5806, %v597
        %v5849 = vadd.f32 %v5812, %v598
        %v5850 = vadd.f32 %v5818, %v599
        %v5851 = vmax.f32 %v5819, %v5821
        %v5852 = vmax.f32 %v5820, %v5822
        %v5853 = vmax.f32 %v5851, %v5823
        %v5854 = vmax.f32 %v5852, %v5824
        %v5855 = vmax.f32 %v5853, %v5825
        %v5856 = vmax.f32 %v5854, %v5826
        %v5857 = vmax.f32 %v5855, %v5827
        %v5858 = vmax.f32 %v5856, %v5828
        %v5859 = vmax.f32 %v5857, %v5829
        %v5860 = vmax.f32 %v5858, %v5830
        %v5861 = vmax.f32 %v5859, %v5831
        %v5862 = vmax.f32 %v5860, %v5832
        %v5863 = vmax.f32 %v5861, %v5833
        %v5864 = vmax.f32 %v5862, %v5834
        %v5865 = vmax.f32 %v5863, %v5864
        %v5866 = vrot.slane %v5865, 4
        %v5867 = vmax.f32 %v5865, %v5866
        %v5868 = vrot.slane %v5867, 2
        %v5869 = vmax.f32 %v5867, %v5868
        %v5870 = vrot.slane %v5869, 1
        %v5871 = vmax.f32 %v5869, %v5870
        %v5872 = vmax.f32 %v5835, %v5837
        %v5873 = vmax.f32 %v5836, %v5838
        %v5874 = vmax.f32 %v5872, %v5839
        %v5875 = vmax.f32 %v5873, %v5840
        %v5876 = vmax.f32 %v5874, %v5841
        %v5877 = vmax.f32 %v5875, %v5842
        %v5878 = vmax.f32 %v5876, %v5843
        %v5879 = vmax.f32 %v5877, %v5844
        %v5880 = vmax.f32 %v5878, %v5845
        %v5881 = vmax.f32 %v5879, %v5846
        %v5882 = vmax.f32 %v5880, %v5847
        %v5883 = vmax.f32 %v5881, %v5848
        %v5884 = vmax.f32 %v5882, %v5849
        %v5885 = vmax.f32 %v5883, %v5850
        %v5886 = vmax.f32 %v5884, %v5885
        %v5887 = vrot.slane %v5886, 4
        %v5888 = vmax.f32 %v5886, %v5887
        %v5889 = vrot.slane %v5888, 2
        %v5890 = vmax.f32 %v5888, %v5889
        %v5891 = vrot.slane %v5890, 1
        %v5892 = vmax.f32 %v5890, %v5891
        %v5893 = vsub.f32 %v5819, %v5871
        %v5894 = vsub.f32 %v5820, %v5871
        %v5895 = vsub.f32 %v5821, %v5871
        %v5896 = vsub.f32 %v5822, %v5871
        %v5897 = vsub.f32 %v5823, %v5871
        %v5898 = vsub.f32 %v5824, %v5871
        %v5899 = vsub.f32 %v5825, %v5871
        %v5900 = vsub.f32 %v5826, %v5871
        %v5901 = vsub.f32 %v5827, %v5871
        %v5902 = vsub.f32 %v5828, %v5871
        %v5903 = vsub.f32 %v5829, %v5871
        %v5904 = vsub.f32 %v5830, %v5871
        %v5905 = vsub.f32 %v5831, %v5871
        %v5906 = vsub.f32 %v5832, %v5871
        %v5907 = vsub.f32 %v5833, %v5871
        %v5908 = vsub.f32 %v5834, %v5871
        %v5909 = vsub.f32 %v5835, %v5892
        %v5910 = vsub.f32 %v5836, %v5892
        %v5911 = vsub.f32 %v5837, %v5892
        %v5912 = vsub.f32 %v5838, %v5892
        %v5913 = vsub.f32 %v5839, %v5892
        %v5914 = vsub.f32 %v5840, %v5892
        %v5915 = vsub.f32 %v5841, %v5892
        %v5916 = vsub.f32 %v5842, %v5892
        %v5917 = vsub.f32 %v5843, %v5892
        %v5918 = vsub.f32 %v5844, %v5892
        %v5919 = vsub.f32 %v5845, %v5892
        %v5920 = vsub.f32 %v5846, %v5892
        %v5921 = vsub.f32 %v5847, %v5892
        %v5922 = vsub.f32 %v5848, %v5892
        %v5923 = vsub.f32 %v5849, %v5892
        %v5924 = vsub.f32 %v5850, %v5892
        %v5925 = vmul.f32 %v5893, 1.442695
        %v5926 = vpow.pop %v5925
        %v5927 = vmul.f32 %v5894, 1.442695
        %v5928 = vpow.pop %v5927
        %v5929 = vmul.f32 %v5895, 1.442695
        %v5930 = vpow.pop %v5929
        %v5931 = vmul.f32 %v5896, 1.442695
        %v5932 = vpow.pop %v5931
        %v5933 = vmul.f32 %v5897, 1.442695
        %v5934 = vpow.pop %v5933
        %v5935 = vmul.f32 %v5898, 1.442695
        %v5936 = vpow.pop %v5935
        %v5937 = vmul.f32 %v5899, 1.442695
        %v5938 = vpow.pop %v5937
        %v5939 = vmul.f32 %v5900, 1.442695
        %v5940 = vpow.pop %v5939
        %v5941 = vmul.f32 %v5901, 1.442695
        %v5942 = vpow.pop %v5941
        %v5943 = vmul.f32 %v5902, 1.442695
        %v5944 = vpow.pop %v5943
        %v5945 = vmul.f32 %v5903, 1.442695
        %v5946 = vpow.pop %v5945
        %v5947 = vmul.f32 %v5904, 1.442695
        %v5948 = vpow.pop %v5947
        %v5949 = vmul.f32 %v5905, 1.442695
        %v5950 = vpow.pop %v5949
        %v5951 = vmul.f32 %v5906, 1.442695
        %v5952 = vpow.pop %v5951
        %v5953 = vmul.f32 %v5907, 1.442695
        %v5954 = vpow.pop %v5953
        %v5955 = vmul.f32 %v5908, 1.442695
        %v5956 = vpow.pop %v5955
        %v5957 = vmul.f32 %v5909, 1.442695
        %v5958 = vpow.pop %v5957
        %v5959 = vmul.f32 %v5910, 1.442695
        %v5960 = vpow.pop %v5959
        %v5961 = vmul.f32 %v5911, 1.442695
        %v5962 = vpow.pop %v5961
        %v5963 = vmul.f32 %v5912, 1.442695
        %v5964 = vpow.pop %v5963
        %v5965 = vmul.f32 %v5913, 1.442695
        %v5966 = vpow.pop %v5965
        %v5967 = vmul.f32 %v5914, 1.442695
        %v5968 = vpow.pop %v5967
        %v5969 = vmul.f32 %v5915, 1.442695
        %v5970 = vpow.pop %v5969
        %v5971 = vmul.f32 %v5916, 1.442695
        %v5972 = vpow.pop %v5971
        %v5973 = vmul.f32 %v5917, 1.442695
        %v5974 = vpow.pop %v5973
        %v5975 = vmul.f32 %v5918, 1.442695
        %v5976 = vpow.pop %v5975
        %v5977 = vmul.f32 %v5919, 1.442695
        %v5978 = vpow.pop %v5977
        %v5979 = vmul.f32 %v5920, 1.442695
        %v5980 = vpow.pop %v5979
        %v5981 = vmul.f32 %v5921, 1.442695
        %v5982 = vpow.pop %v5981
        %v5983 = vmul.f32 %v5922, 1.442695
        %v5984 = vpow.pop %v5983
        %v5985 = vmul.f32 %v5923, 1.442695
        %v5986 = vpow.pop %v5985
        %v5987 = vmul.f32 %v5924, 1.442695
        %v5988 = vpow.pop %v5987
        %v5989 = vadd.f32 %v5926, %v5928
        %v5990 = vadd.f32 %v5989, %v5930
        %v5991 = vadd.f32 %v5990, %v5932
        %v5992 = vadd.f32 %v5991, %v5934
        %v5993 = vadd.f32 %v5992, %v5936
        %v5994 = vadd.f32 %v5993, %v5938
        %v5995 = vadd.f32 %v5994, %v5940
        %v5996 = vadd.f32 %v5995, %v5942
        %v5997 = vadd.f32 %v5996, %v5944
        %v5998 = vadd.f32 %v5997, %v5946
        %v5999 = vadd.f32 %v5998, %v5948
        %v6000 = vadd.f32 %v5999, %v5950
        %v6001 = vadd.f32 %v6000, %v5952
        %v6002 = vadd.f32 %v6001, %v5954
        %v6003 = vadd.f32 %v6002, %v5956
        %v6004 = vrot.slane %v6003, 4
        %v6005 = vadd.f32 %v6003, %v6004
        %v6006 = vrot.slane %v6005, 2
        %v6007 = vadd.f32 %v6005, %v6006
        %v6008 = vrot.slane %v6007, 1
        %v6009 = vadd.f32 %v6007, %v6008
        %v6010 = vadd.f32 %v5958, %v5960
        %v6011 = vadd.f32 %v6010, %v5962
        %v6012 = vadd.f32 %v6011, %v5964
        %v6013 = vadd.f32 %v6012, %v5966
        %v6014 = vadd.f32 %v6013, %v5968
        %v6015 = vadd.f32 %v6014, %v5970
        %v6016 = vadd.f32 %v6015, %v5972
        %v6017 = vadd.f32 %v6016, %v5974
        %v6018 = vadd.f32 %v6017, %v5976
        %v6019 = vadd.f32 %v6018, %v5978
        %v6020 = vadd.f32 %v6019, %v5980
        %v6021 = vadd.f32 %v6020, %v5982
        %v6022 = vadd.f32 %v6021, %v5984
        %v6023 = vadd.f32 %v6022, %v5986
        %v6024 = vadd.f32 %v6023, %v5988
        %v6025 = vrot.slane %v6024, 4
        %v6026 = vadd.f32 %v6024, %v6025
        %v6027 = vrot.slane %v6026, 2
        %v6028 = vadd.f32 %v6026, %v6027
        %v6029 = vrot.slane %v6028, 1
        %v6030 = vadd.f32 %v6028, %v6029
        %v6031 = vlog2.pop %v6009
        %v6032 = vmul.f32 %v6031, 0.6931472
        %v6033 = vlog2.pop %v6030
        %v6034 = vmul.f32 %v6033, 0.6931472
        %v6035 = vadd.f32 %v5871, %v6032
        %v6036 = vadd.f32 %v5892, %v6034
        %v6037 = vadd.f32 %v6035, %v658
        %v6038 = vadd.f32 %v6036, %v660
        %v6039 = vperm.slane %v5624, 0
        %v6040 = vlaneseq
        %v6041 = vshrl.u32 %v6040, 7
        %6043 = vset.pattern.permute.xlu0 %v6041
        %6044 = vperm.xlu0 %6043, %v6039
        %v6045 = vpop.permute.xlu0 %6044
        %v6046 = vlaneseq
        %v6047 = vshrl.u32 %v6046, 7
        %v6048 = vadd.s32 %v6047, 8
        %6049 = vset.pattern.permute.xlu0 %v6048
        %6050 = vperm.xlu0 %6049, %v6039
        %v6051 = vpop.permute.xlu0 %6050
        %v6052 = vlaneseq
        %v6053 = vshrl.u32 %v6052, 7
        %v6054 = vadd.s32 %v6053, 16
        %6055 = vset.pattern.permute.xlu0 %v6054
        %6056 = vperm.xlu0 %6055, %v6039
        %v6057 = vpop.permute.xlu0 %6056
        %v6058 = vlaneseq
        %v6059 = vshrl.u32 %v6058, 7
        %v6060 = vadd.s32 %v6059, 24
        %6061 = vset.pattern.permute.xlu0 %v6060
        %6062 = vperm.xlu0 %6061, %v6039
        %v6063 = vpop.permute.xlu0 %6062
        %v6064 = vlaneseq
        %v6065 = vshrl.u32 %v6064, 7
        %v6066 = vadd.s32 %v6065, 32
        %6067 = vset.pattern.permute.xlu0 %v6066
        %6068 = vperm.xlu0 %6067, %v6039
        %v6069 = vpop.permute.xlu0 %6068
        %v6070 = vlaneseq
        %v6071 = vshrl.u32 %v6070, 7
        %v6072 = vadd.s32 %v6071, 40
        %6073 = vset.pattern.permute.xlu0 %v6072
        %6074 = vperm.xlu0 %6073, %v6039
        %v6075 = vpop.permute.xlu0 %6074
        %v6076 = vlaneseq
        %v6077 = vshrl.u32 %v6076, 7
        %v6078 = vadd.s32 %v6077, 48
        %6079 = vset.pattern.permute.xlu0 %v6078
        %6080 = vperm.xlu0 %6079, %v6039
        %v6081 = vpop.permute.xlu0 %6080
        %v6082 = vlaneseq
        %v6083 = vshrl.u32 %v6082, 7
        %v6084 = vadd.s32 %v6083, 56
        %6085 = vset.pattern.permute.xlu0 %v6084
        %6086 = vperm.xlu0 %6085, %v6039
        %v6087 = vpop.permute.xlu0 %6086
        %v6088 = vlaneseq
        %v6089 = vshrl.u32 %v6088, 7
        %v6090 = vadd.s32 %v6089, 64
        %6091 = vset.pattern.permute.xlu0 %v6090
        %6092 = vperm.xlu0 %6091, %v6039
        %v6093 = vpop.permute.xlu0 %6092
        %v6094 = vlaneseq
        %v6095 = vshrl.u32 %v6094, 7
        %v6096 = vadd.s32 %v6095, 72
        %6097 = vset.pattern.permute.xlu0 %v6096
        %6098 = vperm.xlu0 %6097, %v6039
        %v6099 = vpop.permute.xlu0 %6098
        %v6100 = vlaneseq
        %v6101 = vshrl.u32 %v6100, 7
        %v6102 = vadd.s32 %v6101, 80
        %6103 = vset.pattern.permute.xlu0 %v6102
        %6104 = vperm.xlu0 %6103, %v6039
        %v6105 = vpop.permute.xlu0 %6104
        %v6106 = vlaneseq
        %v6107 = vshrl.u32 %v6106, 7
        %v6108 = vadd.s32 %v6107, 88
        %6109 = vset.pattern.permute.xlu0 %v6108
        %6110 = vperm.xlu0 %6109, %v6039
        %v6111 = vpop.permute.xlu0 %6110
        %v6112 = vlaneseq
        %v6113 = vshrl.u32 %v6112, 7
        %v6114 = vadd.s32 %v6113, 96
        %6115 = vset.pattern.permute.xlu0 %v6114
        %6116 = vperm.xlu0 %6115, %v6039
        %v6117 = vpop.permute.xlu0 %6116
        %v6118 = vlaneseq
        %v6119 = vshrl.u32 %v6118, 7
        %v6120 = vadd.s32 %v6119, 104
        %6121 = vset.pattern.permute.xlu0 %v6120
        %6122 = vperm.xlu0 %6121, %v6039
        %v6123 = vpop.permute.xlu0 %6122
        %v6124 = vlaneseq
        %v6125 = vshrl.u32 %v6124, 7
        %v6126 = vadd.s32 %v6125, 112
        %6127 = vset.pattern.permute.xlu0 %v6126
        %6128 = vperm.xlu0 %6127, %v6039
        %v6129 = vpop.permute.xlu0 %6128
        %v6130 = vlaneseq
        %v6131 = vshrl.u32 %v6130, 7
        %v6132 = vadd.s32 %v6131, 120
        %6133 = vset.pattern.permute.xlu0 %v6132
        %6134 = vperm.xlu0 %6133, %v6039
        %v6135 = vpop.permute.xlu0 %6134
        %v6136 = vperm.slane %v5624, 1
        %v6137 = vlaneseq
        %v6138 = vshrl.u32 %v6137, 7
        %6140 = vset.pattern.permute.xlu0 %v6138
        %6141 = vperm.xlu0 %6140, %v6136
        %v6142 = vpop.permute.xlu0 %6141
        %v6143 = vlaneseq
        %v6144 = vshrl.u32 %v6143, 7
        %v6145 = vadd.s32 %v6144, 8
        %6146 = vset.pattern.permute.xlu0 %v6145
        %6147 = vperm.xlu0 %6146, %v6136
        %v6148 = vpop.permute.xlu0 %6147
        %v6149 = vlaneseq
        %v6150 = vshrl.u32 %v6149, 7
        %v6151 = vadd.s32 %v6150, 16
        %6152 = vset.pattern.permute.xlu0 %v6151
        %6153 = vperm.xlu0 %6152, %v6136
        %v6154 = vpop.permute.xlu0 %6153
        %v6155 = vlaneseq
        %v6156 = vshrl.u32 %v6155, 7
        %v6157 = vadd.s32 %v6156, 24
        %6158 = vset.pattern.permute.xlu0 %v6157
        %6159 = vperm.xlu0 %6158, %v6136
        %v6160 = vpop.permute.xlu0 %6159
        %v6161 = vlaneseq
        %v6162 = vshrl.u32 %v6161, 7
        %v6163 = vadd.s32 %v6162, 32
        %6164 = vset.pattern.permute.xlu0 %v6163
        %6165 = vperm.xlu0 %6164, %v6136
        %v6166 = vpop.permute.xlu0 %6165
        %v6167 = vlaneseq
        %v6168 = vshrl.u32 %v6167, 7
        %v6169 = vadd.s32 %v6168, 40
        %6170 = vset.pattern.permute.xlu0 %v6169
        %6171 = vperm.xlu0 %6170, %v6136
        %v6172 = vpop.permute.xlu0 %6171
        %v6173 = vlaneseq
        %v6174 = vshrl.u32 %v6173, 7
        %v6175 = vadd.s32 %v6174, 48
        %6176 = vset.pattern.permute.xlu0 %v6175
        %6177 = vperm.xlu0 %6176, %v6136
        %v6178 = vpop.permute.xlu0 %6177
        %v6179 = vlaneseq
        %v6180 = vshrl.u32 %v6179, 7
        %v6181 = vadd.s32 %v6180, 56
        %6182 = vset.pattern.permute.xlu0 %v6181
        %6183 = vperm.xlu0 %6182, %v6136
        %v6184 = vpop.permute.xlu0 %6183
        %v6185 = vlaneseq
        %v6186 = vshrl.u32 %v6185, 7
        %v6187 = vadd.s32 %v6186, 64
        %6188 = vset.pattern.permute.xlu0 %v6187
        %6189 = vperm.xlu0 %6188, %v6136
        %v6190 = vpop.permute.xlu0 %6189
        %v6191 = vlaneseq
        %v6192 = vshrl.u32 %v6191, 7
        %v6193 = vadd.s32 %v6192, 72
        %6194 = vset.pattern.permute.xlu0 %v6193
        %6195 = vperm.xlu0 %6194, %v6136
        %v6196 = vpop.permute.xlu0 %6195
        %v6197 = vlaneseq
        %v6198 = vshrl.u32 %v6197, 7
        %v6199 = vadd.s32 %v6198, 80
        %6200 = vset.pattern.permute.xlu0 %v6199
        %6201 = vperm.xlu0 %6200, %v6136
        %v6202 = vpop.permute.xlu0 %6201
        %v6203 = vlaneseq
        %v6204 = vshrl.u32 %v6203, 7
        %v6205 = vadd.s32 %v6204, 88
        %6206 = vset.pattern.permute.xlu0 %v6205
        %6207 = vperm.xlu0 %6206, %v6136
        %v6208 = vpop.permute.xlu0 %6207
        %v6209 = vlaneseq
        %v6210 = vshrl.u32 %v6209, 7
        %v6211 = vadd.s32 %v6210, 96
        %6212 = vset.pattern.permute.xlu0 %v6211
        %6213 = vperm.xlu0 %6212, %v6136
        %v6214 = vpop.permute.xlu0 %6213
        %v6215 = vlaneseq
        %v6216 = vshrl.u32 %v6215, 7
        %v6217 = vadd.s32 %v6216, 104
        %6218 = vset.pattern.permute.xlu0 %v6217
        %6219 = vperm.xlu0 %6218, %v6136
        %v6220 = vpop.permute.xlu0 %6219
        %v6221 = vlaneseq
        %v6222 = vshrl.u32 %v6221, 7
        %v6223 = vadd.s32 %v6222, 112
        %6224 = vset.pattern.permute.xlu0 %v6223
        %6225 = vperm.xlu0 %6224, %v6136
        %v6226 = vpop.permute.xlu0 %6225
        %v6227 = vlaneseq
        %v6228 = vshrl.u32 %v6227, 7
        %v6229 = vadd.s32 %v6228, 120
        %6230 = vset.pattern.permute.xlu0 %v6229
        %6231 = vperm.xlu0 %6230, %v6136
        %v6232 = vpop.permute.xlu0 %6231
        %v6233 = vadd.f32 %v6045, %v584
        %v6234 = vadd.f32 %v6051, %v585
        %v6235 = vadd.f32 %v6057, %v586
        %v6236 = vadd.f32 %v6063, %v587
        %v6237 = vadd.f32 %v6069, %v588
        %v6238 = vadd.f32 %v6075, %v589
        %v6239 = vadd.f32 %v6081, %v590
        %v6240 = vadd.f32 %v6087, %v591
        %v6241 = vadd.f32 %v6093, %v592
        %v6242 = vadd.f32 %v6099, %v593
        %v6243 = vadd.f32 %v6105, %v594
        %v6244 = vadd.f32 %v6111, %v595
        %v6245 = vadd.f32 %v6117, %v596
        %v6246 = vadd.f32 %v6123, %v597
        %v6247 = vadd.f32 %v6129, %v598
        %v6248 = vadd.f32 %v6135, %v599
        %v6249 = vadd.f32 %v6142, %v584
        %v6250 = vadd.f32 %v6148, %v585
        %v6251 = vadd.f32 %v6154, %v586
        %v6252 = vadd.f32 %v6160, %v587
        %v6253 = vadd.f32 %v6166, %v588
        %v6254 = vadd.f32 %v6172, %v589
        %v6255 = vadd.f32 %v6178, %v590
        %v6256 = vadd.f32 %v6184, %v591
        %v6257 = vadd.f32 %v6190, %v592
        %v6258 = vadd.f32 %v6196, %v593
        %v6259 = vadd.f32 %v6202, %v594
        %v6260 = vadd.f32 %v6208, %v595
        %v6261 = vadd.f32 %v6214, %v596
        %v6262 = vadd.f32 %v6220, %v597
        %v6263 = vadd.f32 %v6226, %v598
        %v6264 = vadd.f32 %v6232, %v599
        %v6265 = vmax.f32 %v6233, %v6235
        %v6266 = vmax.f32 %v6234, %v6236
        %v6267 = vmax.f32 %v6265, %v6237
        %v6268 = vmax.f32 %v6266, %v6238
        %v6269 = vmax.f32 %v6267, %v6239
        %v6270 = vmax.f32 %v6268, %v6240
        %v6271 = vmax.f32 %v6269, %v6241
        %v6272 = vmax.f32 %v6270, %v6242
        %v6273 = vmax.f32 %v6271, %v6243
        %v6274 = vmax.f32 %v6272, %v6244
        %v6275 = vmax.f32 %v6273, %v6245
        %v6276 = vmax.f32 %v6274, %v6246
        %v6277 = vmax.f32 %v6275, %v6247
        %v6278 = vmax.f32 %v6276, %v6248
        %v6279 = vmax.f32 %v6277, %v6278
        %v6280 = vrot.slane %v6279, 4
        %v6281 = vmax.f32 %v6279, %v6280
        %v6282 = vrot.slane %v6281, 2
        %v6283 = vmax.f32 %v6281, %v6282
        %v6284 = vrot.slane %v6283, 1
        %v6285 = vmax.f32 %v6283, %v6284
        %v6286 = vmax.f32 %v6249, %v6251
        %v6287 = vmax.f32 %v6250, %v6252
        %v6288 = vmax.f32 %v6286, %v6253
        %v6289 = vmax.f32 %v6287, %v6254
        %v6290 = vmax.f32 %v6288, %v6255
        %v6291 = vmax.f32 %v6289, %v6256
        %v6292 = vmax.f32 %v6290, %v6257
        %v6293 = vmax.f32 %v6291, %v6258
        %v6294 = vmax.f32 %v6292, %v6259
        %v6295 = vmax.f32 %v6293, %v6260
        %v6296 = vmax.f32 %v6294, %v6261
        %v6297 = vmax.f32 %v6295, %v6262
        %v6298 = vmax.f32 %v6296, %v6263
        %v6299 = vmax.f32 %v6297, %v6264
        %v6300 = vmax.f32 %v6298, %v6299
        %v6301 = vrot.slane %v6300, 4
        %v6302 = vmax.f32 %v6300, %v6301
        %v6303 = vrot.slane %v6302, 2
        %v6304 = vmax.f32 %v6302, %v6303
        %v6305 = vrot.slane %v6304, 1
        %v6306 = vmax.f32 %v6304, %v6305
        %vm6307 = vcmp.eq.f32.partialorder %v6233, %v6285
        %vm6308 = vcmp.eq.f32.partialorder %v6234, %v6285
        %vm6309 = vcmp.eq.f32.partialorder %v6235, %v6285
        %vm6310 = vcmp.eq.f32.partialorder %v6236, %v6285
        %vm6311 = vcmp.eq.f32.partialorder %v6237, %v6285
        %vm6312 = vcmp.eq.f32.partialorder %v6238, %v6285
        %vm6313 = vcmp.eq.f32.partialorder %v6239, %v6285
        %vm6314 = vcmp.eq.f32.partialorder %v6240, %v6285
        %vm6315 = vcmp.eq.f32.partialorder %v6241, %v6285
        %vm6316 = vcmp.eq.f32.partialorder %v6242, %v6285
        %vm6317 = vcmp.eq.f32.partialorder %v6243, %v6285
        %vm6318 = vcmp.eq.f32.partialorder %v6244, %v6285
        %vm6319 = vcmp.eq.f32.partialorder %v6245, %v6285
        %vm6320 = vcmp.eq.f32.partialorder %v6246, %v6285
        %vm6321 = vcmp.eq.f32.partialorder %v6247, %v6285
        %vm6322 = vcmp.eq.f32.partialorder %v6248, %v6285
        %vm6323 = vcmp.eq.f32.partialorder %v6249, %v6306
        %vm6324 = vcmp.eq.f32.partialorder %v6250, %v6306
        %vm6325 = vcmp.eq.f32.partialorder %v6251, %v6306
        %vm6326 = vcmp.eq.f32.partialorder %v6252, %v6306
        %vm6327 = vcmp.eq.f32.partialorder %v6253, %v6306
        %vm6328 = vcmp.eq.f32.partialorder %v6254, %v6306
        %vm6329 = vcmp.eq.f32.partialorder %v6255, %v6306
        %vm6330 = vcmp.eq.f32.partialorder %v6256, %v6306
        %vm6331 = vcmp.eq.f32.partialorder %v6257, %v6306
        %vm6332 = vcmp.eq.f32.partialorder %v6258, %v6306
        %vm6333 = vcmp.eq.f32.partialorder %v6259, %v6306
        %vm6334 = vcmp.eq.f32.partialorder %v6260, %v6306
        %vm6335 = vcmp.eq.f32.partialorder %v6261, %v6306
        %vm6336 = vcmp.eq.f32.partialorder %v6262, %v6306
        %vm6337 = vcmp.eq.f32.partialorder %v6263, %v6306
        %vm6338 = vcmp.eq.f32.partialorder %v6264, %v6306
        %v6339 = vsel %vm6307, %v620, 128
        %v6340 = vsel %vm6308, %v621, 128
        %v6341 = vsel %vm6309, %v622, 128
        %v6342 = vsel %vm6310, %v623, 128
        %v6343 = vsel %vm6311, %v624, 128
        %v6344 = vsel %vm6312, %v625, 128
        %v6345 = vsel %vm6313, %v626, 128
        %v6346 = vsel %vm6314, %v627, 128
        %v6347 = vsel %vm6315, %v628, 128
        %v6348 = vsel %vm6316, %v629, 128
        %v6349 = vsel %vm6317, %v630, 128
        %v6350 = vsel %vm6318, %v631, 128
        %v6351 = vsel %vm6319, %v632, 128
        %v6352 = vsel %vm6320, %v633, 128
        %v6353 = vsel %vm6321, %v634, 128
        %v6354 = vsel %vm6322, %v635, 128
        %v6355 = vsel %vm6323, %v620, 128
        %v6356 = vsel %vm6324, %v621, 128
        %v6357 = vsel %vm6325, %v622, 128
        %v6358 = vsel %vm6326, %v623, 128
        %v6359 = vsel %vm6327, %v624, 128
        %v6360 = vsel %vm6328, %v625, 128
        %v6361 = vsel %vm6329, %v626, 128
        %v6362 = vsel %vm6330, %v627, 128
        %v6363 = vsel %vm6331, %v628, 128
        %v6364 = vsel %vm6332, %v629, 128
        %v6365 = vsel %vm6333, %v630, 128
        %v6366 = vsel %vm6334, %v631, 128
        %v6367 = vsel %vm6335, %v632, 128
        %v6368 = vsel %vm6336, %v633, 128
        %v6369 = vsel %vm6337, %v634, 128
        %v6370 = vsel %vm6338, %v635, 128
        %vm6371 = vcmp.lt.s32.totalorder %v6339, %v6341
        %v6372 = vsel %vm6371, %v6339, %v6341
        %vm6373 = vcmp.lt.s32.totalorder %v6340, %v6342
        %v6374 = vsel %vm6373, %v6340, %v6342
        %vm6375 = vcmp.lt.s32.totalorder %v6372, %v6343
        %v6376 = vsel %vm6375, %v6372, %v6343
        %vm6377 = vcmp.lt.s32.totalorder %v6374, %v6344
        %v6378 = vsel %vm6377, %v6374, %v6344
        %vm6379 = vcmp.lt.s32.totalorder %v6376, %v6345
        %v6380 = vsel %vm6379, %v6376, %v6345
        %vm6381 = vcmp.lt.s32.totalorder %v6378, %v6346
        %v6382 = vsel %vm6381, %v6378, %v6346
        %vm6383 = vcmp.lt.s32.totalorder %v6380, %v6347
        %v6384 = vsel %vm6383, %v6380, %v6347
        %vm6385 = vcmp.lt.s32.totalorder %v6382, %v6348
        %v6386 = vsel %vm6385, %v6382, %v6348
        %vm6387 = vcmp.lt.s32.totalorder %v6384, %v6349
        %v6388 = vsel %vm6387, %v6384, %v6349
        %vm6389 = vcmp.lt.s32.totalorder %v6386, %v6350
        %v6390 = vsel %vm6389, %v6386, %v6350
        %vm6391 = vcmp.lt.s32.totalorder %v6388, %v6351
        %v6392 = vsel %vm6391, %v6388, %v6351
        %vm6393 = vcmp.lt.s32.totalorder %v6390, %v6352
        %v6394 = vsel %vm6393, %v6390, %v6352
        %vm6395 = vcmp.lt.s32.totalorder %v6392, %v6353
        %v6396 = vsel %vm6395, %v6392, %v6353
        %vm6397 = vcmp.lt.s32.totalorder %v6394, %v6354
        %v6398 = vsel %vm6397, %v6394, %v6354
        %vm6399 = vcmp.lt.s32.totalorder %v6396, %v6398
        %v6400 = vsel %vm6399, %v6396, %v6398
        %v6401 = vrot.slane %v6400, 4
        %vm6402 = vcmp.lt.s32.totalorder %v6400, %v6401
        %v6403 = vsel %vm6402, %v6400, %v6401
        %v6404 = vrot.slane %v6403, 2
        %vm6405 = vcmp.lt.s32.totalorder %v6403, %v6404
        %v6406 = vsel %vm6405, %v6403, %v6404
        %v6407 = vrot.slane %v6406, 1
        %vm6408 = vcmp.lt.s32.totalorder %v6406, %v6407
        %v6409 = vsel %vm6408, %v6406, %v6407
        %vm6410 = vcmp.lt.s32.totalorder %v6355, %v6357
        %v6411 = vsel %vm6410, %v6355, %v6357
        %vm6412 = vcmp.lt.s32.totalorder %v6356, %v6358
        %v6413 = vsel %vm6412, %v6356, %v6358
        %vm6414 = vcmp.lt.s32.totalorder %v6411, %v6359
        %v6415 = vsel %vm6414, %v6411, %v6359
        %vm6416 = vcmp.lt.s32.totalorder %v6413, %v6360
        %v6417 = vsel %vm6416, %v6413, %v6360
        %vm6418 = vcmp.lt.s32.totalorder %v6415, %v6361
        %v6419 = vsel %vm6418, %v6415, %v6361
        %vm6420 = vcmp.lt.s32.totalorder %v6417, %v6362
        %v6421 = vsel %vm6420, %v6417, %v6362
        %vm6422 = vcmp.lt.s32.totalorder %v6419, %v6363
        %v6423 = vsel %vm6422, %v6419, %v6363
        %vm6424 = vcmp.lt.s32.totalorder %v6421, %v6364
        %v6425 = vsel %vm6424, %v6421, %v6364
        %vm6426 = vcmp.lt.s32.totalorder %v6423, %v6365
        %v6427 = vsel %vm6426, %v6423, %v6365
        %vm6428 = vcmp.lt.s32.totalorder %v6425, %v6366
        %v6429 = vsel %vm6428, %v6425, %v6366
        %vm6430 = vcmp.lt.s32.totalorder %v6427, %v6367
        %v6431 = vsel %vm6430, %v6427, %v6367
        %vm6432 = vcmp.lt.s32.totalorder %v6429, %v6368
        %v6433 = vsel %vm6432, %v6429, %v6368
        %vm6434 = vcmp.lt.s32.totalorder %v6431, %v6369
        %v6435 = vsel %vm6434, %v6431, %v6369
        %vm6436 = vcmp.lt.s32.totalorder %v6433, %v6370
        %v6437 = vsel %vm6436, %v6433, %v6370
        %vm6438 = vcmp.lt.s32.totalorder %v6435, %v6437
        %v6439 = vsel %vm6438, %v6435, %v6437
        %v6440 = vrot.slane %v6439, 4
        %vm6441 = vcmp.lt.s32.totalorder %v6439, %v6440
        %v6442 = vsel %vm6441, %v6439, %v6440
        %v6443 = vrot.slane %v6442, 2
        %vm6444 = vcmp.lt.s32.totalorder %v6442, %v6443
        %v6445 = vsel %vm6444, %v6442, %v6443
        %v6446 = vrot.slane %v6445, 1
        %vm6447 = vcmp.lt.s32.totalorder %v6445, %v6446
        %v6448 = vsel %vm6447, %v6445, %v6446
        %v6449 = vadd.f32 %v6285, %v658
        %v6450 = vadd.f32 %v6306, %v660
        %vm6451 = vcmp.gt.s32.totalorder %v618, 7
        %v6452 = vsel %vm6451, 1, 0
        %vm6453 = vcmp.eq.s32.totalorder %v6452, 1
        %v6456 = vrot.slane %v6037, 7
        %v6457 = vrot.slane %v6038, 6
        %v6458 = vsel %vm717, %v6457, %v6456
        %v6460 = vsel %vm6453, %v6458, %v5617
        %v6463 = vrot.slane %v6449, 7
        %v6464 = vrot.slane %v6450, 6
        %v6465 = vsel %vm717, %v6464, %v6463
        %v6467 = vsel %vm6453, %v6465, %v5624
        %v6468 = vadd.f32 %v6460, %v822
        %v6469 = vsel %vm732, %v6468, -inf
        %6470 = vmax.xlane.f32.xlu0 %v6469
        %v6471 = vpop.xlane.xlu0 %6470
        %v6472 = vsub.f32 %v6468, %v6471
        %v6473 = vmul.f32 %v6472, 1.442695
        %v6474 = vpow.pop %v6473
        %v6475 = vsel %vm732, %v6474, 0.0
        %6476 = vadd.xlane.f32.xlu0 %v6475
        %v6477 = vpop.xlane.xlu0 %6476
        %v6478 = vlog2.pop %v6477
        %v6479 = vmul.f32 %v6478, 0.6931472
        %v6480 = vadd.f32 %v6471, %v6479
        %v6481 = vsub.f32 %v830, %v6480
        %vm6482 = vcmask 1024
        %6483 = vst.msk [vmem:[%s571] sm:$0x3] %vm6482, %v6481
        %v6484 = vadd.f32 %v6467, %v822
        %v6485 = vsel %vm732, %v6484, -inf
        %6486 = vmax.xlane.f32.xlu0 %v6485
        %v6487 = vpop.xlane.xlu0 %6486
        %vm6488 = vcmp.eq.f32.partialorder %v6484, %v6487
        %v6489 = vsel %vm6488, %v637, 128
        %v6490 = vsel %vm732, %v6489, 2147483647
        %v6491 = vand.u32 %v6490, 65535
        %v6492 = vshra.s32 %v6490, 16
        %v6493 = vcvt.s32.f32 %v6491
        %v6494 = vcvt.s32.f32 %v6492
        %6495 = vmin.xlane.f32.xlu0 %v6494
        %v6496 = vpop.xlane.xlu0 %6495
        %vm6497 = vcmp.eq.f32.partialorder %v6494, %v6496
        %v6498 = vsel %vm6497, %v6493, inf
        %6499 = vmin.xlane.f32.xlu0 %v6498
        %v6500 = vpop.xlane.xlu0 %6499
        %v6501 = vcvt.f32.s32 %v6500
        %v6502 = vcvt.f32.s32 %v6496
        %v6503 = vshll.u32 %v6502, 16
        %v6504 = vadd.s32 %v6503, %v6501
        %v6505 = vsel %vm805, %v6504, 0
        %vm6506 = vcmp.eq.s32.totalorder %v637, %v6504
        %v6507 = vsel %vm717, %v6448, %v6409
        %v6508 = vsel %vm6506, %v6507, 0
        %v6509 = vsel %vm732, %v6508, 0
        %v6510 = vand.u32 %v6509, 65535
        %v6511 = vshrl.u32 %v6509, 16
        %v6512 = vcvt.s32.f32 %v6510
        %v6513 = vcvt.s32.f32 %v6511
        %6514 = vadd.xlane.f32.xlu0 %v6512
        %v6515 = vpop.xlane.xlu0 %6514
        %6516 = vadd.xlane.f32.xlu0 %v6513
        %v6517 = vpop.xlane.xlu0 %6516
        %v6518 = vcvt.f32.s32 %v6515
        %v6519 = vcvt.f32.s32 %v6517
        %v6520 = vshll.u32 %v6519, 16
        %v6521 = vadd.s32 %v6520, %v6518
        %v6522 = vsub.s32 %v618, 2
        %vm6523 = vcmp.ge.s32.totalorder %v6522, 6
        %v6524 = vsel %vm6523, %v6521, %v6504
        %vm6525 = vcmp.eq.s32.totalorder %v637, 6
        %v6526 = vsel %vm6523, 1, 0
        %vm6527 = vcmp.eq.s32.totalorder %v6526, 1
        %vm6528 = vmand %vm6527, %vm6525
        %v6529 = vsel %vm6528, %v6521, %v6505
        %vm6530 = vcmp.eq.s32.totalorder %v637, %v6524
        %v6531 = vsel %vm717, %v5605, %v5566
        %v6532 = vsel %vm6530, %v6531, 0
        %v6533 = vsel %vm732, %v6532, 0
        %v6534 = vand.u32 %v6533, 65535
        %v6535 = vshrl.u32 %v6533, 16
        %v6536 = vcvt.s32.f32 %v6534
        %v6537 = vcvt.s32.f32 %v6535
        %6538 = vadd.xlane.f32.xlu0 %v6536
        %v6539 = vpop.xlane.xlu0 %6538
        %6540 = vadd.xlane.f32.xlu0 %v6537
        %v6541 = vpop.xlane.xlu0 %6540
        %v6542 = vcvt.f32.s32 %v6539
        %v6543 = vcvt.f32.s32 %v6541
        %v6544 = vshll.u32 %v6543, 16
        %v6545 = vadd.s32 %v6544, %v6542
        %vm6546 = vcmp.ge.s32.totalorder %v6522, 5
        %v6547 = vsel %vm6546, %v6545, %v6524
        %vm6548 = vcmp.eq.s32.totalorder %v637, 5
        %v6549 = vsel %vm6546, 1, 0
        %vm6550 = vcmp.eq.s32.totalorder %v6549, 1
        %vm6551 = vmand %vm6550, %vm6548
        %v6552 = vsel %vm6551, %v6545, %v6529
        %vm6553 = vcmp.eq.s32.totalorder %v637, %v6547
        %v6554 = vsel %vm717, %v4762, %v4723
        %v6555 = vsel %vm6553, %v6554, 0
        %v6556 = vsel %vm732, %v6555, 0
        %v6557 = vand.u32 %v6556, 65535
        %v6558 = vshrl.u32 %v6556, 16
        %v6559 = vcvt.s32.f32 %v6557
        %v6560 = vcvt.s32.f32 %v6558
        %6561 = vadd.xlane.f32.xlu0 %v6559
        %v6562 = vpop.xlane.xlu0 %6561
        %6563 = vadd.xlane.f32.xlu0 %v6560
        %v6564 = vpop.xlane.xlu0 %6563
        %v6565 = vcvt.f32.s32 %v6562
        %v6566 = vcvt.f32.s32 %v6564
        %v6567 = vshll.u32 %v6566, 16
        %v6568 = vadd.s32 %v6567, %v6565
        %vm6569 = vcmp.ge.s32.totalorder %v6522, 4
        %v6570 = vsel %vm6569, %v6568, %v6547
        %vm6571 = vcmp.eq.s32.totalorder %v637, 4
        %v6572 = vsel %vm6569, 1, 0
        %vm6573 = vcmp.eq.s32.totalorder %v6572, 1
        %vm6574 = vmand %vm6573, %vm6571
        %v6575 = vsel %vm6574, %v6568, %v6552
        %vm6576 = vcmp.eq.s32.totalorder %v637, %v6570
        %v6577 = vsel %vm717, %v3919, %v3880
        %v6578 = vsel %vm6576, %v6577, 0
        %v6579 = vsel %vm732, %v6578, 0
        %v6580 = vand.u32 %v6579, 65535
        %v6581 = vshrl.u32 %v6579, 16
        %v6582 = vcvt.s32.f32 %v6580
        %v6583 = vcvt.s32.f32 %v6581
        %6584 = vadd.xlane.f32.xlu0 %v6582
        %v6585 = vpop.xlane.xlu0 %6584
        %6586 = vadd.xlane.f32.xlu0 %v6583
        %v6587 = vpop.xlane.xlu0 %6586
        %v6588 = vcvt.f32.s32 %v6585
        %v6589 = vcvt.f32.s32 %v6587
        %v6590 = vshll.u32 %v6589, 16
        %v6591 = vadd.s32 %v6590, %v6588
        %vm6592 = vcmp.ge.s32.totalorder %v6522, 3
        %v6593 = vsel %vm6592, %v6591, %v6570
        %vm6594 = vcmp.eq.s32.totalorder %v637, 3
        %v6595 = vsel %vm6592, 1, 0
        %vm6596 = vcmp.eq.s32.totalorder %v6595, 1
        %vm6597 = vmand %vm6596, %vm6594
        %v6598 = vsel %vm6597, %v6591, %v6575
        %vm6599 = vcmp.eq.s32.totalorder %v637, %v6593
        %v6600 = vsel %vm717, %v3076, %v3037
        %v6601 = vsel %vm6599, %v6600, 0
        %v6602 = vsel %vm732, %v6601, 0
        %v6603 = vand.u32 %v6602, 65535
        %v6604 = vshrl.u32 %v6602, 16
        %v6605 = vcvt.s32.f32 %v6603
        %v6606 = vcvt.s32.f32 %v6604
        %6607 = vadd.xlane.f32.xlu0 %v6605
        %v6608 = vpop.xlane.xlu0 %6607
        %6609 = vadd.xlane.f32.xlu0 %v6606
        %v6610 = vpop.xlane.xlu0 %6609
        %v6611 = vcvt.f32.s32 %v6608
        %v6612 = vcvt.f32.s32 %v6610
        %v6613 = vshll.u32 %v6612, 16
        %v6614 = vadd.s32 %v6613, %v6611
        %vm6615 = vcmp.ge.s32.totalorder %v6522, 2
        %v6616 = vsel %vm6615, %v6614, %v6593
        %vm6617 = vcmp.eq.s32.totalorder %v637, 2
        %v6618 = vsel %vm6615, 1, 0
        %vm6619 = vcmp.eq.s32.totalorder %v6618, 1
        %vm6620 = vmand %vm6619, %vm6617
        %v6621 = vsel %vm6620, %v6614, %v6598
        %vm6622 = vcmp.eq.s32.totalorder %v637, %v6616
        %v6623 = vsel %vm717, %v2233, %v2194
        %v6624 = vsel %vm6622, %v6623, 0
        %v6625 = vsel %vm732, %v6624, 0
        %v6626 = vand.u32 %v6625, 65535
        %v6627 = vshrl.u32 %v6625, 16
        %v6628 = vcvt.s32.f32 %v6626
        %v6629 = vcvt.s32.f32 %v6627
        %6630 = vadd.xlane.f32.xlu0 %v6628
        %v6631 = vpop.xlane.xlu0 %6630
        %6632 = vadd.xlane.f32.xlu0 %v6629
        %v6633 = vpop.xlane.xlu0 %6632
        %v6634 = vcvt.f32.s32 %v6631
        %v6635 = vcvt.f32.s32 %v6633
        %v6636 = vshll.u32 %v6635, 16
        %v6637 = vadd.s32 %v6636, %v6634
        %vm6638 = vcmp.ge.s32.totalorder %v6522, 1
        %v6639 = vsel %vm6638, %v6637, %v6616
        %vm6640 = vcmp.eq.s32.totalorder %v637, 1
        %v6641 = vsel %vm6638, 1, 0
        %vm6642 = vcmp.eq.s32.totalorder %v6641, 1
        %vm6643 = vmand %vm6642, %vm6640
        %v6644 = vsel %vm6643, %v6637, %v6621
        %vm6645 = vcmp.eq.s32.totalorder %v637, %v6639
        %v6646 = vsel %vm717, %v1392, %v1353
        %v6647 = vsel %vm6645, %v6646, 0
        %v6648 = vsel %vm732, %v6647, 0
        %v6649 = vand.u32 %v6648, 65535
        %v6650 = vshrl.u32 %v6648, 16
        %v6651 = vcvt.s32.f32 %v6649
        %v6652 = vcvt.s32.f32 %v6650
        %6653 = vadd.xlane.f32.xlu0 %v6651
        %v6654 = vpop.xlane.xlu0 %6653
        %6655 = vadd.xlane.f32.xlu0 %v6652
        %v6656 = vpop.xlane.xlu0 %6655
        %v6657 = vcvt.f32.s32 %v6654
        %v6658 = vcvt.f32.s32 %v6656
        %v6659 = vshll.u32 %v6658, 16
        %v6660 = vadd.s32 %v6659, %v6657
        %vm6661 = vcmp.ge.s32.totalorder %v6522, 0
        %vm6662 = vcmp.eq.s32.totalorder %v637, 0
        %v6663 = vsel %vm6661, 1, 0
        %vm6664 = vcmp.eq.s32.totalorder %v6663, 1
        %vm6665 = vmand %vm6664, %vm6662
        %v6666 = vsel %vm6665, %v6660, %v6644
        %6667 = vst.msk [vmem:[%s557] sm:$0x3] %vm605, %v6666
        %6668 = vst.msk [vmem:[%s575] sm:$0x3] %vm6482, %v6487
        %p6669 = scmp.lt.s32.totalorder %s35, 1
        %s6670 = scalar_select %p6669, %s35, 1
        %s6671 = smul.addr %s6670, 2
        %s6672 = scalar_lea.vmem %s8, %s6671
        %s6673 = sand.u32 %s267, 1
        %s6674 = scalar_lea.sflag [#allocation4], %s6673
        %s6675 = sand.u32 %s267, 1
        %s6676 = smul.addr %s6675, 2
        %s6677 = scalar_lea.vmem [#allocation13], %s6676
        %p6678 = scmp.lt.s32.totalorder %s35, 1
        %s6679 = scalar_select %p6678, %s35, 1
        %s6680 = smul.addr %s6679, 2
        %s6681 = scalar_lea.vmem %s10, %s6680
        // Predicated region
        $region77: #{tpu_custom_call.1} parent=51 // pred_check
          %p6682 = pneg %p251
        $region78: #{tpu_custom_call.1} parent=51 // pred_check_branch
          %6684 = sbr.rel (%p6682) target = $region80
        $region79: #{tpu_custom_call.1} parent=51 // pred_region
          _
        $region80: #{tpu_custom_call.1} parent=51 // pred_fallthru
          _
        // Predicated region
        $region81: #{tpu_custom_call.1} parent=51 // pred_check
          %p6685 = pneg %p277
        $region82: #{tpu_custom_call.1} parent=51 // pred_check_branch
          %6687 = sbr.rel (%p6685) target = $region84
        $region83: #{tpu_custom_call.1} parent=51 // pred_region
          %6689 = vsyncadd %s6674, 0
          %s6690 = smul.addr %s35, 2
          %s6691 = scalar_lea.hbm %s9, %s6690
          %s6693 = sshll.u32 %s6677, 4
          %s6694 = int_to_ptr.vmem [resolvable:$true] %s6693
          %s6695 = sshll.u32 %s6691, 4
          %s6696 = int_to_ptr.hbm [resolvable:$true] %s6695
          %6698 = dma.vmem_to_hbm [thread:$0]  %s6694, 32, %s6696, %s6674
        $region84: #{tpu_custom_call.1} parent=51 // pred_fallthru
          _
        // Predicated region
        $region85: #{tpu_custom_call.1} parent=51 // pred_check
          %p6699 = pneg %p303
        $region86: #{tpu_custom_call.1} parent=51 // pred_check_branch
          %6701 = sbr.rel (%p6699) target = $region88
        $region87: #{tpu_custom_call.1} parent=51 // pred_region
          _
        $region88: #{tpu_custom_call.1} parent=51 // pred_fallthru
          _
      $region52: #{tpu_custom_call.1} parent=5 // pred_fallthru
        _
      %p6702 = scmp.le.s32.totalorder 2, %s30
      // Predicated region
      $region89: #{tpu_custom_call.1} parent=5 // pred_check
        %p6703 = pneg %p6702
      $region90: #{tpu_custom_call.1} parent=5 // pred_check_branch
        %6705 = sbr.rel (%p6703) target = $region92
      $region91: #{tpu_custom_call.1} parent=5 // pred_region
        %s6706 = ssub.s32 %s30, 2
        // Predicated region
        $region93: #{tpu_custom_call.1} parent=91 // pred_check
          %p6707 = pneg %p257
        $region94: #{tpu_custom_call.1} parent=91 // pred_check_branch
          %6709 = sbr.rel (%p6707) target = $region96
        $region95: #{tpu_custom_call.1} parent=91 // pred_region
          %p6710 = scmp.lt.s32.totalorder %s36, 1
          %s6711 = scalar_select %p6710, %s36, 1
          %s6712 = smul.addr %s6711, 2
          %s6713 = scalar_lea.vmem %s8, %s6712
        $region96: #{tpu_custom_call.1} parent=91 // pred_fallthru
          _
        // Predicated region
        $region97: #{tpu_custom_call.1} parent=91 // pred_check
          %p6714 = pneg %p283
        $region98: #{tpu_custom_call.1} parent=91 // pred_check_branch
          %6716 = sbr.rel (%p6714) target = $region100
        $region99: #{tpu_custom_call.1} parent=91 // pred_region
          %s6717 = sand.u32 %s268, 1
          %s6718 = scalar_lea.sflag [#allocation4], %s6717
          %s6719 = sand.u32 %s268, 1
          %s6720 = smul.addr %s6719, 2
          %s6721 = scalar_lea.vmem [#allocation13], %s6720
          %6723 = dma.done %s6718, 32
        $region100: #{tpu_custom_call.1} parent=91 // pred_fallthru
          _
        // Predicated region
        $region101: #{tpu_custom_call.1} parent=91 // pred_check
          %p6724 = pneg %p309
        $region102: #{tpu_custom_call.1} parent=91 // pred_check_branch
          %6726 = sbr.rel (%p6724) target = $region104
        $region103: #{tpu_custom_call.1} parent=91 // pred_region
          %p6727 = scmp.lt.s32.totalorder %s36, 1
          %s6728 = scalar_select %p6727, %s36, 1
          %s6729 = smul.addr %s6728, 2
          %s6730 = scalar_lea.vmem %s10, %s6729
        $region104: #{tpu_custom_call.1} parent=91 // pred_fallthru
          _
      $region92: #{tpu_custom_call.1} parent=5 // pred_fallthru
        _
    $region6: #{tpu_custom_call.1} parent=1 // loop_footer
      %s34 = sadd.s32 1, %s30
    $region7: #{tpu_custom_call.1} parent=1 // loop_footer_branch
      %29 = sbr.rel target = $region3
    $region8: #{tpu_custom_call.1} parent=1 // loop_exit
      _
    %6731 = vsyncpa [#allocation3], 1
    %s6732 = scalar_lea.sflag [#allocation3], 1
    %6733 = vsyncpa %s6732, 1
    %6734 = vsyncpa [#allocation6], 1
    %s6735 = scalar_lea.sflag [#allocation6], 1
    %6736 = vsyncpa %s6735, 1
    %6737 = vsyncpa [#allocation9], 1
    %s6738 = scalar_lea.sflag [#allocation9], 1
    %6739 = vsyncpa %s6738, 1
    %6740 = vsyncpa [#allocation12], 1
    %s6741 = scalar_lea.sflag [#allocation12], 1
    %6742 = vsyncpa %s6741, 1
    %6743 = vsyncpa [#allocation4], 1
    %s6744 = scalar_lea.sflag [#allocation4], 1
    %6745 = vsyncpa %s6744, 1

</llo_original>
